<compile_context>
chip_gen: v7x
topology: tpu7x:2x2x1
jax: 0.10.0
libtpu: 0.0.40
codegen_flags: <defaults>
</compile_context>

<pallas_src>
import functools
import math

import jax
import jax.numpy as jnp
from jax.experimental import pallas as pl
from jax.experimental.pallas import tpu as pltpu


# ---------------------------------------------------------------------------
# Pallas kernel 1: fused (W @ A) + bias (+ residual) (+ ReLU), transposed layout
# ---------------------------------------------------------------------------
def _conv_matmul_kernel(apply_relu, has_res, w_ref, b_ref, a_ref, *rest):
    if has_res:
        r_ref, o_ref = rest
    else:
        (o_ref,) = rest
    acc = jnp.dot(w_ref[...], a_ref[...], preferred_element_type=jnp.float32)
    acc = acc + b_ref[...]                      # folded-BN bias, f32, (N, 1) bcast
    if has_res:
        acc = acc + r_ref[...].astype(jnp.float32)
    if apply_relu:
        acc = jnp.maximum(acc, 0.0)
    o_ref[...] = acc.astype(o_ref.dtype)


def _pick_col_tile(R):
    """Column (lane) tile: multiple of 128 that divides R exactly, <= 512."""
    if R % 128 != 0 or R <= 512:
        return R                                # single full-width block
    for tc in range(512, 127, -128):
        if R % tc == 0:
            return tc
    return 128                                  # unreachable (128 | R)


def fused_matmul_t(w, bias, a, res=None, relu=True, out_dtype=jnp.bfloat16):
    """out(N, R) = maybe_relu(W(N, K) @ A(K, R) + bias (+ res)); tiled over R."""
    N, K = w.shape
    _, R = a.shape
    TC = _pick_col_tile(R)                      # exact division -> no padding
    grid = (R // TC,)

    in_specs = [
        pl.BlockSpec((N, K), lambda j: (0, 0)),   # full weight (BN scale folded)
        pl.BlockSpec((N, 1), lambda j: (0, 0)),   # folded BN bias (f32)
        pl.BlockSpec((K, TC), lambda j: (0, j)),  # patch-matrix column tile
    ]
    args = [w, bias, a]
    if res is not None:
        in_specs.append(pl.BlockSpec((N, TC), lambda j: (0, j)))
        args.append(res)

    return pl.pallas_call(
        functools.partial(_conv_matmul_kernel, relu, res is not None),
        out_shape=jax.ShapeDtypeStruct((N, R), out_dtype),
        grid=grid,
        in_specs=in_specs,
        out_specs=pl.BlockSpec((N, TC), lambda j: (0, j)),
        compiler_params=pltpu.CompilerParams(dimension_semantics=("parallel",)),
    )(*args)


# ---------------------------------------------------------------------------
# Pallas kernel 2: fused head = convbn5 + ReLU + flatten + 4 linear layers
# ---------------------------------------------------------------------------
def _head_kernel(*refs):
    c_ref, o_ref = refs[0], refs[-1]
    wb = refs[1:-1]
    n_layers = len(wb) // 2
    h = c_ref[...].astype(jnp.float32)          # (K, B)
    for i in range(n_layers):
        w = wb[2 * i][...].astype(jnp.float32)
        b = wb[2 * i + 1][...]
        h = jnp.dot(w, h, preferred_element_type=jnp.float32) + b
        if i < n_layers - 1:                    # ReLU after all but the last
            h = jnp.maximum(h, 0.0)
    o_ref[...] = h


def head_forward(feat, convbn5_p, linear_ps):
    """feat: (C, B, kh, kw) -> logits (B, num_classes); single pallas_call."""
    C, B, H, W = feat.shape
    w5, s5, b5 = convbn5_p
    kh, kw, cin, cout = w5.shape
    assert (H, W, C) == (kh, kw, cin)           # convbn5 collapses spatial to 1x1
    cols = jnp.transpose(feat, (2, 3, 0, 1)).reshape(kh * kw * cin, B)
    cols = cols.astype(jnp.float32)
    w5t = (jnp.transpose(w5, (3, 0, 1, 2)).reshape(cout, -1) * s5[:, None])
    args = [cols, w5t.astype(jnp.float32), b5.reshape(cout, 1)]
    for wl, bl in linear_ps:                    # wl: (fout, fin)
        args.append(wl)
        args.append(bl.reshape(-1, 1))
    num_classes = linear_ps[-1][0].shape[0]
    out = pl.pallas_call(
        _head_kernel,
        out_shape=jax.ShapeDtypeStruct((num_classes, B), jnp.float32),
    )(*args)
    return out.T                                # (B, num_classes)


# ---------------------------------------------------------------------------
# Plain-JAX glue: horizontal pad, im2col (transposed), conv wrapper
# ---------------------------------------------------------------------------
def horizontal_pad(x, pad=1):
    """(C, B, H, W): circular (wrap) pad W, zero pad H — matches horizontalPad()."""
    x = jnp.pad(x, ((0, 0), (0, 0), (0, 0), (pad, pad)), mode="wrap")
    x = jnp.pad(x, ((0, 0), (0, 0), (pad, pad), (0, 0)))
    return x


def _im2col_t(x, k, stride, padding):
    """x: (C, B, H, W) -> (k*k*C, B*Ho*Wo); rows (ky,kx,ci), cols (b,ho,wo)."""
    C, B, H, W = x.shape
    if padding:
        x = jnp.pad(x, ((0, 0), (0, 0), (padding, padding), (padding, padding)))
    Ho = (H + 2 * padding - k) // stride + 1
    Wo = (W + 2 * padding - k) // stride + 1
    taps = []
    for ky in range(k):
        for kx in range(k):
            taps.append(x[:, :, ky:ky + (Ho - 1) * stride + 1:stride,
                              kx:kx + (Wo - 1) * stride + 1:stride])
    cols = jnp.stack(taps, axis=0)              # (k*k, C, B, Ho, Wo)
    return cols.reshape(k * k * C, B * Ho * Wo), (B, Ho, Wo)


def conv_bn_act(x, w_hwio, scale, bias, stride=1, padding=0, relu=True, res=None):
    """Conv2d (no bias) + folded BN + optional residual + optional ReLU via Pallas."""
    kh, kw, cin, cout = w_hwio.shape
    cols, (B, Ho, Wo) = _im2col_t(x, kh, stride, padding)
    w_t = jnp.transpose(w_hwio, (3, 0, 1, 2)).reshape(cout, kh * kw * cin)
    w_t = (w_t * scale[:, None]).astype(jnp.bfloat16)        # fold BN scale into W
    b = bias.reshape(cout, 1).astype(jnp.float32)
    res_flat = None if res is None else res.reshape(cout, -1).astype(jnp.bfloat16)
    out = fused_matmul_t(w_t, b, cols.astype(jnp.bfloat16),
                         res=res_flat, relu=relu, out_dtype=jnp.bfloat16)
    return out.reshape(cout, B, Ho, Wo)


# ---------------------------------------------------------------------------
# Deterministic parameter construction (BN folded to scale/bias, eval mode)
# ---------------------------------------------------------------------------
def _conv_bn_params(key, cin, cout, k, with_conv_bias=False):
    ks = jax.random.split(key, 6)
    fan_in = k * k * cin
    w = jax.random.normal(ks[0], (k, k, cin, cout), jnp.float32) / math.sqrt(fan_in)
    gamma = jax.random.uniform(ks[1], (cout,), jnp.float32, 0.5, 1.5)
    beta = 0.1 * jax.random.normal(ks[2], (cout,), jnp.float32)
    mean = 0.1 * jax.random.normal(ks[3], (cout,), jnp.float32)
    var = jax.random.uniform(ks[4], (cout,), jnp.float32, 0.5, 1.5)
    scale = gamma / jnp.sqrt(var + 1e-5)
    bias = beta - mean * scale
    if with_conv_bias:                      # convbn5 has a conv bias; fold through BN
        cb = 0.1 * jax.random.normal(ks[5], (cout,), jnp.float32)
        bias = bias + cb * scale
    return w, scale, bias


def _linear_params(key, fin, fout):
    kw, kb = jax.random.split(key)
    w = jax.random.normal(kw, (fout, fin), jnp.float32) / math.sqrt(fin)
    b = 0.1 * jax.random.normal(kb, (fout,), jnp.float32)
    return w, b


def _basic_block_params(key, in_planes, planes, stride):
    """Canonical ResNet BasicBlock (expansion = 1)."""
    k1, k2, k3 = jax.random.split(key, 3)
    p = {
        "stride": stride,
        "conv1": _conv_bn_params(k1, in_planes, planes, 3),
        "conv2": _conv_bn_params(k2, planes, planes, 3),
    }
    if stride != 1 or in_planes != planes:
        p["shortcut"] = _conv_bn_params(k3, in_planes, planes, 1)
    return p


def init_params(key, in_planes=8, ch=16, num_blocks=(1, 1, 1, 1), num_classes=3):
    keys = jax.random.split(key, 6)
    params = {
        "conv1": _conv_bn_params(keys[0], in_planes, ch, 3),
        "conv2": _conv_bn_params(keys[1], ch, ch, 3),
    }
    blocks = [_basic_block_params(keys[2], ch, ch, 1)]          # layer0
    cur = ch
    planes_list = [ch, ch, ch, 2 * ch]                          # layer1..layer4
    bkeys = jax.random.split(keys[3], sum(num_blocks))
    bi = 0
    for planes, nb in zip(planes_list, num_blocks):
        for s in [2] + [1] * (nb - 1):
            blocks.append(_basic_block_params(bkeys[bi], cur, planes, s))
            cur = planes
            bi += 1
    params["blocks"] = blocks
    params["convbn5"] = _conv_bn_params(keys[4], 2 * ch, 2 * ch, 3, with_conv_bias=True)
    dims = [2 * ch, ch, ch // 2, ch // 4, num_classes]
    lkeys = jax.random.split(keys[5], 4)
    params["linears"] = [_linear_params(lkeys[i], dims[i], dims[i + 1]) for i in range(4)]
    return params


# ---------------------------------------------------------------------------
# Forward pass (mirrors ResNetHoriz.forward)
# ---------------------------------------------------------------------------
def _basic_block_forward(x, p):
    w1, s1, b1 = p["conv1"]
    out = conv_bn_act(x, w1, s1, b1, stride=p["stride"], padding=1, relu=True)
    if "shortcut" in p:
        ws, ss, bs = p["shortcut"]
        sc = conv_bn_act(x, ws, ss, bs, stride=p["stride"], padding=0, relu=False)
    else:
        sc = x
    w2, s2, b2 = p["conv2"]
    # bn2(conv2(out)) + shortcut, then ReLU — all fused in one kernel call.
    # NOTE: block convs use standard zero padding (BasicBlock semantics),
    # only the stem uses the circular horizontalPad, as in the reference.
    return conv_bn_act(out, w2, s2, b2, stride=1, padding=1, relu=True, res=sc)


def resnet_horiz_forward(x_nchw, params, pad=1):
    # NCHW -> internal (C, B, H, W) bf16 layout (channels in sublanes,
    # flattened B*H*W in lanes inside the kernels -> lane-dense I/O).
    x = jnp.transpose(x_nchw, (1, 0, 2, 3)).astype(jnp.bfloat16)
    w, s, b = params["conv1"]
    out = conv_bn_act(horizontal_pad(x, pad), w, s, b, stride=1, padding=0, relu=True)
    w, s, b = params["conv2"]
    out = conv_bn_act(horizontal_pad(out, pad), w, s, b, stride=1, padding=0, relu=True)
    for blk in params["blocks"]:
        out = _basic_block_forward(out, blk)
    # convbn5 + ReLU + flatten + linear1..4 in a single fused pallas_call.
    return head_forward(out, params["convbn5"], params["linears"])


# ---------------------------------------------------------------------------
if __name__ == "__main__":
    key = jax.random.PRNGKey(0)
    kx, kp = jax.random.split(key)

    # M = 48 so the four stride-2 stages give 48 -> 24 -> 12 -> 6 -> 3 and the
    # 3x3 convbn5 reduces spatial to 1x1, feeding linear1 with exactly 2*ch.
    B, Cin, M = 2, 8, 48
    ch, num_classes = 16, 3

    x = jax.random.normal(kx, (B, Cin, M, M), jnp.float32)
    params = init_params(kp, in_planes=Cin, ch=ch,
                         num_blocks=(1, 1, 1, 1), num_classes=num_classes)

    fwd = jax.jit(lambda inp: resnet_horiz_forward(inp, params))
    out = jax.block_until_ready(fwd(x))
    assert out.shape == (B, num_classes)
    assert bool(jnp.all(jnp.isfinite(out)))
    print("KERNEL_OK")
</pallas_src>

<mosaic_0001>
module attributes {stable_mosaic.version = 11 : i64} {
  func.func @_conv_matmul_kernel(%arg0: i32, %arg1: memref<16x72xbf16, #tpu.memory_space<vmem>>, %arg2: memref<16x1xf32, #tpu.memory_space<vmem>>, %arg3: memref<72x512xbf16, #tpu.memory_space<vmem>>, %arg4: memref<16x512xbf16, #tpu.memory_space<vmem>>) attributes {dimension_semantics = [#tpu.dimension_semantics<parallel>], iteration_bounds = array<i64: 9>, scalar_prefetch = 0 : i64, scratch_operands = 0 : i64, tpu.core_type = #tpu.core_type<tc>, window_params = [{pipeline_mode = #tpu.pipeline_mode<synchronous>, transform_indices = @transform_0, window_bounds = array<i64: 16, 72>}, {pipeline_mode = #tpu.pipeline_mode<synchronous>, transform_indices = @transform_1, window_bounds = array<i64: 16, 1>}, {transform_indices = @transform_2, window_bounds = array<i64: 72, 512>}, {transform_indices = @transform_3, window_bounds = array<i64: 16, 512>}]} {
    %c0 = arith.constant 0 : index
    %c0_0 = arith.constant 0 : index
    %0 = vector.load %arg1[%c0, %c0_0] : memref<16x72xbf16, #tpu.memory_space<vmem>>, vector<16x72xbf16>
    %c0_1 = arith.constant 0 : index
    %c0_2 = arith.constant 0 : index
    %1 = vector.load %arg3[%c0_1, %c0_2] : memref<72x512xbf16, #tpu.memory_space<vmem>>, vector<72x512xbf16>
    %cst = arith.constant dense<0.000000e+00> : vector<16x512xf32>
    %2 = tpu.matmul %0, %1, %cst {dimension_numbers = #tpu.dot_dimension_numbers<[1], [0], [0], [1], [0, 0, 1, 1], [], []>} : vector<16x72xbf16>, vector<72x512xbf16>, vector<16x512xf32> -> vector<16x512xf32>
    %c0_3 = arith.constant 0 : index
    %c0_4 = arith.constant 0 : index
    %3 = vector.load %arg2[%c0_3, %c0_4] : memref<16x1xf32, #tpu.memory_space<vmem>>, vector<16x1xf32>
    %4 = vector.broadcast %3 : vector<16x1xf32> to vector<16x512xf32>
    %5 = arith.addf %2, %4 : vector<16x512xf32>
    %cst_5 = arith.constant 0.000000e+00 : f32
    %6 = vector.broadcast %cst_5 : f32 to vector<16x512xf32>
    %7 = arith.maximumf %5, %6 : vector<16x512xf32>
    %8 = arith.truncf %7 : vector<16x512xf32> to vector<16x512xbf16>
    %c0_6 = arith.constant 0 : index
    %c0_7 = arith.constant 0 : index
    %9 = vector.load %arg4[%c0_6, %c0_7] : memref<16x512xbf16, #tpu.memory_space<vmem>>, vector<16x512xbf16>
    tpu.vector_store %arg4[%c0_6, %c0_7], %8 {strides = array<i32>} : memref<16x512xbf16, #tpu.memory_space<vmem>>, vector<16x512xbf16>,
    return
  }
  func.func @transform_0(%arg0: i32) -> (i32, i32) {
    %c0_i32 = arith.constant 0 : i32
    %c0_i32_0 = arith.constant 0 : i32
    %c0_i32_1 = arith.constant 0 : i32
    return %c0_i32, %c0_i32_0 : i32, i32
  }
  func.func @transform_1(%arg0: i32) -> (i32, i32) {
    %c0_i32 = arith.constant 0 : i32
    %c0_i32_0 = arith.constant 0 : i32
    %c0_i32_1 = arith.constant 0 : i32
    return %c0_i32, %c0_i32_0 : i32, i32
  }
  func.func @transform_2(%arg0: i32) -> (i32, i32) {
    %c0_i32 = arith.constant 0 : i32
    %c0_i32_0 = arith.constant 0 : i32
    return %c0_i32, %arg0 : i32, i32
  }
  func.func @transform_3(%arg0: i32) -> (i32, i32) {
    %c0_i32 = arith.constant 0 : i32
    %c0_i32_0 = arith.constant 0 : i32
    return %c0_i32, %arg0 : i32, i32
  }
}

module attributes {stable_mosaic.version = 11 : i64} {
  func.func @_conv_matmul_kernel(%arg0: i32, %arg1: memref<16x144xbf16, #tpu.memory_space<vmem>>, %arg2: memref<16x1xf32, #tpu.memory_space<vmem>>, %arg3: memref<144x512xbf16, #tpu.memory_space<vmem>>, %arg4: memref<16x512xbf16, #tpu.memory_space<vmem>>) attributes {dimension_semantics = [#tpu.dimension_semantics<parallel>], iteration_bounds = array<i64: 9>, scalar_prefetch = 0 : i64, scratch_operands = 0 : i64, tpu.core_type = #tpu.core_type<tc>, window_params = [{pipeline_mode = #tpu.pipeline_mode<synchronous>, transform_indices = @transform_0, window_bounds = array<i64: 16, 144>}, {pipeline_mode = #tpu.pipeline_mode<synchronous>, transform_indices = @transform_1, window_bounds = array<i64: 16, 1>}, {transform_indices = @transform_2, window_bounds = array<i64: 144, 512>}, {transform_indices = @transform_3, window_bounds = array<i64: 16, 512>}]} {
    %c0 = arith.constant 0 : index
    %c0_0 = arith.constant 0 : index
    %0 = vector.load %arg1[%c0, %c0_0] : memref<16x144xbf16, #tpu.memory_space<vmem>>, vector<16x144xbf16>
    %c0_1 = arith.constant 0 : index
    %c0_2 = arith.constant 0 : index
    %1 = vector.load %arg3[%c0_1, %c0_2] : memref<144x512xbf16, #tpu.memory_space<vmem>>, vector<144x512xbf16>
    %cst = arith.constant dense<0.000000e+00> : vector<16x512xf32>
    %2 = tpu.matmul %0, %1, %cst {dimension_numbers = #tpu.dot_dimension_numbers<[1], [0], [0], [1], [0, 0, 1, 1], [], []>} : vector<16x144xbf16>, vector<144x512xbf16>, vector<16x512xf32> -> vector<16x512xf32>
    %c0_3 = arith.constant 0 : index
    %c0_4 = arith.constant 0 : index
    %3 = vector.load %arg2[%c0_3, %c0_4] : memref<16x1xf32, #tpu.memory_space<vmem>>, vector<16x1xf32>
    %4 = vector.broadcast %3 : vector<16x1xf32> to vector<16x512xf32>
    %5 = arith.addf %2, %4 : vector<16x512xf32>
    %cst_5 = arith.constant 0.000000e+00 : f32
    %6 = vector.broadcast %cst_5 : f32 to vector<16x512xf32>
    %7 = arith.maximumf %5, %6 : vector<16x512xf32>
    %8 = arith.truncf %7 : vector<16x512xf32> to vector<16x512xbf16>
    %c0_6 = arith.constant 0 : index
    %c0_7 = arith.constant 0 : index
    %9 = vector.load %arg4[%c0_6, %c0_7] : memref<16x512xbf16, #tpu.memory_space<vmem>>, vector<16x512xbf16>
    tpu.vector_store %arg4[%c0_6, %c0_7], %8 {strides = array<i32>} : memref<16x512xbf16, #tpu.memory_space<vmem>>, vector<16x512xbf16>,
    return
  }
  func.func @transform_0(%arg0: i32) -> (i32, i32) {
    %c0_i32 = arith.constant 0 : i32
    %c0_i32_0 = arith.constant 0 : i32
    %c0_i32_1 = arith.constant 0 : i32
    return %c0_i32, %c0_i32_0 : i32, i32
  }
  func.func @transform_1(%arg0: i32) -> (i32, i32) {
    %c0_i32 = arith.constant 0 : i32
    %c0_i32_0 = arith.constant 0 : i32
    %c0_i32_1 = arith.constant 0 : i32
    return %c0_i32, %c0_i32_0 : i32, i32
  }
  func.func @transform_2(%arg0: i32) -> (i32, i32) {
    %c0_i32 = arith.constant 0 : i32
    %c0_i32_0 = arith.constant 0 : i32
    return %c0_i32, %arg0 : i32, i32
  }
  func.func @transform_3(%arg0: i32) -> (i32, i32) {
    %c0_i32 = arith.constant 0 : i32
    %c0_i32_0 = arith.constant 0 : i32
    return %c0_i32, %arg0 : i32, i32
  }
}

module attributes {stable_mosaic.version = 11 : i64} {
  func.func @_conv_matmul_kernel(%arg0: i32, %arg1: memref<16x144xbf16, #tpu.memory_space<vmem>>, %arg2: memref<16x1xf32, #tpu.memory_space<vmem>>, %arg3: memref<144x512xbf16, #tpu.memory_space<vmem>>, %arg4: memref<16x512xbf16, #tpu.memory_space<vmem>>, %arg5: memref<16x512xbf16, #tpu.memory_space<vmem>>) attributes {dimension_semantics = [#tpu.dimension_semantics<parallel>], iteration_bounds = array<i64: 9>, scalar_prefetch = 0 : i64, scratch_operands = 0 : i64, tpu.core_type = #tpu.core_type<tc>, window_params = [{pipeline_mode = #tpu.pipeline_mode<synchronous>, transform_indices = @transform_0, window_bounds = array<i64: 16, 144>}, {pipeline_mode = #tpu.pipeline_mode<synchronous>, transform_indices = @transform_1, window_bounds = array<i64: 16, 1>}, {transform_indices = @transform_2, window_bounds = array<i64: 144, 512>}, {transform_indices = @transform_3, window_bounds = array<i64: 16, 512>}, {transform_indices = @transform_4, window_bounds = array<i64: 16, 512>}]} {
    %c0 = arith.constant 0 : index
    %c0_0 = arith.constant 0 : index
    %0 = vector.load %arg1[%c0, %c0_0] : memref<16x144xbf16, #tpu.memory_space<vmem>>, vector<16x144xbf16>
    %c0_1 = arith.constant 0 : index
    %c0_2 = arith.constant 0 : index
    %1 = vector.load %arg3[%c0_1, %c0_2] : memref<144x512xbf16, #tpu.memory_space<vmem>>, vector<144x512xbf16>
    %cst = arith.constant dense<0.000000e+00> : vector<16x512xf32>
    %2 = tpu.matmul %0, %1, %cst {dimension_numbers = #tpu.dot_dimension_numbers<[1], [0], [0], [1], [0, 0, 1, 1], [], []>} : vector<16x144xbf16>, vector<144x512xbf16>, vector<16x512xf32> -> vector<16x512xf32>
    %c0_3 = arith.constant 0 : index
    %c0_4 = arith.constant 0 : index
    %3 = vector.load %arg2[%c0_3, %c0_4] : memref<16x1xf32, #tpu.memory_space<vmem>>, vector<16x1xf32>
    %4 = vector.broadcast %3 : vector<16x1xf32> to vector<16x512xf32>
    %5 = arith.addf %2, %4 : vector<16x512xf32>
    %c0_5 = arith.constant 0 : index
    %c0_6 = arith.constant 0 : index
    %6 = vector.load %arg4[%c0_5, %c0_6] : memref<16x512xbf16, #tpu.memory_space<vmem>>, vector<16x512xbf16>
    %7 = arith.extf %6 : vector<16x512xbf16> to vector<16x512xf32>
    %8 = arith.addf %5, %7 : vector<16x512xf32>
    %cst_7 = arith.constant 0.000000e+00 : f32
    %9 = vector.broadcast %cst_7 : f32 to vector<16x512xf32>
    %10 = arith.maximumf %8, %9 : vector<16x512xf32>
    %11 = arith.truncf %10 : vector<16x512xf32> to vector<16x512xbf16>
    %c0_8 = arith.constant 0 : index
    %c0_9 = arith.constant 0 : index
    %12 = vector.load %arg5[%c0_8, %c0_9] : memref<16x512xbf16, #tpu.memory_space<vmem>>, vector<16x512xbf16>
    tpu.vector_store %arg5[%c0_8, %c0_9], %11 {strides = array<i32>} : memref<16x512xbf16, #tpu.memory_space<vmem>>, vector<16x512xbf16>,
    return
  }
  func.func @transform_0(%arg0: i32) -> (i32, i32) {
    %c0_i32 = arith.constant 0 : i32
    %c0_i32_0 = arith.constant 0 : i32
    %c0_i32_1 = arith.constant 0 : i32
    return %c0_i32, %c0_i32_0 : i32, i32
  }
  func.func @transform_1(%arg0: i32) -> (i32, i32) {
    %c0_i32 = arith.constant 0 : i32
    %c0_i32_0 = arith.constant 0 : i32
    %c0_i32_1 = arith.constant 0 : i32
    return %c0_i32, %c0_i32_0 : i32, i32
  }
  func.func @transform_2(%arg0: i32) -> (i32, i32) {
    %c0_i32 = arith.constant 0 : i32
    %c0_i32_0 = arith.constant 0 : i32
    return %c0_i32, %arg0 : i32, i32
  }
  func.func @transform_3(%arg0: i32) -> (i32, i32) {
    %c0_i32 = arith.constant 0 : i32
    %c0_i32_0 = arith.constant 0 : i32
    return %c0_i32, %arg0 : i32, i32
  }
  func.func @transform_4(%arg0: i32) -> (i32, i32) {
    %c0_i32 = arith.constant 0 : i32
    %c0_i32_0 = arith.constant 0 : i32
    return %c0_i32, %arg0 : i32, i32
  }
}

module attributes {stable_mosaic.version = 11 : i64} {
  func.func @_conv_matmul_kernel(%arg0: i32, %arg1: memref<16x144xbf16, #tpu.memory_space<vmem>>, %arg2: memref<16x1xf32, #tpu.memory_space<vmem>>, %arg3: memref<144x384xbf16, #tpu.memory_space<vmem>>, %arg4: memref<16x384xbf16, #tpu.memory_space<vmem>>) attributes {dimension_semantics = [#tpu.dimension_semantics<parallel>], iteration_bounds = array<i64: 3>, scalar_prefetch = 0 : i64, scratch_operands = 0 : i64, tpu.core_type = #tpu.core_type<tc>, window_params = [{pipeline_mode = #tpu.pipeline_mode<synchronous>, transform_indices = @transform_0, window_bounds = array<i64: 16, 144>}, {pipeline_mode = #tpu.pipeline_mode<synchronous>, transform_indices = @transform_1, window_bounds = array<i64: 16, 1>}, {transform_indices = @transform_2, window_bounds = array<i64: 144, 384>}, {transform_indices = @transform_3, window_bounds = array<i64: 16, 384>}]} {
    %c0 = arith.constant 0 : index
    %c0_0 = arith.constant 0 : index
    %0 = vector.load %arg1[%c0, %c0_0] : memref<16x144xbf16, #tpu.memory_space<vmem>>, vector<16x144xbf16>
    %c0_1 = arith.constant 0 : index
    %c0_2 = arith.constant 0 : index
    %1 = vector.load %arg3[%c0_1, %c0_2] : memref<144x384xbf16, #tpu.memory_space<vmem>>, vector<144x384xbf16>
    %cst = arith.constant dense<0.000000e+00> : vector<16x384xf32>
    %2 = tpu.matmul %0, %1, %cst {dimension_numbers = #tpu.dot_dimension_numbers<[1], [0], [0], [1], [0, 0, 1, 1], [], []>} : vector<16x144xbf16>, vector<144x384xbf16>, vector<16x384xf32> -> vector<16x384xf32>
    %c0_3 = arith.constant 0 : index
    %c0_4 = arith.constant 0 : index
    %3 = vector.load %arg2[%c0_3, %c0_4] : memref<16x1xf32, #tpu.memory_space<vmem>>, vector<16x1xf32>
    %4 = vector.broadcast %3 : vector<16x1xf32> to vector<16x384xf32>
    %5 = arith.addf %2, %4 : vector<16x384xf32>
    %cst_5 = arith.constant 0.000000e+00 : f32
    %6 = vector.broadcast %cst_5 : f32 to vector<16x384xf32>
    %7 = arith.maximumf %5, %6 : vector<16x384xf32>
    %8 = arith.truncf %7 : vector<16x384xf32> to vector<16x384xbf16>
    %c0_6 = arith.constant 0 : index
    %c0_7 = arith.constant 0 : index
    %9 = vector.load %arg4[%c0_6, %c0_7] : memref<16x384xbf16, #tpu.memory_space<vmem>>, vector<16x384xbf16>
    tpu.vector_store %arg4[%c0_6, %c0_7], %8 {strides = array<i32>} : memref<16x384xbf16, #tpu.memory_space<vmem>>, vector<16x384xbf16>,
    return
  }
  func.func @transform_0(%arg0: i32) -> (i32, i32) {
    %c0_i32 = arith.constant 0 : i32
    %c0_i32_0 = arith.constant 0 : i32
    %c0_i32_1 = arith.constant 0 : i32
    return %c0_i32, %c0_i32_0 : i32, i32
  }
  func.func @transform_1(%arg0: i32) -> (i32, i32) {
    %c0_i32 = arith.constant 0 : i32
    %c0_i32_0 = arith.constant 0 : i32
    %c0_i32_1 = arith.constant 0 : i32
    return %c0_i32, %c0_i32_0 : i32, i32
  }
  func.func @transform_2(%arg0: i32) -> (i32, i32) {
    %c0_i32 = arith.constant 0 : i32
    %c0_i32_0 = arith.constant 0 : i32
    return %c0_i32, %arg0 : i32, i32
  }
  func.func @transform_3(%arg0: i32) -> (i32, i32) {
    %c0_i32 = arith.constant 0 : i32
    %c0_i32_0 = arith.constant 0 : i32
    return %c0_i32, %arg0 : i32, i32
  }
}

module attributes {stable_mosaic.version = 11 : i64} {
  func.func @_conv_matmul_kernel(%arg0: i32, %arg1: memref<16x16xbf16, #tpu.memory_space<vmem>>, %arg2: memref<16x1xf32, #tpu.memory_space<vmem>>, %arg3: memref<16x384xbf16, #tpu.memory_space<vmem>>, %arg4: memref<16x384xbf16, #tpu.memory_space<vmem>>) attributes {dimension_semantics = [#tpu.dimension_semantics<parallel>], iteration_bounds = array<i64: 3>, scalar_prefetch = 0 : i64, scratch_operands = 0 : i64, tpu.core_type = #tpu.core_type<tc>, window_params = [{pipeline_mode = #tpu.pipeline_mode<synchronous>, transform_indices = @transform_0, window_bounds = array<i64: 16, 16>}, {pipeline_mode = #tpu.pipeline_mode<synchronous>, transform_indices = @transform_1, window_bounds = array<i64: 16, 1>}, {transform_indices = @transform_2, window_bounds = array<i64: 16, 384>}, {transform_indices = @transform_3, window_bounds = array<i64: 16, 384>}]} {
    %c0 = arith.constant 0 : index
    %c0_0 = arith.constant 0 : index
    %0 = vector.load %arg1[%c0, %c0_0] : memref<16x16xbf16, #tpu.memory_space<vmem>>, vector<16x16xbf16>
    %c0_1 = arith.constant 0 : index
    %c0_2 = arith.constant 0 : index
    %1 = vector.load %arg3[%c0_1, %c0_2] : memref<16x384xbf16, #tpu.memory_space<vmem>>, vector<16x384xbf16>
    %cst = arith.constant dense<0.000000e+00> : vector<16x384xf32>
    %2 = tpu.matmul %0, %1, %cst {dimension_numbers = #tpu.dot_dimension_numbers<[1], [0], [0], [1], [0, 0, 1, 1], [], []>} : vector<16x16xbf16>, vector<16x384xbf16>, vector<16x384xf32> -> vector<16x384xf32>
    %c0_3 = arith.constant 0 : index
    %c0_4 = arith.constant 0 : index
    %3 = vector.load %arg2[%c0_3, %c0_4] : memref<16x1xf32, #tpu.memory_space<vmem>>, vector<16x1xf32>
    %4 = vector.broadcast %3 : vector<16x1xf32> to vector<16x384xf32>
    %5 = arith.addf %2, %4 : vector<16x384xf32>
    %6 = arith.truncf %5 : vector<16x384xf32> to vector<16x384xbf16>
    %c0_5 = arith.constant 0 : index
    %c0_6 = arith.constant 0 : index
    %7 = vector.load %arg4[%c0_5, %c0_6] : memref<16x384xbf16, #tpu.memory_space<vmem>>, vector<16x384xbf16>
    tpu.vector_store %arg4[%c0_5, %c0_6], %6 {strides = array<i32>} : memref<16x384xbf16, #tpu.memory_space<vmem>>, vector<16x384xbf16>,
    return
  }
  func.func @transform_0(%arg0: i32) -> (i32, i32) {
    %c0_i32 = arith.constant 0 : i32
    %c0_i32_0 = arith.constant 0 : i32
    %c0_i32_1 = arith.constant 0 : i32
    return %c0_i32, %c0_i32_0 : i32, i32
  }
  func.func @transform_1(%arg0: i32) -> (i32, i32) {
    %c0_i32 = arith.constant 0 : i32
    %c0_i32_0 = arith.constant 0 : i32
    %c0_i32_1 = arith.constant 0 : i32
    return %c0_i32, %c0_i32_0 : i32, i32
  }
  func.func @transform_2(%arg0: i32) -> (i32, i32) {
    %c0_i32 = arith.constant 0 : i32
    %c0_i32_0 = arith.constant 0 : i32
    return %c0_i32, %arg0 : i32, i32
  }
  func.func @transform_3(%arg0: i32) -> (i32, i32) {
    %c0_i32 = arith.constant 0 : i32
    %c0_i32_0 = arith.constant 0 : i32
    return %c0_i32, %arg0 : i32, i32
  }
}

module attributes {stable_mosaic.version = 11 : i64} {
  func.func @_conv_matmul_kernel(%arg0: i32, %arg1: memref<16x144xbf16, #tpu.memory_space<vmem>>, %arg2: memref<16x1xf32, #tpu.memory_space<vmem>>, %arg3: memref<144x384xbf16, #tpu.memory_space<vmem>>, %arg4: memref<16x384xbf16, #tpu.memory_space<vmem>>, %arg5: memref<16x384xbf16, #tpu.memory_space<vmem>>) attributes {dimension_semantics = [#tpu.dimension_semantics<parallel>], iteration_bounds = array<i64: 3>, scalar_prefetch = 0 : i64, scratch_operands = 0 : i64, tpu.core_type = #tpu.core_type<tc>, window_params = [{pipeline_mode = #tpu.pipeline_mode<synchronous>, transform_indices = @transform_0, window_bounds = array<i64: 16, 144>}, {pipeline_mode = #tpu.pipeline_mode<synchronous>, transform_indices = @transform_1, window_bounds = array<i64: 16, 1>}, {transform_indices = @transform_2, window_bounds = array<i64: 144, 384>}, {transform_indices = @transform_3, window_bounds = array<i64: 16, 384>}, {transform_indices = @transform_4, window_bounds = array<i64: 16, 384>}]} {
    %c0 = arith.constant 0 : index
    %c0_0 = arith.constant 0 : index
    %0 = vector.load %arg1[%c0, %c0_0] : memref<16x144xbf16, #tpu.memory_space<vmem>>, vector<16x144xbf16>
    %c0_1 = arith.constant 0 : index
    %c0_2 = arith.constant 0 : index
    %1 = vector.load %arg3[%c0_1, %c0_2] : memref<144x384xbf16, #tpu.memory_space<vmem>>, vector<144x384xbf16>
    %cst = arith.constant dense<0.000000e+00> : vector<16x384xf32>
    %2 = tpu.matmul %0, %1, %cst {dimension_numbers = #tpu.dot_dimension_numbers<[1], [0], [0], [1], [0, 0, 1, 1], [], []>} : vector<16x144xbf16>, vector<144x384xbf16>, vector<16x384xf32> -> vector<16x384xf32>
    %c0_3 = arith.constant 0 : index
    %c0_4 = arith.constant 0 : index
    %3 = vector.load %arg2[%c0_3, %c0_4] : memref<16x1xf32, #tpu.memory_space<vmem>>, vector<16x1xf32>
    %4 = vector.broadcast %3 : vector<16x1xf32> to vector<16x384xf32>
    %5 = arith.addf %2, %4 : vector<16x384xf32>
    %c0_5 = arith.constant 0 : index
    %c0_6 = arith.constant 0 : index
    %6 = vector.load %arg4[%c0_5, %c0_6] : memref<16x384xbf16, #tpu.memory_space<vmem>>, vector<16x384xbf16>
    %7 = arith.extf %6 : vector<16x384xbf16> to vector<16x384xf32>
    %8 = arith.addf %5, %7 : vector<16x384xf32>
    %cst_7 = arith.constant 0.000000e+00 : f32
    %9 = vector.broadcast %cst_7 : f32 to vector<16x384xf32>
    %10 = arith.maximumf %8, %9 : vector<16x384xf32>
    %11 = arith.truncf %10 : vector<16x384xf32> to vector<16x384xbf16>
    %c0_8 = arith.constant 0 : index
    %c0_9 = arith.constant 0 : index
    %12 = vector.load %arg5[%c0_8, %c0_9] : memref<16x384xbf16, #tpu.memory_space<vmem>>, vector<16x384xbf16>
    tpu.vector_store %arg5[%c0_8, %c0_9], %11 {strides = array<i32>} : memref<16x384xbf16, #tpu.memory_space<vmem>>, vector<16x384xbf16>,
    return
  }
  func.func @transform_0(%arg0: i32) -> (i32, i32) {
    %c0_i32 = arith.constant 0 : i32
    %c0_i32_0 = arith.constant 0 : i32
    %c0_i32_1 = arith.constant 0 : i32
    return %c0_i32, %c0_i32_0 : i32, i32
  }
  func.func @transform_1(%arg0: i32) -> (i32, i32) {
    %c0_i32 = arith.constant 0 : i32
    %c0_i32_0 = arith.constant 0 : i32
    %c0_i32_1 = arith.constant 0 : i32
    return %c0_i32, %c0_i32_0 : i32, i32
  }
  func.func @transform_2(%arg0: i32) -> (i32, i32) {
    %c0_i32 = arith.constant 0 : i32
    %c0_i32_0 = arith.constant 0 : i32
    return %c0_i32, %arg0 : i32, i32
  }
  func.func @transform_3(%arg0: i32) -> (i32, i32) {
    %c0_i32 = arith.constant 0 : i32
    %c0_i32_0 = arith.constant 0 : i32
    return %c0_i32, %arg0 : i32, i32
  }
  func.func @transform_4(%arg0: i32) -> (i32, i32) {
    %c0_i32 = arith.constant 0 : i32
    %c0_i32_0 = arith.constant 0 : i32
    return %c0_i32, %arg0 : i32, i32
  }
}

module attributes {stable_mosaic.version = 11 : i64} {
  func.func @_conv_matmul_kernel(%arg0: i32, %arg1: memref<16x144xbf16, #tpu.memory_space<vmem>>, %arg2: memref<16x1xf32, #tpu.memory_space<vmem>>, %arg3: memref<144x288xbf16, #tpu.memory_space<vmem>>, %arg4: memref<16x288xbf16, #tpu.memory_space<vmem>>) attributes {dimension_semantics = [#tpu.dimension_semantics<parallel>], iteration_bounds = array<i64: 1>, scalar_prefetch = 0 : i64, scratch_operands = 0 : i64, tpu.core_type = #tpu.core_type<tc>, window_params = [{pipeline_mode = #tpu.pipeline_mode<synchronous>, transform_indices = @transform_0, window_bounds = array<i64: 16, 144>}, {pipeline_mode = #tpu.pipeline_mode<synchronous>, transform_indices = @transform_1, window_bounds = array<i64: 16, 1>}, {transform_indices = @transform_2, window_bounds = array<i64: 144, 288>}, {transform_indices = @transform_3, window_bounds = array<i64: 16, 288>}]} {
    %c0 = arith.constant 0 : index
    %c0_0 = arith.constant 0 : index
    %0 = vector.load %arg1[%c0, %c0_0] : memref<16x144xbf16, #tpu.memory_space<vmem>>, vector<16x144xbf16>
    %c0_1 = arith.constant 0 : index
    %c0_2 = arith.constant 0 : index
    %1 = vector.load %arg3[%c0_1, %c0_2] : memref<144x288xbf16, #tpu.memory_space<vmem>>, vector<144x288xbf16>
    %cst = arith.constant dense<0.000000e+00> : vector<16x288xf32>
    %2 = tpu.matmul %0, %1, %cst {dimension_numbers = #tpu.dot_dimension_numbers<[1], [0], [0], [1], [0, 0, 1, 1], [], []>} : vector<16x144xbf16>, vector<144x288xbf16>, vector<16x288xf32> -> vector<16x288xf32>
    %c0_3 = arith.constant 0 : index
    %c0_4 = arith.constant 0 : index
    %3 = vector.load %arg2[%c0_3, %c0_4] : memref<16x1xf32, #tpu.memory_space<vmem>>, vector<16x1xf32>
    %4 = vector.broadcast %3 : vector<16x1xf32> to vector<16x288xf32>
    %5 = arith.addf %2, %4 : vector<16x288xf32>
    %cst_5 = arith.constant 0.000000e+00 : f32
    %6 = vector.broadcast %cst_5 : f32 to vector<16x288xf32>
    %7 = arith.maximumf %5, %6 : vector<16x288xf32>
    %8 = arith.truncf %7 : vector<16x288xf32> to vector<16x288xbf16>
    %c0_6 = arith.constant 0 : index
    %c0_7 = arith.constant 0 : index
    %9 = vector.load %arg4[%c0_6, %c0_7] : memref<16x288xbf16, #tpu.memory_space<vmem>>, vector<16x288xbf16>
    tpu.vector_store %arg4[%c0_6, %c0_7], %8 {strides = array<i32>} : memref<16x288xbf16, #tpu.memory_space<vmem>>, vector<16x288xbf16>,
    return
  }
  func.func @transform_0(%arg0: i32) -> (i32, i32) {
    %c0_i32 = arith.constant 0 : i32
    %c0_i32_0 = arith.constant 0 : i32
    %c0_i32_1 = arith.constant 0 : i32
    return %c0_i32, %c0_i32_0 : i32, i32
  }
  func.func @transform_1(%arg0: i32) -> (i32, i32) {
    %c0_i32 = arith.constant 0 : i32
    %c0_i32_0 = arith.constant 0 : i32
    %c0_i32_1 = arith.constant 0 : i32
    return %c0_i32, %c0_i32_0 : i32, i32
  }
  func.func @transform_2(%arg0: i32) -> (i32, i32) {
    %c0_i32 = arith.constant 0 : i32
    %c0_i32_0 = arith.constant 0 : i32
    return %c0_i32, %arg0 : i32, i32
  }
  func.func @transform_3(%arg0: i32) -> (i32, i32) {
    %c0_i32 = arith.constant 0 : i32
    %c0_i32_0 = arith.constant 0 : i32
    return %c0_i32, %arg0 : i32, i32
  }
}

module attributes {stable_mosaic.version = 11 : i64} {
  func.func @_conv_matmul_kernel(%arg0: i32, %arg1: memref<16x16xbf16, #tpu.memory_space<vmem>>, %arg2: memref<16x1xf32, #tpu.memory_space<vmem>>, %arg3: memref<16x288xbf16, #tpu.memory_space<vmem>>, %arg4: memref<16x288xbf16, #tpu.memory_space<vmem>>) attributes {dimension_semantics = [#tpu.dimension_semantics<parallel>], iteration_bounds = array<i64: 1>, scalar_prefetch = 0 : i64, scratch_operands = 0 : i64, tpu.core_type = #tpu.core_type<tc>, window_params = [{pipeline_mode = #tpu.pipeline_mode<synchronous>, transform_indices = @transform_0, window_bounds = array<i64: 16, 16>}, {pipeline_mode = #tpu.pipeline_mode<synchronous>, transform_indices = @transform_1, window_bounds = array<i64: 16, 1>}, {transform_indices = @transform_2, window_bounds = array<i64: 16, 288>}, {transform_indices = @transform_3, window_bounds = array<i64: 16, 288>}]} {
    %c0 = arith.constant 0 : index
    %c0_0 = arith.constant 0 : index
    %0 = vector.load %arg1[%c0, %c0_0] : memref<16x16xbf16, #tpu.memory_space<vmem>>, vector<16x16xbf16>
    %c0_1 = arith.constant 0 : index
    %c0_2 = arith.constant 0 : index
    %1 = vector.load %arg3[%c0_1, %c0_2] : memref<16x288xbf16, #tpu.memory_space<vmem>>, vector<16x288xbf16>
    %cst = arith.constant dense<0.000000e+00> : vector<16x288xf32>
    %2 = tpu.matmul %0, %1, %cst {dimension_numbers = #tpu.dot_dimension_numbers<[1], [0], [0], [1], [0, 0, 1, 1], [], []>} : vector<16x16xbf16>, vector<16x288xbf16>, vector<16x288xf32> -> vector<16x288xf32>
    %c0_3 = arith.constant 0 : index
    %c0_4 = arith.constant 0 : index
    %3 = vector.load %arg2[%c0_3, %c0_4] : memref<16x1xf32, #tpu.memory_space<vmem>>, vector<16x1xf32>
    %4 = vector.broadcast %3 : vector<16x1xf32> to vector<16x288xf32>
    %5 = arith.addf %2, %4 : vector<16x288xf32>
    %6 = arith.truncf %5 : vector<16x288xf32> to vector<16x288xbf16>
    %c0_5 = arith.constant 0 : index
    %c0_6 = arith.constant 0 : index
    %7 = vector.load %arg4[%c0_5, %c0_6] : memref<16x288xbf16, #tpu.memory_space<vmem>>, vector<16x288xbf16>
    tpu.vector_store %arg4[%c0_5, %c0_6], %6 {strides = array<i32>} : memref<16x288xbf16, #tpu.memory_space<vmem>>, vector<16x288xbf16>,
    return
  }
  func.func @transform_0(%arg0: i32) -> (i32, i32) {
    %c0_i32 = arith.constant 0 : i32
    %c0_i32_0 = arith.constant 0 : i32
    %c0_i32_1 = arith.constant 0 : i32
    return %c0_i32, %c0_i32_0 : i32, i32
  }
  func.func @transform_1(%arg0: i32) -> (i32, i32) {
    %c0_i32 = arith.constant 0 : i32
    %c0_i32_0 = arith.constant 0 : i32
    %c0_i32_1 = arith.constant 0 : i32
    return %c0_i32, %c0_i32_0 : i32, i32
  }
  func.func @transform_2(%arg0: i32) -> (i32, i32) {
    %c0_i32 = arith.constant 0 : i32
    %c0_i32_0 = arith.constant 0 : i32
    return %c0_i32, %arg0 : i32, i32
  }
  func.func @transform_3(%arg0: i32) -> (i32, i32) {
    %c0_i32 = arith.constant 0 : i32
    %c0_i32_0 = arith.constant 0 : i32
    return %c0_i32, %arg0 : i32, i32
  }
}

module attributes {stable_mosaic.version = 11 : i64} {
  func.func @_conv_matmul_kernel(%arg0: i32, %arg1: memref<16x144xbf16, #tpu.memory_space<vmem>>, %arg2: memref<16x1xf32, #tpu.memory_space<vmem>>, %arg3: memref<144x288xbf16, #tpu.memory_space<vmem>>, %arg4: memref<16x288xbf16, #tpu.memory_space<vmem>>, %arg5: memref<16x288xbf16, #tpu.memory_space<vmem>>) attributes {dimension_semantics = [#tpu.dimension_semantics<parallel>], iteration_bounds = array<i64: 1>, scalar_prefetch = 0 : i64, scratch_operands = 0 : i64, tpu.core_type = #tpu.core_type<tc>, window_params = [{pipeline_mode = #tpu.pipeline_mode<synchronous>, transform_indices = @transform_0, window_bounds = array<i64: 16, 144>}, {pipeline_mode = #tpu.pipeline_mode<synchronous>, transform_indices = @transform_1, window_bounds = array<i64: 16, 1>}, {transform_indices = @transform_2, window_bounds = array<i64: 144, 288>}, {transform_indices = @transform_3, window_bounds = array<i64: 16, 288>}, {transform_indices = @transform_4, window_bounds = array<i64: 16, 288>}]} {
    %c0 = arith.constant 0 : index
    %c0_0 = arith.constant 0 : index
    %0 = vector.load %arg1[%c0, %c0_0] : memref<16x144xbf16, #tpu.memory_space<vmem>>, vector<16x144xbf16>
    %c0_1 = arith.constant 0 : index
    %c0_2 = arith.constant 0 : index
    %1 = vector.load %arg3[%c0_1, %c0_2] : memref<144x288xbf16, #tpu.memory_space<vmem>>, vector<144x288xbf16>
    %cst = arith.constant dense<0.000000e+00> : vector<16x288xf32>
    %2 = tpu.matmul %0, %1, %cst {dimension_numbers = #tpu.dot_dimension_numbers<[1], [0], [0], [1], [0, 0, 1, 1], [], []>} : vector<16x144xbf16>, vector<144x288xbf16>, vector<16x288xf32> -> vector<16x288xf32>
    %c0_3 = arith.constant 0 : index
    %c0_4 = arith.constant 0 : index
    %3 = vector.load %arg2[%c0_3, %c0_4] : memref<16x1xf32, #tpu.memory_space<vmem>>, vector<16x1xf32>
    %4 = vector.broadcast %3 : vector<16x1xf32> to vector<16x288xf32>
    %5 = arith.addf %2, %4 : vector<16x288xf32>
    %c0_5 = arith.constant 0 : index
    %c0_6 = arith.constant 0 : index
    %6 = vector.load %arg4[%c0_5, %c0_6] : memref<16x288xbf16, #tpu.memory_space<vmem>>, vector<16x288xbf16>
    %7 = arith.extf %6 : vector<16x288xbf16> to vector<16x288xf32>
    %8 = arith.addf %5, %7 : vector<16x288xf32>
    %cst_7 = arith.constant 0.000000e+00 : f32
    %9 = vector.broadcast %cst_7 : f32 to vector<16x288xf32>
    %10 = arith.maximumf %8, %9 : vector<16x288xf32>
    %11 = arith.truncf %10 : vector<16x288xf32> to vector<16x288xbf16>
    %c0_8 = arith.constant 0 : index
    %c0_9 = arith.constant 0 : index
    %12 = vector.load %arg5[%c0_8, %c0_9] : memref<16x288xbf16, #tpu.memory_space<vmem>>, vector<16x288xbf16>
    tpu.vector_store %arg5[%c0_8, %c0_9], %11 {strides = array<i32>} : memref<16x288xbf16, #tpu.memory_space<vmem>>, vector<16x288xbf16>,
    return
  }
  func.func @transform_0(%arg0: i32) -> (i32, i32) {
    %c0_i32 = arith.constant 0 : i32
    %c0_i32_0 = arith.constant 0 : i32
    %c0_i32_1 = arith.constant 0 : i32
    return %c0_i32, %c0_i32_0 : i32, i32
  }
  func.func @transform_1(%arg0: i32) -> (i32, i32) {
    %c0_i32 = arith.constant 0 : i32
    %c0_i32_0 = arith.constant 0 : i32
    %c0_i32_1 = arith.constant 0 : i32
    return %c0_i32, %c0_i32_0 : i32, i32
  }
  func.func @transform_2(%arg0: i32) -> (i32, i32) {
    %c0_i32 = arith.constant 0 : i32
    %c0_i32_0 = arith.constant 0 : i32
    return %c0_i32, %arg0 : i32, i32
  }
  func.func @transform_3(%arg0: i32) -> (i32, i32) {
    %c0_i32 = arith.constant 0 : i32
    %c0_i32_0 = arith.constant 0 : i32
    return %c0_i32, %arg0 : i32, i32
  }
  func.func @transform_4(%arg0: i32) -> (i32, i32) {
    %c0_i32 = arith.constant 0 : i32
    %c0_i32_0 = arith.constant 0 : i32
    return %c0_i32, %arg0 : i32, i32
  }
}

module attributes {stable_mosaic.version = 11 : i64} {
  func.func @_conv_matmul_kernel(%arg0: i32, %arg1: memref<16x144xbf16, #tpu.memory_space<vmem>>, %arg2: memref<16x1xf32, #tpu.memory_space<vmem>>, %arg3: memref<144x72xbf16, #tpu.memory_space<vmem>>, %arg4: memref<16x72xbf16, #tpu.memory_space<vmem>>) attributes {dimension_semantics = [#tpu.dimension_semantics<parallel>], iteration_bounds = array<i64: 1>, scalar_prefetch = 0 : i64, scratch_operands = 0 : i64, tpu.core_type = #tpu.core_type<tc>, window_params = [{pipeline_mode = #tpu.pipeline_mode<synchronous>, transform_indices = @transform_0, window_bounds = array<i64: 16, 144>}, {pipeline_mode = #tpu.pipeline_mode<synchronous>, transform_indices = @transform_1, window_bounds = array<i64: 16, 1>}, {transform_indices = @transform_2, window_bounds = array<i64: 144, 72>}, {transform_indices = @transform_3, window_bounds = array<i64: 16, 72>}]} {
    %c0 = arith.constant 0 : index
    %c0_0 = arith.constant 0 : index
    %0 = vector.load %arg1[%c0, %c0_0] : memref<16x144xbf16, #tpu.memory_space<vmem>>, vector<16x144xbf16>
    %c0_1 = arith.constant 0 : index
    %c0_2 = arith.constant 0 : index
    %1 = vector.load %arg3[%c0_1, %c0_2] : memref<144x72xbf16, #tpu.memory_space<vmem>>, vector<144x72xbf16>
    %cst = arith.constant dense<0.000000e+00> : vector<16x72xf32>
    %2 = tpu.matmul %0, %1, %cst {dimension_numbers = #tpu.dot_dimension_numbers<[1], [0], [0], [1], [0, 0, 1, 1], [], []>} : vector<16x144xbf16>, vector<144x72xbf16>, vector<16x72xf32> -> vector<16x72xf32>
    %c0_3 = arith.constant 0 : index
    %c0_4 = arith.constant 0 : index
    %3 = vector.load %arg2[%c0_3, %c0_4] : memref<16x1xf32, #tpu.memory_space<vmem>>, vector<16x1xf32>
    %4 = vector.broadcast %3 : vector<16x1xf32> to vector<16x72xf32>
    %5 = arith.addf %2, %4 : vector<16x72xf32>
    %cst_5 = arith.constant 0.000000e+00 : f32
    %6 = vector.broadcast %cst_5 : f32 to vector<16x72xf32>
    %7 = arith.maximumf %5, %6 : vector<16x72xf32>
    %8 = arith.truncf %7 : vector<16x72xf32> to vector<16x72xbf16>
    %c0_6 = arith.constant 0 : index
    %c0_7 = arith.constant 0 : index
    %9 = vector.load %arg4[%c0_6, %c0_7] : memref<16x72xbf16, #tpu.memory_space<vmem>>, vector<16x72xbf16>
    tpu.vector_store %arg4[%c0_6, %c0_7], %8 {strides = array<i32>} : memref<16x72xbf16, #tpu.memory_space<vmem>>, vector<16x72xbf16>,
    return
  }
  func.func @transform_0(%arg0: i32) -> (i32, i32) {
    %c0_i32 = arith.constant 0 : i32
    %c0_i32_0 = arith.constant 0 : i32
    %c0_i32_1 = arith.constant 0 : i32
    return %c0_i32, %c0_i32_0 : i32, i32
  }
  func.func @transform_1(%arg0: i32) -> (i32, i32) {
    %c0_i32 = arith.constant 0 : i32
    %c0_i32_0 = arith.constant 0 : i32
    %c0_i32_1 = arith.constant 0 : i32
    return %c0_i32, %c0_i32_0 : i32, i32
  }
  func.func @transform_2(%arg0: i32) -> (i32, i32) {
    %c0_i32 = arith.constant 0 : i32
    %c0_i32_0 = arith.constant 0 : i32
    return %c0_i32, %arg0 : i32, i32
  }
  func.func @transform_3(%arg0: i32) -> (i32, i32) {
    %c0_i32 = arith.constant 0 : i32
    %c0_i32_0 = arith.constant 0 : i32
    return %c0_i32, %arg0 : i32, i32
  }
}

module attributes {stable_mosaic.version = 11 : i64} {
  func.func @_conv_matmul_kernel(%arg0: i32, %arg1: memref<16x16xbf16, #tpu.memory_space<vmem>>, %arg2: memref<16x1xf32, #tpu.memory_space<vmem>>, %arg3: memref<16x72xbf16, #tpu.memory_space<vmem>>, %arg4: memref<16x72xbf16, #tpu.memory_space<vmem>>) attributes {dimension_semantics = [#tpu.dimension_semantics<parallel>], iteration_bounds = array<i64: 1>, scalar_prefetch = 0 : i64, scratch_operands = 0 : i64, tpu.core_type = #tpu.core_type<tc>, window_params = [{pipeline_mode = #tpu.pipeline_mode<synchronous>, transform_indices = @transform_0, window_bounds = array<i64: 16, 16>}, {pipeline_mode = #tpu.pipeline_mode<synchronous>, transform_indices = @transform_1, window_bounds = array<i64: 16, 1>}, {transform_indices = @transform_2, window_bounds = array<i64: 16, 72>}, {transform_indices = @transform_3, window_bounds = array<i64: 16, 72>}]} {
    %c0 = arith.constant 0 : index
    %c0_0 = arith.constant 0 : index
    %0 = vector.load %arg1[%c0, %c0_0] : memref<16x16xbf16, #tpu.memory_space<vmem>>, vector<16x16xbf16>
    %c0_1 = arith.constant 0 : index
    %c0_2 = arith.constant 0 : index
    %1 = vector.load %arg3[%c0_1, %c0_2] : memref<16x72xbf16, #tpu.memory_space<vmem>>, vector<16x72xbf16>
    %cst = arith.constant dense<0.000000e+00> : vector<16x72xf32>
    %2 = tpu.matmul %0, %1, %cst {dimension_numbers = #tpu.dot_dimension_numbers<[1], [0], [0], [1], [0, 0, 1, 1], [], []>} : vector<16x16xbf16>, vector<16x72xbf16>, vector<16x72xf32> -> vector<16x72xf32>
    %c0_3 = arith.constant 0 : index
    %c0_4 = arith.constant 0 : index
    %3 = vector.load %arg2[%c0_3, %c0_4] : memref<16x1xf32, #tpu.memory_space<vmem>>, vector<16x1xf32>
    %4 = vector.broadcast %3 : vector<16x1xf32> to vector<16x72xf32>
    %5 = arith.addf %2, %4 : vector<16x72xf32>
    %6 = arith.truncf %5 : vector<16x72xf32> to vector<16x72xbf16>
    %c0_5 = arith.constant 0 : index
    %c0_6 = arith.constant 0 : index
    %7 = vector.load %arg4[%c0_5, %c0_6] : memref<16x72xbf16, #tpu.memory_space<vmem>>, vector<16x72xbf16>
    tpu.vector_store %arg4[%c0_5, %c0_6], %6 {strides = array<i32>} : memref<16x72xbf16, #tpu.memory_space<vmem>>, vector<16x72xbf16>,
    return
  }
  func.func @transform_0(%arg0: i32) -> (i32, i32) {
    %c0_i32 = arith.constant 0 : i32
    %c0_i32_0 = arith.constant 0 : i32
    %c0_i32_1 = arith.constant 0 : i32
    return %c0_i32, %c0_i32_0 : i32, i32
  }
  func.func @transform_1(%arg0: i32) -> (i32, i32) {
    %c0_i32 = arith.constant 0 : i32
    %c0_i32_0 = arith.constant 0 : i32
    %c0_i32_1 = arith.constant 0 : i32
    return %c0_i32, %c0_i32_0 : i32, i32
  }
  func.func @transform_2(%arg0: i32) -> (i32, i32) {
    %c0_i32 = arith.constant 0 : i32
    %c0_i32_0 = arith.constant 0 : i32
    return %c0_i32, %arg0 : i32, i32
  }
  func.func @transform_3(%arg0: i32) -> (i32, i32) {
    %c0_i32 = arith.constant 0 : i32
    %c0_i32_0 = arith.constant 0 : i32
    return %c0_i32, %arg0 : i32, i32
  }
}

module attributes {stable_mosaic.version = 11 : i64} {
  func.func @_conv_matmul_kernel(%arg0: i32, %arg1: memref<16x144xbf16, #tpu.memory_space<vmem>>, %arg2: memref<16x1xf32, #tpu.memory_space<vmem>>, %arg3: memref<144x72xbf16, #tpu.memory_space<vmem>>, %arg4: memref<16x72xbf16, #tpu.memory_space<vmem>>, %arg5: memref<16x72xbf16, #tpu.memory_space<vmem>>) attributes {dimension_semantics = [#tpu.dimension_semantics<parallel>], iteration_bounds = array<i64: 1>, scalar_prefetch = 0 : i64, scratch_operands = 0 : i64, tpu.core_type = #tpu.core_type<tc>, window_params = [{pipeline_mode = #tpu.pipeline_mode<synchronous>, transform_indices = @transform_0, window_bounds = array<i64: 16, 144>}, {pipeline_mode = #tpu.pipeline_mode<synchronous>, transform_indices = @transform_1, window_bounds = array<i64: 16, 1>}, {transform_indices = @transform_2, window_bounds = array<i64: 144, 72>}, {transform_indices = @transform_3, window_bounds = array<i64: 16, 72>}, {transform_indices = @transform_4, window_bounds = array<i64: 16, 72>}]} {
    %c0 = arith.constant 0 : index
    %c0_0 = arith.constant 0 : index
    %0 = vector.load %arg1[%c0, %c0_0] : memref<16x144xbf16, #tpu.memory_space<vmem>>, vector<16x144xbf16>
    %c0_1 = arith.constant 0 : index
    %c0_2 = arith.constant 0 : index
    %1 = vector.load %arg3[%c0_1, %c0_2] : memref<144x72xbf16, #tpu.memory_space<vmem>>, vector<144x72xbf16>
    %cst = arith.constant dense<0.000000e+00> : vector<16x72xf32>
    %2 = tpu.matmul %0, %1, %cst {dimension_numbers = #tpu.dot_dimension_numbers<[1], [0], [0], [1], [0, 0, 1, 1], [], []>} : vector<16x144xbf16>, vector<144x72xbf16>, vector<16x72xf32> -> vector<16x72xf32>
    %c0_3 = arith.constant 0 : index
    %c0_4 = arith.constant 0 : index
    %3 = vector.load %arg2[%c0_3, %c0_4] : memref<16x1xf32, #tpu.memory_space<vmem>>, vector<16x1xf32>
    %4 = vector.broadcast %3 : vector<16x1xf32> to vector<16x72xf32>
    %5 = arith.addf %2, %4 : vector<16x72xf32>
    %c0_5 = arith.constant 0 : index
    %c0_6 = arith.constant 0 : index
    %6 = vector.load %arg4[%c0_5, %c0_6] : memref<16x72xbf16, #tpu.memory_space<vmem>>, vector<16x72xbf16>
    %7 = arith.extf %6 : vector<16x72xbf16> to vector<16x72xf32>
    %8 = arith.addf %5, %7 : vector<16x72xf32>
    %cst_7 = arith.constant 0.000000e+00 : f32
    %9 = vector.broadcast %cst_7 : f32 to vector<16x72xf32>
    %10 = arith.maximumf %8, %9 : vector<16x72xf32>
    %11 = arith.truncf %10 : vector<16x72xf32> to vector<16x72xbf16>
    %c0_8 = arith.constant 0 : index
    %c0_9 = arith.constant 0 : index
    %12 = vector.load %arg5[%c0_8, %c0_9] : memref<16x72xbf16, #tpu.memory_space<vmem>>, vector<16x72xbf16>
    tpu.vector_store %arg5[%c0_8, %c0_9], %11 {strides = array<i32>} : memref<16x72xbf16, #tpu.memory_space<vmem>>, vector<16x72xbf16>,
    return
  }
  func.func @transform_0(%arg0: i32) -> (i32, i32) {
    %c0_i32 = arith.constant 0 : i32
    %c0_i32_0 = arith.constant 0 : i32
    %c0_i32_1 = arith.constant 0 : i32
    return %c0_i32, %c0_i32_0 : i32, i32
  }
  func.func @transform_1(%arg0: i32) -> (i32, i32) {
    %c0_i32 = arith.constant 0 : i32
    %c0_i32_0 = arith.constant 0 : i32
    %c0_i32_1 = arith.constant 0 : i32
    return %c0_i32, %c0_i32_0 : i32, i32
  }
  func.func @transform_2(%arg0: i32) -> (i32, i32) {
    %c0_i32 = arith.constant 0 : i32
    %c0_i32_0 = arith.constant 0 : i32
    return %c0_i32, %arg0 : i32, i32
  }
  func.func @transform_3(%arg0: i32) -> (i32, i32) {
    %c0_i32 = arith.constant 0 : i32
    %c0_i32_0 = arith.constant 0 : i32
    return %c0_i32, %arg0 : i32, i32
  }
  func.func @transform_4(%arg0: i32) -> (i32, i32) {
    %c0_i32 = arith.constant 0 : i32
    %c0_i32_0 = arith.constant 0 : i32
    return %c0_i32, %arg0 : i32, i32
  }
}

module attributes {stable_mosaic.version = 11 : i64} {
  func.func @_conv_matmul_kernel(%arg0: i32, %arg1: memref<32x144xbf16, #tpu.memory_space<vmem>>, %arg2: memref<32x1xf32, #tpu.memory_space<vmem>>, %arg3: memref<144x18xbf16, #tpu.memory_space<vmem>>, %arg4: memref<32x18xbf16, #tpu.memory_space<vmem>>) attributes {dimension_semantics = [#tpu.dimension_semantics<parallel>], iteration_bounds = array<i64: 1>, scalar_prefetch = 0 : i64, scratch_operands = 0 : i64, tpu.core_type = #tpu.core_type<tc>, window_params = [{pipeline_mode = #tpu.pipeline_mode<synchronous>, transform_indices = @transform_0, window_bounds = array<i64: 32, 144>}, {pipeline_mode = #tpu.pipeline_mode<synchronous>, transform_indices = @transform_1, window_bounds = array<i64: 32, 1>}, {transform_indices = @transform_2, window_bounds = array<i64: 144, 18>}, {transform_indices = @transform_3, window_bounds = array<i64: 32, 18>}]} {
    %c0 = arith.constant 0 : index
    %c0_0 = arith.constant 0 : index
    %0 = vector.load %arg1[%c0, %c0_0] : memref<32x144xbf16, #tpu.memory_space<vmem>>, vector<32x144xbf16>
    %c0_1 = arith.constant 0 : index
    %c0_2 = arith.constant 0 : index
    %1 = vector.load %arg3[%c0_1, %c0_2] : memref<144x18xbf16, #tpu.memory_space<vmem>>, vector<144x18xbf16>
    %cst = arith.constant dense<0.000000e+00> : vector<32x18xf32>
    %2 = tpu.matmul %0, %1, %cst {dimension_numbers = #tpu.dot_dimension_numbers<[1], [0], [0], [1], [0, 0, 1, 1], [], []>} : vector<32x144xbf16>, vector<144x18xbf16>, vector<32x18xf32> -> vector<32x18xf32>
    %c0_3 = arith.constant 0 : index
    %c0_4 = arith.constant 0 : index
    %3 = vector.load %arg2[%c0_3, %c0_4] : memref<32x1xf32, #tpu.memory_space<vmem>>, vector<32x1xf32>
    %4 = vector.broadcast %3 : vector<32x1xf32> to vector<32x18xf32>
    %5 = arith.addf %2, %4 : vector<32x18xf32>
    %cst_5 = arith.constant 0.000000e+00 : f32
    %6 = vector.broadcast %cst_5 : f32 to vector<32x18xf32>
    %7 = arith.maximumf %5, %6 : vector<32x18xf32>
    %8 = arith.truncf %7 : vector<32x18xf32> to vector<32x18xbf16>
    %c0_6 = arith.constant 0 : index
    %c0_7 = arith.constant 0 : index
    %9 = vector.load %arg4[%c0_6, %c0_7] : memref<32x18xbf16, #tpu.memory_space<vmem>>, vector<32x18xbf16>
    tpu.vector_store %arg4[%c0_6, %c0_7], %8 {strides = array<i32>} : memref<32x18xbf16, #tpu.memory_space<vmem>>, vector<32x18xbf16>,
    return
  }
  func.func @transform_0(%arg0: i32) -> (i32, i32) {
    %c0_i32 = arith.constant 0 : i32
    %c0_i32_0 = arith.constant 0 : i32
    %c0_i32_1 = arith.constant 0 : i32
    return %c0_i32, %c0_i32_0 : i32, i32
  }
  func.func @transform_1(%arg0: i32) -> (i32, i32) {
    %c0_i32 = arith.constant 0 : i32
    %c0_i32_0 = arith.constant 0 : i32
    %c0_i32_1 = arith.constant 0 : i32
    return %c0_i32, %c0_i32_0 : i32, i32
  }
  func.func @transform_2(%arg0: i32) -> (i32, i32) {
    %c0_i32 = arith.constant 0 : i32
    %c0_i32_0 = arith.constant 0 : i32
    return %c0_i32, %arg0 : i32, i32
  }
  func.func @transform_3(%arg0: i32) -> (i32, i32) {
    %c0_i32 = arith.constant 0 : i32
    %c0_i32_0 = arith.constant 0 : i32
    return %c0_i32, %arg0 : i32, i32
  }
}

module attributes {stable_mosaic.version = 11 : i64} {
  func.func @_conv_matmul_kernel(%arg0: i32, %arg1: memref<32x16xbf16, #tpu.memory_space<vmem>>, %arg2: memref<32x1xf32, #tpu.memory_space<vmem>>, %arg3: memref<16x18xbf16, #tpu.memory_space<vmem>>, %arg4: memref<32x18xbf16, #tpu.memory_space<vmem>>) attributes {dimension_semantics = [#tpu.dimension_semantics<parallel>], iteration_bounds = array<i64: 1>, scalar_prefetch = 0 : i64, scratch_operands = 0 : i64, tpu.core_type = #tpu.core_type<tc>, window_params = [{pipeline_mode = #tpu.pipeline_mode<synchronous>, transform_indices = @transform_0, window_bounds = array<i64: 32, 16>}, {pipeline_mode = #tpu.pipeline_mode<synchronous>, transform_indices = @transform_1, window_bounds = array<i64: 32, 1>}, {transform_indices = @transform_2, window_bounds = array<i64: 16, 18>}, {transform_indices = @transform_3, window_bounds = array<i64: 32, 18>}]} {
    %c0 = arith.constant 0 : index
    %c0_0 = arith.constant 0 : index
    %0 = vector.load %arg1[%c0, %c0_0] : memref<32x16xbf16, #tpu.memory_space<vmem>>, vector<32x16xbf16>
    %c0_1 = arith.constant 0 : index
    %c0_2 = arith.constant 0 : index
    %1 = vector.load %arg3[%c0_1, %c0_2] : memref<16x18xbf16, #tpu.memory_space<vmem>>, vector<16x18xbf16>
    %cst = arith.constant dense<0.000000e+00> : vector<32x18xf32>
    %2 = tpu.matmul %0, %1, %cst {dimension_numbers = #tpu.dot_dimension_numbers<[1], [0], [0], [1], [0, 0, 1, 1], [], []>} : vector<32x16xbf16>, vector<16x18xbf16>, vector<32x18xf32> -> vector<32x18xf32>
    %c0_3 = arith.constant 0 : index
    %c0_4 = arith.constant 0 : index
    %3 = vector.load %arg2[%c0_3, %c0_4] : memref<32x1xf32, #tpu.memory_space<vmem>>, vector<32x1xf32>
    %4 = vector.broadcast %3 : vector<32x1xf32> to vector<32x18xf32>
    %5 = arith.addf %2, %4 : vector<32x18xf32>
    %6 = arith.truncf %5 : vector<32x18xf32> to vector<32x18xbf16>
    %c0_5 = arith.constant 0 : index
    %c0_6 = arith.constant 0 : index
    %7 = vector.load %arg4[%c0_5, %c0_6] : memref<32x18xbf16, #tpu.memory_space<vmem>>, vector<32x18xbf16>
    tpu.vector_store %arg4[%c0_5, %c0_6], %6 {strides = array<i32>} : memref<32x18xbf16, #tpu.memory_space<vmem>>, vector<32x18xbf16>,
    return
  }
  func.func @transform_0(%arg0: i32) -> (i32, i32) {
    %c0_i32 = arith.constant 0 : i32
    %c0_i32_0 = arith.constant 0 : i32
    %c0_i32_1 = arith.constant 0 : i32
    return %c0_i32, %c0_i32_0 : i32, i32
  }
  func.func @transform_1(%arg0: i32) -> (i32, i32) {
    %c0_i32 = arith.constant 0 : i32
    %c0_i32_0 = arith.constant 0 : i32
    %c0_i32_1 = arith.constant 0 : i32
    return %c0_i32, %c0_i32_0 : i32, i32
  }
  func.func @transform_2(%arg0: i32) -> (i32, i32) {
    %c0_i32 = arith.constant 0 : i32
    %c0_i32_0 = arith.constant 0 : i32
    return %c0_i32, %arg0 : i32, i32
  }
  func.func @transform_3(%arg0: i32) -> (i32, i32) {
    %c0_i32 = arith.constant 0 : i32
    %c0_i32_0 = arith.constant 0 : i32
    return %c0_i32, %arg0 : i32, i32
  }
}

module attributes {stable_mosaic.version = 11 : i64} {
  func.func @_conv_matmul_kernel(%arg0: i32, %arg1: memref<32x288xbf16, #tpu.memory_space<vmem>>, %arg2: memref<32x1xf32, #tpu.memory_space<vmem>>, %arg3: memref<288x18xbf16, #tpu.memory_space<vmem>>, %arg4: memref<32x18xbf16, #tpu.memory_space<vmem>>, %arg5: memref<32x18xbf16, #tpu.memory_space<vmem>>) attributes {dimension_semantics = [#tpu.dimension_semantics<parallel>], iteration_bounds = array<i64: 1>, scalar_prefetch = 0 : i64, scratch_operands = 0 : i64, tpu.core_type = #tpu.core_type<tc>, window_params = [{pipeline_mode = #tpu.pipeline_mode<synchronous>, transform_indices = @transform_0, window_bounds = array<i64: 32, 288>}, {pipeline_mode = #tpu.pipeline_mode<synchronous>, transform_indices = @transform_1, window_bounds = array<i64: 32, 1>}, {transform_indices = @transform_2, window_bounds = array<i64: 288, 18>}, {transform_indices = @transform_3, window_bounds = array<i64: 32, 18>}, {transform_indices = @transform_4, window_bounds = array<i64: 32, 18>}]} {
    %c0 = arith.constant 0 : index
    %c0_0 = arith.constant 0 : index
    %0 = vector.load %arg1[%c0, %c0_0] : memref<32x288xbf16, #tpu.memory_space<vmem>>, vector<32x288xbf16>
    %c0_1 = arith.constant 0 : index
    %c0_2 = arith.constant 0 : index
    %1 = vector.load %arg3[%c0_1, %c0_2] : memref<288x18xbf16, #tpu.memory_space<vmem>>, vector<288x18xbf16>
    %cst = arith.constant dense<0.000000e+00> : vector<32x18xf32>
    %2 = tpu.matmul %0, %1, %cst {dimension_numbers = #tpu.dot_dimension_numbers<[1], [0], [0], [1], [0, 0, 1, 1], [], []>} : vector<32x288xbf16>, vector<288x18xbf16>, vector<32x18xf32> -> vector<32x18xf32>
    %c0_3 = arith.constant 0 : index
    %c0_4 = arith.constant 0 : index
    %3 = vector.load %arg2[%c0_3, %c0_4] : memref<32x1xf32, #tpu.memory_space<vmem>>, vector<32x1xf32>
    %4 = vector.broadcast %3 : vector<32x1xf32> to vector<32x18xf32>
    %5 = arith.addf %2, %4 : vector<32x18xf32>
    %c0_5 = arith.constant 0 : index
    %c0_6 = arith.constant 0 : index
    %6 = vector.load %arg4[%c0_5, %c0_6] : memref<32x18xbf16, #tpu.memory_space<vmem>>, vector<32x18xbf16>
    %7 = arith.extf %6 : vector<32x18xbf16> to vector<32x18xf32>
    %8 = arith.addf %5, %7 : vector<32x18xf32>
    %cst_7 = arith.constant 0.000000e+00 : f32
    %9 = vector.broadcast %cst_7 : f32 to vector<32x18xf32>
    %10 = arith.maximumf %8, %9 : vector<32x18xf32>
    %11 = arith.truncf %10 : vector<32x18xf32> to vector<32x18xbf16>
    %c0_8 = arith.constant 0 : index
    %c0_9 = arith.constant 0 : index
    %12 = vector.load %arg5[%c0_8, %c0_9] : memref<32x18xbf16, #tpu.memory_space<vmem>>, vector<32x18xbf16>
    tpu.vector_store %arg5[%c0_8, %c0_9], %11 {strides = array<i32>} : memref<32x18xbf16, #tpu.memory_space<vmem>>, vector<32x18xbf16>,
    return
  }
  func.func @transform_0(%arg0: i32) -> (i32, i32) {
    %c0_i32 = arith.constant 0 : i32
    %c0_i32_0 = arith.constant 0 : i32
    %c0_i32_1 = arith.constant 0 : i32
    return %c0_i32, %c0_i32_0 : i32, i32
  }
  func.func @transform_1(%arg0: i32) -> (i32, i32) {
    %c0_i32 = arith.constant 0 : i32
    %c0_i32_0 = arith.constant 0 : i32
    %c0_i32_1 = arith.constant 0 : i32
    return %c0_i32, %c0_i32_0 : i32, i32
  }
  func.func @transform_2(%arg0: i32) -> (i32, i32) {
    %c0_i32 = arith.constant 0 : i32
    %c0_i32_0 = arith.constant 0 : i32
    return %c0_i32, %arg0 : i32, i32
  }
  func.func @transform_3(%arg0: i32) -> (i32, i32) {
    %c0_i32 = arith.constant 0 : i32
    %c0_i32_0 = arith.constant 0 : i32
    return %c0_i32, %arg0 : i32, i32
  }
  func.func @transform_4(%arg0: i32) -> (i32, i32) {
    %c0_i32 = arith.constant 0 : i32
    %c0_i32_0 = arith.constant 0 : i32
    return %c0_i32, %arg0 : i32, i32
  }
}

module attributes {stable_mosaic.version = 11 : i64} {
  func.func @_head_kernel(%arg0: memref<288x2xf32, #tpu.memory_space<vmem>>, %arg1: memref<32x288xf32, #tpu.memory_space<vmem>>, %arg2: memref<32x1xf32, #tpu.memory_space<vmem>>, %arg3: memref<16x32xf32, #tpu.memory_space<vmem>>, %arg4: memref<16x1xf32, #tpu.memory_space<vmem>>, %arg5: memref<8x16xf32, #tpu.memory_space<vmem>>, %arg6: memref<8x1xf32, #tpu.memory_space<vmem>>, %arg7: memref<4x8xf32, #tpu.memory_space<vmem>>, %arg8: memref<4x1xf32, #tpu.memory_space<vmem>>, %arg9: memref<3x4xf32, #tpu.memory_space<vmem>>, %arg10: memref<3x1xf32, #tpu.memory_space<vmem>>, %arg11: memref<3x2xf32, #tpu.memory_space<vmem>>) attributes {dimension_semantics = [], scalar_prefetch = 0 : i64, scratch_operands = 0 : i64, tpu.core_type = #tpu.core_type<tc>} {
    %c0 = arith.constant 0 : index
    %c0_0 = arith.constant 0 : index
    %0 = vector.load %arg0[%c0, %c0_0] : memref<288x2xf32, #tpu.memory_space<vmem>>, vector<288x2xf32>
    %c0_1 = arith.constant 0 : index
    %c0_2 = arith.constant 0 : index
    %1 = vector.load %arg1[%c0_1, %c0_2] : memref<32x288xf32, #tpu.memory_space<vmem>>, vector<32x288xf32>
    %c0_3 = arith.constant 0 : index
    %c0_4 = arith.constant 0 : index
    %2 = vector.load %arg2[%c0_3, %c0_4] : memref<32x1xf32, #tpu.memory_space<vmem>>, vector<32x1xf32>
    %cst = arith.constant dense<0.000000e+00> : vector<32x2xf32>
    %3 = tpu.matmul %1, %0, %cst {dimension_numbers = #tpu.dot_dimension_numbers<[1], [0], [0], [1], [0, 0, 1, 1], [], []>} : vector<32x288xf32>, vector<288x2xf32>, vector<32x2xf32> -> vector<32x2xf32>
    %4 = vector.broadcast %2 : vector<32x1xf32> to vector<32x2xf32>
    %5 = arith.addf %3, %4 : vector<32x2xf32>
    %cst_5 = arith.constant 0.000000e+00 : f32
    %6 = vector.broadcast %cst_5 : f32 to vector<32x2xf32>
    %7 = arith.maximumf %5, %6 : vector<32x2xf32>
    %c0_6 = arith.constant 0 : index
    %c0_7 = arith.constant 0 : index
    %8 = vector.load %arg3[%c0_6, %c0_7] : memref<16x32xf32, #tpu.memory_space<vmem>>, vector<16x32xf32>
    %c0_8 = arith.constant 0 : index
    %c0_9 = arith.constant 0 : index
    %9 = vector.load %arg4[%c0_8, %c0_9] : memref<16x1xf32, #tpu.memory_space<vmem>>, vector<16x1xf32>
    %cst_10 = arith.constant dense<0.000000e+00> : vector<16x2xf32>
    %10 = tpu.matmul %8, %7, %cst_10 {dimension_numbers = #tpu.dot_dimension_numbers<[1], [0], [0], [1], [0, 0, 1, 1], [], []>} : vector<16x32xf32>, vector<32x2xf32>, vector<16x2xf32> -> vector<16x2xf32>
    %11 = vector.broadcast %9 : vector<16x1xf32> to vector<16x2xf32>
    %12 = arith.addf %10, %11 : vector<16x2xf32>
    %cst_11 = arith.constant 0.000000e+00 : f32
    %13 = vector.broadcast %cst_11 : f32 to vector<16x2xf32>
    %14 = arith.maximumf %12, %13 : vector<16x2xf32>
    %c0_12 = arith.constant 0 : index
    %c0_13 = arith.constant 0 : index
    %15 = vector.load %arg5[%c0_12, %c0_13] : memref<8x16xf32, #tpu.memory_space<vmem>>, vector<8x16xf32>
    %c0_14 = arith.constant 0 : index
    %c0_15 = arith.constant 0 : index
    %16 = vector.load %arg6[%c0_14, %c0_15] : memref<8x1xf32, #tpu.memory_space<vmem>>, vector<8x1xf32>
    %cst_16 = arith.constant dense<0.000000e+00> : vector<8x2xf32>
    %17 = tpu.matmul %15, %14, %cst_16 {dimension_numbers = #tpu.dot_dimension_numbers<[1], [0], [0], [1], [0, 0, 1, 1], [], []>} : vector<8x16xf32>, vector<16x2xf32>, vector<8x2xf32> -> vector<8x2xf32>
    %18 = vector.broadcast %16 : vector<8x1xf32> to vector<8x2xf32>
    %19 = arith.addf %17, %18 : vector<8x2xf32>
    %cst_17 = arith.constant 0.000000e+00 : f32
    %20 = vector.broadcast %cst_17 : f32 to vector<8x2xf32>
    %21 = arith.maximumf %19, %20 : vector<8x2xf32>
    %c0_18 = arith.constant 0 : index
    %c0_19 = arith.constant 0 : index
    %22 = vector.load %arg7[%c0_18, %c0_19] : memref<4x8xf32, #tpu.memory_space<vmem>>, vector<4x8xf32>
    %c0_20 = arith.constant 0 : index
    %c0_21 = arith.constant 0 : index
    %23 = vector.load %arg8[%c0_20, %c0_21] : memref<4x1xf32, #tpu.memory_space<vmem>>, vector<4x1xf32>
    %cst_22 = arith.constant dense<0.000000e+00> : vector<4x2xf32>
    %24 = tpu.matmul %22, %21, %cst_22 {dimension_numbers = #tpu.dot_dimension_numbers<[1], [0], [0], [1], [0, 0, 1, 1], [], []>} : vector<4x8xf32>, vector<8x2xf32>, vector<4x2xf32> -> vector<4x2xf32>
    %25 = vector.broadcast %23 : vector<4x1xf32> to vector<4x2xf32>
    %26 = arith.addf %24, %25 : vector<4x2xf32>
    %cst_23 = arith.constant 0.000000e+00 : f32
    %27 = vector.broadcast %cst_23 : f32 to vector<4x2xf32>
    %28 = arith.maximumf %26, %27 : vector<4x2xf32>
    %c0_24 = arith.constant 0 : index
    %c0_25 = arith.constant 0 : index
    %29 = vector.load %arg9[%c0_24, %c0_25] : memref<3x4xf32, #tpu.memory_space<vmem>>, vector<3x4xf32>
    %c0_26 = arith.constant 0 : index
    %c0_27 = arith.constant 0 : index
    %30 = vector.load %arg10[%c0_26, %c0_27] : memref<3x1xf32, #tpu.memory_space<vmem>>, vector<3x1xf32>
    %cst_28 = arith.constant dense<0.000000e+00> : vector<3x2xf32>
    %31 = tpu.matmul %29, %28, %cst_28 {dimension_numbers = #tpu.dot_dimension_numbers<[1], [0], [0], [1], [0, 0, 1, 1], [], []>} : vector<3x4xf32>, vector<4x2xf32>, vector<3x2xf32> -> vector<3x2xf32>
    %32 = vector.broadcast %30 : vector<3x1xf32> to vector<3x2xf32>
    %33 = arith.addf %31, %32 : vector<3x2xf32>
    %c0_29 = arith.constant 0 : index
    %c0_30 = arith.constant 0 : index
    %34 = vector.load %arg11[%c0_29, %c0_30] : memref<3x2xf32, #tpu.memory_space<vmem>>, vector<3x2xf32>
    tpu.vector_store %arg11[%c0_29, %c0_30], %33 {strides = array<i32>} : memref<3x2xf32, #tpu.memory_space<vmem>>, vector<3x2xf32>,
    return
  }
}

</mosaic_0001>

<llo_original>
// kernel: _lambda_.17
$region0: #{_lambda_.17}
  #allocation0 [shape = 'u32[]', space=smem, size = 0x4, offset = 0x4, fixed_abs, tag = 'smem constant byte address 0x4 - core index']
  #allocation1 [shape = 'u32[144,128]{1,0:T(1,128)}', space=vmem, size = 0x12000, scoped, tag = 'internal scratch']
  %s0 = inlined_call_operand.vmem [shape: bf16[16,72], index: 0, kind: input, shape index: {}]
  %s1 = inlined_call_operand.vmem [shape: f32[16,1], index: 1, kind: input, shape index: {}]
  %s2 = inlined_call_operand.vmem [shape: bf16[72,4608], index: 2, kind: input, shape index: {}]
  %s3 = inlined_call_operand.vmem [shape: bf16[16,4608], index: 3, kind: output, shape index: {}]
  %s4 = sld [smem:[#allocation0]]
  $region87: #{_lambda_.17} parent=0
    _
  %s6 = ssub.s32 1, %s4
  %s7 = scalar_select 0, %s6, %s4
  $region1: #{_lambda_.17} parent=0
    #allocation2 [shape = 'u8[147456]{0}', space=vmem, size = 0x24000, scoped, tag = 'input window, operand 2']
    #allocation3 [shape = 'u8[32768]{0}', space=vmem, size = 0x8000, scoped, tag = 'output window, operand 0']
    loop: start=0, step=1, limit=11
    $region2: #{_lambda_.17} parent=1 // loop_pre_header
      _
    $region3: #{_lambda_.17} parent=1 // loop_header
      %s9 = sphi 0, %s13
      %p10 = scmp.ge.s32.totalorder %s9, 11
      %s17 = sphi 0, %s17
      %s19 = sphi 0, %s17
      %s20 = sphi 0, %s19
      %s34 = sphi 0, %s20
      %s38 = sphi 0, %s38
      %s40 = sphi 0, %s38
      %s41 = sphi 0, %s40
      %s55 = sphi 0, %s41
      %s61 = sphi 0, %s63
      %s64 = sphi 0, %s61
      %s65 = sphi 0, %s64
      %s81 = sphi 0, %s65
      %s87 = sphi 0, %s89
      %s90 = sphi 0, %s87
      %s91 = sphi 0, %s90
      %s107 = sphi 0, %s91
    $region4: #{_lambda_.17} parent=1 // loop_header_branch
      %12 = sbr.rel (%p10) target = $region8
    $region5: #{_lambda_.17} parent=1 // loop_body
      %s14 = ssub.s32 %s9, 1
      %s15 = ssub.s32 %s9, 2
      %s16 = sadd.s32 %s9, 1
      %s18 = sadd.s32 %s17, 1
      %p21 = scmp.eq.s32.totalorder %s9, 8
      %p22 = scmp.ne.s32.totalorder %s17, %s19
      %p23 = scmp.eq.s32.totalorder %s9, 0
      %p24 = por %p22, %p23
      %p25 = scmp.ne.s32.totalorder %s17, %s19
      %p26 = scmp.eq.s32.totalorder %s14, 8
      %p27 = por %p25, %p26
      %p28 = scmp.ne.s32.totalorder %s19, %s20
      %p29 = scmp.eq.s32.totalorder %s14, 0
      %p30 = por %p28, %p29
      %p31 = scmp.ne.s32.totalorder %s19, %s20
      %p32 = scmp.eq.s32.totalorder %s15, 8
      %p33 = por %p31, %p32
      %p35 = scmp.ne.s32.totalorder %s20, %s34
      %p36 = scmp.eq.s32.totalorder %s15, 0
      %p37 = por %p35, %p36
      %s39 = sadd.s32 %s38, 1
      %p42 = scmp.eq.s32.totalorder %s9, 8
      %p43 = scmp.ne.s32.totalorder %s38, %s40
      %p44 = scmp.eq.s32.totalorder %s9, 0
      %p45 = por %p43, %p44
      %p46 = scmp.ne.s32.totalorder %s38, %s40
      %p47 = scmp.eq.s32.totalorder %s14, 8
      %p48 = por %p46, %p47
      %p49 = scmp.ne.s32.totalorder %s40, %s41
      %p50 = scmp.eq.s32.totalorder %s14, 0
      %p51 = por %p49, %p50
      %p52 = scmp.ne.s32.totalorder %s40, %s41
      %p53 = scmp.eq.s32.totalorder %s15, 8
      %p54 = por %p52, %p53
      %p56 = scmp.ne.s32.totalorder %s41, %s55
      %p57 = scmp.eq.s32.totalorder %s15, 0
      %p58 = por %p56, %p57
      %s59 = ssub.s32 %s9, %s16
      %p60 = scmp.eq.s32.totalorder %s59, 0
      %s62 = sadd.s32 %s61, 1
      %s63 = scalar_select %p60, %s61, %s62
      %p66 = pneg %p60
      %p67 = scmp.eq.s32.totalorder %s9, 8
      %p68 = por %p66, %p67
      %p69 = scmp.ne.s32.totalorder %s61, %s64
      %p70 = scmp.eq.s32.totalorder %s9, 0
      %p71 = por %p69, %p70
      %p72 = scmp.ne.s32.totalorder %s61, %s64
      %p73 = scmp.eq.s32.totalorder %s14, 8
      %p74 = por %p72, %p73
      %p75 = scmp.ne.s32.totalorder %s64, %s65
      %p76 = scmp.eq.s32.totalorder %s14, 0
      %p77 = por %p75, %p76
      %p78 = scmp.ne.s32.totalorder %s64, %s65
      %p79 = scmp.eq.s32.totalorder %s15, 8
      %p80 = por %p78, %p79
      %p82 = scmp.ne.s32.totalorder %s65, %s81
      %p83 = scmp.eq.s32.totalorder %s15, 0
      %p84 = por %p82, %p83
      %s85 = ssub.s32 %s9, %s16
      %p86 = scmp.eq.s32.totalorder %s85, 0
      %s88 = sadd.s32 %s87, 1
      %s89 = scalar_select %p86, %s87, %s88
      %p92 = pneg %p86
      %p93 = scmp.eq.s32.totalorder %s9, 8
      %p94 = por %p92, %p93
      %p95 = scmp.ne.s32.totalorder %s87, %s90
      %p96 = scmp.eq.s32.totalorder %s9, 0
      %p97 = por %p95, %p96
      %p98 = scmp.ne.s32.totalorder %s87, %s90
      %p99 = scmp.eq.s32.totalorder %s14, 8
      %p100 = por %p98, %p99
      %p101 = scmp.ne.s32.totalorder %s90, %s91
      %p102 = scmp.eq.s32.totalorder %s14, 0
      %p103 = por %p101, %p102
      %p104 = scmp.ne.s32.totalorder %s90, %s91
      %p105 = scmp.eq.s32.totalorder %s15, 8
      %p106 = por %p104, %p105
      %p108 = scmp.ne.s32.totalorder %s91, %s107
      %p109 = scmp.eq.s32.totalorder %s15, 0
      %p110 = por %p108, %p109
      %p111 = scmp.le.s32.totalorder 1, %s9
      %p112 = scmp.lt.s32.totalorder %s9, 10
      %p113 = pnand %p111, %p112
      %p114 = pneg %p113
      // Predicated region
      $region9: #{_lambda_.17} parent=5 // pred_check
        _
      $region10: #{_lambda_.17} parent=5 // pred_check_branch
        %116 = sbr.rel (%p113) target = $region12
      $region11: #{_lambda_.17} parent=5 // pred_region
        %s117 = ssub.s32 %s9, 1
        // Predicated region
        $region13: #{_lambda_.17} parent=11 // pred_check
          %p118 = pneg %p30
        $region14: #{_lambda_.17} parent=11 // pred_check_branch
          %120 = sbr.rel (%p118) target = $region16
        $region15: #{_lambda_.17} parent=11 // pred_region
          _
        $region16: #{_lambda_.17} parent=11 // pred_fallthru
          _
        // Predicated region
        $region17: #{_lambda_.17} parent=11 // pred_check
          %p121 = pneg %p51
        $region18: #{_lambda_.17} parent=11 // pred_check_branch
          %123 = sbr.rel (%p121) target = $region20
        $region19: #{_lambda_.17} parent=11 // pred_region
          _
        $region20: #{_lambda_.17} parent=11 // pred_fallthru
          _
      $region12: #{_lambda_.17} parent=5 // pred_fallthru
        _
      %p124 = scmp.lt.s32.totalorder %s9, 9
      // Predicated region
      $region21: #{_lambda_.17} parent=5 // pred_check
        %p125 = pneg %p124
      $region22: #{_lambda_.17} parent=5 // pred_check_branch
        %127 = sbr.rel (%p125) target = $region24
      $region23: #{_lambda_.17} parent=5 // pred_region
        // Predicated region
        $region25: #{_lambda_.17} parent=23 // pred_check
          %p128 = pneg %p71
        $region26: #{_lambda_.17} parent=23 // pred_check_branch
          %130 = sbr.rel (%p128) target = $region28
        $region27: #{_lambda_.17} parent=23 // pred_region
          %s131 = sand.u32 %s61, 1
          %s132 = sand.u32 %s61, 1
          %s133 = smul.addr %s132, 144
          %s134 = scalar_lea.vmem [#allocation2], %s133
          %s135 = smul.u32 4, %s9
          %s136 = smul.addr %s135, 4
          %s137 = scalar_lea.vmem %s2, %s136
          // Predicated region
          $region29: #{_lambda_.17} parent=27 // pred_check
            _
          $region30: #{_lambda_.17} parent=27 // pred_check_branch
            %139 = sbr.rel (0) target = $region32
          $region31: #{_lambda_.17} parent=27 // pred_region
            // Predicated region
            $region33: #{_lambda_.17} parent=31 // pred_check
              _
            $region34: #{_lambda_.17} parent=31 // pred_check_branch
              %141 = sbr.rel (0) target = $region36
            $region35: #{_lambda_.17} parent=31 // pred_region
              loop: start=0, step=1, limit=1
              $region37: #{_lambda_.17} parent=35 // loop_pre_header
                _
              $region38: #{_lambda_.17} parent=35 // loop_header
                %s143 = sphi 0, %s147
                %p144 = scmp.ge.s32.totalorder %s143, 1
                %s148 = sphi %s137, %s137
                %s149 = sphi %s134, %s134
              $region39: #{_lambda_.17} parent=35 // loop_header_branch
                %146 = sbr.rel (%p144) target = $region43
              $region40: #{_lambda_.17} parent=35 // loop_body
                %v150 = vld [vmem:[%s148] sm:$0xff]
                %151 = vst [vmem:[%s149] sm:$0xff] %v150
                %v152 = vld [vmem:[%s148 + $0x8] sm:$0xff]
                %153 = vst [vmem:[%s149 + $0x8] sm:$0xff] %v152
                %v154 = vld [vmem:[%s148 + $0x90] sm:$0xff]
                %155 = vst [vmem:[%s149 + $0x10] sm:$0xff] %v154
                %v156 = vld [vmem:[%s148 + $0x98] sm:$0xff]
                %157 = vst [vmem:[%s149 + $0x18] sm:$0xff] %v156
                %v158 = vld [vmem:[%s148 + $0x120] sm:$0xff]
                %159 = vst [vmem:[%s149 + $0x20] sm:$0xff] %v158
                %v160 = vld [vmem:[%s148 + $0x128] sm:$0xff]
                %161 = vst [vmem:[%s149 + $0x28] sm:$0xff] %v160
                %v162 = vld [vmem:[%s148 + $0x1b0] sm:$0xff]
                %163 = vst [vmem:[%s149 + $0x30] sm:$0xff] %v162
                %v164 = vld [vmem:[%s148 + $0x1b8] sm:$0xff]
                %165 = vst [vmem:[%s149 + $0x38] sm:$0xff] %v164
                %v166 = vld [vmem:[%s148 + $0x240] sm:$0xff]
                %167 = vst [vmem:[%s149 + $0x40] sm:$0xff] %v166
                %v168 = vld [vmem:[%s148 + $0x248] sm:$0xff]
                %169 = vst [vmem:[%s149 + $0x48] sm:$0xff] %v168
                %v170 = vld [vmem:[%s148 + $0x2d0] sm:$0xff]
                %171 = vst [vmem:[%s149 + $0x50] sm:$0xff] %v170
                %v172 = vld [vmem:[%s148 + $0x2d8] sm:$0xff]
                %173 = vst [vmem:[%s149 + $0x58] sm:$0xff] %v172
                %v174 = vld [vmem:[%s148 + $0x360] sm:$0xff]
                %175 = vst [vmem:[%s149 + $0x60] sm:$0xff] %v174
                %v176 = vld [vmem:[%s148 + $0x368] sm:$0xff]
                %177 = vst [vmem:[%s149 + $0x68] sm:$0xff] %v176
                %v178 = vld [vmem:[%s148 + $0x3f0] sm:$0xff]
                %179 = vst [vmem:[%s149 + $0x70] sm:$0xff] %v178
                %v180 = vld [vmem:[%s148 + $0x3f8] sm:$0xff]
                %181 = vst [vmem:[%s149 + $0x78] sm:$0xff] %v180
                %v182 = vld [vmem:[%s148 + $0x480] sm:$0xff]
                %183 = vst [vmem:[%s149 + $0x80] sm:$0xff] %v182
                %v184 = vld [vmem:[%s148 + $0x488] sm:$0xff]
                %185 = vst [vmem:[%s149 + $0x88] sm:$0xff] %v184
              $region41: #{_lambda_.17} parent=35 // loop_footer
                %s147 = sadd.s32 1, %s143
              $region42: #{_lambda_.17} parent=35 // loop_footer_branch
                %142 = sbr.rel target = $region38
              $region43: #{_lambda_.17} parent=35 // loop_exit
                _
            $region36: #{_lambda_.17} parent=31 // pred_fallthru
              _
            // Predicated region
            $region44: #{_lambda_.17} parent=31 // pred_check
              _
            $region45: #{_lambda_.17} parent=31 // pred_check_branch
              %187 = sbr.rel target = $region47
            $region46: #{_lambda_.17} parent=31 // pred_region
              _
            $region47: #{_lambda_.17} parent=31 // pred_fallthru
              _
          $region32: #{_lambda_.17} parent=27 // pred_fallthru
            _
          %188 = vnop
        $region28: #{_lambda_.17} parent=23 // pred_fallthru
          _
      $region24: #{_lambda_.17} parent=5 // pred_fallthru
        _
      %p189 = scmp.le.s32.totalorder 1, %s9
      %p190 = scmp.lt.s32.totalorder %s9, 10
      %p191 = pnand %p189, %p190
      %p192 = pneg %p191
      // Predicated region
      $region48: #{_lambda_.17} parent=5 // pred_check
        _
      $region49: #{_lambda_.17} parent=5 // pred_check_branch
        %194 = sbr.rel (%p191) target = $region51
      $region50: #{_lambda_.17} parent=5 // pred_region
        %s195 = ssub.s32 %s9, 1
        %s196 = sand.u32 %s64, 1
        %s197 = sand.u32 %s64, 1
        %s198 = smul.addr %s197, 144
        %s199 = scalar_lea.vmem [#allocation2], %s198
        // Predicated region
        $region52: #{_lambda_.17} parent=50 // pred_check
          %p200 = pneg %p77
        $region53: #{_lambda_.17} parent=50 // pred_check_branch
          %202 = sbr.rel (%p200) target = $region55
        $region54: #{_lambda_.17} parent=50 // pred_region
          _
        $region55: #{_lambda_.17} parent=50 // pred_fallthru
          _
        %p203 = pneg %p30
        %p204 = pneg %p27
        %p205 = pneg %p51
        %p206 = pneg %p48
        %s207 = sand.u32 %s64, 1
        %s208 = sand.u32 %s64, 1
        %s209 = smul.addr %s208, 144
        %s210 = scalar_lea.vmem [#allocation2], %s209
        %p211 = pneg %p77
        %p212 = pneg %p74
        %p213 = pneg %p103
        %p214 = pneg %p100
        %s215 = sand.u32 %s90, 1
        %s216 = sand.u32 %s90, 1
        %s217 = smul.addr %s216, 32
        %s218 = scalar_lea.vmem [#allocation3], %s217
        %s219 = smul.u32 4, %s14
        %s220 = smul.u32 4, %s14
        %v222 = vld [vmem:[%s0] sm:$0xf]
        %v223 = vld [vmem:[%s0 + $0x4] sm:$0xf]
        %v224 = vld [vmem:[%s199] sm:$0xff]
        %v225 = vld [vmem:[%s199 + $0x8] sm:$0xff]
        %v226 = vld [vmem:[%s199 + $0x10] sm:$0xff]
        %v227 = vld [vmem:[%s199 + $0x18] sm:$0xff]
        %v228 = vld [vmem:[%s199 + $0x20] sm:$0xff]
        %v229 = vld [vmem:[%s199 + $0x28] sm:$0xff]
        %v230 = vld [vmem:[%s199 + $0x30] sm:$0xff]
        %v231 = vld [vmem:[%s199 + $0x38] sm:$0xff]
        %v232 = vld [vmem:[%s199 + $0x40] sm:$0xff]
        %v233 = vld [vmem:[%s199 + $0x48] sm:$0xff]
        %v234 = vld [vmem:[%s199 + $0x50] sm:$0xff]
        %v235 = vld [vmem:[%s199 + $0x58] sm:$0xff]
        %v236 = vld [vmem:[%s199 + $0x60] sm:$0xff]
        %v237 = vld [vmem:[%s199 + $0x68] sm:$0xff]
        %v238 = vld [vmem:[%s199 + $0x70] sm:$0xff]
        %v239 = vld [vmem:[%s199 + $0x78] sm:$0xff]
        %v240 = vld [vmem:[%s199 + $0x80] sm:$0xff]
        %v241 = vld [vmem:[%s199 + $0x88] sm:$0xff]
        %v242 = vld [vmem:[%s1] sm:$0xff]
        %v243 = vld [vmem:[%s1 + $0x8] sm:$0xff]
        %245 = vset.pattern.permute.xlu0 0
        %246 = vperm.xlu0 %245, %v242
        %v247 = vpop.permute.xlu0 %246
        %250 = vset.pattern.permute.xlu0 0
        %251 = vperm.xlu0 %250, %v243
        %v252 = vpop.permute.xlu0 %251
        %v256 = vunpack.c.l.b16 %v222
        %v257 = vunpack.c.l.b16 %v223
        %v258 = vpack.c.b16 %v257, %v256
        %v277 = vunpack.c.l.b16 %v224
        %v278 = vunpack.c.h.b16 %v224
        %v279 = vunpack.c.l.b16 %v225
        %v280 = vunpack.c.h.b16 %v225
        %v281 = vunpack.c.l.b16 %v226
        %v282 = vunpack.c.h.b16 %v226
        %v283 = vunpack.c.l.b16 %v227
        %v284 = vunpack.c.h.b16 %v227
        %v285 = vunpack.c.l.b16 %v228
        %v286 = vunpack.c.h.b16 %v228
        %v287 = vunpack.c.l.b16 %v229
        %v288 = vunpack.c.h.b16 %v229
        %v289 = vunpack.c.l.b16 %v230
        %v290 = vunpack.c.h.b16 %v230
        %v291 = vunpack.c.l.b16 %v231
        %v292 = vunpack.c.h.b16 %v231
        %v293 = vunpack.c.l.b16 %v232
        %v294 = vunpack.c.h.b16 %v232
        %v295 = vunpack.c.l.b16 %v233
        %v296 = vunpack.c.h.b16 %v233
        %v297 = vunpack.c.l.b16 %v234
        %v298 = vunpack.c.h.b16 %v234
        %v299 = vunpack.c.l.b16 %v235
        %v300 = vunpack.c.h.b16 %v235
        %v301 = vunpack.c.l.b16 %v236
        %v302 = vunpack.c.h.b16 %v236
        %v303 = vunpack.c.l.b16 %v237
        %v304 = vunpack.c.h.b16 %v237
        %v305 = vunpack.c.l.b16 %v238
        %v306 = vunpack.c.h.b16 %v238
        %v307 = vunpack.c.l.b16 %v239
        %v308 = vunpack.c.h.b16 %v239
        %v309 = vunpack.c.l.b16 %v240
        %v310 = vunpack.c.h.b16 %v240
        %v311 = vunpack.c.l.b16 %v241
        %v312 = vunpack.c.h.b16 %v241
        %v313 = vpack.c.b16 %v281, %v277
        %v314 = vpack.c.b16 %v282, %v278
        %v315 = vpack.c.b16 %v283, %v279
        %v316 = vpack.c.b16 %v284, %v280
        %v317 = vpack.c.b16 %v289, %v285
        %v318 = vpack.c.b16 %v290, %v286
        %v319 = vpack.c.b16 %v291, %v287
        %v320 = vpack.c.b16 %v292, %v288
        %v321 = vpack.c.b16 %v297, %v293
        %v322 = vpack.c.b16 %v298, %v294
        %v323 = vpack.c.b16 %v299, %v295
        %v324 = vpack.c.b16 %v300, %v296
        %v325 = vpack.c.b16 %v305, %v301
        %v326 = vpack.c.b16 %v306, %v302
        %v327 = vpack.c.b16 %v307, %v303
        %v328 = vpack.c.b16 %v308, %v304
        %v329 = vpack.c.b16 %v309, %v309
        %v330 = vpack.c.b16 %v310, %v310
        %v331 = vpack.c.b16 %v311, %v311
        %v332 = vpack.c.b16 %v312, %v312
        %vm349 = vcmask 588800
        %v351 = vsel %vm349, %v258, 0
        %vm353 = vcmask 1043456
        %v355 = vsel %vm353, %v329, 0
        %v358 = vsel %vm353, %v330, 0
        %v361 = vsel %vm353, %v331, 0
        %v364 = vsel %vm353, %v332, 0
        %366 = vmatprep.subr.bf16.mxu0 %v314
        %367 = vmatpush1.bf16.msra.mxu0 %v313
        %368 = vmatprep.subr.bf16.mxu0 %v318
        %369 = vmatpush1.bf16.msra.mxu0 %v317
        %370 = vmatprep.subr.bf16.mxu0 %v322
        %371 = vmatpush1.bf16.msra.mxu0 %v321
        %372 = vmatprep.subr.bf16.mxu0 %v326
        %373 = vmatpush1.bf16.msra.mxu0 %v325
        %374 = vmatprep.subr.bf16.mxu0 %v358
        %375 = vmatpush1.bf16.msra.mxu0 %v355
        %376 = vmatprep.subr.bf16.mxu0 0
        %377 = vmatpush1.bf16.msra.mxu0 0
        %378 = vmatprep.subr.bf16.mxu0 0
        %379 = vmatpush1.bf16.msra.mxu0 0
        %380 = vmatprep.subr.bf16.mxu0 0
        %381 = vmatpush1.bf16.msra.mxu0 0
        %382 = vmatprep.subr.bf16.mxu0 0
        %383 = vmatpush1.bf16.msra.mxu0 0
        %384 = vmatprep.subr.bf16.mxu0 0
        %385 = vmatpush1.bf16.msra.mxu0 0
        %386 = vmatprep.subr.bf16.mxu0 0
        %387 = vmatpush1.bf16.msra.mxu0 0
        %388 = vmatprep.subr.bf16.mxu0 0
        %389 = vmatpush1.bf16.msra.mxu0 0
        %390 = vmatprep.subr.bf16.mxu0 0
        %391 = vmatpush1.bf16.msra.mxu0 0
        %392 = vmatprep.subr.bf16.mxu0 0
        %393 = vmatpush1.bf16.msra.mxu0 0
        %394 = vmatprep.subr.bf16.mxu0 0
        %395 = vmatpush1.bf16.msra.mxu0 0
        %396 = vmatprep.subr.bf16.mxu0 0
        %397 = vmatpush1.bf16.msra.mxu0 0
        %398 = vmatprep.mubr.bf16.mxu0 0
        %399 = vmatmul.mubr.bf16.gmra.mrb[0].mxu0 %v351
        %v400 = vpop.f32.mrb[0].mxu0
        %v401 = vadd.f32 %v247, %v400
        %v402 = vpop.f32.mrb[0].mxu0
        %v403 = vadd.f32 %v247, %v402
        %v404 = vpop.f32.mrb[0].mxu0
        %v405 = vadd.f32 %v252, %v404
        %v406 = vpop.f32.mrb[0].mxu0
        %v407 = vadd.f32 %v252, %v406
        %408 = vdwg.mxu0
        %409 = vmatprep.subr.bf16.mxu0 %v316
        %410 = vmatpush1.bf16.msra.mxu0 %v315
        %411 = vmatprep.subr.bf16.mxu0 %v320
        %412 = vmatpush1.bf16.msra.mxu0 %v319
        %413 = vmatprep.subr.bf16.mxu0 %v324
        %414 = vmatpush1.bf16.msra.mxu0 %v323
        %415 = vmatprep.subr.bf16.mxu0 %v328
        %416 = vmatpush1.bf16.msra.mxu0 %v327
        %417 = vmatprep.subr.bf16.mxu0 %v364
        %418 = vmatpush1.bf16.msra.mxu0 %v361
        %419 = vmatprep.subr.bf16.mxu0 0
        %420 = vmatpush1.bf16.msra.mxu0 0
        %421 = vmatprep.subr.bf16.mxu0 0
        %422 = vmatpush1.bf16.msra.mxu0 0
        %423 = vmatprep.subr.bf16.mxu0 0
        %424 = vmatpush1.bf16.msra.mxu0 0
        %425 = vmatprep.subr.bf16.mxu0 0
        %426 = vmatpush1.bf16.msra.mxu0 0
        %427 = vmatprep.subr.bf16.mxu0 0
        %428 = vmatpush1.bf16.msra.mxu0 0
        %429 = vmatprep.subr.bf16.mxu0 0
        %430 = vmatpush1.bf16.msra.mxu0 0
        %431 = vmatprep.subr.bf16.mxu0 0
        %432 = vmatpush1.bf16.msra.mxu0 0
        %433 = vmatprep.subr.bf16.mxu0 0
        %434 = vmatpush1.bf16.msra.mxu0 0
        %435 = vmatprep.subr.bf16.mxu0 0
        %436 = vmatpush1.bf16.msra.mxu0 0
        %437 = vmatprep.subr.bf16.mxu0 0
        %438 = vmatpush1.bf16.msra.mxu0 0
        %439 = vmatprep.subr.bf16.mxu0 0
        %440 = vmatpush1.bf16.msra.mxu0 0
        %441 = vmatprep.mubr.bf16.mxu0 0
        %442 = vmatmul.mubr.bf16.gmra.mrb[0].mxu0 %v351
        %v443 = vpop.f32.mrb[0].mxu0
        %v444 = vadd.f32 %v247, %v443
        %v445 = vpop.f32.mrb[0].mxu0
        %v446 = vadd.f32 %v247, %v445
        %v447 = vpop.f32.mrb[0].mxu0
        %v448 = vadd.f32 %v252, %v447
        %v449 = vpop.f32.mrb[0].mxu0
        %v450 = vadd.f32 %v252, %v449
        %451 = vdwg.mxu0
        %v452 = vmax.f32 %v401, 0.0
        %v453 = vmax.f32 %v403, 0.0
        %v454 = vmax.f32 %v444, 0.0
        %v455 = vmax.f32 %v446, 0.0
        %v456 = vmax.f32 %v405, 0.0
        %v457 = vmax.f32 %v407, 0.0
        %v458 = vmax.f32 %v448, 0.0
        %v459 = vmax.f32 %v450, 0.0
        %v460 = vpack.c.bf16 %v456, %v452
        %v461 = vpack.c.bf16 %v457, %v453
        %v462 = vpack.c.bf16 %v458, %v454
        %v463 = vpack.c.bf16 %v459, %v455
        %v468 = vunpack.c.l.b16 %v460
        %v469 = vunpack.c.l.b16 %v461
        %v470 = vunpack.c.l.b16 %v462
        %v471 = vunpack.c.l.b16 %v463
        %v472 = vunpack.c.h.b16 %v460
        %v473 = vunpack.c.h.b16 %v461
        %v474 = vunpack.c.h.b16 %v462
        %v475 = vunpack.c.h.b16 %v463
        %v476 = vpack.c.b16 %v469, %v468
        %v477 = vpack.c.b16 %v471, %v470
        %v478 = vpack.c.b16 %v473, %v472
        %v479 = vpack.c.b16 %v475, %v474
        %484 = vst [vmem:[%s218] sm:$0xff] %v476
        %485 = vst [vmem:[%s218 + $0x8] sm:$0xff] %v477
        %486 = vst [vmem:[%s218 + $0x10] sm:$0xff] %v478
        %487 = vst [vmem:[%s218 + $0x18] sm:$0xff] %v479
        %s488 = sand.u32 %s90, 1
        %s489 = sand.u32 %s90, 1
        %s490 = smul.addr %s489, 32
        %s491 = scalar_lea.vmem [#allocation3], %s490
        // Predicated region
        $region56: #{_lambda_.17} parent=50 // pred_check
          %p492 = pneg %p100
        $region57: #{_lambda_.17} parent=50 // pred_check_branch
          %494 = sbr.rel (%p492) target = $region59
        $region58: #{_lambda_.17} parent=50 // pred_region
          %s495 = smul.u32 4, %s14
          %s496 = smul.addr %s495, 4
          %s497 = scalar_lea.vmem %s3, %s496
          // Predicated region
          $region60: #{_lambda_.17} parent=58 // pred_check
            _
          $region61: #{_lambda_.17} parent=58 // pred_check_branch
            %499 = sbr.rel (0) target = $region63
          $region62: #{_lambda_.17} parent=58 // pred_region
            // Predicated region
            $region64: #{_lambda_.17} parent=62 // pred_check
              _
            $region65: #{_lambda_.17} parent=62 // pred_check_branch
              %501 = sbr.rel (0) target = $region67
            $region66: #{_lambda_.17} parent=62 // pred_region
              loop: start=0, step=1, limit=1
              $region68: #{_lambda_.17} parent=66 // loop_pre_header
                _
              $region69: #{_lambda_.17} parent=66 // loop_header
                %s503 = sphi 0, %s507
                %p504 = scmp.ge.s32.totalorder %s503, 1
                %s508 = sphi %s491, %s491
                %s509 = sphi %s497, %s497
              $region70: #{_lambda_.17} parent=66 // loop_header_branch
                %506 = sbr.rel (%p504) target = $region74
              $region71: #{_lambda_.17} parent=66 // loop_body
                %v510 = vld [vmem:[%s508] sm:$0xff]
                %511 = vst [vmem:[%s509] sm:$0xff] %v510
                %v512 = vld [vmem:[%s508 + $0x8] sm:$0xff]
                %513 = vst [vmem:[%s509 + $0x8] sm:$0xff] %v512
                %v514 = vld [vmem:[%s508 + $0x10] sm:$0xff]
                %515 = vst [vmem:[%s509 + $0x90] sm:$0xff] %v514
                %v516 = vld [vmem:[%s508 + $0x18] sm:$0xff]
                %517 = vst [vmem:[%s509 + $0x98] sm:$0xff] %v516
              $region72: #{_lambda_.17} parent=66 // loop_footer
                %s507 = sadd.s32 1, %s503
              $region73: #{_lambda_.17} parent=66 // loop_footer_branch
                %502 = sbr.rel target = $region69
              $region74: #{_lambda_.17} parent=66 // loop_exit
                _
            $region67: #{_lambda_.17} parent=62 // pred_fallthru
              _
            // Predicated region
            $region75: #{_lambda_.17} parent=62 // pred_check
              _
            $region76: #{_lambda_.17} parent=62 // pred_check_branch
              %519 = sbr.rel target = $region78
            $region77: #{_lambda_.17} parent=62 // pred_region
              _
            $region78: #{_lambda_.17} parent=62 // pred_fallthru
              _
          $region63: #{_lambda_.17} parent=58 // pred_fallthru
            _
          %520 = vnop
        $region59: #{_lambda_.17} parent=50 // pred_fallthru
          _
      $region51: #{_lambda_.17} parent=5 // pred_fallthru
        _
      %p521 = scmp.le.s32.totalorder 2, %s9
      // Predicated region
      $region79: #{_lambda_.17} parent=5 // pred_check
        %p522 = pneg %p521
      $region80: #{_lambda_.17} parent=5 // pred_check_branch
        %524 = sbr.rel (%p522) target = $region82
      $region81: #{_lambda_.17} parent=5 // pred_region
        %s525 = ssub.s32 %s9, 2
        // Predicated region
        $region83: #{_lambda_.17} parent=81 // pred_check
          %p526 = pneg %p106
        $region84: #{_lambda_.17} parent=81 // pred_check_branch
          %528 = sbr.rel (%p526) target = $region86
        $region85: #{_lambda_.17} parent=81 // pred_region
          %s529 = sand.u32 %s91, 1
          %s530 = sand.u32 %s91, 1
          %s531 = smul.addr %s530, 32
          %s532 = scalar_lea.vmem [#allocation3], %s531
        $region86: #{_lambda_.17} parent=81 // pred_fallthru
          _
      $region82: #{_lambda_.17} parent=5 // pred_fallthru
        _
    $region6: #{_lambda_.17} parent=1 // loop_footer
      %s13 = sadd.s32 1, %s9
    $region7: #{_lambda_.17} parent=1 // loop_footer_branch
      %8 = sbr.rel target = $region3
    $region8: #{_lambda_.17} parent=1 // loop_exit
      _

// kernel: _lambda_.18
$region0: #{_lambda_.18}
  #allocation0 [shape = 'u32[]', space=smem, size = 0x4, offset = 0x4, fixed_abs, tag = 'smem constant byte address 0x4 - core index']
  #allocation1 [shape = 'u32[144,128]{1,0:T(1,128)}', space=vmem, size = 0x12000, scoped, tag = 'internal scratch']
  %s0 = inlined_call_operand.vmem [shape: bf16[16,144], index: 0, kind: input, shape index: {}]
  %s1 = inlined_call_operand.vmem [shape: f32[16,1], index: 1, kind: input, shape index: {}]
  %s2 = inlined_call_operand.vmem [shape: bf16[144,4608], index: 2, kind: input, shape index: {}]
  %s3 = inlined_call_operand.vmem [shape: bf16[16,4608], index: 3, kind: output, shape index: {}]
  %s4 = sld [smem:[#allocation0]]
  $region87: #{_lambda_.18} parent=0
    _
  %s6 = ssub.s32 1, %s4
  %s7 = scalar_select 0, %s6, %s4
  $region1: #{_lambda_.18} parent=0
    #allocation2 [shape = 'u8[294912]{0}', space=vmem, size = 0x48000, scoped, tag = 'input window, operand 2']
    #allocation3 [shape = 'u8[32768]{0}', space=vmem, size = 0x8000, scoped, tag = 'output window, operand 0']
    loop: start=0, step=1, limit=11
    $region2: #{_lambda_.18} parent=1 // loop_pre_header
      _
    $region3: #{_lambda_.18} parent=1 // loop_header
      %s9 = sphi 0, %s13
      %p10 = scmp.ge.s32.totalorder %s9, 11
      %s17 = sphi 0, %s17
      %s19 = sphi 0, %s17
      %s20 = sphi 0, %s19
      %s34 = sphi 0, %s20
      %s38 = sphi 0, %s38
      %s40 = sphi 0, %s38
      %s41 = sphi 0, %s40
      %s55 = sphi 0, %s41
      %s61 = sphi 0, %s63
      %s64 = sphi 0, %s61
      %s65 = sphi 0, %s64
      %s81 = sphi 0, %s65
      %s87 = sphi 0, %s89
      %s90 = sphi 0, %s87
      %s91 = sphi 0, %s90
      %s107 = sphi 0, %s91
    $region4: #{_lambda_.18} parent=1 // loop_header_branch
      %12 = sbr.rel (%p10) target = $region8
    $region5: #{_lambda_.18} parent=1 // loop_body
      %s14 = ssub.s32 %s9, 1
      %s15 = ssub.s32 %s9, 2
      %s16 = sadd.s32 %s9, 1
      %s18 = sadd.s32 %s17, 1
      %p21 = scmp.eq.s32.totalorder %s9, 8
      %p22 = scmp.ne.s32.totalorder %s17, %s19
      %p23 = scmp.eq.s32.totalorder %s9, 0
      %p24 = por %p22, %p23
      %p25 = scmp.ne.s32.totalorder %s17, %s19
      %p26 = scmp.eq.s32.totalorder %s14, 8
      %p27 = por %p25, %p26
      %p28 = scmp.ne.s32.totalorder %s19, %s20
      %p29 = scmp.eq.s32.totalorder %s14, 0
      %p30 = por %p28, %p29
      %p31 = scmp.ne.s32.totalorder %s19, %s20
      %p32 = scmp.eq.s32.totalorder %s15, 8
      %p33 = por %p31, %p32
      %p35 = scmp.ne.s32.totalorder %s20, %s34
      %p36 = scmp.eq.s32.totalorder %s15, 0
      %p37 = por %p35, %p36
      %s39 = sadd.s32 %s38, 1
      %p42 = scmp.eq.s32.totalorder %s9, 8
      %p43 = scmp.ne.s32.totalorder %s38, %s40
      %p44 = scmp.eq.s32.totalorder %s9, 0
      %p45 = por %p43, %p44
      %p46 = scmp.ne.s32.totalorder %s38, %s40
      %p47 = scmp.eq.s32.totalorder %s14, 8
      %p48 = por %p46, %p47
      %p49 = scmp.ne.s32.totalorder %s40, %s41
      %p50 = scmp.eq.s32.totalorder %s14, 0
      %p51 = por %p49, %p50
      %p52 = scmp.ne.s32.totalorder %s40, %s41
      %p53 = scmp.eq.s32.totalorder %s15, 8
      %p54 = por %p52, %p53
      %p56 = scmp.ne.s32.totalorder %s41, %s55
      %p57 = scmp.eq.s32.totalorder %s15, 0
      %p58 = por %p56, %p57
      %s59 = ssub.s32 %s9, %s16
      %p60 = scmp.eq.s32.totalorder %s59, 0
      %s62 = sadd.s32 %s61, 1
      %s63 = scalar_select %p60, %s61, %s62
      %p66 = pneg %p60
      %p67 = scmp.eq.s32.totalorder %s9, 8
      %p68 = por %p66, %p67
      %p69 = scmp.ne.s32.totalorder %s61, %s64
      %p70 = scmp.eq.s32.totalorder %s9, 0
      %p71 = por %p69, %p70
      %p72 = scmp.ne.s32.totalorder %s61, %s64
      %p73 = scmp.eq.s32.totalorder %s14, 8
      %p74 = por %p72, %p73
      %p75 = scmp.ne.s32.totalorder %s64, %s65
      %p76 = scmp.eq.s32.totalorder %s14, 0
      %p77 = por %p75, %p76
      %p78 = scmp.ne.s32.totalorder %s64, %s65
      %p79 = scmp.eq.s32.totalorder %s15, 8
      %p80 = por %p78, %p79
      %p82 = scmp.ne.s32.totalorder %s65, %s81
      %p83 = scmp.eq.s32.totalorder %s15, 0
      %p84 = por %p82, %p83
      %s85 = ssub.s32 %s9, %s16
      %p86 = scmp.eq.s32.totalorder %s85, 0
      %s88 = sadd.s32 %s87, 1
      %s89 = scalar_select %p86, %s87, %s88
      %p92 = pneg %p86
      %p93 = scmp.eq.s32.totalorder %s9, 8
      %p94 = por %p92, %p93
      %p95 = scmp.ne.s32.totalorder %s87, %s90
      %p96 = scmp.eq.s32.totalorder %s9, 0
      %p97 = por %p95, %p96
      %p98 = scmp.ne.s32.totalorder %s87, %s90
      %p99 = scmp.eq.s32.totalorder %s14, 8
      %p100 = por %p98, %p99
      %p101 = scmp.ne.s32.totalorder %s90, %s91
      %p102 = scmp.eq.s32.totalorder %s14, 0
      %p103 = por %p101, %p102
      %p104 = scmp.ne.s32.totalorder %s90, %s91
      %p105 = scmp.eq.s32.totalorder %s15, 8
      %p106 = por %p104, %p105
      %p108 = scmp.ne.s32.totalorder %s91, %s107
      %p109 = scmp.eq.s32.totalorder %s15, 0
      %p110 = por %p108, %p109
      %p111 = scmp.le.s32.totalorder 1, %s9
      %p112 = scmp.lt.s32.totalorder %s9, 10
      %p113 = pnand %p111, %p112
      %p114 = pneg %p113
      // Predicated region
      $region9: #{_lambda_.18} parent=5 // pred_check
        _
      $region10: #{_lambda_.18} parent=5 // pred_check_branch
        %116 = sbr.rel (%p113) target = $region12
      $region11: #{_lambda_.18} parent=5 // pred_region
        %s117 = ssub.s32 %s9, 1
        // Predicated region
        $region13: #{_lambda_.18} parent=11 // pred_check
          %p118 = pneg %p30
        $region14: #{_lambda_.18} parent=11 // pred_check_branch
          %120 = sbr.rel (%p118) target = $region16
        $region15: #{_lambda_.18} parent=11 // pred_region
          _
        $region16: #{_lambda_.18} parent=11 // pred_fallthru
          _
        // Predicated region
        $region17: #{_lambda_.18} parent=11 // pred_check
          %p121 = pneg %p51
        $region18: #{_lambda_.18} parent=11 // pred_check_branch
          %123 = sbr.rel (%p121) target = $region20
        $region19: #{_lambda_.18} parent=11 // pred_region
          _
        $region20: #{_lambda_.18} parent=11 // pred_fallthru
          _
      $region12: #{_lambda_.18} parent=5 // pred_fallthru
        _
      %p124 = scmp.lt.s32.totalorder %s9, 9
      // Predicated region
      $region21: #{_lambda_.18} parent=5 // pred_check
        %p125 = pneg %p124
      $region22: #{_lambda_.18} parent=5 // pred_check_branch
        %127 = sbr.rel (%p125) target = $region24
      $region23: #{_lambda_.18} parent=5 // pred_region
        // Predicated region
        $region25: #{_lambda_.18} parent=23 // pred_check
          %p128 = pneg %p71
        $region26: #{_lambda_.18} parent=23 // pred_check_branch
          %130 = sbr.rel (%p128) target = $region28
        $region27: #{_lambda_.18} parent=23 // pred_region
          %s131 = sand.u32 %s61, 1
          %s132 = sand.u32 %s61, 1
          %s133 = smul.addr %s132, 288
          %s134 = scalar_lea.vmem [#allocation2], %s133
          %s135 = smul.u32 4, %s9
          %s136 = smul.addr %s135, 4
          %s137 = scalar_lea.vmem %s2, %s136
          // Predicated region
          $region29: #{_lambda_.18} parent=27 // pred_check
            _
          $region30: #{_lambda_.18} parent=27 // pred_check_branch
            %139 = sbr.rel (0) target = $region32
          $region31: #{_lambda_.18} parent=27 // pred_region
            // Predicated region
            $region33: #{_lambda_.18} parent=31 // pred_check
              _
            $region34: #{_lambda_.18} parent=31 // pred_check_branch
              %141 = sbr.rel (0) target = $region36
            $region35: #{_lambda_.18} parent=31 // pred_region
              loop: start=0, step=1, limit=1
              $region37: #{_lambda_.18} parent=35 // loop_pre_header
                _
              $region38: #{_lambda_.18} parent=35 // loop_header
                %s143 = sphi 0, %s147
                %p144 = scmp.ge.s32.totalorder %s143, 1
                %s148 = sphi %s137, %s137
                %s149 = sphi %s134, %s134
              $region39: #{_lambda_.18} parent=35 // loop_header_branch
                %146 = sbr.rel (%p144) target = $region43
              $region40: #{_lambda_.18} parent=35 // loop_body
                %v150 = vld [vmem:[%s148] sm:$0xff]
                %151 = vst [vmem:[%s149] sm:$0xff] %v150
                %v152 = vld [vmem:[%s148 + $0x8] sm:$0xff]
                %153 = vst [vmem:[%s149 + $0x8] sm:$0xff] %v152
                %v154 = vld [vmem:[%s148 + $0x90] sm:$0xff]
                %155 = vst [vmem:[%s149 + $0x10] sm:$0xff] %v154
                %v156 = vld [vmem:[%s148 + $0x98] sm:$0xff]
                %157 = vst [vmem:[%s149 + $0x18] sm:$0xff] %v156
                %v158 = vld [vmem:[%s148 + $0x120] sm:$0xff]
                %159 = vst [vmem:[%s149 + $0x20] sm:$0xff] %v158
                %v160 = vld [vmem:[%s148 + $0x128] sm:$0xff]
                %161 = vst [vmem:[%s149 + $0x28] sm:$0xff] %v160
                %v162 = vld [vmem:[%s148 + $0x1b0] sm:$0xff]
                %163 = vst [vmem:[%s149 + $0x30] sm:$0xff] %v162
                %v164 = vld [vmem:[%s148 + $0x1b8] sm:$0xff]
                %165 = vst [vmem:[%s149 + $0x38] sm:$0xff] %v164
                %v166 = vld [vmem:[%s148 + $0x240] sm:$0xff]
                %167 = vst [vmem:[%s149 + $0x40] sm:$0xff] %v166
                %v168 = vld [vmem:[%s148 + $0x248] sm:$0xff]
                %169 = vst [vmem:[%s149 + $0x48] sm:$0xff] %v168
                %v170 = vld [vmem:[%s148 + $0x2d0] sm:$0xff]
                %171 = vst [vmem:[%s149 + $0x50] sm:$0xff] %v170
                %v172 = vld [vmem:[%s148 + $0x2d8] sm:$0xff]
                %173 = vst [vmem:[%s149 + $0x58] sm:$0xff] %v172
                %v174 = vld [vmem:[%s148 + $0x360] sm:$0xff]
                %175 = vst [vmem:[%s149 + $0x60] sm:$0xff] %v174
                %v176 = vld [vmem:[%s148 + $0x368] sm:$0xff]
                %177 = vst [vmem:[%s149 + $0x68] sm:$0xff] %v176
                %v178 = vld [vmem:[%s148 + $0x3f0] sm:$0xff]
                %179 = vst [vmem:[%s149 + $0x70] sm:$0xff] %v178
                %v180 = vld [vmem:[%s148 + $0x3f8] sm:$0xff]
                %181 = vst [vmem:[%s149 + $0x78] sm:$0xff] %v180
                %v182 = vld [vmem:[%s148 + $0x480] sm:$0xff]
                %183 = vst [vmem:[%s149 + $0x80] sm:$0xff] %v182
                %v184 = vld [vmem:[%s148 + $0x488] sm:$0xff]
                %185 = vst [vmem:[%s149 + $0x88] sm:$0xff] %v184
                %v186 = vld [vmem:[%s148 + $0x510] sm:$0xff]
                %187 = vst [vmem:[%s149 + $0x90] sm:$0xff] %v186
                %v188 = vld [vmem:[%s148 + $0x518] sm:$0xff]
                %189 = vst [vmem:[%s149 + $0x98] sm:$0xff] %v188
                %v190 = vld [vmem:[%s148 + $0x5a0] sm:$0xff]
                %191 = vst [vmem:[%s149 + $0xa0] sm:$0xff] %v190
                %v192 = vld [vmem:[%s148 + $0x5a8] sm:$0xff]
                %193 = vst [vmem:[%s149 + $0xa8] sm:$0xff] %v192
                %v194 = vld [vmem:[%s148 + $0x630] sm:$0xff]
                %195 = vst [vmem:[%s149 + $0xb0] sm:$0xff] %v194
                %v196 = vld [vmem:[%s148 + $0x638] sm:$0xff]
                %197 = vst [vmem:[%s149 + $0xb8] sm:$0xff] %v196
                %v198 = vld [vmem:[%s148 + $0x6c0] sm:$0xff]
                %199 = vst [vmem:[%s149 + $0xc0] sm:$0xff] %v198
                %v200 = vld [vmem:[%s148 + $0x6c8] sm:$0xff]
                %201 = vst [vmem:[%s149 + $0xc8] sm:$0xff] %v200
                %v202 = vld [vmem:[%s148 + $0x750] sm:$0xff]
                %203 = vst [vmem:[%s149 + $0xd0] sm:$0xff] %v202
                %v204 = vld [vmem:[%s148 + $0x758] sm:$0xff]
                %205 = vst [vmem:[%s149 + $0xd8] sm:$0xff] %v204
                %v206 = vld [vmem:[%s148 + $0x7e0] sm:$0xff]
                %207 = vst [vmem:[%s149 + $0xe0] sm:$0xff] %v206
                %v208 = vld [vmem:[%s148 + $0x7e8] sm:$0xff]
                %209 = vst [vmem:[%s149 + $0xe8] sm:$0xff] %v208
                %v210 = vld [vmem:[%s148 + $0x870] sm:$0xff]
                %211 = vst [vmem:[%s149 + $0xf0] sm:$0xff] %v210
                %v212 = vld [vmem:[%s148 + $0x878] sm:$0xff]
                %213 = vst [vmem:[%s149 + $0xf8] sm:$0xff] %v212
                %v214 = vld [vmem:[%s148 + $0x900] sm:$0xff]
                %215 = vst [vmem:[%s149 + $0x100] sm:$0xff] %v214
                %v216 = vld [vmem:[%s148 + $0x908] sm:$0xff]
                %217 = vst [vmem:[%s149 + $0x108] sm:$0xff] %v216
                %v218 = vld [vmem:[%s148 + $0x990] sm:$0xff]
                %219 = vst [vmem:[%s149 + $0x110] sm:$0xff] %v218
                %v220 = vld [vmem:[%s148 + $0x998] sm:$0xff]
                %221 = vst [vmem:[%s149 + $0x118] sm:$0xff] %v220
              $region41: #{_lambda_.18} parent=35 // loop_footer
                %s147 = sadd.s32 1, %s143
              $region42: #{_lambda_.18} parent=35 // loop_footer_branch
                %142 = sbr.rel target = $region38
              $region43: #{_lambda_.18} parent=35 // loop_exit
                _
            $region36: #{_lambda_.18} parent=31 // pred_fallthru
              _
            // Predicated region
            $region44: #{_lambda_.18} parent=31 // pred_check
              _
            $region45: #{_lambda_.18} parent=31 // pred_check_branch
              %223 = sbr.rel target = $region47
            $region46: #{_lambda_.18} parent=31 // pred_region
              _
            $region47: #{_lambda_.18} parent=31 // pred_fallthru
              _
          $region32: #{_lambda_.18} parent=27 // pred_fallthru
            _
          %224 = vnop
        $region28: #{_lambda_.18} parent=23 // pred_fallthru
          _
      $region24: #{_lambda_.18} parent=5 // pred_fallthru
        _
      %p225 = scmp.le.s32.totalorder 1, %s9
      %p226 = scmp.lt.s32.totalorder %s9, 10
      %p227 = pnand %p225, %p226
      %p228 = pneg %p227
      // Predicated region
      $region48: #{_lambda_.18} parent=5 // pred_check
        _
      $region49: #{_lambda_.18} parent=5 // pred_check_branch
        %230 = sbr.rel (%p227) target = $region51
      $region50: #{_lambda_.18} parent=5 // pred_region
        %s231 = ssub.s32 %s9, 1
        %s232 = sand.u32 %s64, 1
        %s233 = sand.u32 %s64, 1
        %s234 = smul.addr %s233, 288
        %s235 = scalar_lea.vmem [#allocation2], %s234
        // Predicated region
        $region52: #{_lambda_.18} parent=50 // pred_check
          %p236 = pneg %p77
        $region53: #{_lambda_.18} parent=50 // pred_check_branch
          %238 = sbr.rel (%p236) target = $region55
        $region54: #{_lambda_.18} parent=50 // pred_region
          _
        $region55: #{_lambda_.18} parent=50 // pred_fallthru
          _
        %p239 = pneg %p30
        %p240 = pneg %p27
        %p241 = pneg %p51
        %p242 = pneg %p48
        %s243 = sand.u32 %s64, 1
        %s244 = sand.u32 %s64, 1
        %s245 = smul.addr %s244, 288
        %s246 = scalar_lea.vmem [#allocation2], %s245
        %p247 = pneg %p77
        %p248 = pneg %p74
        %p249 = pneg %p103
        %p250 = pneg %p100
        %s251 = sand.u32 %s90, 1
        %s252 = sand.u32 %s90, 1
        %s253 = smul.addr %s252, 32
        %s254 = scalar_lea.vmem [#allocation3], %s253
        %s255 = smul.u32 4, %s14
        %s256 = smul.u32 4, %s14
        %v258 = vld [vmem:[%s0] sm:$0xff]
        %v259 = vld [vmem:[%s0 + $0x8] sm:$0xff]
        %v260 = vld [vmem:[%s235] sm:$0xff]
        %v261 = vld [vmem:[%s235 + $0x8] sm:$0xff]
        %v262 = vld [vmem:[%s235 + $0x10] sm:$0xff]
        %v263 = vld [vmem:[%s235 + $0x18] sm:$0xff]
        %v264 = vld [vmem:[%s235 + $0x20] sm:$0xff]
        %v265 = vld [vmem:[%s235 + $0x28] sm:$0xff]
        %v266 = vld [vmem:[%s235 + $0x30] sm:$0xff]
        %v267 = vld [vmem:[%s235 + $0x38] sm:$0xff]
        %v268 = vld [vmem:[%s235 + $0x40] sm:$0xff]
        %v269 = vld [vmem:[%s235 + $0x48] sm:$0xff]
        %v270 = vld [vmem:[%s235 + $0x50] sm:$0xff]
        %v271 = vld [vmem:[%s235 + $0x58] sm:$0xff]
        %v272 = vld [vmem:[%s235 + $0x60] sm:$0xff]
        %v273 = vld [vmem:[%s235 + $0x68] sm:$0xff]
        %v274 = vld [vmem:[%s235 + $0x70] sm:$0xff]
        %v275 = vld [vmem:[%s235 + $0x78] sm:$0xff]
        %v276 = vld [vmem:[%s235 + $0x80] sm:$0xff]
        %v277 = vld [vmem:[%s235 + $0x88] sm:$0xff]
        %v278 = vld [vmem:[%s235 + $0x90] sm:$0xff]
        %v279 = vld [vmem:[%s235 + $0x98] sm:$0xff]
        %v280 = vld [vmem:[%s235 + $0xa0] sm:$0xff]
        %v281 = vld [vmem:[%s235 + $0xa8] sm:$0xff]
        %v282 = vld [vmem:[%s235 + $0xb0] sm:$0xff]
        %v283 = vld [vmem:[%s235 + $0xb8] sm:$0xff]
        %v284 = vld [vmem:[%s235 + $0xc0] sm:$0xff]
        %v285 = vld [vmem:[%s235 + $0xc8] sm:$0xff]
        %v286 = vld [vmem:[%s235 + $0xd0] sm:$0xff]
        %v287 = vld [vmem:[%s235 + $0xd8] sm:$0xff]
        %v288 = vld [vmem:[%s235 + $0xe0] sm:$0xff]
        %v289 = vld [vmem:[%s235 + $0xe8] sm:$0xff]
        %v290 = vld [vmem:[%s235 + $0xf0] sm:$0xff]
        %v291 = vld [vmem:[%s235 + $0xf8] sm:$0xff]
        %v292 = vld [vmem:[%s235 + $0x100] sm:$0xff]
        %v293 = vld [vmem:[%s235 + $0x108] sm:$0xff]
        %v294 = vld [vmem:[%s235 + $0x110] sm:$0xff]
        %v295 = vld [vmem:[%s235 + $0x118] sm:$0xff]
        %v296 = vld [vmem:[%s1] sm:$0xff]
        %v297 = vld [vmem:[%s1 + $0x8] sm:$0xff]
        %299 = vset.pattern.permute.xlu0 0
        %300 = vperm.xlu0 %299, %v296
        %v301 = vpop.permute.xlu0 %300
        %304 = vset.pattern.permute.xlu0 0
        %305 = vperm.xlu0 %304, %v297
        %v306 = vpop.permute.xlu0 %305
        %v310 = vunpack.c.l.b16 %v258
        %v311 = vunpack.c.h.b16 %v258
        %v312 = vunpack.c.l.b16 %v259
        %v313 = vunpack.c.h.b16 %v259
        %v314 = vpack.c.b16 %v312, %v310
        %v315 = vpack.c.b16 %v313, %v311
        %v353 = vunpack.c.l.b16 %v260
        %v354 = vunpack.c.h.b16 %v260
        %v355 = vunpack.c.l.b16 %v261
        %v356 = vunpack.c.h.b16 %v261
        %v357 = vunpack.c.l.b16 %v262
        %v358 = vunpack.c.h.b16 %v262
        %v359 = vunpack.c.l.b16 %v263
        %v360 = vunpack.c.h.b16 %v263
        %v361 = vunpack.c.l.b16 %v264
        %v362 = vunpack.c.h.b16 %v264
        %v363 = vunpack.c.l.b16 %v265
        %v364 = vunpack.c.h.b16 %v265
        %v365 = vunpack.c.l.b16 %v266
        %v366 = vunpack.c.h.b16 %v266
        %v367 = vunpack.c.l.b16 %v267
        %v368 = vunpack.c.h.b16 %v267
        %v369 = vunpack.c.l.b16 %v268
        %v370 = vunpack.c.h.b16 %v268
        %v371 = vunpack.c.l.b16 %v269
        %v372 = vunpack.c.h.b16 %v269
        %v373 = vunpack.c.l.b16 %v270
        %v374 = vunpack.c.h.b16 %v270
        %v375 = vunpack.c.l.b16 %v271
        %v376 = vunpack.c.h.b16 %v271
        %v377 = vunpack.c.l.b16 %v272
        %v378 = vunpack.c.h.b16 %v272
        %v379 = vunpack.c.l.b16 %v273
        %v380 = vunpack.c.h.b16 %v273
        %v381 = vunpack.c.l.b16 %v274
        %v382 = vunpack.c.h.b16 %v274
        %v383 = vunpack.c.l.b16 %v275
        %v384 = vunpack.c.h.b16 %v275
        %v385 = vunpack.c.l.b16 %v276
        %v386 = vunpack.c.h.b16 %v276
        %v387 = vunpack.c.l.b16 %v277
        %v388 = vunpack.c.h.b16 %v277
        %v389 = vunpack.c.l.b16 %v278
        %v390 = vunpack.c.h.b16 %v278
        %v391 = vunpack.c.l.b16 %v279
        %v392 = vunpack.c.h.b16 %v279
        %v393 = vunpack.c.l.b16 %v280
        %v394 = vunpack.c.h.b16 %v280
        %v395 = vunpack.c.l.b16 %v281
        %v396 = vunpack.c.h.b16 %v281
        %v397 = vunpack.c.l.b16 %v282
        %v398 = vunpack.c.h.b16 %v282
        %v399 = vunpack.c.l.b16 %v283
        %v400 = vunpack.c.h.b16 %v283
        %v401 = vunpack.c.l.b16 %v284
        %v402 = vunpack.c.h.b16 %v284
        %v403 = vunpack.c.l.b16 %v285
        %v404 = vunpack.c.h.b16 %v285
        %v405 = vunpack.c.l.b16 %v286
        %v406 = vunpack.c.h.b16 %v286
        %v407 = vunpack.c.l.b16 %v287
        %v408 = vunpack.c.h.b16 %v287
        %v409 = vunpack.c.l.b16 %v288
        %v410 = vunpack.c.h.b16 %v288
        %v411 = vunpack.c.l.b16 %v289
        %v412 = vunpack.c.h.b16 %v289
        %v413 = vunpack.c.l.b16 %v290
        %v414 = vunpack.c.h.b16 %v290
        %v415 = vunpack.c.l.b16 %v291
        %v416 = vunpack.c.h.b16 %v291
        %v417 = vunpack.c.l.b16 %v292
        %v418 = vunpack.c.h.b16 %v292
        %v419 = vunpack.c.l.b16 %v293
        %v420 = vunpack.c.h.b16 %v293
        %v421 = vunpack.c.l.b16 %v294
        %v422 = vunpack.c.h.b16 %v294
        %v423 = vunpack.c.l.b16 %v295
        %v424 = vunpack.c.h.b16 %v295
        %v425 = vpack.c.b16 %v357, %v353
        %v426 = vpack.c.b16 %v358, %v354
        %v427 = vpack.c.b16 %v359, %v355
        %v428 = vpack.c.b16 %v360, %v356
        %v429 = vpack.c.b16 %v365, %v361
        %v430 = vpack.c.b16 %v366, %v362
        %v431 = vpack.c.b16 %v367, %v363
        %v432 = vpack.c.b16 %v368, %v364
        %v433 = vpack.c.b16 %v373, %v369
        %v434 = vpack.c.b16 %v374, %v370
        %v435 = vpack.c.b16 %v375, %v371
        %v436 = vpack.c.b16 %v376, %v372
        %v437 = vpack.c.b16 %v381, %v377
        %v438 = vpack.c.b16 %v382, %v378
        %v439 = vpack.c.b16 %v383, %v379
        %v440 = vpack.c.b16 %v384, %v380
        %v441 = vpack.c.b16 %v389, %v385
        %v442 = vpack.c.b16 %v390, %v386
        %v443 = vpack.c.b16 %v391, %v387
        %v444 = vpack.c.b16 %v392, %v388
        %v445 = vpack.c.b16 %v397, %v393
        %v446 = vpack.c.b16 %v398, %v394
        %v447 = vpack.c.b16 %v399, %v395
        %v448 = vpack.c.b16 %v400, %v396
        %v449 = vpack.c.b16 %v405, %v401
        %v450 = vpack.c.b16 %v406, %v402
        %v451 = vpack.c.b16 %v407, %v403
        %v452 = vpack.c.b16 %v408, %v404
        %v453 = vpack.c.b16 %v413, %v409
        %v454 = vpack.c.b16 %v414, %v410
        %v455 = vpack.c.b16 %v415, %v411
        %v456 = vpack.c.b16 %v416, %v412
        %v457 = vpack.c.b16 %v421, %v417
        %v458 = vpack.c.b16 %v422, %v418
        %v459 = vpack.c.b16 %v423, %v419
        %v460 = vpack.c.b16 %v424, %v420
        %vm497 = vcmask 130048
        %v499 = vsel %vm497, %v315, 0
        %501 = vmatprep.subr.bf16.mxu0 %v426
        %502 = vmatpush1.bf16.msra.mxu0 %v425
        %503 = vmatprep.subr.bf16.mxu0 %v430
        %504 = vmatpush1.bf16.msra.mxu0 %v429
        %505 = vmatprep.subr.bf16.mxu0 %v434
        %506 = vmatpush1.bf16.msra.mxu0 %v433
        %507 = vmatprep.subr.bf16.mxu0 %v438
        %508 = vmatpush1.bf16.msra.mxu0 %v437
        %509 = vmatprep.subr.bf16.mxu0 %v442
        %510 = vmatpush1.bf16.msra.mxu0 %v441
        %511 = vmatprep.subr.bf16.mxu0 %v446
        %512 = vmatpush1.bf16.msra.mxu0 %v445
        %513 = vmatprep.subr.bf16.mxu0 %v450
        %514 = vmatpush1.bf16.msra.mxu0 %v449
        %515 = vmatprep.subr.bf16.mxu0 %v454
        %516 = vmatpush1.bf16.msra.mxu0 %v453
        %517 = vmatprep.subr.bf16.mxu0 %v458
        %518 = vmatpush1.bf16.msra.mxu0 %v457
        %519 = vmatprep.subr.bf16.mxu0 0
        %520 = vmatpush1.bf16.msra.mxu0 0
        %521 = vmatprep.subr.bf16.mxu0 0
        %522 = vmatpush1.bf16.msra.mxu0 0
        %523 = vmatprep.subr.bf16.mxu0 0
        %524 = vmatpush1.bf16.msra.mxu0 0
        %525 = vmatprep.subr.bf16.mxu0 0
        %526 = vmatpush1.bf16.msra.mxu0 0
        %527 = vmatprep.subr.bf16.mxu0 0
        %528 = vmatpush1.bf16.msra.mxu0 0
        %529 = vmatprep.subr.bf16.mxu0 0
        %530 = vmatpush1.bf16.msra.mxu0 0
        %531 = vmatprep.subr.bf16.mxu0 0
        %532 = vmatpush1.bf16.msra.mxu0 0
        %533 = vmatprep.mubr.bf16.mxu0 %v499
        %534 = vmatmul.mubr.bf16.gmra.mrb[0].mxu0 %v314
        %v535 = vpop.f32.mrb[0].mxu0
        %v536 = vadd.f32 %v301, %v535
        %v537 = vpop.f32.mrb[0].mxu0
        %v538 = vadd.f32 %v301, %v537
        %v539 = vpop.f32.mrb[0].mxu0
        %v540 = vadd.f32 %v306, %v539
        %v541 = vpop.f32.mrb[0].mxu0
        %v542 = vadd.f32 %v306, %v541
        %543 = vdwg.mxu0
        %544 = vmatprep.subr.bf16.mxu0 %v428
        %545 = vmatpush1.bf16.msra.mxu0 %v427
        %546 = vmatprep.subr.bf16.mxu0 %v432
        %547 = vmatpush1.bf16.msra.mxu0 %v431
        %548 = vmatprep.subr.bf16.mxu0 %v436
        %549 = vmatpush1.bf16.msra.mxu0 %v435
        %550 = vmatprep.subr.bf16.mxu0 %v440
        %551 = vmatpush1.bf16.msra.mxu0 %v439
        %552 = vmatprep.subr.bf16.mxu0 %v444
        %553 = vmatpush1.bf16.msra.mxu0 %v443
        %554 = vmatprep.subr.bf16.mxu0 %v448
        %555 = vmatpush1.bf16.msra.mxu0 %v447
        %556 = vmatprep.subr.bf16.mxu0 %v452
        %557 = vmatpush1.bf16.msra.mxu0 %v451
        %558 = vmatprep.subr.bf16.mxu0 %v456
        %559 = vmatpush1.bf16.msra.mxu0 %v455
        %560 = vmatprep.subr.bf16.mxu0 %v460
        %561 = vmatpush1.bf16.msra.mxu0 %v459
        %562 = vmatprep.subr.bf16.mxu0 0
        %563 = vmatpush1.bf16.msra.mxu0 0
        %564 = vmatprep.subr.bf16.mxu0 0
        %565 = vmatpush1.bf16.msra.mxu0 0
        %566 = vmatprep.subr.bf16.mxu0 0
        %567 = vmatpush1.bf16.msra.mxu0 0
        %568 = vmatprep.subr.bf16.mxu0 0
        %569 = vmatpush1.bf16.msra.mxu0 0
        %570 = vmatprep.subr.bf16.mxu0 0
        %571 = vmatpush1.bf16.msra.mxu0 0
        %572 = vmatprep.subr.bf16.mxu0 0
        %573 = vmatpush1.bf16.msra.mxu0 0
        %574 = vmatprep.subr.bf16.mxu0 0
        %575 = vmatpush1.bf16.msra.mxu0 0
        %576 = vmatprep.mubr.bf16.mxu0 %v499
        %577 = vmatmul.mubr.bf16.gmra.mrb[0].mxu0 %v314
        %v578 = vpop.f32.mrb[0].mxu0
        %v579 = vadd.f32 %v301, %v578
        %v580 = vpop.f32.mrb[0].mxu0
        %v581 = vadd.f32 %v301, %v580
        %v582 = vpop.f32.mrb[0].mxu0
        %v583 = vadd.f32 %v306, %v582
        %v584 = vpop.f32.mrb[0].mxu0
        %v585 = vadd.f32 %v306, %v584
        %586 = vdwg.mxu0
        %v587 = vmax.f32 %v536, 0.0
        %v588 = vmax.f32 %v538, 0.0
        %v589 = vmax.f32 %v579, 0.0
        %v590 = vmax.f32 %v581, 0.0
        %v591 = vmax.f32 %v540, 0.0
        %v592 = vmax.f32 %v542, 0.0
        %v593 = vmax.f32 %v583, 0.0
        %v594 = vmax.f32 %v585, 0.0
        %v595 = vpack.c.bf16 %v591, %v587
        %v596 = vpack.c.bf16 %v592, %v588
        %v597 = vpack.c.bf16 %v593, %v589
        %v598 = vpack.c.bf16 %v594, %v590
        %v603 = vunpack.c.l.b16 %v595
        %v604 = vunpack.c.l.b16 %v596
        %v605 = vunpack.c.l.b16 %v597
        %v606 = vunpack.c.l.b16 %v598
        %v607 = vunpack.c.h.b16 %v595
        %v608 = vunpack.c.h.b16 %v596
        %v609 = vunpack.c.h.b16 %v597
        %v610 = vunpack.c.h.b16 %v598
        %v611 = vpack.c.b16 %v604, %v603
        %v612 = vpack.c.b16 %v606, %v605
        %v613 = vpack.c.b16 %v608, %v607
        %v614 = vpack.c.b16 %v610, %v609
        %619 = vst [vmem:[%s254] sm:$0xff] %v611
        %620 = vst [vmem:[%s254 + $0x8] sm:$0xff] %v612
        %621 = vst [vmem:[%s254 + $0x10] sm:$0xff] %v613
        %622 = vst [vmem:[%s254 + $0x18] sm:$0xff] %v614
        %s623 = sand.u32 %s90, 1
        %s624 = sand.u32 %s90, 1
        %s625 = smul.addr %s624, 32
        %s626 = scalar_lea.vmem [#allocation3], %s625
        // Predicated region
        $region56: #{_lambda_.18} parent=50 // pred_check
          %p627 = pneg %p100
        $region57: #{_lambda_.18} parent=50 // pred_check_branch
          %629 = sbr.rel (%p627) target = $region59
        $region58: #{_lambda_.18} parent=50 // pred_region
          %s630 = smul.u32 4, %s14
          %s631 = smul.addr %s630, 4
          %s632 = scalar_lea.vmem %s3, %s631
          // Predicated region
          $region60: #{_lambda_.18} parent=58 // pred_check
            _
          $region61: #{_lambda_.18} parent=58 // pred_check_branch
            %634 = sbr.rel (0) target = $region63
          $region62: #{_lambda_.18} parent=58 // pred_region
            // Predicated region
            $region64: #{_lambda_.18} parent=62 // pred_check
              _
            $region65: #{_lambda_.18} parent=62 // pred_check_branch
              %636 = sbr.rel (0) target = $region67
            $region66: #{_lambda_.18} parent=62 // pred_region
              loop: start=0, step=1, limit=1
              $region68: #{_lambda_.18} parent=66 // loop_pre_header
                _
              $region69: #{_lambda_.18} parent=66 // loop_header
                %s638 = sphi 0, %s642
                %p639 = scmp.ge.s32.totalorder %s638, 1
                %s643 = sphi %s626, %s626
                %s644 = sphi %s632, %s632
              $region70: #{_lambda_.18} parent=66 // loop_header_branch
                %641 = sbr.rel (%p639) target = $region74
              $region71: #{_lambda_.18} parent=66 // loop_body
                %v645 = vld [vmem:[%s643] sm:$0xff]
                %646 = vst [vmem:[%s644] sm:$0xff] %v645
                %v647 = vld [vmem:[%s643 + $0x8] sm:$0xff]
                %648 = vst [vmem:[%s644 + $0x8] sm:$0xff] %v647
                %v649 = vld [vmem:[%s643 + $0x10] sm:$0xff]
                %650 = vst [vmem:[%s644 + $0x90] sm:$0xff] %v649
                %v651 = vld [vmem:[%s643 + $0x18] sm:$0xff]
                %652 = vst [vmem:[%s644 + $0x98] sm:$0xff] %v651
              $region72: #{_lambda_.18} parent=66 // loop_footer
                %s642 = sadd.s32 1, %s638
              $region73: #{_lambda_.18} parent=66 // loop_footer_branch
                %637 = sbr.rel target = $region69
              $region74: #{_lambda_.18} parent=66 // loop_exit
                _
            $region67: #{_lambda_.18} parent=62 // pred_fallthru
              _
            // Predicated region
            $region75: #{_lambda_.18} parent=62 // pred_check
              _
            $region76: #{_lambda_.18} parent=62 // pred_check_branch
              %654 = sbr.rel target = $region78
            $region77: #{_lambda_.18} parent=62 // pred_region
              _
            $region78: #{_lambda_.18} parent=62 // pred_fallthru
              _
          $region63: #{_lambda_.18} parent=58 // pred_fallthru
            _
          %655 = vnop
        $region59: #{_lambda_.18} parent=50 // pred_fallthru
          _
      $region51: #{_lambda_.18} parent=5 // pred_fallthru
        _
      %p656 = scmp.le.s32.totalorder 2, %s9
      // Predicated region
      $region79: #{_lambda_.18} parent=5 // pred_check
        %p657 = pneg %p656
      $region80: #{_lambda_.18} parent=5 // pred_check_branch
        %659 = sbr.rel (%p657) target = $region82
      $region81: #{_lambda_.18} parent=5 // pred_region
        %s660 = ssub.s32 %s9, 2
        // Predicated region
        $region83: #{_lambda_.18} parent=81 // pred_check
          %p661 = pneg %p106
        $region84: #{_lambda_.18} parent=81 // pred_check_branch
          %663 = sbr.rel (%p661) target = $region86
        $region85: #{_lambda_.18} parent=81 // pred_region
          %s664 = sand.u32 %s91, 1
          %s665 = sand.u32 %s91, 1
          %s666 = smul.addr %s665, 32
          %s667 = scalar_lea.vmem [#allocation3], %s666
        $region86: #{_lambda_.18} parent=81 // pred_fallthru
          _
      $region82: #{_lambda_.18} parent=5 // pred_fallthru
        _
    $region6: #{_lambda_.18} parent=1 // loop_footer
      %s13 = sadd.s32 1, %s9
    $region7: #{_lambda_.18} parent=1 // loop_footer_branch
      %8 = sbr.rel target = $region3
    $region8: #{_lambda_.18} parent=1 // loop_exit
      _

// kernel: _lambda_.20
$region0: #{_lambda_.20}
  #allocation0 [shape = 'u32[]', space=smem, size = 0x4, offset = 0x4, fixed_abs, tag = 'smem constant byte address 0x4 - core index']
  #allocation1 [shape = 'u32[144,128]{1,0:T(1,128)}', space=vmem, size = 0x12000, scoped, tag = 'internal scratch']
  %s0 = inlined_call_operand.vmem [shape: bf16[16,144], index: 0, kind: input, shape index: {}]
  %s1 = inlined_call_operand.vmem [shape: f32[16,1], index: 1, kind: input, shape index: {}]
  %s2 = inlined_call_operand.vmem [shape: bf16[144,4608], index: 2, kind: input, shape index: {}]
  %s3 = inlined_call_operand.vmem [shape: bf16[16,4608], index: 3, kind: input, shape index: {}]
  %s4 = inlined_call_operand.vmem [shape: bf16[16,4608], index: 4, kind: output, shape index: {}]
  %s5 = sld [smem:[#allocation0]]
  $region114: #{_lambda_.20} parent=0
    _
  %s7 = ssub.s32 1, %s5
  %s8 = scalar_select 0, %s7, %s5
  $region1: #{_lambda_.20} parent=0
    #allocation2 [shape = 'u8[294912]{0}', space=vmem, size = 0x48000, scoped, tag = 'input window, operand 2']
    #allocation3 [shape = 'u8[32768]{0}', space=vmem, size = 0x8000, scoped, tag = 'input window, operand 3']
    #allocation4 [shape = 'u8[32768]{0}', space=vmem, size = 0x8000, scoped, tag = 'output window, operand 0']
    loop: start=0, step=1, limit=11
    $region2: #{_lambda_.20} parent=1 // loop_pre_header
      _
    $region3: #{_lambda_.20} parent=1 // loop_header
      %s10 = sphi 0, %s14
      %p11 = scmp.ge.s32.totalorder %s10, 11
      %s18 = sphi 0, %s18
      %s20 = sphi 0, %s18
      %s21 = sphi 0, %s20
      %s35 = sphi 0, %s21
      %s39 = sphi 0, %s39
      %s41 = sphi 0, %s39
      %s42 = sphi 0, %s41
      %s56 = sphi 0, %s42
      %s62 = sphi 0, %s64
      %s65 = sphi 0, %s62
      %s66 = sphi 0, %s65
      %s82 = sphi 0, %s66
      %s88 = sphi 0, %s90
      %s91 = sphi 0, %s88
      %s92 = sphi 0, %s91
      %s108 = sphi 0, %s92
      %s114 = sphi 0, %s116
      %s117 = sphi 0, %s114
      %s118 = sphi 0, %s117
      %s134 = sphi 0, %s118
    $region4: #{_lambda_.20} parent=1 // loop_header_branch
      %13 = sbr.rel (%p11) target = $region8
    $region5: #{_lambda_.20} parent=1 // loop_body
      %s15 = ssub.s32 %s10, 1
      %s16 = ssub.s32 %s10, 2
      %s17 = sadd.s32 %s10, 1
      %s19 = sadd.s32 %s18, 1
      %p22 = scmp.eq.s32.totalorder %s10, 8
      %p23 = scmp.ne.s32.totalorder %s18, %s20
      %p24 = scmp.eq.s32.totalorder %s10, 0
      %p25 = por %p23, %p24
      %p26 = scmp.ne.s32.totalorder %s18, %s20
      %p27 = scmp.eq.s32.totalorder %s15, 8
      %p28 = por %p26, %p27
      %p29 = scmp.ne.s32.totalorder %s20, %s21
      %p30 = scmp.eq.s32.totalorder %s15, 0
      %p31 = por %p29, %p30
      %p32 = scmp.ne.s32.totalorder %s20, %s21
      %p33 = scmp.eq.s32.totalorder %s16, 8
      %p34 = por %p32, %p33
      %p36 = scmp.ne.s32.totalorder %s21, %s35
      %p37 = scmp.eq.s32.totalorder %s16, 0
      %p38 = por %p36, %p37
      %s40 = sadd.s32 %s39, 1
      %p43 = scmp.eq.s32.totalorder %s10, 8
      %p44 = scmp.ne.s32.totalorder %s39, %s41
      %p45 = scmp.eq.s32.totalorder %s10, 0
      %p46 = por %p44, %p45
      %p47 = scmp.ne.s32.totalorder %s39, %s41
      %p48 = scmp.eq.s32.totalorder %s15, 8
      %p49 = por %p47, %p48
      %p50 = scmp.ne.s32.totalorder %s41, %s42
      %p51 = scmp.eq.s32.totalorder %s15, 0
      %p52 = por %p50, %p51
      %p53 = scmp.ne.s32.totalorder %s41, %s42
      %p54 = scmp.eq.s32.totalorder %s16, 8
      %p55 = por %p53, %p54
      %p57 = scmp.ne.s32.totalorder %s42, %s56
      %p58 = scmp.eq.s32.totalorder %s16, 0
      %p59 = por %p57, %p58
      %s60 = ssub.s32 %s10, %s17
      %p61 = scmp.eq.s32.totalorder %s60, 0
      %s63 = sadd.s32 %s62, 1
      %s64 = scalar_select %p61, %s62, %s63
      %p67 = pneg %p61
      %p68 = scmp.eq.s32.totalorder %s10, 8
      %p69 = por %p67, %p68
      %p70 = scmp.ne.s32.totalorder %s62, %s65
      %p71 = scmp.eq.s32.totalorder %s10, 0
      %p72 = por %p70, %p71
      %p73 = scmp.ne.s32.totalorder %s62, %s65
      %p74 = scmp.eq.s32.totalorder %s15, 8
      %p75 = por %p73, %p74
      %p76 = scmp.ne.s32.totalorder %s65, %s66
      %p77 = scmp.eq.s32.totalorder %s15, 0
      %p78 = por %p76, %p77
      %p79 = scmp.ne.s32.totalorder %s65, %s66
      %p80 = scmp.eq.s32.totalorder %s16, 8
      %p81 = por %p79, %p80
      %p83 = scmp.ne.s32.totalorder %s66, %s82
      %p84 = scmp.eq.s32.totalorder %s16, 0
      %p85 = por %p83, %p84
      %s86 = ssub.s32 %s10, %s17
      %p87 = scmp.eq.s32.totalorder %s86, 0
      %s89 = sadd.s32 %s88, 1
      %s90 = scalar_select %p87, %s88, %s89
      %p93 = pneg %p87
      %p94 = scmp.eq.s32.totalorder %s10, 8
      %p95 = por %p93, %p94
      %p96 = scmp.ne.s32.totalorder %s88, %s91
      %p97 = scmp.eq.s32.totalorder %s10, 0
      %p98 = por %p96, %p97
      %p99 = scmp.ne.s32.totalorder %s88, %s91
      %p100 = scmp.eq.s32.totalorder %s15, 8
      %p101 = por %p99, %p100
      %p102 = scmp.ne.s32.totalorder %s91, %s92
      %p103 = scmp.eq.s32.totalorder %s15, 0
      %p104 = por %p102, %p103
      %p105 = scmp.ne.s32.totalorder %s91, %s92
      %p106 = scmp.eq.s32.totalorder %s16, 8
      %p107 = por %p105, %p106
      %p109 = scmp.ne.s32.totalorder %s92, %s108
      %p110 = scmp.eq.s32.totalorder %s16, 0
      %p111 = por %p109, %p110
      %s112 = ssub.s32 %s10, %s17
      %p113 = scmp.eq.s32.totalorder %s112, 0
      %s115 = sadd.s32 %s114, 1
      %s116 = scalar_select %p113, %s114, %s115
      %p119 = pneg %p113
      %p120 = scmp.eq.s32.totalorder %s10, 8
      %p121 = por %p119, %p120
      %p122 = scmp.ne.s32.totalorder %s114, %s117
      %p123 = scmp.eq.s32.totalorder %s10, 0
      %p124 = por %p122, %p123
      %p125 = scmp.ne.s32.totalorder %s114, %s117
      %p126 = scmp.eq.s32.totalorder %s15, 8
      %p127 = por %p125, %p126
      %p128 = scmp.ne.s32.totalorder %s117, %s118
      %p129 = scmp.eq.s32.totalorder %s15, 0
      %p130 = por %p128, %p129
      %p131 = scmp.ne.s32.totalorder %s117, %s118
      %p132 = scmp.eq.s32.totalorder %s16, 8
      %p133 = por %p131, %p132
      %p135 = scmp.ne.s32.totalorder %s118, %s134
      %p136 = scmp.eq.s32.totalorder %s16, 0
      %p137 = por %p135, %p136
      %p138 = scmp.le.s32.totalorder 1, %s10
      %p139 = scmp.lt.s32.totalorder %s10, 10
      %p140 = pnand %p138, %p139
      %p141 = pneg %p140
      // Predicated region
      $region9: #{_lambda_.20} parent=5 // pred_check
        _
      $region10: #{_lambda_.20} parent=5 // pred_check_branch
        %143 = sbr.rel (%p140) target = $region12
      $region11: #{_lambda_.20} parent=5 // pred_region
        %s144 = ssub.s32 %s10, 1
        // Predicated region
        $region13: #{_lambda_.20} parent=11 // pred_check
          %p145 = pneg %p31
        $region14: #{_lambda_.20} parent=11 // pred_check_branch
          %147 = sbr.rel (%p145) target = $region16
        $region15: #{_lambda_.20} parent=11 // pred_region
          _
        $region16: #{_lambda_.20} parent=11 // pred_fallthru
          _
        // Predicated region
        $region17: #{_lambda_.20} parent=11 // pred_check
          %p148 = pneg %p52
        $region18: #{_lambda_.20} parent=11 // pred_check_branch
          %150 = sbr.rel (%p148) target = $region20
        $region19: #{_lambda_.20} parent=11 // pred_region
          _
        $region20: #{_lambda_.20} parent=11 // pred_fallthru
          _
      $region12: #{_lambda_.20} parent=5 // pred_fallthru
        _
      %p151 = scmp.lt.s32.totalorder %s10, 9
      // Predicated region
      $region21: #{_lambda_.20} parent=5 // pred_check
        %p152 = pneg %p151
      $region22: #{_lambda_.20} parent=5 // pred_check_branch
        %154 = sbr.rel (%p152) target = $region24
      $region23: #{_lambda_.20} parent=5 // pred_region
        // Predicated region
        $region25: #{_lambda_.20} parent=23 // pred_check
          %p155 = pneg %p72
        $region26: #{_lambda_.20} parent=23 // pred_check_branch
          %157 = sbr.rel (%p155) target = $region28
        $region27: #{_lambda_.20} parent=23 // pred_region
          %s158 = sand.u32 %s62, 1
          %s159 = sand.u32 %s62, 1
          %s160 = smul.addr %s159, 288
          %s161 = scalar_lea.vmem [#allocation2], %s160
          %s162 = smul.u32 4, %s10
          %s163 = smul.addr %s162, 4
          %s164 = scalar_lea.vmem %s2, %s163
          // Predicated region
          $region29: #{_lambda_.20} parent=27 // pred_check
            _
          $region30: #{_lambda_.20} parent=27 // pred_check_branch
            %166 = sbr.rel (0) target = $region32
          $region31: #{_lambda_.20} parent=27 // pred_region
            // Predicated region
            $region33: #{_lambda_.20} parent=31 // pred_check
              _
            $region34: #{_lambda_.20} parent=31 // pred_check_branch
              %168 = sbr.rel (0) target = $region36
            $region35: #{_lambda_.20} parent=31 // pred_region
              loop: start=0, step=1, limit=1
              $region37: #{_lambda_.20} parent=35 // loop_pre_header
                _
              $region38: #{_lambda_.20} parent=35 // loop_header
                %s170 = sphi 0, %s174
                %p171 = scmp.ge.s32.totalorder %s170, 1
                %s175 = sphi %s164, %s164
                %s176 = sphi %s161, %s161
              $region39: #{_lambda_.20} parent=35 // loop_header_branch
                %173 = sbr.rel (%p171) target = $region43
              $region40: #{_lambda_.20} parent=35 // loop_body
                %v177 = vld [vmem:[%s175] sm:$0xff]
                %178 = vst [vmem:[%s176] sm:$0xff] %v177
                %v179 = vld [vmem:[%s175 + $0x8] sm:$0xff]
                %180 = vst [vmem:[%s176 + $0x8] sm:$0xff] %v179
                %v181 = vld [vmem:[%s175 + $0x90] sm:$0xff]
                %182 = vst [vmem:[%s176 + $0x10] sm:$0xff] %v181
                %v183 = vld [vmem:[%s175 + $0x98] sm:$0xff]
                %184 = vst [vmem:[%s176 + $0x18] sm:$0xff] %v183
                %v185 = vld [vmem:[%s175 + $0x120] sm:$0xff]
                %186 = vst [vmem:[%s176 + $0x20] sm:$0xff] %v185
                %v187 = vld [vmem:[%s175 + $0x128] sm:$0xff]
                %188 = vst [vmem:[%s176 + $0x28] sm:$0xff] %v187
                %v189 = vld [vmem:[%s175 + $0x1b0] sm:$0xff]
                %190 = vst [vmem:[%s176 + $0x30] sm:$0xff] %v189
                %v191 = vld [vmem:[%s175 + $0x1b8] sm:$0xff]
                %192 = vst [vmem:[%s176 + $0x38] sm:$0xff] %v191
                %v193 = vld [vmem:[%s175 + $0x240] sm:$0xff]
                %194 = vst [vmem:[%s176 + $0x40] sm:$0xff] %v193
                %v195 = vld [vmem:[%s175 + $0x248] sm:$0xff]
                %196 = vst [vmem:[%s176 + $0x48] sm:$0xff] %v195
                %v197 = vld [vmem:[%s175 + $0x2d0] sm:$0xff]
                %198 = vst [vmem:[%s176 + $0x50] sm:$0xff] %v197
                %v199 = vld [vmem:[%s175 + $0x2d8] sm:$0xff]
                %200 = vst [vmem:[%s176 + $0x58] sm:$0xff] %v199
                %v201 = vld [vmem:[%s175 + $0x360] sm:$0xff]
                %202 = vst [vmem:[%s176 + $0x60] sm:$0xff] %v201
                %v203 = vld [vmem:[%s175 + $0x368] sm:$0xff]
                %204 = vst [vmem:[%s176 + $0x68] sm:$0xff] %v203
                %v205 = vld [vmem:[%s175 + $0x3f0] sm:$0xff]
                %206 = vst [vmem:[%s176 + $0x70] sm:$0xff] %v205
                %v207 = vld [vmem:[%s175 + $0x3f8] sm:$0xff]
                %208 = vst [vmem:[%s176 + $0x78] sm:$0xff] %v207
                %v209 = vld [vmem:[%s175 + $0x480] sm:$0xff]
                %210 = vst [vmem:[%s176 + $0x80] sm:$0xff] %v209
                %v211 = vld [vmem:[%s175 + $0x488] sm:$0xff]
                %212 = vst [vmem:[%s176 + $0x88] sm:$0xff] %v211
                %v213 = vld [vmem:[%s175 + $0x510] sm:$0xff]
                %214 = vst [vmem:[%s176 + $0x90] sm:$0xff] %v213
                %v215 = vld [vmem:[%s175 + $0x518] sm:$0xff]
                %216 = vst [vmem:[%s176 + $0x98] sm:$0xff] %v215
                %v217 = vld [vmem:[%s175 + $0x5a0] sm:$0xff]
                %218 = vst [vmem:[%s176 + $0xa0] sm:$0xff] %v217
                %v219 = vld [vmem:[%s175 + $0x5a8] sm:$0xff]
                %220 = vst [vmem:[%s176 + $0xa8] sm:$0xff] %v219
                %v221 = vld [vmem:[%s175 + $0x630] sm:$0xff]
                %222 = vst [vmem:[%s176 + $0xb0] sm:$0xff] %v221
                %v223 = vld [vmem:[%s175 + $0x638] sm:$0xff]
                %224 = vst [vmem:[%s176 + $0xb8] sm:$0xff] %v223
                %v225 = vld [vmem:[%s175 + $0x6c0] sm:$0xff]
                %226 = vst [vmem:[%s176 + $0xc0] sm:$0xff] %v225
                %v227 = vld [vmem:[%s175 + $0x6c8] sm:$0xff]
                %228 = vst [vmem:[%s176 + $0xc8] sm:$0xff] %v227
                %v229 = vld [vmem:[%s175 + $0x750] sm:$0xff]
                %230 = vst [vmem:[%s176 + $0xd0] sm:$0xff] %v229
                %v231 = vld [vmem:[%s175 + $0x758] sm:$0xff]
                %232 = vst [vmem:[%s176 + $0xd8] sm:$0xff] %v231
                %v233 = vld [vmem:[%s175 + $0x7e0] sm:$0xff]
                %234 = vst [vmem:[%s176 + $0xe0] sm:$0xff] %v233
                %v235 = vld [vmem:[%s175 + $0x7e8] sm:$0xff]
                %236 = vst [vmem:[%s176 + $0xe8] sm:$0xff] %v235
                %v237 = vld [vmem:[%s175 + $0x870] sm:$0xff]
                %238 = vst [vmem:[%s176 + $0xf0] sm:$0xff] %v237
                %v239 = vld [vmem:[%s175 + $0x878] sm:$0xff]
                %240 = vst [vmem:[%s176 + $0xf8] sm:$0xff] %v239
                %v241 = vld [vmem:[%s175 + $0x900] sm:$0xff]
                %242 = vst [vmem:[%s176 + $0x100] sm:$0xff] %v241
                %v243 = vld [vmem:[%s175 + $0x908] sm:$0xff]
                %244 = vst [vmem:[%s176 + $0x108] sm:$0xff] %v243
                %v245 = vld [vmem:[%s175 + $0x990] sm:$0xff]
                %246 = vst [vmem:[%s176 + $0x110] sm:$0xff] %v245
                %v247 = vld [vmem:[%s175 + $0x998] sm:$0xff]
                %248 = vst [vmem:[%s176 + $0x118] sm:$0xff] %v247
              $region41: #{_lambda_.20} parent=35 // loop_footer
                %s174 = sadd.s32 1, %s170
              $region42: #{_lambda_.20} parent=35 // loop_footer_branch
                %169 = sbr.rel target = $region38
              $region43: #{_lambda_.20} parent=35 // loop_exit
                _
            $region36: #{_lambda_.20} parent=31 // pred_fallthru
              _
            // Predicated region
            $region44: #{_lambda_.20} parent=31 // pred_check
              _
            $region45: #{_lambda_.20} parent=31 // pred_check_branch
              %250 = sbr.rel target = $region47
            $region46: #{_lambda_.20} parent=31 // pred_region
              _
            $region47: #{_lambda_.20} parent=31 // pred_fallthru
              _
          $region32: #{_lambda_.20} parent=27 // pred_fallthru
            _
          %251 = vnop
        $region28: #{_lambda_.20} parent=23 // pred_fallthru
          _
        // Predicated region
        $region48: #{_lambda_.20} parent=23 // pred_check
          %p252 = pneg %p98
        $region49: #{_lambda_.20} parent=23 // pred_check_branch
          %254 = sbr.rel (%p252) target = $region51
        $region50: #{_lambda_.20} parent=23 // pred_region
          %s255 = sand.u32 %s88, 1
          %s256 = sand.u32 %s88, 1
          %s257 = smul.addr %s256, 32
          %s258 = scalar_lea.vmem [#allocation3], %s257
          %s259 = smul.u32 4, %s10
          %s260 = smul.addr %s259, 4
          %s261 = scalar_lea.vmem %s3, %s260
          // Predicated region
          $region52: #{_lambda_.20} parent=50 // pred_check
            _
          $region53: #{_lambda_.20} parent=50 // pred_check_branch
            %263 = sbr.rel (0) target = $region55
          $region54: #{_lambda_.20} parent=50 // pred_region
            // Predicated region
            $region56: #{_lambda_.20} parent=54 // pred_check
              _
            $region57: #{_lambda_.20} parent=54 // pred_check_branch
              %265 = sbr.rel (0) target = $region59
            $region58: #{_lambda_.20} parent=54 // pred_region
              loop: start=0, step=1, limit=1
              $region60: #{_lambda_.20} parent=58 // loop_pre_header
                _
              $region61: #{_lambda_.20} parent=58 // loop_header
                %s267 = sphi 0, %s271
                %p268 = scmp.ge.s32.totalorder %s267, 1
                %s272 = sphi %s261, %s261
                %s273 = sphi %s258, %s258
              $region62: #{_lambda_.20} parent=58 // loop_header_branch
                %270 = sbr.rel (%p268) target = $region66
              $region63: #{_lambda_.20} parent=58 // loop_body
                %v274 = vld [vmem:[%s272] sm:$0xff]
                %275 = vst [vmem:[%s273] sm:$0xff] %v274
                %v276 = vld [vmem:[%s272 + $0x8] sm:$0xff]
                %277 = vst [vmem:[%s273 + $0x8] sm:$0xff] %v276
                %v278 = vld [vmem:[%s272 + $0x90] sm:$0xff]
                %279 = vst [vmem:[%s273 + $0x10] sm:$0xff] %v278
                %v280 = vld [vmem:[%s272 + $0x98] sm:$0xff]
                %281 = vst [vmem:[%s273 + $0x18] sm:$0xff] %v280
              $region64: #{_lambda_.20} parent=58 // loop_footer
                %s271 = sadd.s32 1, %s267
              $region65: #{_lambda_.20} parent=58 // loop_footer_branch
                %266 = sbr.rel target = $region61
              $region66: #{_lambda_.20} parent=58 // loop_exit
                _
            $region59: #{_lambda_.20} parent=54 // pred_fallthru
              _
            // Predicated region
            $region67: #{_lambda_.20} parent=54 // pred_check
              _
            $region68: #{_lambda_.20} parent=54 // pred_check_branch
              %283 = sbr.rel target = $region70
            $region69: #{_lambda_.20} parent=54 // pred_region
              _
            $region70: #{_lambda_.20} parent=54 // pred_fallthru
              _
          $region55: #{_lambda_.20} parent=50 // pred_fallthru
            _
          %284 = vnop
        $region51: #{_lambda_.20} parent=23 // pred_fallthru
          _
      $region24: #{_lambda_.20} parent=5 // pred_fallthru
        _
      %p285 = scmp.le.s32.totalorder 1, %s10
      %p286 = scmp.lt.s32.totalorder %s10, 10
      %p287 = pnand %p285, %p286
      %p288 = pneg %p287
      // Predicated region
      $region71: #{_lambda_.20} parent=5 // pred_check
        _
      $region72: #{_lambda_.20} parent=5 // pred_check_branch
        %290 = sbr.rel (%p287) target = $region74
      $region73: #{_lambda_.20} parent=5 // pred_region
        %s291 = ssub.s32 %s10, 1
        %s292 = sand.u32 %s65, 1
        %s293 = sand.u32 %s65, 1
        %s294 = smul.addr %s293, 288
        %s295 = scalar_lea.vmem [#allocation2], %s294
        // Predicated region
        $region75: #{_lambda_.20} parent=73 // pred_check
          %p296 = pneg %p78
        $region76: #{_lambda_.20} parent=73 // pred_check_branch
          %298 = sbr.rel (%p296) target = $region78
        $region77: #{_lambda_.20} parent=73 // pred_region
          _
        $region78: #{_lambda_.20} parent=73 // pred_fallthru
          _
        %s299 = sand.u32 %s91, 1
        %s300 = sand.u32 %s91, 1
        %s301 = smul.addr %s300, 32
        %s302 = scalar_lea.vmem [#allocation3], %s301
        // Predicated region
        $region79: #{_lambda_.20} parent=73 // pred_check
          %p303 = pneg %p104
        $region80: #{_lambda_.20} parent=73 // pred_check_branch
          %305 = sbr.rel (%p303) target = $region82
        $region81: #{_lambda_.20} parent=73 // pred_region
          _
        $region82: #{_lambda_.20} parent=73 // pred_fallthru
          _
        %p306 = pneg %p31
        %p307 = pneg %p28
        %p308 = pneg %p52
        %p309 = pneg %p49
        %s310 = sand.u32 %s65, 1
        %s311 = sand.u32 %s65, 1
        %s312 = smul.addr %s311, 288
        %s313 = scalar_lea.vmem [#allocation2], %s312
        %p314 = pneg %p78
        %p315 = pneg %p75
        %s316 = sand.u32 %s91, 1
        %s317 = sand.u32 %s91, 1
        %s318 = smul.addr %s317, 32
        %s319 = scalar_lea.vmem [#allocation3], %s318
        %p320 = pneg %p104
        %p321 = pneg %p101
        %p322 = pneg %p130
        %p323 = pneg %p127
        %s324 = sand.u32 %s117, 1
        %s325 = sand.u32 %s117, 1
        %s326 = smul.addr %s325, 32
        %s327 = scalar_lea.vmem [#allocation4], %s326
        %s328 = smul.u32 4, %s15
        %s329 = smul.u32 4, %s15
        %s330 = smul.u32 4, %s15
        %v332 = vld [vmem:[%s0] sm:$0xff]
        %v333 = vld [vmem:[%s0 + $0x8] sm:$0xff]
        %v334 = vld [vmem:[%s295] sm:$0xff]
        %v335 = vld [vmem:[%s295 + $0x8] sm:$0xff]
        %v336 = vld [vmem:[%s295 + $0x10] sm:$0xff]
        %v337 = vld [vmem:[%s295 + $0x18] sm:$0xff]
        %v338 = vld [vmem:[%s295 + $0x20] sm:$0xff]
        %v339 = vld [vmem:[%s295 + $0x28] sm:$0xff]
        %v340 = vld [vmem:[%s295 + $0x30] sm:$0xff]
        %v341 = vld [vmem:[%s295 + $0x38] sm:$0xff]
        %v342 = vld [vmem:[%s295 + $0x40] sm:$0xff]
        %v343 = vld [vmem:[%s295 + $0x48] sm:$0xff]
        %v344 = vld [vmem:[%s295 + $0x50] sm:$0xff]
        %v345 = vld [vmem:[%s295 + $0x58] sm:$0xff]
        %v346 = vld [vmem:[%s295 + $0x60] sm:$0xff]
        %v347 = vld [vmem:[%s295 + $0x68] sm:$0xff]
        %v348 = vld [vmem:[%s295 + $0x70] sm:$0xff]
        %v349 = vld [vmem:[%s295 + $0x78] sm:$0xff]
        %v350 = vld [vmem:[%s295 + $0x80] sm:$0xff]
        %v351 = vld [vmem:[%s295 + $0x88] sm:$0xff]
        %v352 = vld [vmem:[%s295 + $0x90] sm:$0xff]
        %v353 = vld [vmem:[%s295 + $0x98] sm:$0xff]
        %v354 = vld [vmem:[%s295 + $0xa0] sm:$0xff]
        %v355 = vld [vmem:[%s295 + $0xa8] sm:$0xff]
        %v356 = vld [vmem:[%s295 + $0xb0] sm:$0xff]
        %v357 = vld [vmem:[%s295 + $0xb8] sm:$0xff]
        %v358 = vld [vmem:[%s295 + $0xc0] sm:$0xff]
        %v359 = vld [vmem:[%s295 + $0xc8] sm:$0xff]
        %v360 = vld [vmem:[%s295 + $0xd0] sm:$0xff]
        %v361 = vld [vmem:[%s295 + $0xd8] sm:$0xff]
        %v362 = vld [vmem:[%s295 + $0xe0] sm:$0xff]
        %v363 = vld [vmem:[%s295 + $0xe8] sm:$0xff]
        %v364 = vld [vmem:[%s295 + $0xf0] sm:$0xff]
        %v365 = vld [vmem:[%s295 + $0xf8] sm:$0xff]
        %v366 = vld [vmem:[%s295 + $0x100] sm:$0xff]
        %v367 = vld [vmem:[%s295 + $0x108] sm:$0xff]
        %v368 = vld [vmem:[%s295 + $0x110] sm:$0xff]
        %v369 = vld [vmem:[%s295 + $0x118] sm:$0xff]
        %v370 = vld [vmem:[%s1] sm:$0xff]
        %v371 = vld [vmem:[%s1 + $0x8] sm:$0xff]
        %373 = vset.pattern.permute.xlu0 0
        %374 = vperm.xlu0 %373, %v370
        %v375 = vpop.permute.xlu0 %374
        %378 = vset.pattern.permute.xlu0 0
        %379 = vperm.xlu0 %378, %v371
        %v380 = vpop.permute.xlu0 %379
        %v384 = vunpack.c.l.b16 %v332
        %v385 = vunpack.c.h.b16 %v332
        %v386 = vunpack.c.l.b16 %v333
        %v387 = vunpack.c.h.b16 %v333
        %v388 = vpack.c.b16 %v386, %v384
        %v389 = vpack.c.b16 %v387, %v385
        %v427 = vunpack.c.l.b16 %v334
        %v428 = vunpack.c.h.b16 %v334
        %v429 = vunpack.c.l.b16 %v335
        %v430 = vunpack.c.h.b16 %v335
        %v431 = vunpack.c.l.b16 %v336
        %v432 = vunpack.c.h.b16 %v336
        %v433 = vunpack.c.l.b16 %v337
        %v434 = vunpack.c.h.b16 %v337
        %v435 = vunpack.c.l.b16 %v338
        %v436 = vunpack.c.h.b16 %v338
        %v437 = vunpack.c.l.b16 %v339
        %v438 = vunpack.c.h.b16 %v339
        %v439 = vunpack.c.l.b16 %v340
        %v440 = vunpack.c.h.b16 %v340
        %v441 = vunpack.c.l.b16 %v341
        %v442 = vunpack.c.h.b16 %v341
        %v443 = vunpack.c.l.b16 %v342
        %v444 = vunpack.c.h.b16 %v342
        %v445 = vunpack.c.l.b16 %v343
        %v446 = vunpack.c.h.b16 %v343
        %v447 = vunpack.c.l.b16 %v344
        %v448 = vunpack.c.h.b16 %v344
        %v449 = vunpack.c.l.b16 %v345
        %v450 = vunpack.c.h.b16 %v345
        %v451 = vunpack.c.l.b16 %v346
        %v452 = vunpack.c.h.b16 %v346
        %v453 = vunpack.c.l.b16 %v347
        %v454 = vunpack.c.h.b16 %v347
        %v455 = vunpack.c.l.b16 %v348
        %v456 = vunpack.c.h.b16 %v348
        %v457 = vunpack.c.l.b16 %v349
        %v458 = vunpack.c.h.b16 %v349
        %v459 = vunpack.c.l.b16 %v350
        %v460 = vunpack.c.h.b16 %v350
        %v461 = vunpack.c.l.b16 %v351
        %v462 = vunpack.c.h.b16 %v351
        %v463 = vunpack.c.l.b16 %v352
        %v464 = vunpack.c.h.b16 %v352
        %v465 = vunpack.c.l.b16 %v353
        %v466 = vunpack.c.h.b16 %v353
        %v467 = vunpack.c.l.b16 %v354
        %v468 = vunpack.c.h.b16 %v354
        %v469 = vunpack.c.l.b16 %v355
        %v470 = vunpack.c.h.b16 %v355
        %v471 = vunpack.c.l.b16 %v356
        %v472 = vunpack.c.h.b16 %v356
        %v473 = vunpack.c.l.b16 %v357
        %v474 = vunpack.c.h.b16 %v357
        %v475 = vunpack.c.l.b16 %v358
        %v476 = vunpack.c.h.b16 %v358
        %v477 = vunpack.c.l.b16 %v359
        %v478 = vunpack.c.h.b16 %v359
        %v479 = vunpack.c.l.b16 %v360
        %v480 = vunpack.c.h.b16 %v360
        %v481 = vunpack.c.l.b16 %v361
        %v482 = vunpack.c.h.b16 %v361
        %v483 = vunpack.c.l.b16 %v362
        %v484 = vunpack.c.h.b16 %v362
        %v485 = vunpack.c.l.b16 %v363
        %v486 = vunpack.c.h.b16 %v363
        %v487 = vunpack.c.l.b16 %v364
        %v488 = vunpack.c.h.b16 %v364
        %v489 = vunpack.c.l.b16 %v365
        %v490 = vunpack.c.h.b16 %v365
        %v491 = vunpack.c.l.b16 %v366
        %v492 = vunpack.c.h.b16 %v366
        %v493 = vunpack.c.l.b16 %v367
        %v494 = vunpack.c.h.b16 %v367
        %v495 = vunpack.c.l.b16 %v368
        %v496 = vunpack.c.h.b16 %v368
        %v497 = vunpack.c.l.b16 %v369
        %v498 = vunpack.c.h.b16 %v369
        %v499 = vpack.c.b16 %v431, %v427
        %v500 = vpack.c.b16 %v432, %v428
        %v501 = vpack.c.b16 %v433, %v429
        %v502 = vpack.c.b16 %v434, %v430
        %v503 = vpack.c.b16 %v439, %v435
        %v504 = vpack.c.b16 %v440, %v436
        %v505 = vpack.c.b16 %v441, %v437
        %v506 = vpack.c.b16 %v442, %v438
        %v507 = vpack.c.b16 %v447, %v443
        %v508 = vpack.c.b16 %v448, %v444
        %v509 = vpack.c.b16 %v449, %v445
        %v510 = vpack.c.b16 %v450, %v446
        %v511 = vpack.c.b16 %v455, %v451
        %v512 = vpack.c.b16 %v456, %v452
        %v513 = vpack.c.b16 %v457, %v453
        %v514 = vpack.c.b16 %v458, %v454
        %v515 = vpack.c.b16 %v463, %v459
        %v516 = vpack.c.b16 %v464, %v460
        %v517 = vpack.c.b16 %v465, %v461
        %v518 = vpack.c.b16 %v466, %v462
        %v519 = vpack.c.b16 %v471, %v467
        %v520 = vpack.c.b16 %v472, %v468
        %v521 = vpack.c.b16 %v473, %v469
        %v522 = vpack.c.b16 %v474, %v470
        %v523 = vpack.c.b16 %v479, %v475
        %v524 = vpack.c.b16 %v480, %v476
        %v525 = vpack.c.b16 %v481, %v477
        %v526 = vpack.c.b16 %v482, %v478
        %v527 = vpack.c.b16 %v487, %v483
        %v528 = vpack.c.b16 %v488, %v484
        %v529 = vpack.c.b16 %v489, %v485
        %v530 = vpack.c.b16 %v490, %v486
        %v531 = vpack.c.b16 %v495, %v491
        %v532 = vpack.c.b16 %v496, %v492
        %v533 = vpack.c.b16 %v497, %v493
        %v534 = vpack.c.b16 %v498, %v494
        %vm571 = vcmask 130048
        %v573 = vsel %vm571, %v389, 0
        %575 = vmatprep.subr.bf16.mxu0 %v500
        %576 = vmatpush1.bf16.msra.mxu0 %v499
        %577 = vmatprep.subr.bf16.mxu0 %v504
        %578 = vmatpush1.bf16.msra.mxu0 %v503
        %579 = vmatprep.subr.bf16.mxu0 %v508
        %580 = vmatpush1.bf16.msra.mxu0 %v507
        %581 = vmatprep.subr.bf16.mxu0 %v512
        %582 = vmatpush1.bf16.msra.mxu0 %v511
        %583 = vmatprep.subr.bf16.mxu0 %v516
        %584 = vmatpush1.bf16.msra.mxu0 %v515
        %585 = vmatprep.subr.bf16.mxu0 %v520
        %586 = vmatpush1.bf16.msra.mxu0 %v519
        %587 = vmatprep.subr.bf16.mxu0 %v524
        %588 = vmatpush1.bf16.msra.mxu0 %v523
        %589 = vmatprep.subr.bf16.mxu0 %v528
        %590 = vmatpush1.bf16.msra.mxu0 %v527
        %591 = vmatprep.subr.bf16.mxu0 %v532
        %592 = vmatpush1.bf16.msra.mxu0 %v531
        %593 = vmatprep.subr.bf16.mxu0 0
        %594 = vmatpush1.bf16.msra.mxu0 0
        %595 = vmatprep.subr.bf16.mxu0 0
        %596 = vmatpush1.bf16.msra.mxu0 0
        %597 = vmatprep.subr.bf16.mxu0 0
        %598 = vmatpush1.bf16.msra.mxu0 0
        %599 = vmatprep.subr.bf16.mxu0 0
        %600 = vmatpush1.bf16.msra.mxu0 0
        %601 = vmatprep.subr.bf16.mxu0 0
        %602 = vmatpush1.bf16.msra.mxu0 0
        %603 = vmatprep.subr.bf16.mxu0 0
        %604 = vmatpush1.bf16.msra.mxu0 0
        %605 = vmatprep.subr.bf16.mxu0 0
        %606 = vmatpush1.bf16.msra.mxu0 0
        %607 = vmatprep.mubr.bf16.mxu0 %v573
        %608 = vmatmul.mubr.bf16.gmra.mrb[0].mxu0 %v388
        %v609 = vpop.f32.mrb[0].mxu0
        %v610 = vadd.f32 %v375, %v609
        %v611 = vpop.f32.mrb[0].mxu0
        %v612 = vadd.f32 %v375, %v611
        %v613 = vpop.f32.mrb[0].mxu0
        %v614 = vadd.f32 %v380, %v613
        %v615 = vpop.f32.mrb[0].mxu0
        %v616 = vadd.f32 %v380, %v615
        %617 = vdwg.mxu0
        %618 = vmatprep.subr.bf16.mxu0 %v502
        %619 = vmatpush1.bf16.msra.mxu0 %v501
        %620 = vmatprep.subr.bf16.mxu0 %v506
        %621 = vmatpush1.bf16.msra.mxu0 %v505
        %622 = vmatprep.subr.bf16.mxu0 %v510
        %623 = vmatpush1.bf16.msra.mxu0 %v509
        %624 = vmatprep.subr.bf16.mxu0 %v514
        %625 = vmatpush1.bf16.msra.mxu0 %v513
        %626 = vmatprep.subr.bf16.mxu0 %v518
        %627 = vmatpush1.bf16.msra.mxu0 %v517
        %628 = vmatprep.subr.bf16.mxu0 %v522
        %629 = vmatpush1.bf16.msra.mxu0 %v521
        %630 = vmatprep.subr.bf16.mxu0 %v526
        %631 = vmatpush1.bf16.msra.mxu0 %v525
        %632 = vmatprep.subr.bf16.mxu0 %v530
        %633 = vmatpush1.bf16.msra.mxu0 %v529
        %634 = vmatprep.subr.bf16.mxu0 %v534
        %635 = vmatpush1.bf16.msra.mxu0 %v533
        %636 = vmatprep.subr.bf16.mxu0 0
        %637 = vmatpush1.bf16.msra.mxu0 0
        %638 = vmatprep.subr.bf16.mxu0 0
        %639 = vmatpush1.bf16.msra.mxu0 0
        %640 = vmatprep.subr.bf16.mxu0 0
        %641 = vmatpush1.bf16.msra.mxu0 0
        %642 = vmatprep.subr.bf16.mxu0 0
        %643 = vmatpush1.bf16.msra.mxu0 0
        %644 = vmatprep.subr.bf16.mxu0 0
        %645 = vmatpush1.bf16.msra.mxu0 0
        %646 = vmatprep.subr.bf16.mxu0 0
        %647 = vmatpush1.bf16.msra.mxu0 0
        %648 = vmatprep.subr.bf16.mxu0 0
        %649 = vmatpush1.bf16.msra.mxu0 0
        %650 = vmatprep.mubr.bf16.mxu0 %v573
        %651 = vmatmul.mubr.bf16.gmra.mrb[0].mxu0 %v388
        %v652 = vpop.f32.mrb[0].mxu0
        %v653 = vadd.f32 %v375, %v652
        %v654 = vpop.f32.mrb[0].mxu0
        %v655 = vadd.f32 %v375, %v654
        %v656 = vpop.f32.mrb[0].mxu0
        %v657 = vadd.f32 %v380, %v656
        %v658 = vpop.f32.mrb[0].mxu0
        %v659 = vadd.f32 %v380, %v658
        %660 = vdwg.mxu0
        %v661 = vld [vmem:[%s302] sm:$0xff]
        %v662 = vld [vmem:[%s302 + $0x8] sm:$0xff]
        %v663 = vld [vmem:[%s302 + $0x10] sm:$0xff]
        %v664 = vld [vmem:[%s302 + $0x18] sm:$0xff]
        %v665 = vunpack.c.l.bf16 %v661
        %v666 = vunpack.c.h.bf16 %v661
        %v667 = vunpack.c.l.bf16 %v662
        %v668 = vunpack.c.h.bf16 %v662
        %v669 = vunpack.c.l.bf16 %v663
        %v670 = vunpack.c.h.bf16 %v663
        %v671 = vunpack.c.l.bf16 %v664
        %v672 = vunpack.c.h.bf16 %v664
        %v673 = vadd.f32 %v610, %v665
        %v674 = vadd.f32 %v612, %v666
        %v675 = vadd.f32 %v653, %v667
        %v676 = vadd.f32 %v655, %v668
        %v677 = vadd.f32 %v614, %v669
        %v678 = vadd.f32 %v616, %v670
        %v679 = vadd.f32 %v657, %v671
        %v680 = vadd.f32 %v659, %v672
        %v681 = vmax.f32 %v673, 0.0
        %v682 = vmax.f32 %v674, 0.0
        %v683 = vmax.f32 %v675, 0.0
        %v684 = vmax.f32 %v676, 0.0
        %v685 = vmax.f32 %v677, 0.0
        %v686 = vmax.f32 %v678, 0.0
        %v687 = vmax.f32 %v679, 0.0
        %v688 = vmax.f32 %v680, 0.0
        %v689 = vpack.c.bf16 %v685, %v681
        %v690 = vpack.c.bf16 %v686, %v682
        %v691 = vpack.c.bf16 %v687, %v683
        %v692 = vpack.c.bf16 %v688, %v684
        %v697 = vunpack.c.l.b16 %v689
        %v698 = vunpack.c.l.b16 %v690
        %v699 = vunpack.c.l.b16 %v691
        %v700 = vunpack.c.l.b16 %v692
        %v701 = vunpack.c.h.b16 %v689
        %v702 = vunpack.c.h.b16 %v690
        %v703 = vunpack.c.h.b16 %v691
        %v704 = vunpack.c.h.b16 %v692
        %v705 = vpack.c.b16 %v698, %v697
        %v706 = vpack.c.b16 %v700, %v699
        %v707 = vpack.c.b16 %v702, %v701
        %v708 = vpack.c.b16 %v704, %v703
        %713 = vst [vmem:[%s327] sm:$0xff] %v705
        %714 = vst [vmem:[%s327 + $0x8] sm:$0xff] %v706
        %715 = vst [vmem:[%s327 + $0x10] sm:$0xff] %v707
        %716 = vst [vmem:[%s327 + $0x18] sm:$0xff] %v708
        %s717 = sand.u32 %s117, 1
        %s718 = sand.u32 %s117, 1
        %s719 = smul.addr %s718, 32
        %s720 = scalar_lea.vmem [#allocation4], %s719
        // Predicated region
        $region83: #{_lambda_.20} parent=73 // pred_check
          %p721 = pneg %p127
        $region84: #{_lambda_.20} parent=73 // pred_check_branch
          %723 = sbr.rel (%p721) target = $region86
        $region85: #{_lambda_.20} parent=73 // pred_region
          %s724 = smul.u32 4, %s15
          %s725 = smul.addr %s724, 4
          %s726 = scalar_lea.vmem %s4, %s725
          // Predicated region
          $region87: #{_lambda_.20} parent=85 // pred_check
            _
          $region88: #{_lambda_.20} parent=85 // pred_check_branch
            %728 = sbr.rel (0) target = $region90
          $region89: #{_lambda_.20} parent=85 // pred_region
            // Predicated region
            $region91: #{_lambda_.20} parent=89 // pred_check
              _
            $region92: #{_lambda_.20} parent=89 // pred_check_branch
              %730 = sbr.rel (0) target = $region94
            $region93: #{_lambda_.20} parent=89 // pred_region
              loop: start=0, step=1, limit=1
              $region95: #{_lambda_.20} parent=93 // loop_pre_header
                _
              $region96: #{_lambda_.20} parent=93 // loop_header
                %s732 = sphi 0, %s736
                %p733 = scmp.ge.s32.totalorder %s732, 1
                %s737 = sphi %s720, %s720
                %s738 = sphi %s726, %s726
              $region97: #{_lambda_.20} parent=93 // loop_header_branch
                %735 = sbr.rel (%p733) target = $region101
              $region98: #{_lambda_.20} parent=93 // loop_body
                %v739 = vld [vmem:[%s737] sm:$0xff]
                %740 = vst [vmem:[%s738] sm:$0xff] %v739
                %v741 = vld [vmem:[%s737 + $0x8] sm:$0xff]
                %742 = vst [vmem:[%s738 + $0x8] sm:$0xff] %v741
                %v743 = vld [vmem:[%s737 + $0x10] sm:$0xff]
                %744 = vst [vmem:[%s738 + $0x90] sm:$0xff] %v743
                %v745 = vld [vmem:[%s737 + $0x18] sm:$0xff]
                %746 = vst [vmem:[%s738 + $0x98] sm:$0xff] %v745
              $region99: #{_lambda_.20} parent=93 // loop_footer
                %s736 = sadd.s32 1, %s732
              $region100: #{_lambda_.20} parent=93 // loop_footer_branch
                %731 = sbr.rel target = $region96
              $region101: #{_lambda_.20} parent=93 // loop_exit
                _
            $region94: #{_lambda_.20} parent=89 // pred_fallthru
              _
            // Predicated region
            $region102: #{_lambda_.20} parent=89 // pred_check
              _
            $region103: #{_lambda_.20} parent=89 // pred_check_branch
              %748 = sbr.rel target = $region105
            $region104: #{_lambda_.20} parent=89 // pred_region
              _
            $region105: #{_lambda_.20} parent=89 // pred_fallthru
              _
          $region90: #{_lambda_.20} parent=85 // pred_fallthru
            _
          %749 = vnop
        $region86: #{_lambda_.20} parent=73 // pred_fallthru
          _
      $region74: #{_lambda_.20} parent=5 // pred_fallthru
        _
      %p750 = scmp.le.s32.totalorder 2, %s10
      // Predicated region
      $region106: #{_lambda_.20} parent=5 // pred_check
        %p751 = pneg %p750
      $region107: #{_lambda_.20} parent=5 // pred_check_branch
        %753 = sbr.rel (%p751) target = $region109
      $region108: #{_lambda_.20} parent=5 // pred_region
        %s754 = ssub.s32 %s10, 2
        // Predicated region
        $region110: #{_lambda_.20} parent=108 // pred_check
          %p755 = pneg %p133
        $region111: #{_lambda_.20} parent=108 // pred_check_branch
          %757 = sbr.rel (%p755) target = $region113
        $region112: #{_lambda_.20} parent=108 // pred_region
          %s758 = sand.u32 %s118, 1
          %s759 = sand.u32 %s118, 1
          %s760 = smul.addr %s759, 32
          %s761 = scalar_lea.vmem [#allocation4], %s760
        $region113: #{_lambda_.20} parent=108 // pred_fallthru
          _
      $region109: #{_lambda_.20} parent=5 // pred_fallthru
        _
    $region6: #{_lambda_.20} parent=1 // loop_footer
      %s14 = sadd.s32 1, %s10
    $region7: #{_lambda_.20} parent=1 // loop_footer_branch
      %9 = sbr.rel target = $region3
    $region8: #{_lambda_.20} parent=1 // loop_exit
      _

// kernel: _lambda_.21
$region0: #{_lambda_.21}
  #allocation0 [shape = 'u32[]', space=smem, size = 0x4, offset = 0x4, fixed_abs, tag = 'smem constant byte address 0x4 - core index']
  #allocation1 [shape = 'u32[144,128]{1,0:T(1,128)}', space=vmem, size = 0x12000, scoped, tag = 'internal scratch']
  %s0 = inlined_call_operand.vmem [shape: bf16[16,144], index: 0, kind: input, shape index: {}]
  %s1 = inlined_call_operand.vmem [shape: f32[16,1], index: 1, kind: input, shape index: {}]
  %s2 = inlined_call_operand.vmem [shape: bf16[144,1152], index: 2, kind: input, shape index: {}]
  %s3 = inlined_call_operand.vmem [shape: bf16[16,1152], index: 3, kind: output, shape index: {}]
  %s4 = sld [smem:[#allocation0]]
  $region93: #{_lambda_.21} parent=0
    _
  %s6 = ssub.s32 1, %s4
  %s7 = scalar_select 0, %s6, %s4
  $region1: #{_lambda_.21} parent=0
    #allocation2 [shape = 'u8[221184]{0}', space=vmem, size = 0x36000, scoped, tag = 'input window, operand 2']
    #allocation3 [shape = 'u8[24576]{0}', space=vmem, size = 0x6000, scoped, tag = 'output window, operand 0']
    loop: start=0, step=1, limit=5
    $region2: #{_lambda_.21} parent=1 // loop_pre_header
      _
    $region3: #{_lambda_.21} parent=1 // loop_header
      %s9 = sphi 0, %s13
      %p10 = scmp.ge.s32.totalorder %s9, 5
      %s17 = sphi 0, %s17
      %s19 = sphi 0, %s17
      %s20 = sphi 0, %s19
      %s34 = sphi 0, %s20
      %s38 = sphi 0, %s38
      %s40 = sphi 0, %s38
      %s41 = sphi 0, %s40
      %s55 = sphi 0, %s41
      %s61 = sphi 0, %s63
      %s64 = sphi 0, %s61
      %s65 = sphi 0, %s64
      %s81 = sphi 0, %s65
      %s87 = sphi 0, %s89
      %s90 = sphi 0, %s87
      %s91 = sphi 0, %s90
      %s107 = sphi 0, %s91
    $region4: #{_lambda_.21} parent=1 // loop_header_branch
      %12 = sbr.rel (%p10) target = $region8
    $region5: #{_lambda_.21} parent=1 // loop_body
      %s14 = ssub.s32 %s9, 1
      %s15 = ssub.s32 %s9, 2
      %s16 = sadd.s32 %s9, 1
      %s18 = sadd.s32 %s17, 1
      %p21 = scmp.eq.s32.totalorder %s9, 2
      %p22 = scmp.ne.s32.totalorder %s17, %s19
      %p23 = scmp.eq.s32.totalorder %s9, 0
      %p24 = por %p22, %p23
      %p25 = scmp.ne.s32.totalorder %s17, %s19
      %p26 = scmp.eq.s32.totalorder %s14, 2
      %p27 = por %p25, %p26
      %p28 = scmp.ne.s32.totalorder %s19, %s20
      %p29 = scmp.eq.s32.totalorder %s14, 0
      %p30 = por %p28, %p29
      %p31 = scmp.ne.s32.totalorder %s19, %s20
      %p32 = scmp.eq.s32.totalorder %s15, 2
      %p33 = por %p31, %p32
      %p35 = scmp.ne.s32.totalorder %s20, %s34
      %p36 = scmp.eq.s32.totalorder %s15, 0
      %p37 = por %p35, %p36
      %s39 = sadd.s32 %s38, 1
      %p42 = scmp.eq.s32.totalorder %s9, 2
      %p43 = scmp.ne.s32.totalorder %s38, %s40
      %p44 = scmp.eq.s32.totalorder %s9, 0
      %p45 = por %p43, %p44
      %p46 = scmp.ne.s32.totalorder %s38, %s40
      %p47 = scmp.eq.s32.totalorder %s14, 2
      %p48 = por %p46, %p47
      %p49 = scmp.ne.s32.totalorder %s40, %s41
      %p50 = scmp.eq.s32.totalorder %s14, 0
      %p51 = por %p49, %p50
      %p52 = scmp.ne.s32.totalorder %s40, %s41
      %p53 = scmp.eq.s32.totalorder %s15, 2
      %p54 = por %p52, %p53
      %p56 = scmp.ne.s32.totalorder %s41, %s55
      %p57 = scmp.eq.s32.totalorder %s15, 0
      %p58 = por %p56, %p57
      %s59 = ssub.s32 %s9, %s16
      %p60 = scmp.eq.s32.totalorder %s59, 0
      %s62 = sadd.s32 %s61, 1
      %s63 = scalar_select %p60, %s61, %s62
      %p66 = pneg %p60
      %p67 = scmp.eq.s32.totalorder %s9, 2
      %p68 = por %p66, %p67
      %p69 = scmp.ne.s32.totalorder %s61, %s64
      %p70 = scmp.eq.s32.totalorder %s9, 0
      %p71 = por %p69, %p70
      %p72 = scmp.ne.s32.totalorder %s61, %s64
      %p73 = scmp.eq.s32.totalorder %s14, 2
      %p74 = por %p72, %p73
      %p75 = scmp.ne.s32.totalorder %s64, %s65
      %p76 = scmp.eq.s32.totalorder %s14, 0
      %p77 = por %p75, %p76
      %p78 = scmp.ne.s32.totalorder %s64, %s65
      %p79 = scmp.eq.s32.totalorder %s15, 2
      %p80 = por %p78, %p79
      %p82 = scmp.ne.s32.totalorder %s65, %s81
      %p83 = scmp.eq.s32.totalorder %s15, 0
      %p84 = por %p82, %p83
      %s85 = ssub.s32 %s9, %s16
      %p86 = scmp.eq.s32.totalorder %s85, 0
      %s88 = sadd.s32 %s87, 1
      %s89 = scalar_select %p86, %s87, %s88
      %p92 = pneg %p86
      %p93 = scmp.eq.s32.totalorder %s9, 2
      %p94 = por %p92, %p93
      %p95 = scmp.ne.s32.totalorder %s87, %s90
      %p96 = scmp.eq.s32.totalorder %s9, 0
      %p97 = por %p95, %p96
      %p98 = scmp.ne.s32.totalorder %s87, %s90
      %p99 = scmp.eq.s32.totalorder %s14, 2
      %p100 = por %p98, %p99
      %p101 = scmp.ne.s32.totalorder %s90, %s91
      %p102 = scmp.eq.s32.totalorder %s14, 0
      %p103 = por %p101, %p102
      %p104 = scmp.ne.s32.totalorder %s90, %s91
      %p105 = scmp.eq.s32.totalorder %s15, 2
      %p106 = por %p104, %p105
      %p108 = scmp.ne.s32.totalorder %s91, %s107
      %p109 = scmp.eq.s32.totalorder %s15, 0
      %p110 = por %p108, %p109
      %p111 = scmp.le.s32.totalorder 1, %s9
      %p112 = scmp.lt.s32.totalorder %s9, 4
      %p113 = pnand %p111, %p112
      %p114 = pneg %p113
      // Predicated region
      $region9: #{_lambda_.21} parent=5 // pred_check
        _
      $region10: #{_lambda_.21} parent=5 // pred_check_branch
        %116 = sbr.rel (%p113) target = $region12
      $region11: #{_lambda_.21} parent=5 // pred_region
        %s117 = ssub.s32 %s9, 1
        // Predicated region
        $region13: #{_lambda_.21} parent=11 // pred_check
          %p118 = pneg %p30
        $region14: #{_lambda_.21} parent=11 // pred_check_branch
          %120 = sbr.rel (%p118) target = $region16
        $region15: #{_lambda_.21} parent=11 // pred_region
          _
        $region16: #{_lambda_.21} parent=11 // pred_fallthru
          _
        // Predicated region
        $region17: #{_lambda_.21} parent=11 // pred_check
          %p121 = pneg %p51
        $region18: #{_lambda_.21} parent=11 // pred_check_branch
          %123 = sbr.rel (%p121) target = $region20
        $region19: #{_lambda_.21} parent=11 // pred_region
          _
        $region20: #{_lambda_.21} parent=11 // pred_fallthru
          _
      $region12: #{_lambda_.21} parent=5 // pred_fallthru
        _
      %p124 = scmp.lt.s32.totalorder %s9, 3
      // Predicated region
      $region21: #{_lambda_.21} parent=5 // pred_check
        %p125 = pneg %p124
      $region22: #{_lambda_.21} parent=5 // pred_check_branch
        %127 = sbr.rel (%p125) target = $region24
      $region23: #{_lambda_.21} parent=5 // pred_region
        // Predicated region
        $region25: #{_lambda_.21} parent=23 // pred_check
          %p128 = pneg %p71
        $region26: #{_lambda_.21} parent=23 // pred_check_branch
          %130 = sbr.rel (%p128) target = $region28
        $region27: #{_lambda_.21} parent=23 // pred_region
          %s131 = sand.u32 %s61, 1
          %s132 = sand.u32 %s61, 1
          %s133 = smul.addr %s132, 216
          %s134 = scalar_lea.vmem [#allocation2], %s133
          %s135 = smul.u32 3, %s9
          %s136 = smul.addr %s135, 4
          %s137 = scalar_lea.vmem %s2, %s136
          // Predicated region
          $region29: #{_lambda_.21} parent=27 // pred_check
            _
          $region30: #{_lambda_.21} parent=27 // pred_check_branch
            %139 = sbr.rel (0) target = $region32
          $region31: #{_lambda_.21} parent=27 // pred_region
            // Predicated region
            $region33: #{_lambda_.21} parent=31 // pred_check
              _
            $region34: #{_lambda_.21} parent=31 // pred_check_branch
              %141 = sbr.rel (0) target = $region36
            $region35: #{_lambda_.21} parent=31 // pred_region
              %s142 = scalar_lea.vmem %s137, 8
              %s143 = scalar_lea.vmem %s134, 8 [#allocation2]
              loop: start=0, step=1, limit=1
              $region37: #{_lambda_.21} parent=35 // loop_pre_header
                _
              $region38: #{_lambda_.21} parent=35 // loop_header
                %s145 = sphi 0, %s149
                %p146 = scmp.ge.s32.totalorder %s145, 1
                %s150 = sphi %s137, %s137
                %s151 = sphi %s134, %s134
              $region39: #{_lambda_.21} parent=35 // loop_header_branch
                %148 = sbr.rel (%p146) target = $region43
              $region40: #{_lambda_.21} parent=35 // loop_body
                %v152 = vld [vmem:[%s150] sm:$0xff]
                %153 = vst [vmem:[%s151] sm:$0xff] %v152
                %v154 = vld [vmem:[%s150 + $0x24] sm:$0xff]
                %155 = vst [vmem:[%s151 + $0xc] sm:$0xff] %v154
                %v156 = vld [vmem:[%s150 + $0x48] sm:$0xff]
                %157 = vst [vmem:[%s151 + $0x18] sm:$0xff] %v156
                %v158 = vld [vmem:[%s150 + $0x6c] sm:$0xff]
                %159 = vst [vmem:[%s151 + $0x24] sm:$0xff] %v158
                %v160 = vld [vmem:[%s150 + $0x90] sm:$0xff]
                %161 = vst [vmem:[%s151 + $0x30] sm:$0xff] %v160
                %v162 = vld [vmem:[%s150 + $0xb4] sm:$0xff]
                %163 = vst [vmem:[%s151 + $0x3c] sm:$0xff] %v162
                %v164 = vld [vmem:[%s150 + $0xd8] sm:$0xff]
                %165 = vst [vmem:[%s151 + $0x48] sm:$0xff] %v164
                %v166 = vld [vmem:[%s150 + $0xfc] sm:$0xff]
                %167 = vst [vmem:[%s151 + $0x54] sm:$0xff] %v166
                %v168 = vld [vmem:[%s150 + $0x120] sm:$0xff]
                %169 = vst [vmem:[%s151 + $0x60] sm:$0xff] %v168
                %v170 = vld [vmem:[%s150 + $0x144] sm:$0xff]
                %171 = vst [vmem:[%s151 + $0x6c] sm:$0xff] %v170
                %v172 = vld [vmem:[%s150 + $0x168] sm:$0xff]
                %173 = vst [vmem:[%s151 + $0x78] sm:$0xff] %v172
                %v174 = vld [vmem:[%s150 + $0x18c] sm:$0xff]
                %175 = vst [vmem:[%s151 + $0x84] sm:$0xff] %v174
                %v176 = vld [vmem:[%s150 + $0x1b0] sm:$0xff]
                %177 = vst [vmem:[%s151 + $0x90] sm:$0xff] %v176
                %v178 = vld [vmem:[%s150 + $0x1d4] sm:$0xff]
                %179 = vst [vmem:[%s151 + $0x9c] sm:$0xff] %v178
                %v180 = vld [vmem:[%s150 + $0x1f8] sm:$0xff]
                %181 = vst [vmem:[%s151 + $0xa8] sm:$0xff] %v180
                %v182 = vld [vmem:[%s150 + $0x21c] sm:$0xff]
                %183 = vst [vmem:[%s151 + $0xb4] sm:$0xff] %v182
                %v184 = vld [vmem:[%s150 + $0x240] sm:$0xff]
                %185 = vst [vmem:[%s151 + $0xc0] sm:$0xff] %v184
                %v186 = vld [vmem:[%s150 + $0x264] sm:$0xff]
                %187 = vst [vmem:[%s151 + $0xcc] sm:$0xff] %v186
              $region41: #{_lambda_.21} parent=35 // loop_footer
                %s149 = sadd.s32 1, %s145
              $region42: #{_lambda_.21} parent=35 // loop_footer_branch
                %144 = sbr.rel target = $region38
              $region43: #{_lambda_.21} parent=35 // loop_exit
                _
              loop: start=0, step=1, limit=1
              $region44: #{_lambda_.21} parent=35 // loop_pre_header
                _
              $region45: #{_lambda_.21} parent=35 // loop_header
                %s190 = sphi 0, %s194
                %p191 = scmp.ge.s32.totalorder %s190, 1
                %s195 = sphi %s142, %s142
                %s196 = sphi %s143, %s143
              $region46: #{_lambda_.21} parent=35 // loop_header_branch
                %193 = sbr.rel (%p191) target = $region50
              $region47: #{_lambda_.21} parent=35 // loop_body
                %v197 = vld [vmem:[%s195] sm:$0xf]
                %198 = vst [vmem:[%s196] sm:$0xf] %v197
                %v199 = vld [vmem:[%s195 + $0x24] sm:$0xf]
                %200 = vst [vmem:[%s196 + $0xc] sm:$0xf] %v199
                %v201 = vld [vmem:[%s195 + $0x48] sm:$0xf]
                %202 = vst [vmem:[%s196 + $0x18] sm:$0xf] %v201
                %v203 = vld [vmem:[%s195 + $0x6c] sm:$0xf]
                %204 = vst [vmem:[%s196 + $0x24] sm:$0xf] %v203
                %v205 = vld [vmem:[%s195 + $0x90] sm:$0xf]
                %206 = vst [vmem:[%s196 + $0x30] sm:$0xf] %v205
                %v207 = vld [vmem:[%s195 + $0xb4] sm:$0xf]
                %208 = vst [vmem:[%s196 + $0x3c] sm:$0xf] %v207
                %v209 = vld [vmem:[%s195 + $0xd8] sm:$0xf]
                %210 = vst [vmem:[%s196 + $0x48] sm:$0xf] %v209
                %v211 = vld [vmem:[%s195 + $0xfc] sm:$0xf]
                %212 = vst [vmem:[%s196 + $0x54] sm:$0xf] %v211
                %v213 = vld [vmem:[%s195 + $0x120] sm:$0xf]
                %214 = vst [vmem:[%s196 + $0x60] sm:$0xf] %v213
                %v215 = vld [vmem:[%s195 + $0x144] sm:$0xf]
                %216 = vst [vmem:[%s196 + $0x6c] sm:$0xf] %v215
                %v217 = vld [vmem:[%s195 + $0x168] sm:$0xf]
                %218 = vst [vmem:[%s196 + $0x78] sm:$0xf] %v217
                %v219 = vld [vmem:[%s195 + $0x18c] sm:$0xf]
                %220 = vst [vmem:[%s196 + $0x84] sm:$0xf] %v219
                %v221 = vld [vmem:[%s195 + $0x1b0] sm:$0xf]
                %222 = vst [vmem:[%s196 + $0x90] sm:$0xf] %v221
                %v223 = vld [vmem:[%s195 + $0x1d4] sm:$0xf]
                %224 = vst [vmem:[%s196 + $0x9c] sm:$0xf] %v223
                %v225 = vld [vmem:[%s195 + $0x1f8] sm:$0xf]
                %226 = vst [vmem:[%s196 + $0xa8] sm:$0xf] %v225
                %v227 = vld [vmem:[%s195 + $0x21c] sm:$0xf]
                %228 = vst [vmem:[%s196 + $0xb4] sm:$0xf] %v227
                %v229 = vld [vmem:[%s195 + $0x240] sm:$0xf]
                %230 = vst [vmem:[%s196 + $0xc0] sm:$0xf] %v229
                %v231 = vld [vmem:[%s195 + $0x264] sm:$0xf]
                %232 = vst [vmem:[%s196 + $0xcc] sm:$0xf] %v231
              $region48: #{_lambda_.21} parent=35 // loop_footer
                %s194 = sadd.s32 1, %s190
              $region49: #{_lambda_.21} parent=35 // loop_footer_branch
                %189 = sbr.rel target = $region45
              $region50: #{_lambda_.21} parent=35 // loop_exit
                _
            $region36: #{_lambda_.21} parent=31 // pred_fallthru
              _
          $region32: #{_lambda_.21} parent=27 // pred_fallthru
            _
          %233 = vnop
        $region28: #{_lambda_.21} parent=23 // pred_fallthru
          _
      $region24: #{_lambda_.21} parent=5 // pred_fallthru
        _
      %p234 = scmp.le.s32.totalorder 1, %s9
      %p235 = scmp.lt.s32.totalorder %s9, 4
      %p236 = pnand %p234, %p235
      %p237 = pneg %p236
      // Predicated region
      $region51: #{_lambda_.21} parent=5 // pred_check
        _
      $region52: #{_lambda_.21} parent=5 // pred_check_branch
        %239 = sbr.rel (%p236) target = $region54
      $region53: #{_lambda_.21} parent=5 // pred_region
        %s240 = ssub.s32 %s9, 1
        %s241 = sand.u32 %s64, 1
        %s242 = sand.u32 %s64, 1
        %s243 = smul.addr %s242, 216
        %s244 = scalar_lea.vmem [#allocation2], %s243
        // Predicated region
        $region55: #{_lambda_.21} parent=53 // pred_check
          %p245 = pneg %p77
        $region56: #{_lambda_.21} parent=53 // pred_check_branch
          %247 = sbr.rel (%p245) target = $region58
        $region57: #{_lambda_.21} parent=53 // pred_region
          _
        $region58: #{_lambda_.21} parent=53 // pred_fallthru
          _
        %p248 = pneg %p30
        %p249 = pneg %p27
        %p250 = pneg %p51
        %p251 = pneg %p48
        %s252 = sand.u32 %s64, 1
        %s253 = sand.u32 %s64, 1
        %s254 = smul.addr %s253, 216
        %s255 = scalar_lea.vmem [#allocation2], %s254
        %p256 = pneg %p77
        %p257 = pneg %p74
        %p258 = pneg %p103
        %p259 = pneg %p100
        %s260 = sand.u32 %s90, 1
        %s261 = sand.u32 %s90, 1
        %s262 = smul.addr %s261, 24
        %s263 = scalar_lea.vmem [#allocation3], %s262
        %s264 = smul.u32 3, %s14
        %s265 = smul.u32 3, %s14
        %v267 = vld [vmem:[%s0] sm:$0xff]
        %v268 = vld [vmem:[%s0 + $0x8] sm:$0xff]
        %v269 = vld [vmem:[%s244] sm:$0xff]
        %v270 = vld [vmem:[%s244 + $0x8] sm:$0xf]
        %v271 = vld [vmem:[%s244 + $0xc] sm:$0xff]
        %v272 = vld [vmem:[%s244 + $0x14] sm:$0xf]
        %v273 = vld [vmem:[%s244 + $0x18] sm:$0xff]
        %v274 = vld [vmem:[%s244 + $0x20] sm:$0xf]
        %v275 = vld [vmem:[%s244 + $0x24] sm:$0xff]
        %v276 = vld [vmem:[%s244 + $0x2c] sm:$0xf]
        %v277 = vld [vmem:[%s244 + $0x30] sm:$0xff]
        %v278 = vld [vmem:[%s244 + $0x38] sm:$0xf]
        %v279 = vld [vmem:[%s244 + $0x3c] sm:$0xff]
        %v280 = vld [vmem:[%s244 + $0x44] sm:$0xf]
        %v281 = vld [vmem:[%s244 + $0x48] sm:$0xff]
        %v282 = vld [vmem:[%s244 + $0x50] sm:$0xf]
        %v283 = vld [vmem:[%s244 + $0x54] sm:$0xff]
        %v284 = vld [vmem:[%s244 + $0x5c] sm:$0xf]
        %v285 = vld [vmem:[%s244 + $0x60] sm:$0xff]
        %v286 = vld [vmem:[%s244 + $0x68] sm:$0xf]
        %v287 = vld [vmem:[%s244 + $0x6c] sm:$0xff]
        %v288 = vld [vmem:[%s244 + $0x74] sm:$0xf]
        %v289 = vld [vmem:[%s244 + $0x78] sm:$0xff]
        %v290 = vld [vmem:[%s244 + $0x80] sm:$0xf]
        %v291 = vld [vmem:[%s244 + $0x84] sm:$0xff]
        %v292 = vld [vmem:[%s244 + $0x8c] sm:$0xf]
        %v293 = vld [vmem:[%s244 + $0x90] sm:$0xff]
        %v294 = vld [vmem:[%s244 + $0x98] sm:$0xf]
        %v295 = vld [vmem:[%s244 + $0x9c] sm:$0xff]
        %v296 = vld [vmem:[%s244 + $0xa4] sm:$0xf]
        %v297 = vld [vmem:[%s244 + $0xa8] sm:$0xff]
        %v298 = vld [vmem:[%s244 + $0xb0] sm:$0xf]
        %v299 = vld [vmem:[%s244 + $0xb4] sm:$0xff]
        %v300 = vld [vmem:[%s244 + $0xbc] sm:$0xf]
        %v301 = vld [vmem:[%s244 + $0xc0] sm:$0xff]
        %v302 = vld [vmem:[%s244 + $0xc8] sm:$0xf]
        %v303 = vld [vmem:[%s244 + $0xcc] sm:$0xff]
        %v304 = vld [vmem:[%s244 + $0xd4] sm:$0xf]
        %v305 = vld [vmem:[%s1] sm:$0xff]
        %v306 = vld [vmem:[%s1 + $0x8] sm:$0xff]
        %308 = vset.pattern.permute.xlu0 0
        %309 = vperm.xlu0 %308, %v305
        %v310 = vpop.permute.xlu0 %309
        %313 = vset.pattern.permute.xlu0 0
        %314 = vperm.xlu0 %313, %v306
        %v315 = vpop.permute.xlu0 %314
        %v319 = vunpack.c.l.b16 %v267
        %v320 = vunpack.c.h.b16 %v267
        %v321 = vunpack.c.l.b16 %v268
        %v322 = vunpack.c.h.b16 %v268
        %v323 = vpack.c.b16 %v321, %v319
        %v324 = vpack.c.b16 %v322, %v320
        %v362 = vunpack.c.l.b16 %v269
        %v363 = vunpack.c.h.b16 %v269
        %v364 = vunpack.c.l.b16 %v270
        %v365 = vunpack.c.l.b16 %v271
        %v366 = vunpack.c.h.b16 %v271
        %v367 = vunpack.c.l.b16 %v272
        %v368 = vunpack.c.l.b16 %v273
        %v369 = vunpack.c.h.b16 %v273
        %v370 = vunpack.c.l.b16 %v274
        %v371 = vunpack.c.l.b16 %v275
        %v372 = vunpack.c.h.b16 %v275
        %v373 = vunpack.c.l.b16 %v276
        %v374 = vunpack.c.l.b16 %v277
        %v375 = vunpack.c.h.b16 %v277
        %v376 = vunpack.c.l.b16 %v278
        %v377 = vunpack.c.l.b16 %v279
        %v378 = vunpack.c.h.b16 %v279
        %v379 = vunpack.c.l.b16 %v280
        %v380 = vunpack.c.l.b16 %v281
        %v381 = vunpack.c.h.b16 %v281
        %v382 = vunpack.c.l.b16 %v282
        %v383 = vunpack.c.l.b16 %v283
        %v384 = vunpack.c.h.b16 %v283
        %v385 = vunpack.c.l.b16 %v284
        %v386 = vunpack.c.l.b16 %v285
        %v387 = vunpack.c.h.b16 %v285
        %v388 = vunpack.c.l.b16 %v286
        %v389 = vunpack.c.l.b16 %v287
        %v390 = vunpack.c.h.b16 %v287
        %v391 = vunpack.c.l.b16 %v288
        %v392 = vunpack.c.l.b16 %v289
        %v393 = vunpack.c.h.b16 %v289
        %v394 = vunpack.c.l.b16 %v290
        %v395 = vunpack.c.l.b16 %v291
        %v396 = vunpack.c.h.b16 %v291
        %v397 = vunpack.c.l.b16 %v292
        %v398 = vunpack.c.l.b16 %v293
        %v399 = vunpack.c.h.b16 %v293
        %v400 = vunpack.c.l.b16 %v294
        %v401 = vunpack.c.l.b16 %v295
        %v402 = vunpack.c.h.b16 %v295
        %v403 = vunpack.c.l.b16 %v296
        %v404 = vunpack.c.l.b16 %v297
        %v405 = vunpack.c.h.b16 %v297
        %v406 = vunpack.c.l.b16 %v298
        %v407 = vunpack.c.l.b16 %v299
        %v408 = vunpack.c.h.b16 %v299
        %v409 = vunpack.c.l.b16 %v300
        %v410 = vunpack.c.l.b16 %v301
        %v411 = vunpack.c.h.b16 %v301
        %v412 = vunpack.c.l.b16 %v302
        %v413 = vunpack.c.l.b16 %v303
        %v414 = vunpack.c.h.b16 %v303
        %v415 = vunpack.c.l.b16 %v304
        %v416 = vpack.c.b16 %v365, %v362
        %v417 = vpack.c.b16 %v366, %v363
        %v418 = vpack.c.b16 %v367, %v364
        %v419 = vpack.c.b16 %v371, %v368
        %v420 = vpack.c.b16 %v372, %v369
        %v421 = vpack.c.b16 %v373, %v370
        %v422 = vpack.c.b16 %v377, %v374
        %v423 = vpack.c.b16 %v378, %v375
        %v424 = vpack.c.b16 %v379, %v376
        %v425 = vpack.c.b16 %v383, %v380
        %v426 = vpack.c.b16 %v384, %v381
        %v427 = vpack.c.b16 %v385, %v382
        %v428 = vpack.c.b16 %v389, %v386
        %v429 = vpack.c.b16 %v390, %v387
        %v430 = vpack.c.b16 %v391, %v388
        %v431 = vpack.c.b16 %v395, %v392
        %v432 = vpack.c.b16 %v396, %v393
        %v433 = vpack.c.b16 %v397, %v394
        %v434 = vpack.c.b16 %v401, %v398
        %v435 = vpack.c.b16 %v402, %v399
        %v436 = vpack.c.b16 %v403, %v400
        %v437 = vpack.c.b16 %v407, %v404
        %v438 = vpack.c.b16 %v408, %v405
        %v439 = vpack.c.b16 %v409, %v406
        %v440 = vpack.c.b16 %v413, %v410
        %v441 = vpack.c.b16 %v414, %v411
        %v442 = vpack.c.b16 %v415, %v412
        %vm470 = vcmask 130048
        %v472 = vsel %vm470, %v324, 0
        %474 = vmatprep.subr.bf16.mxu0 %v417
        %475 = vmatpush1.bf16.msra.mxu0 %v416
        %476 = vmatprep.subr.bf16.mxu0 %v420
        %477 = vmatpush1.bf16.msra.mxu0 %v419
        %478 = vmatprep.subr.bf16.mxu0 %v423
        %479 = vmatpush1.bf16.msra.mxu0 %v422
        %480 = vmatprep.subr.bf16.mxu0 %v426
        %481 = vmatpush1.bf16.msra.mxu0 %v425
        %482 = vmatprep.subr.bf16.mxu0 %v429
        %483 = vmatpush1.bf16.msra.mxu0 %v428
        %484 = vmatprep.subr.bf16.mxu0 %v432
        %485 = vmatpush1.bf16.msra.mxu0 %v431
        %486 = vmatprep.subr.bf16.mxu0 %v435
        %487 = vmatpush1.bf16.msra.mxu0 %v434
        %488 = vmatprep.subr.bf16.mxu0 %v438
        %489 = vmatpush1.bf16.msra.mxu0 %v437
        %490 = vmatprep.subr.bf16.mxu0 %v441
        %491 = vmatpush1.bf16.msra.mxu0 %v440
        %492 = vmatprep.subr.bf16.mxu0 0
        %493 = vmatpush1.bf16.msra.mxu0 0
        %494 = vmatprep.subr.bf16.mxu0 0
        %495 = vmatpush1.bf16.msra.mxu0 0
        %496 = vmatprep.subr.bf16.mxu0 0
        %497 = vmatpush1.bf16.msra.mxu0 0
        %498 = vmatprep.subr.bf16.mxu0 0
        %499 = vmatpush1.bf16.msra.mxu0 0
        %500 = vmatprep.subr.bf16.mxu0 0
        %501 = vmatpush1.bf16.msra.mxu0 0
        %502 = vmatprep.subr.bf16.mxu0 0
        %503 = vmatpush1.bf16.msra.mxu0 0
        %504 = vmatprep.subr.bf16.mxu0 0
        %505 = vmatpush1.bf16.msra.mxu0 0
        %506 = vmatprep.mubr.bf16.mxu0 %v472
        %507 = vmatmul.mubr.bf16.gmra.mrb[0].mxu0 %v323
        %v508 = vpop.f32.mrb[0].mxu0
        %v509 = vadd.f32 %v310, %v508
        %v510 = vpop.f32.mrb[0].mxu0
        %v511 = vadd.f32 %v310, %v510
        %v512 = vpop.f32.mrb[0].mxu0
        %v513 = vadd.f32 %v315, %v512
        %v514 = vpop.f32.mrb[0].mxu0
        %v515 = vadd.f32 %v315, %v514
        %516 = vdwg.mxu0
        %517 = vmatprep.subr.bf16.mxu0 0
        %518 = vmatpush1.bf16.msra.mxu0 %v418
        %519 = vmatprep.subr.bf16.mxu0 0
        %520 = vmatpush1.bf16.msra.mxu0 %v421
        %521 = vmatprep.subr.bf16.mxu0 0
        %522 = vmatpush1.bf16.msra.mxu0 %v424
        %523 = vmatprep.subr.bf16.mxu0 0
        %524 = vmatpush1.bf16.msra.mxu0 %v427
        %525 = vmatprep.subr.bf16.mxu0 0
        %526 = vmatpush1.bf16.msra.mxu0 %v430
        %527 = vmatprep.subr.bf16.mxu0 0
        %528 = vmatpush1.bf16.msra.mxu0 %v433
        %529 = vmatprep.subr.bf16.mxu0 0
        %530 = vmatpush1.bf16.msra.mxu0 %v436
        %531 = vmatprep.subr.bf16.mxu0 0
        %532 = vmatpush1.bf16.msra.mxu0 %v439
        %533 = vmatprep.subr.bf16.mxu0 0
        %534 = vmatpush1.bf16.msra.mxu0 %v442
        %535 = vmatprep.subr.bf16.mxu0 0
        %536 = vmatpush1.bf16.msra.mxu0 0
        %537 = vmatprep.subr.bf16.mxu0 0
        %538 = vmatpush1.bf16.msra.mxu0 0
        %539 = vmatprep.subr.bf16.mxu0 0
        %540 = vmatpush1.bf16.msra.mxu0 0
        %541 = vmatprep.subr.bf16.mxu0 0
        %542 = vmatpush1.bf16.msra.mxu0 0
        %543 = vmatprep.subr.bf16.mxu0 0
        %544 = vmatpush1.bf16.msra.mxu0 0
        %545 = vmatprep.subr.bf16.mxu0 0
        %546 = vmatpush1.bf16.msra.mxu0 0
        %547 = vmatprep.subr.bf16.mxu0 0
        %548 = vmatpush1.bf16.msra.mxu0 0
        %549 = vmatprep.mubr.bf16.mxu0 %v472
        %550 = vmatmul.mubr.bf16.gmra.mrb[0].mxu0 %v323
        %v551 = vpop.f32.mrb[0].mxu0
        %v552 = vadd.f32 %v310, %v551
        %v553 = vpop.f32.mrb[0].mxu0
        %v554 = vpop.f32.mrb[0].mxu0
        %v555 = vadd.f32 %v315, %v554
        %v556 = vpop.f32.mrb[0].mxu0
        %557 = vdwg.mxu0
        %v558 = vmax.f32 %v509, 0.0
        %v559 = vmax.f32 %v511, 0.0
        %v560 = vmax.f32 %v552, 0.0
        %v561 = vmax.f32 %v513, 0.0
        %v562 = vmax.f32 %v515, 0.0
        %v563 = vmax.f32 %v555, 0.0
        %v564 = vpack.c.bf16 %v561, %v558
        %v565 = vpack.c.bf16 %v562, %v559
        %v566 = vpack.c.bf16 %v563, %v560
        %v570 = vunpack.c.l.b16 %v564
        %v571 = vunpack.c.l.b16 %v565
        %v572 = vunpack.c.l.b16 %v566
        %v573 = vunpack.c.h.b16 %v564
        %v574 = vunpack.c.h.b16 %v565
        %v575 = vunpack.c.h.b16 %v566
        %v576 = vpack.c.b16 %v571, %v570
        %v577 = vpack.c.b16 %v572, %v572
        %v578 = vpack.c.b16 %v574, %v573
        %v579 = vpack.c.b16 %v575, %v575
        %584 = vst [vmem:[%s263] sm:$0xff] %v576
        %585 = vst [vmem:[%s263 + $0x8] sm:$0xf] %v577
        %586 = vst [vmem:[%s263 + $0xc] sm:$0xff] %v578
        %587 = vst [vmem:[%s263 + $0x14] sm:$0xf] %v579
        %s588 = sand.u32 %s90, 1
        %s589 = sand.u32 %s90, 1
        %s590 = smul.addr %s589, 24
        %s591 = scalar_lea.vmem [#allocation3], %s590
        // Predicated region
        $region59: #{_lambda_.21} parent=53 // pred_check
          %p592 = pneg %p100
        $region60: #{_lambda_.21} parent=53 // pred_check_branch
          %594 = sbr.rel (%p592) target = $region62
        $region61: #{_lambda_.21} parent=53 // pred_region
          %s595 = smul.u32 3, %s14
          %s596 = smul.addr %s595, 4
          %s597 = scalar_lea.vmem %s3, %s596
          // Predicated region
          $region63: #{_lambda_.21} parent=61 // pred_check
            _
          $region64: #{_lambda_.21} parent=61 // pred_check_branch
            %599 = sbr.rel (0) target = $region66
          $region65: #{_lambda_.21} parent=61 // pred_region
            // Predicated region
            $region67: #{_lambda_.21} parent=65 // pred_check
              _
            $region68: #{_lambda_.21} parent=65 // pred_check_branch
              %601 = sbr.rel (0) target = $region70
            $region69: #{_lambda_.21} parent=65 // pred_region
              %s602 = scalar_lea.vmem %s591, 8 [#allocation3]
              %s603 = scalar_lea.vmem %s597, 8
              loop: start=0, step=1, limit=1
              $region71: #{_lambda_.21} parent=69 // loop_pre_header
                _
              $region72: #{_lambda_.21} parent=69 // loop_header
                %s605 = sphi 0, %s609
                %p606 = scmp.ge.s32.totalorder %s605, 1
                %s610 = sphi %s591, %s591
                %s611 = sphi %s597, %s597
              $region73: #{_lambda_.21} parent=69 // loop_header_branch
                %608 = sbr.rel (%p606) target = $region77
              $region74: #{_lambda_.21} parent=69 // loop_body
                %v612 = vld [vmem:[%s610] sm:$0xff]
                %613 = vst [vmem:[%s611] sm:$0xff] %v612
                %v614 = vld [vmem:[%s610 + $0xc] sm:$0xff]
                %615 = vst [vmem:[%s611 + $0x24] sm:$0xff] %v614
              $region75: #{_lambda_.21} parent=69 // loop_footer
                %s609 = sadd.s32 1, %s605
              $region76: #{_lambda_.21} parent=69 // loop_footer_branch
                %604 = sbr.rel target = $region72
              $region77: #{_lambda_.21} parent=69 // loop_exit
                _
              loop: start=0, step=1, limit=1
              $region78: #{_lambda_.21} parent=69 // loop_pre_header
                _
              $region79: #{_lambda_.21} parent=69 // loop_header
                %s618 = sphi 0, %s622
                %p619 = scmp.ge.s32.totalorder %s618, 1
                %s623 = sphi %s602, %s602
                %s624 = sphi %s603, %s603
              $region80: #{_lambda_.21} parent=69 // loop_header_branch
                %621 = sbr.rel (%p619) target = $region84
              $region81: #{_lambda_.21} parent=69 // loop_body
                %v625 = vld [vmem:[%s623] sm:$0xf]
                %626 = vst [vmem:[%s624] sm:$0xf] %v625
                %v627 = vld [vmem:[%s623 + $0xc] sm:$0xf]
                %628 = vst [vmem:[%s624 + $0x24] sm:$0xf] %v627
              $region82: #{_lambda_.21} parent=69 // loop_footer
                %s622 = sadd.s32 1, %s618
              $region83: #{_lambda_.21} parent=69 // loop_footer_branch
                %617 = sbr.rel target = $region79
              $region84: #{_lambda_.21} parent=69 // loop_exit
                _
            $region70: #{_lambda_.21} parent=65 // pred_fallthru
              _
          $region66: #{_lambda_.21} parent=61 // pred_fallthru
            _
          %629 = vnop
        $region62: #{_lambda_.21} parent=53 // pred_fallthru
          _
      $region54: #{_lambda_.21} parent=5 // pred_fallthru
        _
      %p630 = scmp.le.s32.totalorder 2, %s9
      // Predicated region
      $region85: #{_lambda_.21} parent=5 // pred_check
        %p631 = pneg %p630
      $region86: #{_lambda_.21} parent=5 // pred_check_branch
        %633 = sbr.rel (%p631) target = $region88
      $region87: #{_lambda_.21} parent=5 // pred_region
        %s634 = ssub.s32 %s9, 2
        // Predicated region
        $region89: #{_lambda_.21} parent=87 // pred_check
          %p635 = pneg %p106
        $region90: #{_lambda_.21} parent=87 // pred_check_branch
          %637 = sbr.rel (%p635) target = $region92
        $region91: #{_lambda_.21} parent=87 // pred_region
          %s638 = sand.u32 %s91, 1
          %s639 = sand.u32 %s91, 1
          %s640 = smul.addr %s639, 24
          %s641 = scalar_lea.vmem [#allocation3], %s640
        $region92: #{_lambda_.21} parent=87 // pred_fallthru
          _
      $region88: #{_lambda_.21} parent=5 // pred_fallthru
        _
    $region6: #{_lambda_.21} parent=1 // loop_footer
      %s13 = sadd.s32 1, %s9
    $region7: #{_lambda_.21} parent=1 // loop_footer_branch
      %8 = sbr.rel target = $region3
    $region8: #{_lambda_.21} parent=1 // loop_exit
      _

// kernel: _lambda_.22
$region0: #{_lambda_.22}
  #allocation0 [shape = 'u32[]', space=smem, size = 0x4, offset = 0x4, fixed_abs, tag = 'smem constant byte address 0x4 - core index']
  #allocation1 [shape = 'u32[144,128]{1,0:T(1,128)}', space=vmem, size = 0x12000, scoped, tag = 'internal scratch']
  %s0 = inlined_call_operand.vmem [shape: bf16[16,16], index: 0, kind: input, shape index: {}]
  %s1 = inlined_call_operand.vmem [shape: f32[16,1], index: 1, kind: input, shape index: {}]
  %s2 = inlined_call_operand.vmem [shape: bf16[16,1152], index: 2, kind: input, shape index: {}]
  %s3 = inlined_call_operand.vmem [shape: bf16[16,1152], index: 3, kind: output, shape index: {}]
  %s4 = sld [smem:[#allocation0]]
  $region93: #{_lambda_.22} parent=0
    _
  %s6 = ssub.s32 1, %s4
  %s7 = scalar_select 0, %s6, %s4
  $region1: #{_lambda_.22} parent=0
    #allocation2 [shape = 'u8[24576]{0}', space=vmem, size = 0x6000, scoped, tag = 'input window, operand 2']
    #allocation3 [shape = 'u8[24576]{0}', space=vmem, size = 0x6000, scoped, tag = 'output window, operand 0']
    loop: start=0, step=1, limit=5
    $region2: #{_lambda_.22} parent=1 // loop_pre_header
      _
    $region3: #{_lambda_.22} parent=1 // loop_header
      %s9 = sphi 0, %s13
      %p10 = scmp.ge.s32.totalorder %s9, 5
      %s17 = sphi 0, %s17
      %s19 = sphi 0, %s17
      %s20 = sphi 0, %s19
      %s34 = sphi 0, %s20
      %s38 = sphi 0, %s38
      %s40 = sphi 0, %s38
      %s41 = sphi 0, %s40
      %s55 = sphi 0, %s41
      %s61 = sphi 0, %s63
      %s64 = sphi 0, %s61
      %s65 = sphi 0, %s64
      %s81 = sphi 0, %s65
      %s87 = sphi 0, %s89
      %s90 = sphi 0, %s87
      %s91 = sphi 0, %s90
      %s107 = sphi 0, %s91
    $region4: #{_lambda_.22} parent=1 // loop_header_branch
      %12 = sbr.rel (%p10) target = $region8
    $region5: #{_lambda_.22} parent=1 // loop_body
      %s14 = ssub.s32 %s9, 1
      %s15 = ssub.s32 %s9, 2
      %s16 = sadd.s32 %s9, 1
      %s18 = sadd.s32 %s17, 1
      %p21 = scmp.eq.s32.totalorder %s9, 2
      %p22 = scmp.ne.s32.totalorder %s17, %s19
      %p23 = scmp.eq.s32.totalorder %s9, 0
      %p24 = por %p22, %p23
      %p25 = scmp.ne.s32.totalorder %s17, %s19
      %p26 = scmp.eq.s32.totalorder %s14, 2
      %p27 = por %p25, %p26
      %p28 = scmp.ne.s32.totalorder %s19, %s20
      %p29 = scmp.eq.s32.totalorder %s14, 0
      %p30 = por %p28, %p29
      %p31 = scmp.ne.s32.totalorder %s19, %s20
      %p32 = scmp.eq.s32.totalorder %s15, 2
      %p33 = por %p31, %p32
      %p35 = scmp.ne.s32.totalorder %s20, %s34
      %p36 = scmp.eq.s32.totalorder %s15, 0
      %p37 = por %p35, %p36
      %s39 = sadd.s32 %s38, 1
      %p42 = scmp.eq.s32.totalorder %s9, 2
      %p43 = scmp.ne.s32.totalorder %s38, %s40
      %p44 = scmp.eq.s32.totalorder %s9, 0
      %p45 = por %p43, %p44
      %p46 = scmp.ne.s32.totalorder %s38, %s40
      %p47 = scmp.eq.s32.totalorder %s14, 2
      %p48 = por %p46, %p47
      %p49 = scmp.ne.s32.totalorder %s40, %s41
      %p50 = scmp.eq.s32.totalorder %s14, 0
      %p51 = por %p49, %p50
      %p52 = scmp.ne.s32.totalorder %s40, %s41
      %p53 = scmp.eq.s32.totalorder %s15, 2
      %p54 = por %p52, %p53
      %p56 = scmp.ne.s32.totalorder %s41, %s55
      %p57 = scmp.eq.s32.totalorder %s15, 0
      %p58 = por %p56, %p57
      %s59 = ssub.s32 %s9, %s16
      %p60 = scmp.eq.s32.totalorder %s59, 0
      %s62 = sadd.s32 %s61, 1
      %s63 = scalar_select %p60, %s61, %s62
      %p66 = pneg %p60
      %p67 = scmp.eq.s32.totalorder %s9, 2
      %p68 = por %p66, %p67
      %p69 = scmp.ne.s32.totalorder %s61, %s64
      %p70 = scmp.eq.s32.totalorder %s9, 0
      %p71 = por %p69, %p70
      %p72 = scmp.ne.s32.totalorder %s61, %s64
      %p73 = scmp.eq.s32.totalorder %s14, 2
      %p74 = por %p72, %p73
      %p75 = scmp.ne.s32.totalorder %s64, %s65
      %p76 = scmp.eq.s32.totalorder %s14, 0
      %p77 = por %p75, %p76
      %p78 = scmp.ne.s32.totalorder %s64, %s65
      %p79 = scmp.eq.s32.totalorder %s15, 2
      %p80 = por %p78, %p79
      %p82 = scmp.ne.s32.totalorder %s65, %s81
      %p83 = scmp.eq.s32.totalorder %s15, 0
      %p84 = por %p82, %p83
      %s85 = ssub.s32 %s9, %s16
      %p86 = scmp.eq.s32.totalorder %s85, 0
      %s88 = sadd.s32 %s87, 1
      %s89 = scalar_select %p86, %s87, %s88
      %p92 = pneg %p86
      %p93 = scmp.eq.s32.totalorder %s9, 2
      %p94 = por %p92, %p93
      %p95 = scmp.ne.s32.totalorder %s87, %s90
      %p96 = scmp.eq.s32.totalorder %s9, 0
      %p97 = por %p95, %p96
      %p98 = scmp.ne.s32.totalorder %s87, %s90
      %p99 = scmp.eq.s32.totalorder %s14, 2
      %p100 = por %p98, %p99
      %p101 = scmp.ne.s32.totalorder %s90, %s91
      %p102 = scmp.eq.s32.totalorder %s14, 0
      %p103 = por %p101, %p102
      %p104 = scmp.ne.s32.totalorder %s90, %s91
      %p105 = scmp.eq.s32.totalorder %s15, 2
      %p106 = por %p104, %p105
      %p108 = scmp.ne.s32.totalorder %s91, %s107
      %p109 = scmp.eq.s32.totalorder %s15, 0
      %p110 = por %p108, %p109
      %p111 = scmp.le.s32.totalorder 1, %s9
      %p112 = scmp.lt.s32.totalorder %s9, 4
      %p113 = pnand %p111, %p112
      %p114 = pneg %p113
      // Predicated region
      $region9: #{_lambda_.22} parent=5 // pred_check
        _
      $region10: #{_lambda_.22} parent=5 // pred_check_branch
        %116 = sbr.rel (%p113) target = $region12
      $region11: #{_lambda_.22} parent=5 // pred_region
        %s117 = ssub.s32 %s9, 1
        // Predicated region
        $region13: #{_lambda_.22} parent=11 // pred_check
          %p118 = pneg %p30
        $region14: #{_lambda_.22} parent=11 // pred_check_branch
          %120 = sbr.rel (%p118) target = $region16
        $region15: #{_lambda_.22} parent=11 // pred_region
          _
        $region16: #{_lambda_.22} parent=11 // pred_fallthru
          _
        // Predicated region
        $region17: #{_lambda_.22} parent=11 // pred_check
          %p121 = pneg %p51
        $region18: #{_lambda_.22} parent=11 // pred_check_branch
          %123 = sbr.rel (%p121) target = $region20
        $region19: #{_lambda_.22} parent=11 // pred_region
          _
        $region20: #{_lambda_.22} parent=11 // pred_fallthru
          _
      $region12: #{_lambda_.22} parent=5 // pred_fallthru
        _
      %p124 = scmp.lt.s32.totalorder %s9, 3
      // Predicated region
      $region21: #{_lambda_.22} parent=5 // pred_check
        %p125 = pneg %p124
      $region22: #{_lambda_.22} parent=5 // pred_check_branch
        %127 = sbr.rel (%p125) target = $region24
      $region23: #{_lambda_.22} parent=5 // pred_region
        // Predicated region
        $region25: #{_lambda_.22} parent=23 // pred_check
          %p128 = pneg %p71
        $region26: #{_lambda_.22} parent=23 // pred_check_branch
          %130 = sbr.rel (%p128) target = $region28
        $region27: #{_lambda_.22} parent=23 // pred_region
          %s131 = sand.u32 %s61, 1
          %s132 = sand.u32 %s61, 1
          %s133 = smul.addr %s132, 24
          %s134 = scalar_lea.vmem [#allocation2], %s133
          %s135 = smul.u32 3, %s9
          %s136 = smul.addr %s135, 4
          %s137 = scalar_lea.vmem %s2, %s136
          // Predicated region
          $region29: #{_lambda_.22} parent=27 // pred_check
            _
          $region30: #{_lambda_.22} parent=27 // pred_check_branch
            %139 = sbr.rel (0) target = $region32
          $region31: #{_lambda_.22} parent=27 // pred_region
            // Predicated region
            $region33: #{_lambda_.22} parent=31 // pred_check
              _
            $region34: #{_lambda_.22} parent=31 // pred_check_branch
              %141 = sbr.rel (0) target = $region36
            $region35: #{_lambda_.22} parent=31 // pred_region
              %s142 = scalar_lea.vmem %s137, 8
              %s143 = scalar_lea.vmem %s134, 8 [#allocation2]
              loop: start=0, step=1, limit=1
              $region37: #{_lambda_.22} parent=35 // loop_pre_header
                _
              $region38: #{_lambda_.22} parent=35 // loop_header
                %s145 = sphi 0, %s149
                %p146 = scmp.ge.s32.totalorder %s145, 1
                %s150 = sphi %s137, %s137
                %s151 = sphi %s134, %s134
              $region39: #{_lambda_.22} parent=35 // loop_header_branch
                %148 = sbr.rel (%p146) target = $region43
              $region40: #{_lambda_.22} parent=35 // loop_body
                %v152 = vld [vmem:[%s150] sm:$0xff]
                %153 = vst [vmem:[%s151] sm:$0xff] %v152
                %v154 = vld [vmem:[%s150 + $0x24] sm:$0xff]
                %155 = vst [vmem:[%s151 + $0xc] sm:$0xff] %v154
              $region41: #{_lambda_.22} parent=35 // loop_footer
                %s149 = sadd.s32 1, %s145
              $region42: #{_lambda_.22} parent=35 // loop_footer_branch
                %144 = sbr.rel target = $region38
              $region43: #{_lambda_.22} parent=35 // loop_exit
                _
              loop: start=0, step=1, limit=1
              $region44: #{_lambda_.22} parent=35 // loop_pre_header
                _
              $region45: #{_lambda_.22} parent=35 // loop_header
                %s158 = sphi 0, %s162
                %p159 = scmp.ge.s32.totalorder %s158, 1
                %s163 = sphi %s142, %s142
                %s164 = sphi %s143, %s143
              $region46: #{_lambda_.22} parent=35 // loop_header_branch
                %161 = sbr.rel (%p159) target = $region50
              $region47: #{_lambda_.22} parent=35 // loop_body
                %v165 = vld [vmem:[%s163] sm:$0xf]
                %166 = vst [vmem:[%s164] sm:$0xf] %v165
                %v167 = vld [vmem:[%s163 + $0x24] sm:$0xf]
                %168 = vst [vmem:[%s164 + $0xc] sm:$0xf] %v167
              $region48: #{_lambda_.22} parent=35 // loop_footer
                %s162 = sadd.s32 1, %s158
              $region49: #{_lambda_.22} parent=35 // loop_footer_branch
                %157 = sbr.rel target = $region45
              $region50: #{_lambda_.22} parent=35 // loop_exit
                _
            $region36: #{_lambda_.22} parent=31 // pred_fallthru
              _
          $region32: #{_lambda_.22} parent=27 // pred_fallthru
            _
          %169 = vnop
        $region28: #{_lambda_.22} parent=23 // pred_fallthru
          _
      $region24: #{_lambda_.22} parent=5 // pred_fallthru
        _
      %p170 = scmp.le.s32.totalorder 1, %s9
      %p171 = scmp.lt.s32.totalorder %s9, 4
      %p172 = pnand %p170, %p171
      %p173 = pneg %p172
      // Predicated region
      $region51: #{_lambda_.22} parent=5 // pred_check
        _
      $region52: #{_lambda_.22} parent=5 // pred_check_branch
        %175 = sbr.rel (%p172) target = $region54
      $region53: #{_lambda_.22} parent=5 // pred_region
        %s176 = ssub.s32 %s9, 1
        %s177 = sand.u32 %s64, 1
        %s178 = sand.u32 %s64, 1
        %s179 = smul.addr %s178, 24
        %s180 = scalar_lea.vmem [#allocation2], %s179
        // Predicated region
        $region55: #{_lambda_.22} parent=53 // pred_check
          %p181 = pneg %p77
        $region56: #{_lambda_.22} parent=53 // pred_check_branch
          %183 = sbr.rel (%p181) target = $region58
        $region57: #{_lambda_.22} parent=53 // pred_region
          _
        $region58: #{_lambda_.22} parent=53 // pred_fallthru
          _
        %p184 = pneg %p30
        %p185 = pneg %p27
        %p186 = pneg %p51
        %p187 = pneg %p48
        %s188 = sand.u32 %s64, 1
        %s189 = sand.u32 %s64, 1
        %s190 = smul.addr %s189, 24
        %s191 = scalar_lea.vmem [#allocation2], %s190
        %p192 = pneg %p77
        %p193 = pneg %p74
        %p194 = pneg %p103
        %p195 = pneg %p100
        %s196 = sand.u32 %s90, 1
        %s197 = sand.u32 %s90, 1
        %s198 = smul.addr %s197, 24
        %s199 = scalar_lea.vmem [#allocation3], %s198
        %s200 = smul.u32 3, %s14
        %s201 = smul.u32 3, %s14
        %v203 = vld [vmem:[%s0] sm:$0xf]
        %v204 = vld [vmem:[%s0 + $0x4] sm:$0xf]
        %v205 = vld [vmem:[%s180] sm:$0xff]
        %v206 = vld [vmem:[%s180 + $0x8] sm:$0xf]
        %v207 = vld [vmem:[%s180 + $0xc] sm:$0xff]
        %v208 = vld [vmem:[%s180 + $0x14] sm:$0xf]
        %v209 = vld [vmem:[%s1] sm:$0xff]
        %v210 = vld [vmem:[%s1 + $0x8] sm:$0xff]
        %212 = vset.pattern.permute.xlu0 0
        %213 = vperm.xlu0 %212, %v209
        %v214 = vpop.permute.xlu0 %213
        %217 = vset.pattern.permute.xlu0 0
        %218 = vperm.xlu0 %217, %v210
        %v219 = vpop.permute.xlu0 %218
        %v223 = vunpack.c.l.b16 %v203
        %v224 = vunpack.c.l.b16 %v204
        %v225 = vpack.c.b16 %v224, %v223
        %v230 = vunpack.c.l.b16 %v205
        %v231 = vunpack.c.h.b16 %v205
        %v232 = vunpack.c.l.b16 %v206
        %v233 = vunpack.c.l.b16 %v207
        %v234 = vunpack.c.h.b16 %v207
        %v235 = vunpack.c.l.b16 %v208
        %v236 = vpack.c.b16 %v233, %v230
        %v237 = vpack.c.b16 %v234, %v231
        %v238 = vpack.c.b16 %v235, %v232
        %vm242 = vcmask 130048
        %v244 = vsel %vm242, %v225, 0
        %246 = vmatprep.subr.bf16.mxu0 %v237
        %247 = vmatpush1.bf16.msra.mxu0 %v236
        %248 = vmatprep.subr.bf16.mxu0 0
        %249 = vmatpush1.bf16.msra.mxu0 0
        %250 = vmatprep.subr.bf16.mxu0 0
        %251 = vmatpush1.bf16.msra.mxu0 0
        %252 = vmatprep.subr.bf16.mxu0 0
        %253 = vmatpush1.bf16.msra.mxu0 0
        %254 = vmatprep.subr.bf16.mxu0 0
        %255 = vmatpush1.bf16.msra.mxu0 0
        %256 = vmatprep.subr.bf16.mxu0 0
        %257 = vmatpush1.bf16.msra.mxu0 0
        %258 = vmatprep.subr.bf16.mxu0 0
        %259 = vmatpush1.bf16.msra.mxu0 0
        %260 = vmatprep.subr.bf16.mxu0 0
        %261 = vmatpush1.bf16.msra.mxu0 0
        %262 = vmatprep.subr.bf16.mxu0 0
        %263 = vmatpush1.bf16.msra.mxu0 0
        %264 = vmatprep.subr.bf16.mxu0 0
        %265 = vmatpush1.bf16.msra.mxu0 0
        %266 = vmatprep.subr.bf16.mxu0 0
        %267 = vmatpush1.bf16.msra.mxu0 0
        %268 = vmatprep.subr.bf16.mxu0 0
        %269 = vmatpush1.bf16.msra.mxu0 0
        %270 = vmatprep.subr.bf16.mxu0 0
        %271 = vmatpush1.bf16.msra.mxu0 0
        %272 = vmatprep.subr.bf16.mxu0 0
        %273 = vmatpush1.bf16.msra.mxu0 0
        %274 = vmatprep.subr.bf16.mxu0 0
        %275 = vmatpush1.bf16.msra.mxu0 0
        %276 = vmatprep.subr.bf16.mxu0 0
        %277 = vmatpush1.bf16.msra.mxu0 0
        %278 = vmatprep.mubr.bf16.mxu0 0
        %279 = vmatmul.mubr.bf16.gmra.mrb[0].mxu0 %v244
        %v280 = vpop.f32.mrb[0].mxu0
        %v281 = vadd.f32 %v214, %v280
        %v282 = vpop.f32.mrb[0].mxu0
        %v283 = vadd.f32 %v214, %v282
        %v284 = vpop.f32.mrb[0].mxu0
        %v285 = vadd.f32 %v219, %v284
        %v286 = vpop.f32.mrb[0].mxu0
        %v287 = vadd.f32 %v219, %v286
        %288 = vdwg.mxu0
        %289 = vmatprep.subr.bf16.mxu0 0
        %290 = vmatpush1.bf16.msra.mxu0 %v238
        %291 = vmatprep.subr.bf16.mxu0 0
        %292 = vmatpush1.bf16.msra.mxu0 0
        %293 = vmatprep.subr.bf16.mxu0 0
        %294 = vmatpush1.bf16.msra.mxu0 0
        %295 = vmatprep.subr.bf16.mxu0 0
        %296 = vmatpush1.bf16.msra.mxu0 0
        %297 = vmatprep.subr.bf16.mxu0 0
        %298 = vmatpush1.bf16.msra.mxu0 0
        %299 = vmatprep.subr.bf16.mxu0 0
        %300 = vmatpush1.bf16.msra.mxu0 0
        %301 = vmatprep.subr.bf16.mxu0 0
        %302 = vmatpush1.bf16.msra.mxu0 0
        %303 = vmatprep.subr.bf16.mxu0 0
        %304 = vmatpush1.bf16.msra.mxu0 0
        %305 = vmatprep.subr.bf16.mxu0 0
        %306 = vmatpush1.bf16.msra.mxu0 0
        %307 = vmatprep.subr.bf16.mxu0 0
        %308 = vmatpush1.bf16.msra.mxu0 0
        %309 = vmatprep.subr.bf16.mxu0 0
        %310 = vmatpush1.bf16.msra.mxu0 0
        %311 = vmatprep.subr.bf16.mxu0 0
        %312 = vmatpush1.bf16.msra.mxu0 0
        %313 = vmatprep.subr.bf16.mxu0 0
        %314 = vmatpush1.bf16.msra.mxu0 0
        %315 = vmatprep.subr.bf16.mxu0 0
        %316 = vmatpush1.bf16.msra.mxu0 0
        %317 = vmatprep.subr.bf16.mxu0 0
        %318 = vmatpush1.bf16.msra.mxu0 0
        %319 = vmatprep.subr.bf16.mxu0 0
        %320 = vmatpush1.bf16.msra.mxu0 0
        %321 = vmatprep.mubr.bf16.mxu0 0
        %322 = vmatmul.mubr.bf16.gmra.mrb[0].mxu0 %v244
        %v323 = vpop.f32.mrb[0].mxu0
        %v324 = vadd.f32 %v214, %v323
        %v325 = vpop.f32.mrb[0].mxu0
        %v326 = vpop.f32.mrb[0].mxu0
        %v327 = vadd.f32 %v219, %v326
        %v328 = vpop.f32.mrb[0].mxu0
        %329 = vdwg.mxu0
        %v330 = vpack.c.bf16 %v285, %v281
        %v331 = vpack.c.bf16 %v287, %v283
        %v332 = vpack.c.bf16 %v327, %v324
        %v336 = vunpack.c.l.b16 %v330
        %v337 = vunpack.c.l.b16 %v331
        %v338 = vunpack.c.l.b16 %v332
        %v339 = vunpack.c.h.b16 %v330
        %v340 = vunpack.c.h.b16 %v331
        %v341 = vunpack.c.h.b16 %v332
        %v342 = vpack.c.b16 %v337, %v336
        %v343 = vpack.c.b16 %v338, %v338
        %v344 = vpack.c.b16 %v340, %v339
        %v345 = vpack.c.b16 %v341, %v341
        %350 = vst [vmem:[%s199] sm:$0xff] %v342
        %351 = vst [vmem:[%s199 + $0x8] sm:$0xf] %v343
        %352 = vst [vmem:[%s199 + $0xc] sm:$0xff] %v344
        %353 = vst [vmem:[%s199 + $0x14] sm:$0xf] %v345
        %s354 = sand.u32 %s90, 1
        %s355 = sand.u32 %s90, 1
        %s356 = smul.addr %s355, 24
        %s357 = scalar_lea.vmem [#allocation3], %s356
        // Predicated region
        $region59: #{_lambda_.22} parent=53 // pred_check
          %p358 = pneg %p100
        $region60: #{_lambda_.22} parent=53 // pred_check_branch
          %360 = sbr.rel (%p358) target = $region62
        $region61: #{_lambda_.22} parent=53 // pred_region
          %s361 = smul.u32 3, %s14
          %s362 = smul.addr %s361, 4
          %s363 = scalar_lea.vmem %s3, %s362
          // Predicated region
          $region63: #{_lambda_.22} parent=61 // pred_check
            _
          $region64: #{_lambda_.22} parent=61 // pred_check_branch
            %365 = sbr.rel (0) target = $region66
          $region65: #{_lambda_.22} parent=61 // pred_region
            // Predicated region
            $region67: #{_lambda_.22} parent=65 // pred_check
              _
            $region68: #{_lambda_.22} parent=65 // pred_check_branch
              %367 = sbr.rel (0) target = $region70
            $region69: #{_lambda_.22} parent=65 // pred_region
              %s368 = scalar_lea.vmem %s357, 8 [#allocation3]
              %s369 = scalar_lea.vmem %s363, 8
              loop: start=0, step=1, limit=1
              $region71: #{_lambda_.22} parent=69 // loop_pre_header
                _
              $region72: #{_lambda_.22} parent=69 // loop_header
                %s371 = sphi 0, %s375
                %p372 = scmp.ge.s32.totalorder %s371, 1
                %s376 = sphi %s357, %s357
                %s377 = sphi %s363, %s363
              $region73: #{_lambda_.22} parent=69 // loop_header_branch
                %374 = sbr.rel (%p372) target = $region77
              $region74: #{_lambda_.22} parent=69 // loop_body
                %v378 = vld [vmem:[%s376] sm:$0xff]
                %379 = vst [vmem:[%s377] sm:$0xff] %v378
                %v380 = vld [vmem:[%s376 + $0xc] sm:$0xff]
                %381 = vst [vmem:[%s377 + $0x24] sm:$0xff] %v380
              $region75: #{_lambda_.22} parent=69 // loop_footer
                %s375 = sadd.s32 1, %s371
              $region76: #{_lambda_.22} parent=69 // loop_footer_branch
                %370 = sbr.rel target = $region72
              $region77: #{_lambda_.22} parent=69 // loop_exit
                _
              loop: start=0, step=1, limit=1
              $region78: #{_lambda_.22} parent=69 // loop_pre_header
                _
              $region79: #{_lambda_.22} parent=69 // loop_header
                %s384 = sphi 0, %s388
                %p385 = scmp.ge.s32.totalorder %s384, 1
                %s389 = sphi %s368, %s368
                %s390 = sphi %s369, %s369
              $region80: #{_lambda_.22} parent=69 // loop_header_branch
                %387 = sbr.rel (%p385) target = $region84
              $region81: #{_lambda_.22} parent=69 // loop_body
                %v391 = vld [vmem:[%s389] sm:$0xf]
                %392 = vst [vmem:[%s390] sm:$0xf] %v391
                %v393 = vld [vmem:[%s389 + $0xc] sm:$0xf]
                %394 = vst [vmem:[%s390 + $0x24] sm:$0xf] %v393
              $region82: #{_lambda_.22} parent=69 // loop_footer
                %s388 = sadd.s32 1, %s384
              $region83: #{_lambda_.22} parent=69 // loop_footer_branch
                %383 = sbr.rel target = $region79
              $region84: #{_lambda_.22} parent=69 // loop_exit
                _
            $region70: #{_lambda_.22} parent=65 // pred_fallthru
              _
          $region66: #{_lambda_.22} parent=61 // pred_fallthru
            _
          %395 = vnop
        $region62: #{_lambda_.22} parent=53 // pred_fallthru
          _
      $region54: #{_lambda_.22} parent=5 // pred_fallthru
        _
      %p396 = scmp.le.s32.totalorder 2, %s9
      // Predicated region
      $region85: #{_lambda_.22} parent=5 // pred_check
        %p397 = pneg %p396
      $region86: #{_lambda_.22} parent=5 // pred_check_branch
        %399 = sbr.rel (%p397) target = $region88
      $region87: #{_lambda_.22} parent=5 // pred_region
        %s400 = ssub.s32 %s9, 2
        // Predicated region
        $region89: #{_lambda_.22} parent=87 // pred_check
          %p401 = pneg %p106
        $region90: #{_lambda_.22} parent=87 // pred_check_branch
          %403 = sbr.rel (%p401) target = $region92
        $region91: #{_lambda_.22} parent=87 // pred_region
          %s404 = sand.u32 %s91, 1
          %s405 = sand.u32 %s91, 1
          %s406 = smul.addr %s405, 24
          %s407 = scalar_lea.vmem [#allocation3], %s406
        $region92: #{_lambda_.22} parent=87 // pred_fallthru
          _
      $region88: #{_lambda_.22} parent=5 // pred_fallthru
        _
    $region6: #{_lambda_.22} parent=1 // loop_footer
      %s13 = sadd.s32 1, %s9
    $region7: #{_lambda_.22} parent=1 // loop_footer_branch
      %8 = sbr.rel target = $region3
    $region8: #{_lambda_.22} parent=1 // loop_exit
      _

// kernel: _lambda_.23
$region0: #{_lambda_.23}
  #allocation0 [shape = 'u32[]', space=smem, size = 0x4, offset = 0x4, fixed_abs, tag = 'smem constant byte address 0x4 - core index']
  #allocation1 [shape = 'u32[144,128]{1,0:T(1,128)}', space=vmem, size = 0x12000, scoped, tag = 'internal scratch']
  %s0 = inlined_call_operand.vmem [shape: bf16[16,144], index: 0, kind: input, shape index: {}]
  %s1 = inlined_call_operand.vmem [shape: f32[16,1], index: 1, kind: input, shape index: {}]
  %s2 = inlined_call_operand.vmem [shape: bf16[144,1152], index: 2, kind: input, shape index: {}]
  %s3 = inlined_call_operand.vmem [shape: bf16[16,1152], index: 3, kind: input, shape index: {}]
  %s4 = inlined_call_operand.vmem [shape: bf16[16,1152], index: 4, kind: output, shape index: {}]
  %s5 = sld [smem:[#allocation0]]
  $region123: #{_lambda_.23} parent=0
    _
  %s7 = ssub.s32 1, %s5
  %s8 = scalar_select 0, %s7, %s5
  $region1: #{_lambda_.23} parent=0
    #allocation2 [shape = 'u8[221184]{0}', space=vmem, size = 0x36000, scoped, tag = 'input window, operand 2']
    #allocation3 [shape = 'u8[24576]{0}', space=vmem, size = 0x6000, scoped, tag = 'input window, operand 3']
    #allocation4 [shape = 'u8[24576]{0}', space=vmem, size = 0x6000, scoped, tag = 'output window, operand 0']
    loop: start=0, step=1, limit=5
    $region2: #{_lambda_.23} parent=1 // loop_pre_header
      _
    $region3: #{_lambda_.23} parent=1 // loop_header
      %s10 = sphi 0, %s14
      %p11 = scmp.ge.s32.totalorder %s10, 5
      %s18 = sphi 0, %s18
      %s20 = sphi 0, %s18
      %s21 = sphi 0, %s20
      %s35 = sphi 0, %s21
      %s39 = sphi 0, %s39
      %s41 = sphi 0, %s39
      %s42 = sphi 0, %s41
      %s56 = sphi 0, %s42
      %s62 = sphi 0, %s64
      %s65 = sphi 0, %s62
      %s66 = sphi 0, %s65
      %s82 = sphi 0, %s66
      %s88 = sphi 0, %s90
      %s91 = sphi 0, %s88
      %s92 = sphi 0, %s91
      %s108 = sphi 0, %s92
      %s114 = sphi 0, %s116
      %s117 = sphi 0, %s114
      %s118 = sphi 0, %s117
      %s134 = sphi 0, %s118
    $region4: #{_lambda_.23} parent=1 // loop_header_branch
      %13 = sbr.rel (%p11) target = $region8
    $region5: #{_lambda_.23} parent=1 // loop_body
      %s15 = ssub.s32 %s10, 1
      %s16 = ssub.s32 %s10, 2
      %s17 = sadd.s32 %s10, 1
      %s19 = sadd.s32 %s18, 1
      %p22 = scmp.eq.s32.totalorder %s10, 2
      %p23 = scmp.ne.s32.totalorder %s18, %s20
      %p24 = scmp.eq.s32.totalorder %s10, 0
      %p25 = por %p23, %p24
      %p26 = scmp.ne.s32.totalorder %s18, %s20
      %p27 = scmp.eq.s32.totalorder %s15, 2
      %p28 = por %p26, %p27
      %p29 = scmp.ne.s32.totalorder %s20, %s21
      %p30 = scmp.eq.s32.totalorder %s15, 0
      %p31 = por %p29, %p30
      %p32 = scmp.ne.s32.totalorder %s20, %s21
      %p33 = scmp.eq.s32.totalorder %s16, 2
      %p34 = por %p32, %p33
      %p36 = scmp.ne.s32.totalorder %s21, %s35
      %p37 = scmp.eq.s32.totalorder %s16, 0
      %p38 = por %p36, %p37
      %s40 = sadd.s32 %s39, 1
      %p43 = scmp.eq.s32.totalorder %s10, 2
      %p44 = scmp.ne.s32.totalorder %s39, %s41
      %p45 = scmp.eq.s32.totalorder %s10, 0
      %p46 = por %p44, %p45
      %p47 = scmp.ne.s32.totalorder %s39, %s41
      %p48 = scmp.eq.s32.totalorder %s15, 2
      %p49 = por %p47, %p48
      %p50 = scmp.ne.s32.totalorder %s41, %s42
      %p51 = scmp.eq.s32.totalorder %s15, 0
      %p52 = por %p50, %p51
      %p53 = scmp.ne.s32.totalorder %s41, %s42
      %p54 = scmp.eq.s32.totalorder %s16, 2
      %p55 = por %p53, %p54
      %p57 = scmp.ne.s32.totalorder %s42, %s56
      %p58 = scmp.eq.s32.totalorder %s16, 0
      %p59 = por %p57, %p58
      %s60 = ssub.s32 %s10, %s17
      %p61 = scmp.eq.s32.totalorder %s60, 0
      %s63 = sadd.s32 %s62, 1
      %s64 = scalar_select %p61, %s62, %s63
      %p67 = pneg %p61
      %p68 = scmp.eq.s32.totalorder %s10, 2
      %p69 = por %p67, %p68
      %p70 = scmp.ne.s32.totalorder %s62, %s65
      %p71 = scmp.eq.s32.totalorder %s10, 0
      %p72 = por %p70, %p71
      %p73 = scmp.ne.s32.totalorder %s62, %s65
      %p74 = scmp.eq.s32.totalorder %s15, 2
      %p75 = por %p73, %p74
      %p76 = scmp.ne.s32.totalorder %s65, %s66
      %p77 = scmp.eq.s32.totalorder %s15, 0
      %p78 = por %p76, %p77
      %p79 = scmp.ne.s32.totalorder %s65, %s66
      %p80 = scmp.eq.s32.totalorder %s16, 2
      %p81 = por %p79, %p80
      %p83 = scmp.ne.s32.totalorder %s66, %s82
      %p84 = scmp.eq.s32.totalorder %s16, 0
      %p85 = por %p83, %p84
      %s86 = ssub.s32 %s10, %s17
      %p87 = scmp.eq.s32.totalorder %s86, 0
      %s89 = sadd.s32 %s88, 1
      %s90 = scalar_select %p87, %s88, %s89
      %p93 = pneg %p87
      %p94 = scmp.eq.s32.totalorder %s10, 2
      %p95 = por %p93, %p94
      %p96 = scmp.ne.s32.totalorder %s88, %s91
      %p97 = scmp.eq.s32.totalorder %s10, 0
      %p98 = por %p96, %p97
      %p99 = scmp.ne.s32.totalorder %s88, %s91
      %p100 = scmp.eq.s32.totalorder %s15, 2
      %p101 = por %p99, %p100
      %p102 = scmp.ne.s32.totalorder %s91, %s92
      %p103 = scmp.eq.s32.totalorder %s15, 0
      %p104 = por %p102, %p103
      %p105 = scmp.ne.s32.totalorder %s91, %s92
      %p106 = scmp.eq.s32.totalorder %s16, 2
      %p107 = por %p105, %p106
      %p109 = scmp.ne.s32.totalorder %s92, %s108
      %p110 = scmp.eq.s32.totalorder %s16, 0
      %p111 = por %p109, %p110
      %s112 = ssub.s32 %s10, %s17
      %p113 = scmp.eq.s32.totalorder %s112, 0
      %s115 = sadd.s32 %s114, 1
      %s116 = scalar_select %p113, %s114, %s115
      %p119 = pneg %p113
      %p120 = scmp.eq.s32.totalorder %s10, 2
      %p121 = por %p119, %p120
      %p122 = scmp.ne.s32.totalorder %s114, %s117
      %p123 = scmp.eq.s32.totalorder %s10, 0
      %p124 = por %p122, %p123
      %p125 = scmp.ne.s32.totalorder %s114, %s117
      %p126 = scmp.eq.s32.totalorder %s15, 2
      %p127 = por %p125, %p126
      %p128 = scmp.ne.s32.totalorder %s117, %s118
      %p129 = scmp.eq.s32.totalorder %s15, 0
      %p130 = por %p128, %p129
      %p131 = scmp.ne.s32.totalorder %s117, %s118
      %p132 = scmp.eq.s32.totalorder %s16, 2
      %p133 = por %p131, %p132
      %p135 = scmp.ne.s32.totalorder %s118, %s134
      %p136 = scmp.eq.s32.totalorder %s16, 0
      %p137 = por %p135, %p136
      %p138 = scmp.le.s32.totalorder 1, %s10
      %p139 = scmp.lt.s32.totalorder %s10, 4
      %p140 = pnand %p138, %p139
      %p141 = pneg %p140
      // Predicated region
      $region9: #{_lambda_.23} parent=5 // pred_check
        _
      $region10: #{_lambda_.23} parent=5 // pred_check_branch
        %143 = sbr.rel (%p140) target = $region12
      $region11: #{_lambda_.23} parent=5 // pred_region
        %s144 = ssub.s32 %s10, 1
        // Predicated region
        $region13: #{_lambda_.23} parent=11 // pred_check
          %p145 = pneg %p31
        $region14: #{_lambda_.23} parent=11 // pred_check_branch
          %147 = sbr.rel (%p145) target = $region16
        $region15: #{_lambda_.23} parent=11 // pred_region
          _
        $region16: #{_lambda_.23} parent=11 // pred_fallthru
          _
        // Predicated region
        $region17: #{_lambda_.23} parent=11 // pred_check
          %p148 = pneg %p52
        $region18: #{_lambda_.23} parent=11 // pred_check_branch
          %150 = sbr.rel (%p148) target = $region20
        $region19: #{_lambda_.23} parent=11 // pred_region
          _
        $region20: #{_lambda_.23} parent=11 // pred_fallthru
          _
      $region12: #{_lambda_.23} parent=5 // pred_fallthru
        _
      %p151 = scmp.lt.s32.totalorder %s10, 3
      // Predicated region
      $region21: #{_lambda_.23} parent=5 // pred_check
        %p152 = pneg %p151
      $region22: #{_lambda_.23} parent=5 // pred_check_branch
        %154 = sbr.rel (%p152) target = $region24
      $region23: #{_lambda_.23} parent=5 // pred_region
        // Predicated region
        $region25: #{_lambda_.23} parent=23 // pred_check
          %p155 = pneg %p72
        $region26: #{_lambda_.23} parent=23 // pred_check_branch
          %157 = sbr.rel (%p155) target = $region28
        $region27: #{_lambda_.23} parent=23 // pred_region
          %s158 = sand.u32 %s62, 1
          %s159 = sand.u32 %s62, 1
          %s160 = smul.addr %s159, 216
          %s161 = scalar_lea.vmem [#allocation2], %s160
          %s162 = smul.u32 3, %s10
          %s163 = smul.addr %s162, 4
          %s164 = scalar_lea.vmem %s2, %s163
          // Predicated region
          $region29: #{_lambda_.23} parent=27 // pred_check
            _
          $region30: #{_lambda_.23} parent=27 // pred_check_branch
            %166 = sbr.rel (0) target = $region32
          $region31: #{_lambda_.23} parent=27 // pred_region
            // Predicated region
            $region33: #{_lambda_.23} parent=31 // pred_check
              _
            $region34: #{_lambda_.23} parent=31 // pred_check_branch
              %168 = sbr.rel (0) target = $region36
            $region35: #{_lambda_.23} parent=31 // pred_region
              %s169 = scalar_lea.vmem %s164, 8
              %s170 = scalar_lea.vmem %s161, 8 [#allocation2]
              loop: start=0, step=1, limit=1
              $region37: #{_lambda_.23} parent=35 // loop_pre_header
                _
              $region38: #{_lambda_.23} parent=35 // loop_header
                %s172 = sphi 0, %s176
                %p173 = scmp.ge.s32.totalorder %s172, 1
                %s177 = sphi %s164, %s164
                %s178 = sphi %s161, %s161
              $region39: #{_lambda_.23} parent=35 // loop_header_branch
                %175 = sbr.rel (%p173) target = $region43
              $region40: #{_lambda_.23} parent=35 // loop_body
                %v179 = vld [vmem:[%s177] sm:$0xff]
                %180 = vst [vmem:[%s178] sm:$0xff] %v179
                %v181 = vld [vmem:[%s177 + $0x24] sm:$0xff]
                %182 = vst [vmem:[%s178 + $0xc] sm:$0xff] %v181
                %v183 = vld [vmem:[%s177 + $0x48] sm:$0xff]
                %184 = vst [vmem:[%s178 + $0x18] sm:$0xff] %v183
                %v185 = vld [vmem:[%s177 + $0x6c] sm:$0xff]
                %186 = vst [vmem:[%s178 + $0x24] sm:$0xff] %v185
                %v187 = vld [vmem:[%s177 + $0x90] sm:$0xff]
                %188 = vst [vmem:[%s178 + $0x30] sm:$0xff] %v187
                %v189 = vld [vmem:[%s177 + $0xb4] sm:$0xff]
                %190 = vst [vmem:[%s178 + $0x3c] sm:$0xff] %v189
                %v191 = vld [vmem:[%s177 + $0xd8] sm:$0xff]
                %192 = vst [vmem:[%s178 + $0x48] sm:$0xff] %v191
                %v193 = vld [vmem:[%s177 + $0xfc] sm:$0xff]
                %194 = vst [vmem:[%s178 + $0x54] sm:$0xff] %v193
                %v195 = vld [vmem:[%s177 + $0x120] sm:$0xff]
                %196 = vst [vmem:[%s178 + $0x60] sm:$0xff] %v195
                %v197 = vld [vmem:[%s177 + $0x144] sm:$0xff]
                %198 = vst [vmem:[%s178 + $0x6c] sm:$0xff] %v197
                %v199 = vld [vmem:[%s177 + $0x168] sm:$0xff]
                %200 = vst [vmem:[%s178 + $0x78] sm:$0xff] %v199
                %v201 = vld [vmem:[%s177 + $0x18c] sm:$0xff]
                %202 = vst [vmem:[%s178 + $0x84] sm:$0xff] %v201
                %v203 = vld [vmem:[%s177 + $0x1b0] sm:$0xff]
                %204 = vst [vmem:[%s178 + $0x90] sm:$0xff] %v203
                %v205 = vld [vmem:[%s177 + $0x1d4] sm:$0xff]
                %206 = vst [vmem:[%s178 + $0x9c] sm:$0xff] %v205
                %v207 = vld [vmem:[%s177 + $0x1f8] sm:$0xff]
                %208 = vst [vmem:[%s178 + $0xa8] sm:$0xff] %v207
                %v209 = vld [vmem:[%s177 + $0x21c] sm:$0xff]
                %210 = vst [vmem:[%s178 + $0xb4] sm:$0xff] %v209
                %v211 = vld [vmem:[%s177 + $0x240] sm:$0xff]
                %212 = vst [vmem:[%s178 + $0xc0] sm:$0xff] %v211
                %v213 = vld [vmem:[%s177 + $0x264] sm:$0xff]
                %214 = vst [vmem:[%s178 + $0xcc] sm:$0xff] %v213
              $region41: #{_lambda_.23} parent=35 // loop_footer
                %s176 = sadd.s32 1, %s172
              $region42: #{_lambda_.23} parent=35 // loop_footer_branch
                %171 = sbr.rel target = $region38
              $region43: #{_lambda_.23} parent=35 // loop_exit
                _
              loop: start=0, step=1, limit=1
              $region44: #{_lambda_.23} parent=35 // loop_pre_header
                _
              $region45: #{_lambda_.23} parent=35 // loop_header
                %s217 = sphi 0, %s221
                %p218 = scmp.ge.s32.totalorder %s217, 1
                %s222 = sphi %s169, %s169
                %s223 = sphi %s170, %s170
              $region46: #{_lambda_.23} parent=35 // loop_header_branch
                %220 = sbr.rel (%p218) target = $region50
              $region47: #{_lambda_.23} parent=35 // loop_body
                %v224 = vld [vmem:[%s222] sm:$0xf]
                %225 = vst [vmem:[%s223] sm:$0xf] %v224
                %v226 = vld [vmem:[%s222 + $0x24] sm:$0xf]
                %227 = vst [vmem:[%s223 + $0xc] sm:$0xf] %v226
                %v228 = vld [vmem:[%s222 + $0x48] sm:$0xf]
                %229 = vst [vmem:[%s223 + $0x18] sm:$0xf] %v228
                %v230 = vld [vmem:[%s222 + $0x6c] sm:$0xf]
                %231 = vst [vmem:[%s223 + $0x24] sm:$0xf] %v230
                %v232 = vld [vmem:[%s222 + $0x90] sm:$0xf]
                %233 = vst [vmem:[%s223 + $0x30] sm:$0xf] %v232
                %v234 = vld [vmem:[%s222 + $0xb4] sm:$0xf]
                %235 = vst [vmem:[%s223 + $0x3c] sm:$0xf] %v234
                %v236 = vld [vmem:[%s222 + $0xd8] sm:$0xf]
                %237 = vst [vmem:[%s223 + $0x48] sm:$0xf] %v236
                %v238 = vld [vmem:[%s222 + $0xfc] sm:$0xf]
                %239 = vst [vmem:[%s223 + $0x54] sm:$0xf] %v238
                %v240 = vld [vmem:[%s222 + $0x120] sm:$0xf]
                %241 = vst [vmem:[%s223 + $0x60] sm:$0xf] %v240
                %v242 = vld [vmem:[%s222 + $0x144] sm:$0xf]
                %243 = vst [vmem:[%s223 + $0x6c] sm:$0xf] %v242
                %v244 = vld [vmem:[%s222 + $0x168] sm:$0xf]
                %245 = vst [vmem:[%s223 + $0x78] sm:$0xf] %v244
                %v246 = vld [vmem:[%s222 + $0x18c] sm:$0xf]
                %247 = vst [vmem:[%s223 + $0x84] sm:$0xf] %v246
                %v248 = vld [vmem:[%s222 + $0x1b0] sm:$0xf]
                %249 = vst [vmem:[%s223 + $0x90] sm:$0xf] %v248
                %v250 = vld [vmem:[%s222 + $0x1d4] sm:$0xf]
                %251 = vst [vmem:[%s223 + $0x9c] sm:$0xf] %v250
                %v252 = vld [vmem:[%s222 + $0x1f8] sm:$0xf]
                %253 = vst [vmem:[%s223 + $0xa8] sm:$0xf] %v252
                %v254 = vld [vmem:[%s222 + $0x21c] sm:$0xf]
                %255 = vst [vmem:[%s223 + $0xb4] sm:$0xf] %v254
                %v256 = vld [vmem:[%s222 + $0x240] sm:$0xf]
                %257 = vst [vmem:[%s223 + $0xc0] sm:$0xf] %v256
                %v258 = vld [vmem:[%s222 + $0x264] sm:$0xf]
                %259 = vst [vmem:[%s223 + $0xcc] sm:$0xf] %v258
              $region48: #{_lambda_.23} parent=35 // loop_footer
                %s221 = sadd.s32 1, %s217
              $region49: #{_lambda_.23} parent=35 // loop_footer_branch
                %216 = sbr.rel target = $region45
              $region50: #{_lambda_.23} parent=35 // loop_exit
                _
            $region36: #{_lambda_.23} parent=31 // pred_fallthru
              _
          $region32: #{_lambda_.23} parent=27 // pred_fallthru
            _
          %260 = vnop
        $region28: #{_lambda_.23} parent=23 // pred_fallthru
          _
        // Predicated region
        $region51: #{_lambda_.23} parent=23 // pred_check
          %p261 = pneg %p98
        $region52: #{_lambda_.23} parent=23 // pred_check_branch
          %263 = sbr.rel (%p261) target = $region54
        $region53: #{_lambda_.23} parent=23 // pred_region
          %s264 = sand.u32 %s88, 1
          %s265 = sand.u32 %s88, 1
          %s266 = smul.addr %s265, 24
          %s267 = scalar_lea.vmem [#allocation3], %s266
          %s268 = smul.u32 3, %s10
          %s269 = smul.addr %s268, 4
          %s270 = scalar_lea.vmem %s3, %s269
          // Predicated region
          $region55: #{_lambda_.23} parent=53 // pred_check
            _
          $region56: #{_lambda_.23} parent=53 // pred_check_branch
            %272 = sbr.rel (0) target = $region58
          $region57: #{_lambda_.23} parent=53 // pred_region
            // Predicated region
            $region59: #{_lambda_.23} parent=57 // pred_check
              _
            $region60: #{_lambda_.23} parent=57 // pred_check_branch
              %274 = sbr.rel (0) target = $region62
            $region61: #{_lambda_.23} parent=57 // pred_region
              %s275 = scalar_lea.vmem %s270, 8
              %s276 = scalar_lea.vmem %s267, 8 [#allocation3]
              loop: start=0, step=1, limit=1
              $region63: #{_lambda_.23} parent=61 // loop_pre_header
                _
              $region64: #{_lambda_.23} parent=61 // loop_header
                %s278 = sphi 0, %s282
                %p279 = scmp.ge.s32.totalorder %s278, 1
                %s283 = sphi %s270, %s270
                %s284 = sphi %s267, %s267
              $region65: #{_lambda_.23} parent=61 // loop_header_branch
                %281 = sbr.rel (%p279) target = $region69
              $region66: #{_lambda_.23} parent=61 // loop_body
                %v285 = vld [vmem:[%s283] sm:$0xff]
                %286 = vst [vmem:[%s284] sm:$0xff] %v285
                %v287 = vld [vmem:[%s283 + $0x24] sm:$0xff]
                %288 = vst [vmem:[%s284 + $0xc] sm:$0xff] %v287
              $region67: #{_lambda_.23} parent=61 // loop_footer
                %s282 = sadd.s32 1, %s278
              $region68: #{_lambda_.23} parent=61 // loop_footer_branch
                %277 = sbr.rel target = $region64
              $region69: #{_lambda_.23} parent=61 // loop_exit
                _
              loop: start=0, step=1, limit=1
              $region70: #{_lambda_.23} parent=61 // loop_pre_header
                _
              $region71: #{_lambda_.23} parent=61 // loop_header
                %s291 = sphi 0, %s295
                %p292 = scmp.ge.s32.totalorder %s291, 1
                %s296 = sphi %s275, %s275
                %s297 = sphi %s276, %s276
              $region72: #{_lambda_.23} parent=61 // loop_header_branch
                %294 = sbr.rel (%p292) target = $region76
              $region73: #{_lambda_.23} parent=61 // loop_body
                %v298 = vld [vmem:[%s296] sm:$0xf]
                %299 = vst [vmem:[%s297] sm:$0xf] %v298
                %v300 = vld [vmem:[%s296 + $0x24] sm:$0xf]
                %301 = vst [vmem:[%s297 + $0xc] sm:$0xf] %v300
              $region74: #{_lambda_.23} parent=61 // loop_footer
                %s295 = sadd.s32 1, %s291
              $region75: #{_lambda_.23} parent=61 // loop_footer_branch
                %290 = sbr.rel target = $region71
              $region76: #{_lambda_.23} parent=61 // loop_exit
                _
            $region62: #{_lambda_.23} parent=57 // pred_fallthru
              _
          $region58: #{_lambda_.23} parent=53 // pred_fallthru
            _
          %302 = vnop
        $region54: #{_lambda_.23} parent=23 // pred_fallthru
          _
      $region24: #{_lambda_.23} parent=5 // pred_fallthru
        _
      %p303 = scmp.le.s32.totalorder 1, %s10
      %p304 = scmp.lt.s32.totalorder %s10, 4
      %p305 = pnand %p303, %p304
      %p306 = pneg %p305
      // Predicated region
      $region77: #{_lambda_.23} parent=5 // pred_check
        _
      $region78: #{_lambda_.23} parent=5 // pred_check_branch
        %308 = sbr.rel (%p305) target = $region80
      $region79: #{_lambda_.23} parent=5 // pred_region
        %s309 = ssub.s32 %s10, 1
        %s310 = sand.u32 %s65, 1
        %s311 = sand.u32 %s65, 1
        %s312 = smul.addr %s311, 216
        %s313 = scalar_lea.vmem [#allocation2], %s312
        // Predicated region
        $region81: #{_lambda_.23} parent=79 // pred_check
          %p314 = pneg %p78
        $region82: #{_lambda_.23} parent=79 // pred_check_branch
          %316 = sbr.rel (%p314) target = $region84
        $region83: #{_lambda_.23} parent=79 // pred_region
          _
        $region84: #{_lambda_.23} parent=79 // pred_fallthru
          _
        %s317 = sand.u32 %s91, 1
        %s318 = sand.u32 %s91, 1
        %s319 = smul.addr %s318, 24
        %s320 = scalar_lea.vmem [#allocation3], %s319
        // Predicated region
        $region85: #{_lambda_.23} parent=79 // pred_check
          %p321 = pneg %p104
        $region86: #{_lambda_.23} parent=79 // pred_check_branch
          %323 = sbr.rel (%p321) target = $region88
        $region87: #{_lambda_.23} parent=79 // pred_region
          _
        $region88: #{_lambda_.23} parent=79 // pred_fallthru
          _
        %p324 = pneg %p31
        %p325 = pneg %p28
        %p326 = pneg %p52
        %p327 = pneg %p49
        %s328 = sand.u32 %s65, 1
        %s329 = sand.u32 %s65, 1
        %s330 = smul.addr %s329, 216
        %s331 = scalar_lea.vmem [#allocation2], %s330
        %p332 = pneg %p78
        %p333 = pneg %p75
        %s334 = sand.u32 %s91, 1
        %s335 = sand.u32 %s91, 1
        %s336 = smul.addr %s335, 24
        %s337 = scalar_lea.vmem [#allocation3], %s336
        %p338 = pneg %p104
        %p339 = pneg %p101
        %p340 = pneg %p130
        %p341 = pneg %p127
        %s342 = sand.u32 %s117, 1
        %s343 = sand.u32 %s117, 1
        %s344 = smul.addr %s343, 24
        %s345 = scalar_lea.vmem [#allocation4], %s344
        %s346 = smul.u32 3, %s15
        %s347 = smul.u32 3, %s15
        %s348 = smul.u32 3, %s15
        %v350 = vld [vmem:[%s0] sm:$0xff]
        %v351 = vld [vmem:[%s0 + $0x8] sm:$0xff]
        %v352 = vld [vmem:[%s313] sm:$0xff]
        %v353 = vld [vmem:[%s313 + $0x8] sm:$0xf]
        %v354 = vld [vmem:[%s313 + $0xc] sm:$0xff]
        %v355 = vld [vmem:[%s313 + $0x14] sm:$0xf]
        %v356 = vld [vmem:[%s313 + $0x18] sm:$0xff]
        %v357 = vld [vmem:[%s313 + $0x20] sm:$0xf]
        %v358 = vld [vmem:[%s313 + $0x24] sm:$0xff]
        %v359 = vld [vmem:[%s313 + $0x2c] sm:$0xf]
        %v360 = vld [vmem:[%s313 + $0x30] sm:$0xff]
        %v361 = vld [vmem:[%s313 + $0x38] sm:$0xf]
        %v362 = vld [vmem:[%s313 + $0x3c] sm:$0xff]
        %v363 = vld [vmem:[%s313 + $0x44] sm:$0xf]
        %v364 = vld [vmem:[%s313 + $0x48] sm:$0xff]
        %v365 = vld [vmem:[%s313 + $0x50] sm:$0xf]
        %v366 = vld [vmem:[%s313 + $0x54] sm:$0xff]
        %v367 = vld [vmem:[%s313 + $0x5c] sm:$0xf]
        %v368 = vld [vmem:[%s313 + $0x60] sm:$0xff]
        %v369 = vld [vmem:[%s313 + $0x68] sm:$0xf]
        %v370 = vld [vmem:[%s313 + $0x6c] sm:$0xff]
        %v371 = vld [vmem:[%s313 + $0x74] sm:$0xf]
        %v372 = vld [vmem:[%s313 + $0x78] sm:$0xff]
        %v373 = vld [vmem:[%s313 + $0x80] sm:$0xf]
        %v374 = vld [vmem:[%s313 + $0x84] sm:$0xff]
        %v375 = vld [vmem:[%s313 + $0x8c] sm:$0xf]
        %v376 = vld [vmem:[%s313 + $0x90] sm:$0xff]
        %v377 = vld [vmem:[%s313 + $0x98] sm:$0xf]
        %v378 = vld [vmem:[%s313 + $0x9c] sm:$0xff]
        %v379 = vld [vmem:[%s313 + $0xa4] sm:$0xf]
        %v380 = vld [vmem:[%s313 + $0xa8] sm:$0xff]
        %v381 = vld [vmem:[%s313 + $0xb0] sm:$0xf]
        %v382 = vld [vmem:[%s313 + $0xb4] sm:$0xff]
        %v383 = vld [vmem:[%s313 + $0xbc] sm:$0xf]
        %v384 = vld [vmem:[%s313 + $0xc0] sm:$0xff]
        %v385 = vld [vmem:[%s313 + $0xc8] sm:$0xf]
        %v386 = vld [vmem:[%s313 + $0xcc] sm:$0xff]
        %v387 = vld [vmem:[%s313 + $0xd4] sm:$0xf]
        %v388 = vld [vmem:[%s1] sm:$0xff]
        %v389 = vld [vmem:[%s1 + $0x8] sm:$0xff]
        %391 = vset.pattern.permute.xlu0 0
        %392 = vperm.xlu0 %391, %v388
        %v393 = vpop.permute.xlu0 %392
        %396 = vset.pattern.permute.xlu0 0
        %397 = vperm.xlu0 %396, %v389
        %v398 = vpop.permute.xlu0 %397
        %v402 = vunpack.c.l.b16 %v350
        %v403 = vunpack.c.h.b16 %v350
        %v404 = vunpack.c.l.b16 %v351
        %v405 = vunpack.c.h.b16 %v351
        %v406 = vpack.c.b16 %v404, %v402
        %v407 = vpack.c.b16 %v405, %v403
        %v445 = vunpack.c.l.b16 %v352
        %v446 = vunpack.c.h.b16 %v352
        %v447 = vunpack.c.l.b16 %v353
        %v448 = vunpack.c.l.b16 %v354
        %v449 = vunpack.c.h.b16 %v354
        %v450 = vunpack.c.l.b16 %v355
        %v451 = vunpack.c.l.b16 %v356
        %v452 = vunpack.c.h.b16 %v356
        %v453 = vunpack.c.l.b16 %v357
        %v454 = vunpack.c.l.b16 %v358
        %v455 = vunpack.c.h.b16 %v358
        %v456 = vunpack.c.l.b16 %v359
        %v457 = vunpack.c.l.b16 %v360
        %v458 = vunpack.c.h.b16 %v360
        %v459 = vunpack.c.l.b16 %v361
        %v460 = vunpack.c.l.b16 %v362
        %v461 = vunpack.c.h.b16 %v362
        %v462 = vunpack.c.l.b16 %v363
        %v463 = vunpack.c.l.b16 %v364
        %v464 = vunpack.c.h.b16 %v364
        %v465 = vunpack.c.l.b16 %v365
        %v466 = vunpack.c.l.b16 %v366
        %v467 = vunpack.c.h.b16 %v366
        %v468 = vunpack.c.l.b16 %v367
        %v469 = vunpack.c.l.b16 %v368
        %v470 = vunpack.c.h.b16 %v368
        %v471 = vunpack.c.l.b16 %v369
        %v472 = vunpack.c.l.b16 %v370
        %v473 = vunpack.c.h.b16 %v370
        %v474 = vunpack.c.l.b16 %v371
        %v475 = vunpack.c.l.b16 %v372
        %v476 = vunpack.c.h.b16 %v372
        %v477 = vunpack.c.l.b16 %v373
        %v478 = vunpack.c.l.b16 %v374
        %v479 = vunpack.c.h.b16 %v374
        %v480 = vunpack.c.l.b16 %v375
        %v481 = vunpack.c.l.b16 %v376
        %v482 = vunpack.c.h.b16 %v376
        %v483 = vunpack.c.l.b16 %v377
        %v484 = vunpack.c.l.b16 %v378
        %v485 = vunpack.c.h.b16 %v378
        %v486 = vunpack.c.l.b16 %v379
        %v487 = vunpack.c.l.b16 %v380
        %v488 = vunpack.c.h.b16 %v380
        %v489 = vunpack.c.l.b16 %v381
        %v490 = vunpack.c.l.b16 %v382
        %v491 = vunpack.c.h.b16 %v382
        %v492 = vunpack.c.l.b16 %v383
        %v493 = vunpack.c.l.b16 %v384
        %v494 = vunpack.c.h.b16 %v384
        %v495 = vunpack.c.l.b16 %v385
        %v496 = vunpack.c.l.b16 %v386
        %v497 = vunpack.c.h.b16 %v386
        %v498 = vunpack.c.l.b16 %v387
        %v499 = vpack.c.b16 %v448, %v445
        %v500 = vpack.c.b16 %v449, %v446
        %v501 = vpack.c.b16 %v450, %v447
        %v502 = vpack.c.b16 %v454, %v451
        %v503 = vpack.c.b16 %v455, %v452
        %v504 = vpack.c.b16 %v456, %v453
        %v505 = vpack.c.b16 %v460, %v457
        %v506 = vpack.c.b16 %v461, %v458
        %v507 = vpack.c.b16 %v462, %v459
        %v508 = vpack.c.b16 %v466, %v463
        %v509 = vpack.c.b16 %v467, %v464
        %v510 = vpack.c.b16 %v468, %v465
        %v511 = vpack.c.b16 %v472, %v469
        %v512 = vpack.c.b16 %v473, %v470
        %v513 = vpack.c.b16 %v474, %v471
        %v514 = vpack.c.b16 %v478, %v475
        %v515 = vpack.c.b16 %v479, %v476
        %v516 = vpack.c.b16 %v480, %v477
        %v517 = vpack.c.b16 %v484, %v481
        %v518 = vpack.c.b16 %v485, %v482
        %v519 = vpack.c.b16 %v486, %v483
        %v520 = vpack.c.b16 %v490, %v487
        %v521 = vpack.c.b16 %v491, %v488
        %v522 = vpack.c.b16 %v492, %v489
        %v523 = vpack.c.b16 %v496, %v493
        %v524 = vpack.c.b16 %v497, %v494
        %v525 = vpack.c.b16 %v498, %v495
        %vm553 = vcmask 130048
        %v555 = vsel %vm553, %v407, 0
        %557 = vmatprep.subr.bf16.mxu0 %v500
        %558 = vmatpush1.bf16.msra.mxu0 %v499
        %559 = vmatprep.subr.bf16.mxu0 %v503
        %560 = vmatpush1.bf16.msra.mxu0 %v502
        %561 = vmatprep.subr.bf16.mxu0 %v506
        %562 = vmatpush1.bf16.msra.mxu0 %v505
        %563 = vmatprep.subr.bf16.mxu0 %v509
        %564 = vmatpush1.bf16.msra.mxu0 %v508
        %565 = vmatprep.subr.bf16.mxu0 %v512
        %566 = vmatpush1.bf16.msra.mxu0 %v511
        %567 = vmatprep.subr.bf16.mxu0 %v515
        %568 = vmatpush1.bf16.msra.mxu0 %v514
        %569 = vmatprep.subr.bf16.mxu0 %v518
        %570 = vmatpush1.bf16.msra.mxu0 %v517
        %571 = vmatprep.subr.bf16.mxu0 %v521
        %572 = vmatpush1.bf16.msra.mxu0 %v520
        %573 = vmatprep.subr.bf16.mxu0 %v524
        %574 = vmatpush1.bf16.msra.mxu0 %v523
        %575 = vmatprep.subr.bf16.mxu0 0
        %576 = vmatpush1.bf16.msra.mxu0 0
        %577 = vmatprep.subr.bf16.mxu0 0
        %578 = vmatpush1.bf16.msra.mxu0 0
        %579 = vmatprep.subr.bf16.mxu0 0
        %580 = vmatpush1.bf16.msra.mxu0 0
        %581 = vmatprep.subr.bf16.mxu0 0
        %582 = vmatpush1.bf16.msra.mxu0 0
        %583 = vmatprep.subr.bf16.mxu0 0
        %584 = vmatpush1.bf16.msra.mxu0 0
        %585 = vmatprep.subr.bf16.mxu0 0
        %586 = vmatpush1.bf16.msra.mxu0 0
        %587 = vmatprep.subr.bf16.mxu0 0
        %588 = vmatpush1.bf16.msra.mxu0 0
        %589 = vmatprep.mubr.bf16.mxu0 %v555
        %590 = vmatmul.mubr.bf16.gmra.mrb[0].mxu0 %v406
        %v591 = vpop.f32.mrb[0].mxu0
        %v592 = vadd.f32 %v393, %v591
        %v593 = vpop.f32.mrb[0].mxu0
        %v594 = vadd.f32 %v393, %v593
        %v595 = vpop.f32.mrb[0].mxu0
        %v596 = vadd.f32 %v398, %v595
        %v597 = vpop.f32.mrb[0].mxu0
        %v598 = vadd.f32 %v398, %v597
        %599 = vdwg.mxu0
        %600 = vmatprep.subr.bf16.mxu0 0
        %601 = vmatpush1.bf16.msra.mxu0 %v501
        %602 = vmatprep.subr.bf16.mxu0 0
        %603 = vmatpush1.bf16.msra.mxu0 %v504
        %604 = vmatprep.subr.bf16.mxu0 0
        %605 = vmatpush1.bf16.msra.mxu0 %v507
        %606 = vmatprep.subr.bf16.mxu0 0
        %607 = vmatpush1.bf16.msra.mxu0 %v510
        %608 = vmatprep.subr.bf16.mxu0 0
        %609 = vmatpush1.bf16.msra.mxu0 %v513
        %610 = vmatprep.subr.bf16.mxu0 0
        %611 = vmatpush1.bf16.msra.mxu0 %v516
        %612 = vmatprep.subr.bf16.mxu0 0
        %613 = vmatpush1.bf16.msra.mxu0 %v519
        %614 = vmatprep.subr.bf16.mxu0 0
        %615 = vmatpush1.bf16.msra.mxu0 %v522
        %616 = vmatprep.subr.bf16.mxu0 0
        %617 = vmatpush1.bf16.msra.mxu0 %v525
        %618 = vmatprep.subr.bf16.mxu0 0
        %619 = vmatpush1.bf16.msra.mxu0 0
        %620 = vmatprep.subr.bf16.mxu0 0
        %621 = vmatpush1.bf16.msra.mxu0 0
        %622 = vmatprep.subr.bf16.mxu0 0
        %623 = vmatpush1.bf16.msra.mxu0 0
        %624 = vmatprep.subr.bf16.mxu0 0
        %625 = vmatpush1.bf16.msra.mxu0 0
        %626 = vmatprep.subr.bf16.mxu0 0
        %627 = vmatpush1.bf16.msra.mxu0 0
        %628 = vmatprep.subr.bf16.mxu0 0
        %629 = vmatpush1.bf16.msra.mxu0 0
        %630 = vmatprep.subr.bf16.mxu0 0
        %631 = vmatpush1.bf16.msra.mxu0 0
        %632 = vmatprep.mubr.bf16.mxu0 %v555
        %633 = vmatmul.mubr.bf16.gmra.mrb[0].mxu0 %v406
        %v634 = vpop.f32.mrb[0].mxu0
        %v635 = vadd.f32 %v393, %v634
        %v636 = vpop.f32.mrb[0].mxu0
        %v637 = vpop.f32.mrb[0].mxu0
        %v638 = vadd.f32 %v398, %v637
        %v639 = vpop.f32.mrb[0].mxu0
        %640 = vdwg.mxu0
        %v641 = vld [vmem:[%s320] sm:$0xff]
        %v642 = vld [vmem:[%s320 + $0x8] sm:$0xf]
        %v643 = vld [vmem:[%s320 + $0xc] sm:$0xff]
        %v644 = vld [vmem:[%s320 + $0x14] sm:$0xf]
        %v645 = vunpack.c.l.bf16 %v641
        %v646 = vunpack.c.h.bf16 %v641
        %v647 = vunpack.c.l.bf16 %v642
        %v648 = vunpack.c.l.bf16 %v643
        %v649 = vunpack.c.h.bf16 %v643
        %v650 = vunpack.c.l.bf16 %v644
        %v651 = vadd.f32 %v592, %v645
        %v652 = vadd.f32 %v594, %v646
        %v653 = vadd.f32 %v635, %v647
        %v654 = vadd.f32 %v596, %v648
        %v655 = vadd.f32 %v598, %v649
        %v656 = vadd.f32 %v638, %v650
        %v657 = vmax.f32 %v651, 0.0
        %v658 = vmax.f32 %v652, 0.0
        %v659 = vmax.f32 %v653, 0.0
        %v660 = vmax.f32 %v654, 0.0
        %v661 = vmax.f32 %v655, 0.0
        %v662 = vmax.f32 %v656, 0.0
        %v663 = vpack.c.bf16 %v660, %v657
        %v664 = vpack.c.bf16 %v661, %v658
        %v665 = vpack.c.bf16 %v662, %v659
        %v669 = vunpack.c.l.b16 %v663
        %v670 = vunpack.c.l.b16 %v664
        %v671 = vunpack.c.l.b16 %v665
        %v672 = vunpack.c.h.b16 %v663
        %v673 = vunpack.c.h.b16 %v664
        %v674 = vunpack.c.h.b16 %v665
        %v675 = vpack.c.b16 %v670, %v669
        %v676 = vpack.c.b16 %v671, %v671
        %v677 = vpack.c.b16 %v673, %v672
        %v678 = vpack.c.b16 %v674, %v674
        %683 = vst [vmem:[%s345] sm:$0xff] %v675
        %684 = vst [vmem:[%s345 + $0x8] sm:$0xf] %v676
        %685 = vst [vmem:[%s345 + $0xc] sm:$0xff] %v677
        %686 = vst [vmem:[%s345 + $0x14] sm:$0xf] %v678
        %s687 = sand.u32 %s117, 1
        %s688 = sand.u32 %s117, 1
        %s689 = smul.addr %s688, 24
        %s690 = scalar_lea.vmem [#allocation4], %s689
        // Predicated region
        $region89: #{_lambda_.23} parent=79 // pred_check
          %p691 = pneg %p127
        $region90: #{_lambda_.23} parent=79 // pred_check_branch
          %693 = sbr.rel (%p691) target = $region92
        $region91: #{_lambda_.23} parent=79 // pred_region
          %s694 = smul.u32 3, %s15
          %s695 = smul.addr %s694, 4
          %s696 = scalar_lea.vmem %s4, %s695
          // Predicated region
          $region93: #{_lambda_.23} parent=91 // pred_check
            _
          $region94: #{_lambda_.23} parent=91 // pred_check_branch
            %698 = sbr.rel (0) target = $region96
          $region95: #{_lambda_.23} parent=91 // pred_region
            // Predicated region
            $region97: #{_lambda_.23} parent=95 // pred_check
              _
            $region98: #{_lambda_.23} parent=95 // pred_check_branch
              %700 = sbr.rel (0) target = $region100
            $region99: #{_lambda_.23} parent=95 // pred_region
              %s701 = scalar_lea.vmem %s690, 8 [#allocation4]
              %s702 = scalar_lea.vmem %s696, 8
              loop: start=0, step=1, limit=1
              $region101: #{_lambda_.23} parent=99 // loop_pre_header
                _
              $region102: #{_lambda_.23} parent=99 // loop_header
                %s704 = sphi 0, %s708
                %p705 = scmp.ge.s32.totalorder %s704, 1
                %s709 = sphi %s690, %s690
                %s710 = sphi %s696, %s696
              $region103: #{_lambda_.23} parent=99 // loop_header_branch
                %707 = sbr.rel (%p705) target = $region107
              $region104: #{_lambda_.23} parent=99 // loop_body
                %v711 = vld [vmem:[%s709] sm:$0xff]
                %712 = vst [vmem:[%s710] sm:$0xff] %v711
                %v713 = vld [vmem:[%s709 + $0xc] sm:$0xff]
                %714 = vst [vmem:[%s710 + $0x24] sm:$0xff] %v713
              $region105: #{_lambda_.23} parent=99 // loop_footer
                %s708 = sadd.s32 1, %s704
              $region106: #{_lambda_.23} parent=99 // loop_footer_branch
                %703 = sbr.rel target = $region102
              $region107: #{_lambda_.23} parent=99 // loop_exit
                _
              loop: start=0, step=1, limit=1
              $region108: #{_lambda_.23} parent=99 // loop_pre_header
                _
              $region109: #{_lambda_.23} parent=99 // loop_header
                %s717 = sphi 0, %s721
                %p718 = scmp.ge.s32.totalorder %s717, 1
                %s722 = sphi %s701, %s701
                %s723 = sphi %s702, %s702
              $region110: #{_lambda_.23} parent=99 // loop_header_branch
                %720 = sbr.rel (%p718) target = $region114
              $region111: #{_lambda_.23} parent=99 // loop_body
                %v724 = vld [vmem:[%s722] sm:$0xf]
                %725 = vst [vmem:[%s723] sm:$0xf] %v724
                %v726 = vld [vmem:[%s722 + $0xc] sm:$0xf]
                %727 = vst [vmem:[%s723 + $0x24] sm:$0xf] %v726
              $region112: #{_lambda_.23} parent=99 // loop_footer
                %s721 = sadd.s32 1, %s717
              $region113: #{_lambda_.23} parent=99 // loop_footer_branch
                %716 = sbr.rel target = $region109
              $region114: #{_lambda_.23} parent=99 // loop_exit
                _
            $region100: #{_lambda_.23} parent=95 // pred_fallthru
              _
          $region96: #{_lambda_.23} parent=91 // pred_fallthru
            _
          %728 = vnop
        $region92: #{_lambda_.23} parent=79 // pred_fallthru
          _
      $region80: #{_lambda_.23} parent=5 // pred_fallthru
        _
      %p729 = scmp.le.s32.totalorder 2, %s10
      // Predicated region
      $region115: #{_lambda_.23} parent=5 // pred_check
        %p730 = pneg %p729
      $region116: #{_lambda_.23} parent=5 // pred_check_branch
        %732 = sbr.rel (%p730) target = $region118
      $region117: #{_lambda_.23} parent=5 // pred_region
        %s733 = ssub.s32 %s10, 2
        // Predicated region
        $region119: #{_lambda_.23} parent=117 // pred_check
          %p734 = pneg %p133
        $region120: #{_lambda_.23} parent=117 // pred_check_branch
          %736 = sbr.rel (%p734) target = $region122
        $region121: #{_lambda_.23} parent=117 // pred_region
          %s737 = sand.u32 %s118, 1
          %s738 = sand.u32 %s118, 1
          %s739 = smul.addr %s738, 24
          %s740 = scalar_lea.vmem [#allocation4], %s739
        $region122: #{_lambda_.23} parent=117 // pred_fallthru
          _
      $region118: #{_lambda_.23} parent=5 // pred_fallthru
        _
    $region6: #{_lambda_.23} parent=1 // loop_footer
      %s14 = sadd.s32 1, %s10
    $region7: #{_lambda_.23} parent=1 // loop_footer_branch
      %9 = sbr.rel target = $region3
    $region8: #{_lambda_.23} parent=1 // loop_exit
      _

// kernel: _lambda_.24
$region0: #{_lambda_.24}
  #allocation0 [shape = 'u32[]', space=smem, size = 0x4, offset = 0x4, fixed_abs, tag = 'smem constant byte address 0x4 - core index']
  #allocation1 [shape = 'u32[144,128]{1,0:T(1,128)}', space=vmem, size = 0x12000, scoped, tag = 'internal scratch']
  %s0 = inlined_call_operand.vmem [shape: bf16[16,144], index: 0, kind: input, shape index: {}]
  %s1 = inlined_call_operand.vmem [shape: f32[16,1], index: 1, kind: input, shape index: {}]
  %s2 = inlined_call_operand.vmem [shape: bf16[144,288], index: 2, kind: input, shape index: {}]
  %s3 = inlined_call_operand.vmem [shape: bf16[16,288], index: 3, kind: output, shape index: {}]
  %s4 = sld [smem:[#allocation0]]
  $region22: #{_lambda_.24} parent=0
    _
  %s6 = ssub.s32 1, %s4
  %s7 = scalar_select 0, %s6, %s4
  // Predicated region
  $region2: #{_lambda_.24} parent=0 // pred_check
    _
  $region3: #{_lambda_.24} parent=0 // pred_check_branch
    %9 = sbr.rel (0) target = $region5
  $region4: #{_lambda_.24} parent=0 // pred_region
    _
  $region5: #{_lambda_.24} parent=0 // pred_fallthru
    _
  // Predicated region
  $region6: #{_lambda_.24} parent=0 // pred_check
    _
  $region7: #{_lambda_.24} parent=0 // pred_check_branch
    %11 = sbr.rel (0) target = $region9
  $region8: #{_lambda_.24} parent=0 // pred_region
    _
  $region9: #{_lambda_.24} parent=0 // pred_fallthru
    _
  // Predicated region
  $region10: #{_lambda_.24} parent=0 // pred_check
    _
  $region11: #{_lambda_.24} parent=0 // pred_check_branch
    %13 = sbr.rel (0) target = $region13
  $region12: #{_lambda_.24} parent=0 // pred_region
    _
  $region13: #{_lambda_.24} parent=0 // pred_fallthru
    _
  %v15 = vld [vmem:[%s0] sm:$0xff]
  %v16 = vld [vmem:[%s0 + $0x8] sm:$0xff]
  %v17 = vld [vmem:[%s2] sm:$0xff]
  %v18 = vld [vmem:[%s2 + $0x8] sm:$0xf]
  %v19 = vld [vmem:[%s2 + $0xc] sm:$0xff]
  %v20 = vld [vmem:[%s2 + $0x14] sm:$0xf]
  %v21 = vld [vmem:[%s2 + $0x18] sm:$0xff]
  %v22 = vld [vmem:[%s2 + $0x20] sm:$0xf]
  %v23 = vld [vmem:[%s2 + $0x24] sm:$0xff]
  %v24 = vld [vmem:[%s2 + $0x2c] sm:$0xf]
  %v25 = vld [vmem:[%s2 + $0x30] sm:$0xff]
  %v26 = vld [vmem:[%s2 + $0x38] sm:$0xf]
  %v27 = vld [vmem:[%s2 + $0x3c] sm:$0xff]
  %v28 = vld [vmem:[%s2 + $0x44] sm:$0xf]
  %v29 = vld [vmem:[%s2 + $0x48] sm:$0xff]
  %v30 = vld [vmem:[%s2 + $0x50] sm:$0xf]
  %v31 = vld [vmem:[%s2 + $0x54] sm:$0xff]
  %v32 = vld [vmem:[%s2 + $0x5c] sm:$0xf]
  %v33 = vld [vmem:[%s2 + $0x60] sm:$0xff]
  %v34 = vld [vmem:[%s2 + $0x68] sm:$0xf]
  %v35 = vld [vmem:[%s2 + $0x6c] sm:$0xff]
  %v36 = vld [vmem:[%s2 + $0x74] sm:$0xf]
  %v37 = vld [vmem:[%s2 + $0x78] sm:$0xff]
  %v38 = vld [vmem:[%s2 + $0x80] sm:$0xf]
  %v39 = vld [vmem:[%s2 + $0x84] sm:$0xff]
  %v40 = vld [vmem:[%s2 + $0x8c] sm:$0xf]
  %v41 = vld [vmem:[%s2 + $0x90] sm:$0xff]
  %v42 = vld [vmem:[%s2 + $0x98] sm:$0xf]
  %v43 = vld [vmem:[%s2 + $0x9c] sm:$0xff]
  %v44 = vld [vmem:[%s2 + $0xa4] sm:$0xf]
  %v45 = vld [vmem:[%s2 + $0xa8] sm:$0xff]
  %v46 = vld [vmem:[%s2 + $0xb0] sm:$0xf]
  %v47 = vld [vmem:[%s2 + $0xb4] sm:$0xff]
  %v48 = vld [vmem:[%s2 + $0xbc] sm:$0xf]
  %v49 = vld [vmem:[%s2 + $0xc0] sm:$0xff]
  %v50 = vld [vmem:[%s2 + $0xc8] sm:$0xf]
  %v51 = vld [vmem:[%s2 + $0xcc] sm:$0xff]
  %v52 = vld [vmem:[%s2 + $0xd4] sm:$0xf]
  %v53 = vld [vmem:[%s1] sm:$0xff]
  %v54 = vld [vmem:[%s1 + $0x8] sm:$0xff]
  %56 = vset.pattern.permute.xlu0 0
  %57 = vperm.xlu0 %56, %v53
  %v58 = vpop.permute.xlu0 %57
  %61 = vset.pattern.permute.xlu0 0
  %62 = vperm.xlu0 %61, %v54
  %v63 = vpop.permute.xlu0 %62
  %v67 = vunpack.c.l.b16 %v15
  %v68 = vunpack.c.h.b16 %v15
  %v69 = vunpack.c.l.b16 %v16
  %v70 = vunpack.c.h.b16 %v16
  %v71 = vpack.c.b16 %v69, %v67
  %v72 = vpack.c.b16 %v70, %v68
  %v110 = vunpack.c.l.b16 %v17
  %v111 = vunpack.c.h.b16 %v17
  %v112 = vunpack.c.l.b16 %v18
  %v113 = vunpack.c.l.b16 %v19
  %v114 = vunpack.c.h.b16 %v19
  %v115 = vunpack.c.l.b16 %v20
  %v116 = vunpack.c.l.b16 %v21
  %v117 = vunpack.c.h.b16 %v21
  %v118 = vunpack.c.l.b16 %v22
  %v119 = vunpack.c.l.b16 %v23
  %v120 = vunpack.c.h.b16 %v23
  %v121 = vunpack.c.l.b16 %v24
  %v122 = vunpack.c.l.b16 %v25
  %v123 = vunpack.c.h.b16 %v25
  %v124 = vunpack.c.l.b16 %v26
  %v125 = vunpack.c.l.b16 %v27
  %v126 = vunpack.c.h.b16 %v27
  %v127 = vunpack.c.l.b16 %v28
  %v128 = vunpack.c.l.b16 %v29
  %v129 = vunpack.c.h.b16 %v29
  %v130 = vunpack.c.l.b16 %v30
  %v131 = vunpack.c.l.b16 %v31
  %v132 = vunpack.c.h.b16 %v31
  %v133 = vunpack.c.l.b16 %v32
  %v134 = vunpack.c.l.b16 %v33
  %v135 = vunpack.c.h.b16 %v33
  %v136 = vunpack.c.l.b16 %v34
  %v137 = vunpack.c.l.b16 %v35
  %v138 = vunpack.c.h.b16 %v35
  %v139 = vunpack.c.l.b16 %v36
  %v140 = vunpack.c.l.b16 %v37
  %v141 = vunpack.c.h.b16 %v37
  %v142 = vunpack.c.l.b16 %v38
  %v143 = vunpack.c.l.b16 %v39
  %v144 = vunpack.c.h.b16 %v39
  %v145 = vunpack.c.l.b16 %v40
  %v146 = vunpack.c.l.b16 %v41
  %v147 = vunpack.c.h.b16 %v41
  %v148 = vunpack.c.l.b16 %v42
  %v149 = vunpack.c.l.b16 %v43
  %v150 = vunpack.c.h.b16 %v43
  %v151 = vunpack.c.l.b16 %v44
  %v152 = vunpack.c.l.b16 %v45
  %v153 = vunpack.c.h.b16 %v45
  %v154 = vunpack.c.l.b16 %v46
  %v155 = vunpack.c.l.b16 %v47
  %v156 = vunpack.c.h.b16 %v47
  %v157 = vunpack.c.l.b16 %v48
  %v158 = vunpack.c.l.b16 %v49
  %v159 = vunpack.c.h.b16 %v49
  %v160 = vunpack.c.l.b16 %v50
  %v161 = vunpack.c.l.b16 %v51
  %v162 = vunpack.c.h.b16 %v51
  %v163 = vunpack.c.l.b16 %v52
  %v164 = vpack.c.b16 %v113, %v110
  %v165 = vpack.c.b16 %v114, %v111
  %v166 = vpack.c.b16 %v115, %v112
  %v167 = vpack.c.b16 %v119, %v116
  %v168 = vpack.c.b16 %v120, %v117
  %v169 = vpack.c.b16 %v121, %v118
  %v170 = vpack.c.b16 %v125, %v122
  %v171 = vpack.c.b16 %v126, %v123
  %v172 = vpack.c.b16 %v127, %v124
  %v173 = vpack.c.b16 %v131, %v128
  %v174 = vpack.c.b16 %v132, %v129
  %v175 = vpack.c.b16 %v133, %v130
  %v176 = vpack.c.b16 %v137, %v134
  %v177 = vpack.c.b16 %v138, %v135
  %v178 = vpack.c.b16 %v139, %v136
  %v179 = vpack.c.b16 %v143, %v140
  %v180 = vpack.c.b16 %v144, %v141
  %v181 = vpack.c.b16 %v145, %v142
  %v182 = vpack.c.b16 %v149, %v146
  %v183 = vpack.c.b16 %v150, %v147
  %v184 = vpack.c.b16 %v151, %v148
  %v185 = vpack.c.b16 %v155, %v152
  %v186 = vpack.c.b16 %v156, %v153
  %v187 = vpack.c.b16 %v157, %v154
  %v188 = vpack.c.b16 %v161, %v158
  %v189 = vpack.c.b16 %v162, %v159
  %v190 = vpack.c.b16 %v163, %v160
  %vm218 = vcmask 130048
  %v220 = vsel %vm218, %v72, 0
  %222 = vmatprep.subr.bf16.mxu0 %v165
  %223 = vmatpush1.bf16.msra.mxu0 %v164
  %224 = vmatprep.subr.bf16.mxu0 %v168
  %225 = vmatpush1.bf16.msra.mxu0 %v167
  %226 = vmatprep.subr.bf16.mxu0 %v171
  %227 = vmatpush1.bf16.msra.mxu0 %v170
  %228 = vmatprep.subr.bf16.mxu0 %v174
  %229 = vmatpush1.bf16.msra.mxu0 %v173
  %230 = vmatprep.subr.bf16.mxu0 %v177
  %231 = vmatpush1.bf16.msra.mxu0 %v176
  %232 = vmatprep.subr.bf16.mxu0 %v180
  %233 = vmatpush1.bf16.msra.mxu0 %v179
  %234 = vmatprep.subr.bf16.mxu0 %v183
  %235 = vmatpush1.bf16.msra.mxu0 %v182
  %236 = vmatprep.subr.bf16.mxu0 %v186
  %237 = vmatpush1.bf16.msra.mxu0 %v185
  %238 = vmatprep.subr.bf16.mxu0 %v189
  %239 = vmatpush1.bf16.msra.mxu0 %v188
  %240 = vmatprep.subr.bf16.mxu0 0
  %241 = vmatpush1.bf16.msra.mxu0 0
  %242 = vmatprep.subr.bf16.mxu0 0
  %243 = vmatpush1.bf16.msra.mxu0 0
  %244 = vmatprep.subr.bf16.mxu0 0
  %245 = vmatpush1.bf16.msra.mxu0 0
  %246 = vmatprep.subr.bf16.mxu0 0
  %247 = vmatpush1.bf16.msra.mxu0 0
  %248 = vmatprep.subr.bf16.mxu0 0
  %249 = vmatpush1.bf16.msra.mxu0 0
  %250 = vmatprep.subr.bf16.mxu0 0
  %251 = vmatpush1.bf16.msra.mxu0 0
  %252 = vmatprep.subr.bf16.mxu0 0
  %253 = vmatpush1.bf16.msra.mxu0 0
  %254 = vmatprep.mubr.bf16.mxu0 %v220
  %255 = vmatmul.mubr.bf16.gmra.mrb[0].mxu0 %v71
  %v256 = vpop.f32.mrb[0].mxu0
  %v257 = vadd.f32 %v58, %v256
  %v258 = vpop.f32.mrb[0].mxu0
  %v259 = vadd.f32 %v58, %v258
  %v260 = vpop.f32.mrb[0].mxu0
  %v261 = vadd.f32 %v63, %v260
  %v262 = vpop.f32.mrb[0].mxu0
  %v263 = vadd.f32 %v63, %v262
  %264 = vdwg.mxu0
  %265 = vmatprep.subr.bf16.mxu0 0
  %266 = vmatpush1.bf16.msra.mxu0 %v166
  %267 = vmatprep.subr.bf16.mxu0 0
  %268 = vmatpush1.bf16.msra.mxu0 %v169
  %269 = vmatprep.subr.bf16.mxu0 0
  %270 = vmatpush1.bf16.msra.mxu0 %v172
  %271 = vmatprep.subr.bf16.mxu0 0
  %272 = vmatpush1.bf16.msra.mxu0 %v175
  %273 = vmatprep.subr.bf16.mxu0 0
  %274 = vmatpush1.bf16.msra.mxu0 %v178
  %275 = vmatprep.subr.bf16.mxu0 0
  %276 = vmatpush1.bf16.msra.mxu0 %v181
  %277 = vmatprep.subr.bf16.mxu0 0
  %278 = vmatpush1.bf16.msra.mxu0 %v184
  %279 = vmatprep.subr.bf16.mxu0 0
  %280 = vmatpush1.bf16.msra.mxu0 %v187
  %281 = vmatprep.subr.bf16.mxu0 0
  %282 = vmatpush1.bf16.msra.mxu0 %v190
  %283 = vmatprep.subr.bf16.mxu0 0
  %284 = vmatpush1.bf16.msra.mxu0 0
  %285 = vmatprep.subr.bf16.mxu0 0
  %286 = vmatpush1.bf16.msra.mxu0 0
  %287 = vmatprep.subr.bf16.mxu0 0
  %288 = vmatpush1.bf16.msra.mxu0 0
  %289 = vmatprep.subr.bf16.mxu0 0
  %290 = vmatpush1.bf16.msra.mxu0 0
  %291 = vmatprep.subr.bf16.mxu0 0
  %292 = vmatpush1.bf16.msra.mxu0 0
  %293 = vmatprep.subr.bf16.mxu0 0
  %294 = vmatpush1.bf16.msra.mxu0 0
  %295 = vmatprep.subr.bf16.mxu0 0
  %296 = vmatpush1.bf16.msra.mxu0 0
  %297 = vmatprep.mubr.bf16.mxu0 %v220
  %298 = vmatmul.mubr.bf16.gmra.mrb[0].mxu0 %v71
  %v299 = vpop.f32.mrb[0].mxu0
  %v300 = vadd.f32 %v58, %v299
  %v301 = vpop.f32.mrb[0].mxu0
  %v302 = vpop.f32.mrb[0].mxu0
  %v303 = vadd.f32 %v63, %v302
  %v304 = vpop.f32.mrb[0].mxu0
  %305 = vdwg.mxu0
  %v306 = vmax.f32 %v257, 0.0
  %v307 = vmax.f32 %v259, 0.0
  %v308 = vmax.f32 %v300, 0.0
  %v309 = vmax.f32 %v261, 0.0
  %v310 = vmax.f32 %v263, 0.0
  %v311 = vmax.f32 %v303, 0.0
  %v312 = vpack.c.bf16 %v309, %v306
  %v313 = vpack.c.bf16 %v310, %v307
  %v314 = vpack.c.bf16 %v311, %v308
  %v318 = vunpack.c.l.b16 %v312
  %v319 = vunpack.c.l.b16 %v313
  %v320 = vunpack.c.l.b16 %v314
  %v321 = vunpack.c.h.b16 %v312
  %v322 = vunpack.c.h.b16 %v313
  %v323 = vunpack.c.h.b16 %v314
  %v324 = vpack.c.b16 %v319, %v318
  %v325 = vpack.c.b16 %v320, %v320
  %v326 = vpack.c.b16 %v322, %v321
  %v327 = vpack.c.b16 %v323, %v323
  %332 = vst [vmem:[%s3] sm:$0xff] %v324
  %vm333 = vcmask 257024
  %334 = vst.msk [vmem:[%s3 + $0x8] sm:$0xf] %vm333, %v325
  %335 = vst [vmem:[%s3 + $0xc] sm:$0xff] %v326
  %336 = vst.msk [vmem:[%s3 + $0x14] sm:$0xf] %vm333, %v327
  // Predicated region
  $region14: #{_lambda_.24} parent=0 // pred_check
    _
  $region15: #{_lambda_.24} parent=0 // pred_check_branch
    %338 = sbr.rel (0) target = $region17
  $region16: #{_lambda_.24} parent=0 // pred_region
    _
  $region17: #{_lambda_.24} parent=0 // pred_fallthru
    _
  // Predicated region
  $region18: #{_lambda_.24} parent=0 // pred_check
    _
  $region19: #{_lambda_.24} parent=0 // pred_check_branch
    %340 = sbr.rel (0) target = $region21
  $region20: #{_lambda_.24} parent=0 // pred_region
    _
  $region21: #{_lambda_.24} parent=0 // pred_fallthru
    _

// kernel: _lambda_.25
$region0: #{_lambda_.25}
  #allocation0 [shape = 'u32[]', space=smem, size = 0x4, offset = 0x4, fixed_abs, tag = 'smem constant byte address 0x4 - core index']
  #allocation1 [shape = 'u32[144,128]{1,0:T(1,128)}', space=vmem, size = 0x12000, scoped, tag = 'internal scratch']
  %s0 = inlined_call_operand.vmem [shape: bf16[16,16], index: 0, kind: input, shape index: {}]
  %s1 = inlined_call_operand.vmem [shape: f32[16,1], index: 1, kind: input, shape index: {}]
  %s2 = inlined_call_operand.vmem [shape: bf16[16,288], index: 2, kind: input, shape index: {}]
  %s3 = inlined_call_operand.vmem [shape: bf16[16,288], index: 3, kind: output, shape index: {}]
  %s4 = sld [smem:[#allocation0]]
  $region22: #{_lambda_.25} parent=0
    _
  %s6 = ssub.s32 1, %s4
  %s7 = scalar_select 0, %s6, %s4
  // Predicated region
  $region2: #{_lambda_.25} parent=0 // pred_check
    _
  $region3: #{_lambda_.25} parent=0 // pred_check_branch
    %9 = sbr.rel (0) target = $region5
  $region4: #{_lambda_.25} parent=0 // pred_region
    _
  $region5: #{_lambda_.25} parent=0 // pred_fallthru
    _
  // Predicated region
  $region6: #{_lambda_.25} parent=0 // pred_check
    _
  $region7: #{_lambda_.25} parent=0 // pred_check_branch
    %11 = sbr.rel (0) target = $region9
  $region8: #{_lambda_.25} parent=0 // pred_region
    _
  $region9: #{_lambda_.25} parent=0 // pred_fallthru
    _
  // Predicated region
  $region10: #{_lambda_.25} parent=0 // pred_check
    _
  $region11: #{_lambda_.25} parent=0 // pred_check_branch
    %13 = sbr.rel (0) target = $region13
  $region12: #{_lambda_.25} parent=0 // pred_region
    _
  $region13: #{_lambda_.25} parent=0 // pred_fallthru
    _
  %v15 = vld [vmem:[%s0] sm:$0xf]
  %v16 = vld [vmem:[%s0 + $0x4] sm:$0xf]
  %v17 = vld [vmem:[%s2] sm:$0xff]
  %v18 = vld [vmem:[%s2 + $0x8] sm:$0xf]
  %v19 = vld [vmem:[%s2 + $0xc] sm:$0xff]
  %v20 = vld [vmem:[%s2 + $0x14] sm:$0xf]
  %v21 = vld [vmem:[%s1] sm:$0xff]
  %v22 = vld [vmem:[%s1 + $0x8] sm:$0xff]
  %24 = vset.pattern.permute.xlu0 0
  %25 = vperm.xlu0 %24, %v21
  %v26 = vpop.permute.xlu0 %25
  %29 = vset.pattern.permute.xlu0 0
  %30 = vperm.xlu0 %29, %v22
  %v31 = vpop.permute.xlu0 %30
  %v35 = vunpack.c.l.b16 %v15
  %v36 = vunpack.c.l.b16 %v16
  %v37 = vpack.c.b16 %v36, %v35
  %v42 = vunpack.c.l.b16 %v17
  %v43 = vunpack.c.h.b16 %v17
  %v44 = vunpack.c.l.b16 %v18
  %v45 = vunpack.c.l.b16 %v19
  %v46 = vunpack.c.h.b16 %v19
  %v47 = vunpack.c.l.b16 %v20
  %v48 = vpack.c.b16 %v45, %v42
  %v49 = vpack.c.b16 %v46, %v43
  %v50 = vpack.c.b16 %v47, %v44
  %vm54 = vcmask 130048
  %v56 = vsel %vm54, %v37, 0
  %58 = vmatprep.subr.bf16.mxu0 %v49
  %59 = vmatpush1.bf16.msra.mxu0 %v48
  %60 = vmatprep.subr.bf16.mxu0 0
  %61 = vmatpush1.bf16.msra.mxu0 0
  %62 = vmatprep.subr.bf16.mxu0 0
  %63 = vmatpush1.bf16.msra.mxu0 0
  %64 = vmatprep.subr.bf16.mxu0 0
  %65 = vmatpush1.bf16.msra.mxu0 0
  %66 = vmatprep.subr.bf16.mxu0 0
  %67 = vmatpush1.bf16.msra.mxu0 0
  %68 = vmatprep.subr.bf16.mxu0 0
  %69 = vmatpush1.bf16.msra.mxu0 0
  %70 = vmatprep.subr.bf16.mxu0 0
  %71 = vmatpush1.bf16.msra.mxu0 0
  %72 = vmatprep.subr.bf16.mxu0 0
  %73 = vmatpush1.bf16.msra.mxu0 0
  %74 = vmatprep.subr.bf16.mxu0 0
  %75 = vmatpush1.bf16.msra.mxu0 0
  %76 = vmatprep.subr.bf16.mxu0 0
  %77 = vmatpush1.bf16.msra.mxu0 0
  %78 = vmatprep.subr.bf16.mxu0 0
  %79 = vmatpush1.bf16.msra.mxu0 0
  %80 = vmatprep.subr.bf16.mxu0 0
  %81 = vmatpush1.bf16.msra.mxu0 0
  %82 = vmatprep.subr.bf16.mxu0 0
  %83 = vmatpush1.bf16.msra.mxu0 0
  %84 = vmatprep.subr.bf16.mxu0 0
  %85 = vmatpush1.bf16.msra.mxu0 0
  %86 = vmatprep.subr.bf16.mxu0 0
  %87 = vmatpush1.bf16.msra.mxu0 0
  %88 = vmatprep.subr.bf16.mxu0 0
  %89 = vmatpush1.bf16.msra.mxu0 0
  %90 = vmatprep.mubr.bf16.mxu0 0
  %91 = vmatmul.mubr.bf16.gmra.mrb[0].mxu0 %v56
  %v92 = vpop.f32.mrb[0].mxu0
  %v93 = vadd.f32 %v26, %v92
  %v94 = vpop.f32.mrb[0].mxu0
  %v95 = vadd.f32 %v26, %v94
  %v96 = vpop.f32.mrb[0].mxu0
  %v97 = vadd.f32 %v31, %v96
  %v98 = vpop.f32.mrb[0].mxu0
  %v99 = vadd.f32 %v31, %v98
  %100 = vdwg.mxu0
  %101 = vmatprep.subr.bf16.mxu0 0
  %102 = vmatpush1.bf16.msra.mxu0 %v50
  %103 = vmatprep.subr.bf16.mxu0 0
  %104 = vmatpush1.bf16.msra.mxu0 0
  %105 = vmatprep.subr.bf16.mxu0 0
  %106 = vmatpush1.bf16.msra.mxu0 0
  %107 = vmatprep.subr.bf16.mxu0 0
  %108 = vmatpush1.bf16.msra.mxu0 0
  %109 = vmatprep.subr.bf16.mxu0 0
  %110 = vmatpush1.bf16.msra.mxu0 0
  %111 = vmatprep.subr.bf16.mxu0 0
  %112 = vmatpush1.bf16.msra.mxu0 0
  %113 = vmatprep.subr.bf16.mxu0 0
  %114 = vmatpush1.bf16.msra.mxu0 0
  %115 = vmatprep.subr.bf16.mxu0 0
  %116 = vmatpush1.bf16.msra.mxu0 0
  %117 = vmatprep.subr.bf16.mxu0 0
  %118 = vmatpush1.bf16.msra.mxu0 0
  %119 = vmatprep.subr.bf16.mxu0 0
  %120 = vmatpush1.bf16.msra.mxu0 0
  %121 = vmatprep.subr.bf16.mxu0 0
  %122 = vmatpush1.bf16.msra.mxu0 0
  %123 = vmatprep.subr.bf16.mxu0 0
  %124 = vmatpush1.bf16.msra.mxu0 0
  %125 = vmatprep.subr.bf16.mxu0 0
  %126 = vmatpush1.bf16.msra.mxu0 0
  %127 = vmatprep.subr.bf16.mxu0 0
  %128 = vmatpush1.bf16.msra.mxu0 0
  %129 = vmatprep.subr.bf16.mxu0 0
  %130 = vmatpush1.bf16.msra.mxu0 0
  %131 = vmatprep.subr.bf16.mxu0 0
  %132 = vmatpush1.bf16.msra.mxu0 0
  %133 = vmatprep.mubr.bf16.mxu0 0
  %134 = vmatmul.mubr.bf16.gmra.mrb[0].mxu0 %v56
  %v135 = vpop.f32.mrb[0].mxu0
  %v136 = vadd.f32 %v26, %v135
  %v137 = vpop.f32.mrb[0].mxu0
  %v138 = vpop.f32.mrb[0].mxu0
  %v139 = vadd.f32 %v31, %v138
  %v140 = vpop.f32.mrb[0].mxu0
  %141 = vdwg.mxu0
  %v142 = vpack.c.bf16 %v97, %v93
  %v143 = vpack.c.bf16 %v99, %v95
  %v144 = vpack.c.bf16 %v139, %v136
  %v148 = vunpack.c.l.b16 %v142
  %v149 = vunpack.c.l.b16 %v143
  %v150 = vunpack.c.l.b16 %v144
  %v151 = vunpack.c.h.b16 %v142
  %v152 = vunpack.c.h.b16 %v143
  %v153 = vunpack.c.h.b16 %v144
  %v154 = vpack.c.b16 %v149, %v148
  %v155 = vpack.c.b16 %v150, %v150
  %v156 = vpack.c.b16 %v152, %v151
  %v157 = vpack.c.b16 %v153, %v153
  %162 = vst [vmem:[%s3] sm:$0xff] %v154
  %vm163 = vcmask 257024
  %164 = vst.msk [vmem:[%s3 + $0x8] sm:$0xf] %vm163, %v155
  %165 = vst [vmem:[%s3 + $0xc] sm:$0xff] %v156
  %166 = vst.msk [vmem:[%s3 + $0x14] sm:$0xf] %vm163, %v157
  // Predicated region
  $region14: #{_lambda_.25} parent=0 // pred_check
    _
  $region15: #{_lambda_.25} parent=0 // pred_check_branch
    %168 = sbr.rel (0) target = $region17
  $region16: #{_lambda_.25} parent=0 // pred_region
    _
  $region17: #{_lambda_.25} parent=0 // pred_fallthru
    _
  // Predicated region
  $region18: #{_lambda_.25} parent=0 // pred_check
    _
  $region19: #{_lambda_.25} parent=0 // pred_check_branch
    %170 = sbr.rel (0) target = $region21
  $region20: #{_lambda_.25} parent=0 // pred_region
    _
  $region21: #{_lambda_.25} parent=0 // pred_fallthru
    _

// kernel: _lambda_.26
$region0: #{_lambda_.26}
  #allocation0 [shape = 'u32[]', space=smem, size = 0x4, offset = 0x4, fixed_abs, tag = 'smem constant byte address 0x4 - core index']
  #allocation1 [shape = 'u32[144,128]{1,0:T(1,128)}', space=vmem, size = 0x12000, scoped, tag = 'internal scratch']
  %s0 = inlined_call_operand.vmem [shape: bf16[16,144], index: 0, kind: input, shape index: {}]
  %s1 = inlined_call_operand.vmem [shape: f32[16,1], index: 1, kind: input, shape index: {}]
  %s2 = inlined_call_operand.vmem [shape: bf16[144,288], index: 2, kind: input, shape index: {}]
  %s3 = inlined_call_operand.vmem [shape: bf16[16,288], index: 3, kind: input, shape index: {}]
  %s4 = inlined_call_operand.vmem [shape: bf16[16,288], index: 4, kind: output, shape index: {}]
  %s5 = sld [smem:[#allocation0]]
  $region26: #{_lambda_.26} parent=0
    _
  %s7 = ssub.s32 1, %s5
  %s8 = scalar_select 0, %s7, %s5
  // Predicated region
  $region2: #{_lambda_.26} parent=0 // pred_check
    _
  $region3: #{_lambda_.26} parent=0 // pred_check_branch
    %10 = sbr.rel (0) target = $region5
  $region4: #{_lambda_.26} parent=0 // pred_region
    _
  $region5: #{_lambda_.26} parent=0 // pred_fallthru
    _
  // Predicated region
  $region6: #{_lambda_.26} parent=0 // pred_check
    _
  $region7: #{_lambda_.26} parent=0 // pred_check_branch
    %12 = sbr.rel (0) target = $region9
  $region8: #{_lambda_.26} parent=0 // pred_region
    _
  $region9: #{_lambda_.26} parent=0 // pred_fallthru
    _
  // Predicated region
  $region10: #{_lambda_.26} parent=0 // pred_check
    _
  $region11: #{_lambda_.26} parent=0 // pred_check_branch
    %14 = sbr.rel (0) target = $region13
  $region12: #{_lambda_.26} parent=0 // pred_region
    _
  $region13: #{_lambda_.26} parent=0 // pred_fallthru
    _
  // Predicated region
  $region14: #{_lambda_.26} parent=0 // pred_check
    _
  $region15: #{_lambda_.26} parent=0 // pred_check_branch
    %16 = sbr.rel (0) target = $region17
  $region16: #{_lambda_.26} parent=0 // pred_region
    _
  $region17: #{_lambda_.26} parent=0 // pred_fallthru
    _
  %v18 = vld [vmem:[%s0] sm:$0xff]
  %v19 = vld [vmem:[%s0 + $0x8] sm:$0xff]
  %v20 = vld [vmem:[%s2] sm:$0xff]
  %v21 = vld [vmem:[%s2 + $0x8] sm:$0xf]
  %v22 = vld [vmem:[%s2 + $0xc] sm:$0xff]
  %v23 = vld [vmem:[%s2 + $0x14] sm:$0xf]
  %v24 = vld [vmem:[%s2 + $0x18] sm:$0xff]
  %v25 = vld [vmem:[%s2 + $0x20] sm:$0xf]
  %v26 = vld [vmem:[%s2 + $0x24] sm:$0xff]
  %v27 = vld [vmem:[%s2 + $0x2c] sm:$0xf]
  %v28 = vld [vmem:[%s2 + $0x30] sm:$0xff]
  %v29 = vld [vmem:[%s2 + $0x38] sm:$0xf]
  %v30 = vld [vmem:[%s2 + $0x3c] sm:$0xff]
  %v31 = vld [vmem:[%s2 + $0x44] sm:$0xf]
  %v32 = vld [vmem:[%s2 + $0x48] sm:$0xff]
  %v33 = vld [vmem:[%s2 + $0x50] sm:$0xf]
  %v34 = vld [vmem:[%s2 + $0x54] sm:$0xff]
  %v35 = vld [vmem:[%s2 + $0x5c] sm:$0xf]
  %v36 = vld [vmem:[%s2 + $0x60] sm:$0xff]
  %v37 = vld [vmem:[%s2 + $0x68] sm:$0xf]
  %v38 = vld [vmem:[%s2 + $0x6c] sm:$0xff]
  %v39 = vld [vmem:[%s2 + $0x74] sm:$0xf]
  %v40 = vld [vmem:[%s2 + $0x78] sm:$0xff]
  %v41 = vld [vmem:[%s2 + $0x80] sm:$0xf]
  %v42 = vld [vmem:[%s2 + $0x84] sm:$0xff]
  %v43 = vld [vmem:[%s2 + $0x8c] sm:$0xf]
  %v44 = vld [vmem:[%s2 + $0x90] sm:$0xff]
  %v45 = vld [vmem:[%s2 + $0x98] sm:$0xf]
  %v46 = vld [vmem:[%s2 + $0x9c] sm:$0xff]
  %v47 = vld [vmem:[%s2 + $0xa4] sm:$0xf]
  %v48 = vld [vmem:[%s2 + $0xa8] sm:$0xff]
  %v49 = vld [vmem:[%s2 + $0xb0] sm:$0xf]
  %v50 = vld [vmem:[%s2 + $0xb4] sm:$0xff]
  %v51 = vld [vmem:[%s2 + $0xbc] sm:$0xf]
  %v52 = vld [vmem:[%s2 + $0xc0] sm:$0xff]
  %v53 = vld [vmem:[%s2 + $0xc8] sm:$0xf]
  %v54 = vld [vmem:[%s2 + $0xcc] sm:$0xff]
  %v55 = vld [vmem:[%s2 + $0xd4] sm:$0xf]
  %v56 = vld [vmem:[%s1] sm:$0xff]
  %v57 = vld [vmem:[%s1 + $0x8] sm:$0xff]
  %59 = vset.pattern.permute.xlu0 0
  %60 = vperm.xlu0 %59, %v56
  %v61 = vpop.permute.xlu0 %60
  %64 = vset.pattern.permute.xlu0 0
  %65 = vperm.xlu0 %64, %v57
  %v66 = vpop.permute.xlu0 %65
  %v70 = vunpack.c.l.b16 %v18
  %v71 = vunpack.c.h.b16 %v18
  %v72 = vunpack.c.l.b16 %v19
  %v73 = vunpack.c.h.b16 %v19
  %v74 = vpack.c.b16 %v72, %v70
  %v75 = vpack.c.b16 %v73, %v71
  %v113 = vunpack.c.l.b16 %v20
  %v114 = vunpack.c.h.b16 %v20
  %v115 = vunpack.c.l.b16 %v21
  %v116 = vunpack.c.l.b16 %v22
  %v117 = vunpack.c.h.b16 %v22
  %v118 = vunpack.c.l.b16 %v23
  %v119 = vunpack.c.l.b16 %v24
  %v120 = vunpack.c.h.b16 %v24
  %v121 = vunpack.c.l.b16 %v25
  %v122 = vunpack.c.l.b16 %v26
  %v123 = vunpack.c.h.b16 %v26
  %v124 = vunpack.c.l.b16 %v27
  %v125 = vunpack.c.l.b16 %v28
  %v126 = vunpack.c.h.b16 %v28
  %v127 = vunpack.c.l.b16 %v29
  %v128 = vunpack.c.l.b16 %v30
  %v129 = vunpack.c.h.b16 %v30
  %v130 = vunpack.c.l.b16 %v31
  %v131 = vunpack.c.l.b16 %v32
  %v132 = vunpack.c.h.b16 %v32
  %v133 = vunpack.c.l.b16 %v33
  %v134 = vunpack.c.l.b16 %v34
  %v135 = vunpack.c.h.b16 %v34
  %v136 = vunpack.c.l.b16 %v35
  %v137 = vunpack.c.l.b16 %v36
  %v138 = vunpack.c.h.b16 %v36
  %v139 = vunpack.c.l.b16 %v37
  %v140 = vunpack.c.l.b16 %v38
  %v141 = vunpack.c.h.b16 %v38
  %v142 = vunpack.c.l.b16 %v39
  %v143 = vunpack.c.l.b16 %v40
  %v144 = vunpack.c.h.b16 %v40
  %v145 = vunpack.c.l.b16 %v41
  %v146 = vunpack.c.l.b16 %v42
  %v147 = vunpack.c.h.b16 %v42
  %v148 = vunpack.c.l.b16 %v43
  %v149 = vunpack.c.l.b16 %v44
  %v150 = vunpack.c.h.b16 %v44
  %v151 = vunpack.c.l.b16 %v45
  %v152 = vunpack.c.l.b16 %v46
  %v153 = vunpack.c.h.b16 %v46
  %v154 = vunpack.c.l.b16 %v47
  %v155 = vunpack.c.l.b16 %v48
  %v156 = vunpack.c.h.b16 %v48
  %v157 = vunpack.c.l.b16 %v49
  %v158 = vunpack.c.l.b16 %v50
  %v159 = vunpack.c.h.b16 %v50
  %v160 = vunpack.c.l.b16 %v51
  %v161 = vunpack.c.l.b16 %v52
  %v162 = vunpack.c.h.b16 %v52
  %v163 = vunpack.c.l.b16 %v53
  %v164 = vunpack.c.l.b16 %v54
  %v165 = vunpack.c.h.b16 %v54
  %v166 = vunpack.c.l.b16 %v55
  %v167 = vpack.c.b16 %v116, %v113
  %v168 = vpack.c.b16 %v117, %v114
  %v169 = vpack.c.b16 %v118, %v115
  %v170 = vpack.c.b16 %v122, %v119
  %v171 = vpack.c.b16 %v123, %v120
  %v172 = vpack.c.b16 %v124, %v121
  %v173 = vpack.c.b16 %v128, %v125
  %v174 = vpack.c.b16 %v129, %v126
  %v175 = vpack.c.b16 %v130, %v127
  %v176 = vpack.c.b16 %v134, %v131
  %v177 = vpack.c.b16 %v135, %v132
  %v178 = vpack.c.b16 %v136, %v133
  %v179 = vpack.c.b16 %v140, %v137
  %v180 = vpack.c.b16 %v141, %v138
  %v181 = vpack.c.b16 %v142, %v139
  %v182 = vpack.c.b16 %v146, %v143
  %v183 = vpack.c.b16 %v147, %v144
  %v184 = vpack.c.b16 %v148, %v145
  %v185 = vpack.c.b16 %v152, %v149
  %v186 = vpack.c.b16 %v153, %v150
  %v187 = vpack.c.b16 %v154, %v151
  %v188 = vpack.c.b16 %v158, %v155
  %v189 = vpack.c.b16 %v159, %v156
  %v190 = vpack.c.b16 %v160, %v157
  %v191 = vpack.c.b16 %v164, %v161
  %v192 = vpack.c.b16 %v165, %v162
  %v193 = vpack.c.b16 %v166, %v163
  %vm221 = vcmask 130048
  %v223 = vsel %vm221, %v75, 0
  %225 = vmatprep.subr.bf16.mxu0 %v168
  %226 = vmatpush1.bf16.msra.mxu0 %v167
  %227 = vmatprep.subr.bf16.mxu0 %v171
  %228 = vmatpush1.bf16.msra.mxu0 %v170
  %229 = vmatprep.subr.bf16.mxu0 %v174
  %230 = vmatpush1.bf16.msra.mxu0 %v173
  %231 = vmatprep.subr.bf16.mxu0 %v177
  %232 = vmatpush1.bf16.msra.mxu0 %v176
  %233 = vmatprep.subr.bf16.mxu0 %v180
  %234 = vmatpush1.bf16.msra.mxu0 %v179
  %235 = vmatprep.subr.bf16.mxu0 %v183
  %236 = vmatpush1.bf16.msra.mxu0 %v182
  %237 = vmatprep.subr.bf16.mxu0 %v186
  %238 = vmatpush1.bf16.msra.mxu0 %v185
  %239 = vmatprep.subr.bf16.mxu0 %v189
  %240 = vmatpush1.bf16.msra.mxu0 %v188
  %241 = vmatprep.subr.bf16.mxu0 %v192
  %242 = vmatpush1.bf16.msra.mxu0 %v191
  %243 = vmatprep.subr.bf16.mxu0 0
  %244 = vmatpush1.bf16.msra.mxu0 0
  %245 = vmatprep.subr.bf16.mxu0 0
  %246 = vmatpush1.bf16.msra.mxu0 0
  %247 = vmatprep.subr.bf16.mxu0 0
  %248 = vmatpush1.bf16.msra.mxu0 0
  %249 = vmatprep.subr.bf16.mxu0 0
  %250 = vmatpush1.bf16.msra.mxu0 0
  %251 = vmatprep.subr.bf16.mxu0 0
  %252 = vmatpush1.bf16.msra.mxu0 0
  %253 = vmatprep.subr.bf16.mxu0 0
  %254 = vmatpush1.bf16.msra.mxu0 0
  %255 = vmatprep.subr.bf16.mxu0 0
  %256 = vmatpush1.bf16.msra.mxu0 0
  %257 = vmatprep.mubr.bf16.mxu0 %v223
  %258 = vmatmul.mubr.bf16.gmra.mrb[0].mxu0 %v74
  %v259 = vpop.f32.mrb[0].mxu0
  %v260 = vadd.f32 %v61, %v259
  %v261 = vpop.f32.mrb[0].mxu0
  %v262 = vadd.f32 %v61, %v261
  %v263 = vpop.f32.mrb[0].mxu0
  %v264 = vadd.f32 %v66, %v263
  %v265 = vpop.f32.mrb[0].mxu0
  %v266 = vadd.f32 %v66, %v265
  %267 = vdwg.mxu0
  %268 = vmatprep.subr.bf16.mxu0 0
  %269 = vmatpush1.bf16.msra.mxu0 %v169
  %270 = vmatprep.subr.bf16.mxu0 0
  %271 = vmatpush1.bf16.msra.mxu0 %v172
  %272 = vmatprep.subr.bf16.mxu0 0
  %273 = vmatpush1.bf16.msra.mxu0 %v175
  %274 = vmatprep.subr.bf16.mxu0 0
  %275 = vmatpush1.bf16.msra.mxu0 %v178
  %276 = vmatprep.subr.bf16.mxu0 0
  %277 = vmatpush1.bf16.msra.mxu0 %v181
  %278 = vmatprep.subr.bf16.mxu0 0
  %279 = vmatpush1.bf16.msra.mxu0 %v184
  %280 = vmatprep.subr.bf16.mxu0 0
  %281 = vmatpush1.bf16.msra.mxu0 %v187
  %282 = vmatprep.subr.bf16.mxu0 0
  %283 = vmatpush1.bf16.msra.mxu0 %v190
  %284 = vmatprep.subr.bf16.mxu0 0
  %285 = vmatpush1.bf16.msra.mxu0 %v193
  %286 = vmatprep.subr.bf16.mxu0 0
  %287 = vmatpush1.bf16.msra.mxu0 0
  %288 = vmatprep.subr.bf16.mxu0 0
  %289 = vmatpush1.bf16.msra.mxu0 0
  %290 = vmatprep.subr.bf16.mxu0 0
  %291 = vmatpush1.bf16.msra.mxu0 0
  %292 = vmatprep.subr.bf16.mxu0 0
  %293 = vmatpush1.bf16.msra.mxu0 0
  %294 = vmatprep.subr.bf16.mxu0 0
  %295 = vmatpush1.bf16.msra.mxu0 0
  %296 = vmatprep.subr.bf16.mxu0 0
  %297 = vmatpush1.bf16.msra.mxu0 0
  %298 = vmatprep.subr.bf16.mxu0 0
  %299 = vmatpush1.bf16.msra.mxu0 0
  %300 = vmatprep.mubr.bf16.mxu0 %v223
  %301 = vmatmul.mubr.bf16.gmra.mrb[0].mxu0 %v74
  %v302 = vpop.f32.mrb[0].mxu0
  %v303 = vadd.f32 %v61, %v302
  %v304 = vpop.f32.mrb[0].mxu0
  %v305 = vpop.f32.mrb[0].mxu0
  %v306 = vadd.f32 %v66, %v305
  %v307 = vpop.f32.mrb[0].mxu0
  %308 = vdwg.mxu0
  %v309 = vld [vmem:[%s3] sm:$0xff]
  %v310 = vld [vmem:[%s3 + $0x8] sm:$0xf]
  %v311 = vld [vmem:[%s3 + $0xc] sm:$0xff]
  %v312 = vld [vmem:[%s3 + $0x14] sm:$0xf]
  %v313 = vunpack.c.l.bf16 %v309
  %v314 = vunpack.c.h.bf16 %v309
  %v315 = vunpack.c.l.bf16 %v310
  %v316 = vunpack.c.l.bf16 %v311
  %v317 = vunpack.c.h.bf16 %v311
  %v318 = vunpack.c.l.bf16 %v312
  %v319 = vadd.f32 %v260, %v313
  %v320 = vadd.f32 %v262, %v314
  %v321 = vadd.f32 %v303, %v315
  %v322 = vadd.f32 %v264, %v316
  %v323 = vadd.f32 %v266, %v317
  %v324 = vadd.f32 %v306, %v318
  %v325 = vmax.f32 %v319, 0.0
  %v326 = vmax.f32 %v320, 0.0
  %v327 = vmax.f32 %v321, 0.0
  %v328 = vmax.f32 %v322, 0.0
  %v329 = vmax.f32 %v323, 0.0
  %v330 = vmax.f32 %v324, 0.0
  %v331 = vpack.c.bf16 %v328, %v325
  %v332 = vpack.c.bf16 %v329, %v326
  %v333 = vpack.c.bf16 %v330, %v327
  %v337 = vunpack.c.l.b16 %v331
  %v338 = vunpack.c.l.b16 %v332
  %v339 = vunpack.c.l.b16 %v333
  %v340 = vunpack.c.h.b16 %v331
  %v341 = vunpack.c.h.b16 %v332
  %v342 = vunpack.c.h.b16 %v333
  %v343 = vpack.c.b16 %v338, %v337
  %v344 = vpack.c.b16 %v339, %v339
  %v345 = vpack.c.b16 %v341, %v340
  %v346 = vpack.c.b16 %v342, %v342
  %351 = vst [vmem:[%s4] sm:$0xff] %v343
  %vm352 = vcmask 257024
  %353 = vst.msk [vmem:[%s4 + $0x8] sm:$0xf] %vm352, %v344
  %354 = vst [vmem:[%s4 + $0xc] sm:$0xff] %v345
  %355 = vst.msk [vmem:[%s4 + $0x14] sm:$0xf] %vm352, %v346
  // Predicated region
  $region18: #{_lambda_.26} parent=0 // pred_check
    _
  $region19: #{_lambda_.26} parent=0 // pred_check_branch
    %357 = sbr.rel (0) target = $region21
  $region20: #{_lambda_.26} parent=0 // pred_region
    _
  $region21: #{_lambda_.26} parent=0 // pred_fallthru
    _
  // Predicated region
  $region22: #{_lambda_.26} parent=0 // pred_check
    _
  $region23: #{_lambda_.26} parent=0 // pred_check_branch
    %359 = sbr.rel (0) target = $region25
  $region24: #{_lambda_.26} parent=0 // pred_region
    _
  $region25: #{_lambda_.26} parent=0 // pred_fallthru
    _

// kernel: _lambda_.27
$region0: #{_lambda_.27}
  #allocation0 [shape = 'u32[]', space=smem, size = 0x4, offset = 0x4, fixed_abs, tag = 'smem constant byte address 0x4 - core index']
  #allocation1 [shape = 'u32[144,128]{1,0:T(1,128)}', space=vmem, size = 0x12000, scoped, tag = 'internal scratch']
  %s0 = inlined_call_operand.vmem [shape: bf16[16,144], index: 0, kind: input, shape index: {}]
  %s1 = inlined_call_operand.vmem [shape: f32[16,1], index: 1, kind: input, shape index: {}]
  %s2 = inlined_call_operand.vmem [shape: bf16[144,72], index: 2, kind: input, shape index: {}]
  %s3 = inlined_call_operand.vmem [shape: bf16[16,72], index: 3, kind: output, shape index: {}]
  %s4 = sld [smem:[#allocation0]]
  $region22: #{_lambda_.27} parent=0
    _
  %s6 = ssub.s32 1, %s4
  %s7 = scalar_select 0, %s6, %s4
  // Predicated region
  $region2: #{_lambda_.27} parent=0 // pred_check
    _
  $region3: #{_lambda_.27} parent=0 // pred_check_branch
    %9 = sbr.rel (0) target = $region5
  $region4: #{_lambda_.27} parent=0 // pred_region
    _
  $region5: #{_lambda_.27} parent=0 // pred_fallthru
    _
  // Predicated region
  $region6: #{_lambda_.27} parent=0 // pred_check
    _
  $region7: #{_lambda_.27} parent=0 // pred_check_branch
    %11 = sbr.rel (0) target = $region9
  $region8: #{_lambda_.27} parent=0 // pred_region
    _
  $region9: #{_lambda_.27} parent=0 // pred_fallthru
    _
  // Predicated region
  $region10: #{_lambda_.27} parent=0 // pred_check
    _
  $region11: #{_lambda_.27} parent=0 // pred_check_branch
    %13 = sbr.rel (0) target = $region13
  $region12: #{_lambda_.27} parent=0 // pred_region
    _
  $region13: #{_lambda_.27} parent=0 // pred_fallthru
    _
  %v15 = vld [vmem:[%s0] sm:$0xff]
  %v16 = vld [vmem:[%s0 + $0x8] sm:$0xff]
  %v17 = vld [vmem:[%s2] sm:$0xf]
  %v18 = vld [vmem:[%s2 + $0x4] sm:$0xf]
  %v19 = vld [vmem:[%s2 + $0x8] sm:$0xf]
  %v20 = vld [vmem:[%s2 + $0xc] sm:$0xf]
  %v21 = vld [vmem:[%s2 + $0x10] sm:$0xf]
  %v22 = vld [vmem:[%s2 + $0x14] sm:$0xf]
  %v23 = vld [vmem:[%s2 + $0x18] sm:$0xf]
  %v24 = vld [vmem:[%s2 + $0x1c] sm:$0xf]
  %v25 = vld [vmem:[%s2 + $0x20] sm:$0xf]
  %v26 = vld [vmem:[%s2 + $0x24] sm:$0xf]
  %v27 = vld [vmem:[%s2 + $0x28] sm:$0xf]
  %v28 = vld [vmem:[%s2 + $0x2c] sm:$0xf]
  %v29 = vld [vmem:[%s2 + $0x30] sm:$0xf]
  %v30 = vld [vmem:[%s2 + $0x34] sm:$0xf]
  %v31 = vld [vmem:[%s2 + $0x38] sm:$0xf]
  %v32 = vld [vmem:[%s2 + $0x3c] sm:$0xf]
  %v33 = vld [vmem:[%s2 + $0x40] sm:$0xf]
  %v34 = vld [vmem:[%s2 + $0x44] sm:$0xf]
  %v35 = vld [vmem:[%s1] sm:$0xff]
  %v36 = vld [vmem:[%s1 + $0x8] sm:$0xff]
  %38 = vset.pattern.permute.xlu0 0
  %39 = vperm.xlu0 %38, %v35
  %v40 = vpop.permute.xlu0 %39
  %43 = vset.pattern.permute.xlu0 0
  %44 = vperm.xlu0 %43, %v36
  %v45 = vpop.permute.xlu0 %44
  %v49 = vunpack.c.l.b16 %v15
  %v50 = vunpack.c.h.b16 %v15
  %v51 = vunpack.c.l.b16 %v16
  %v52 = vunpack.c.h.b16 %v16
  %v53 = vpack.c.b16 %v51, %v49
  %v54 = vpack.c.b16 %v52, %v50
  %v74 = vunpack.c.l.b16 %v17
  %v75 = vunpack.c.l.b16 %v18
  %v76 = vunpack.c.l.b16 %v19
  %v77 = vunpack.c.l.b16 %v20
  %v78 = vunpack.c.l.b16 %v21
  %v79 = vunpack.c.l.b16 %v22
  %v80 = vunpack.c.l.b16 %v23
  %v81 = vunpack.c.l.b16 %v24
  %v82 = vunpack.c.l.b16 %v25
  %v83 = vunpack.c.l.b16 %v26
  %v84 = vunpack.c.l.b16 %v27
  %v85 = vunpack.c.l.b16 %v28
  %v86 = vunpack.c.l.b16 %v29
  %v87 = vunpack.c.l.b16 %v30
  %v88 = vunpack.c.l.b16 %v31
  %v89 = vunpack.c.l.b16 %v32
  %v90 = vunpack.c.l.b16 %v33
  %v91 = vunpack.c.l.b16 %v34
  %v92 = vpack.c.b16 %v75, %v74
  %v93 = vpack.c.b16 %v77, %v76
  %v94 = vpack.c.b16 %v79, %v78
  %v95 = vpack.c.b16 %v81, %v80
  %v96 = vpack.c.b16 %v83, %v82
  %v97 = vpack.c.b16 %v85, %v84
  %v98 = vpack.c.b16 %v87, %v86
  %v99 = vpack.c.b16 %v89, %v88
  %v100 = vpack.c.b16 %v91, %v90
  %vm110 = vcmask 130048
  %v112 = vsel %vm110, %v54, 0
  %114 = vmatprep.subr.bf16.mxu0 0
  %115 = vmatpush1.bf16.msra.mxu0 %v92
  %116 = vmatprep.subr.bf16.mxu0 0
  %117 = vmatpush1.bf16.msra.mxu0 %v93
  %118 = vmatprep.subr.bf16.mxu0 0
  %119 = vmatpush1.bf16.msra.mxu0 %v94
  %120 = vmatprep.subr.bf16.mxu0 0
  %121 = vmatpush1.bf16.msra.mxu0 %v95
  %122 = vmatprep.subr.bf16.mxu0 0
  %123 = vmatpush1.bf16.msra.mxu0 %v96
  %124 = vmatprep.subr.bf16.mxu0 0
  %125 = vmatpush1.bf16.msra.mxu0 %v97
  %126 = vmatprep.subr.bf16.mxu0 0
  %127 = vmatpush1.bf16.msra.mxu0 %v98
  %128 = vmatprep.subr.bf16.mxu0 0
  %129 = vmatpush1.bf16.msra.mxu0 %v99
  %130 = vmatprep.subr.bf16.mxu0 0
  %131 = vmatpush1.bf16.msra.mxu0 %v100
  %132 = vmatprep.subr.bf16.mxu0 0
  %133 = vmatpush1.bf16.msra.mxu0 0
  %134 = vmatprep.subr.bf16.mxu0 0
  %135 = vmatpush1.bf16.msra.mxu0 0
  %136 = vmatprep.subr.bf16.mxu0 0
  %137 = vmatpush1.bf16.msra.mxu0 0
  %138 = vmatprep.subr.bf16.mxu0 0
  %139 = vmatpush1.bf16.msra.mxu0 0
  %140 = vmatprep.subr.bf16.mxu0 0
  %141 = vmatpush1.bf16.msra.mxu0 0
  %142 = vmatprep.subr.bf16.mxu0 0
  %143 = vmatpush1.bf16.msra.mxu0 0
  %144 = vmatprep.subr.bf16.mxu0 0
  %145 = vmatpush1.bf16.msra.mxu0 0
  %146 = vmatprep.mubr.bf16.mxu0 %v112
  %147 = vmatmul.mubr.bf16.gmra.mrb[0].mxu0 %v53
  %v148 = vpop.f32.mrb[0].mxu0
  %v149 = vadd.f32 %v40, %v148
  %v150 = vpop.f32.mrb[0].mxu0
  %v151 = vpop.f32.mrb[0].mxu0
  %v152 = vadd.f32 %v45, %v151
  %v153 = vpop.f32.mrb[0].mxu0
  %154 = vdwg.mxu0
  %v155 = vmax.f32 %v149, 0.0
  %v156 = vmax.f32 %v152, 0.0
  %v157 = vpack.c.bf16 %v156, %v155
  %v159 = vunpack.c.l.b16 %v157
  %v160 = vunpack.c.h.b16 %v157
  %v161 = vpack.c.b16 %v159, %v159
  %v162 = vpack.c.b16 %v160, %v160
  %vm165 = vcmask 584704
  %166 = vst.msk [vmem:[%s3] sm:$0xf] %vm165, %v161
  %167 = vst.msk [vmem:[%s3 + $0x4] sm:$0xf] %vm165, %v162
  // Predicated region
  $region14: #{_lambda_.27} parent=0 // pred_check
    _
  $region15: #{_lambda_.27} parent=0 // pred_check_branch
    %169 = sbr.rel (0) target = $region17
  $region16: #{_lambda_.27} parent=0 // pred_region
    _
  $region17: #{_lambda_.27} parent=0 // pred_fallthru
    _
  // Predicated region
  $region18: #{_lambda_.27} parent=0 // pred_check
    _
  $region19: #{_lambda_.27} parent=0 // pred_check_branch
    %171 = sbr.rel (0) target = $region21
  $region20: #{_lambda_.27} parent=0 // pred_region
    _
  $region21: #{_lambda_.27} parent=0 // pred_fallthru
    _

// kernel: _lambda_.28
$region0: #{_lambda_.28}
  #allocation0 [shape = 'u32[]', space=smem, size = 0x4, offset = 0x4, fixed_abs, tag = 'smem constant byte address 0x4 - core index']
  #allocation1 [shape = 'u32[144,128]{1,0:T(1,128)}', space=vmem, size = 0x12000, scoped, tag = 'internal scratch']
  %s0 = inlined_call_operand.vmem [shape: bf16[16,16], index: 0, kind: input, shape index: {}]
  %s1 = inlined_call_operand.vmem [shape: f32[16,1], index: 1, kind: input, shape index: {}]
  %s2 = inlined_call_operand.vmem [shape: bf16[16,72], index: 2, kind: input, shape index: {}]
  %s3 = inlined_call_operand.vmem [shape: bf16[16,72], index: 3, kind: output, shape index: {}]
  %s4 = sld [smem:[#allocation0]]
  $region22: #{_lambda_.28} parent=0
    _
  %s6 = ssub.s32 1, %s4
  %s7 = scalar_select 0, %s6, %s4
  // Predicated region
  $region2: #{_lambda_.28} parent=0 // pred_check
    _
  $region3: #{_lambda_.28} parent=0 // pred_check_branch
    %9 = sbr.rel (0) target = $region5
  $region4: #{_lambda_.28} parent=0 // pred_region
    _
  $region5: #{_lambda_.28} parent=0 // pred_fallthru
    _
  // Predicated region
  $region6: #{_lambda_.28} parent=0 // pred_check
    _
  $region7: #{_lambda_.28} parent=0 // pred_check_branch
    %11 = sbr.rel (0) target = $region9
  $region8: #{_lambda_.28} parent=0 // pred_region
    _
  $region9: #{_lambda_.28} parent=0 // pred_fallthru
    _
  // Predicated region
  $region10: #{_lambda_.28} parent=0 // pred_check
    _
  $region11: #{_lambda_.28} parent=0 // pred_check_branch
    %13 = sbr.rel (0) target = $region13
  $region12: #{_lambda_.28} parent=0 // pred_region
    _
  $region13: #{_lambda_.28} parent=0 // pred_fallthru
    _
  %v15 = vld [vmem:[%s0] sm:$0xf]
  %v16 = vld [vmem:[%s0 + $0x4] sm:$0xf]
  %v17 = vld [vmem:[%s2] sm:$0xf]
  %v18 = vld [vmem:[%s2 + $0x4] sm:$0xf]
  %v19 = vld [vmem:[%s1] sm:$0xff]
  %v20 = vld [vmem:[%s1 + $0x8] sm:$0xff]
  %22 = vset.pattern.permute.xlu0 0
  %23 = vperm.xlu0 %22, %v19
  %v24 = vpop.permute.xlu0 %23
  %27 = vset.pattern.permute.xlu0 0
  %28 = vperm.xlu0 %27, %v20
  %v29 = vpop.permute.xlu0 %28
  %v33 = vunpack.c.l.b16 %v15
  %v34 = vunpack.c.l.b16 %v16
  %v35 = vpack.c.b16 %v34, %v33
  %v38 = vunpack.c.l.b16 %v17
  %v39 = vunpack.c.l.b16 %v18
  %v40 = vpack.c.b16 %v39, %v38
  %vm42 = vcmask 130048
  %v44 = vsel %vm42, %v35, 0
  %46 = vmatprep.subr.bf16.mxu0 0
  %47 = vmatpush1.bf16.msra.mxu0 %v40
  %48 = vmatprep.subr.bf16.mxu0 0
  %49 = vmatpush1.bf16.msra.mxu0 0
  %50 = vmatprep.subr.bf16.mxu0 0
  %51 = vmatpush1.bf16.msra.mxu0 0
  %52 = vmatprep.subr.bf16.mxu0 0
  %53 = vmatpush1.bf16.msra.mxu0 0
  %54 = vmatprep.subr.bf16.mxu0 0
  %55 = vmatpush1.bf16.msra.mxu0 0
  %56 = vmatprep.subr.bf16.mxu0 0
  %57 = vmatpush1.bf16.msra.mxu0 0
  %58 = vmatprep.subr.bf16.mxu0 0
  %59 = vmatpush1.bf16.msra.mxu0 0
  %60 = vmatprep.subr.bf16.mxu0 0
  %61 = vmatpush1.bf16.msra.mxu0 0
  %62 = vmatprep.subr.bf16.mxu0 0
  %63 = vmatpush1.bf16.msra.mxu0 0
  %64 = vmatprep.subr.bf16.mxu0 0
  %65 = vmatpush1.bf16.msra.mxu0 0
  %66 = vmatprep.subr.bf16.mxu0 0
  %67 = vmatpush1.bf16.msra.mxu0 0
  %68 = vmatprep.subr.bf16.mxu0 0
  %69 = vmatpush1.bf16.msra.mxu0 0
  %70 = vmatprep.subr.bf16.mxu0 0
  %71 = vmatpush1.bf16.msra.mxu0 0
  %72 = vmatprep.subr.bf16.mxu0 0
  %73 = vmatpush1.bf16.msra.mxu0 0
  %74 = vmatprep.subr.bf16.mxu0 0
  %75 = vmatpush1.bf16.msra.mxu0 0
  %76 = vmatprep.subr.bf16.mxu0 0
  %77 = vmatpush1.bf16.msra.mxu0 0
  %78 = vmatprep.mubr.bf16.mxu0 0
  %79 = vmatmul.mubr.bf16.gmra.mrb[0].mxu0 %v44
  %v80 = vpop.f32.mrb[0].mxu0
  %v81 = vadd.f32 %v24, %v80
  %v82 = vpop.f32.mrb[0].mxu0
  %v83 = vpop.f32.mrb[0].mxu0
  %v84 = vadd.f32 %v29, %v83
  %v85 = vpop.f32.mrb[0].mxu0
  %86 = vdwg.mxu0
  %v87 = vpack.c.bf16 %v84, %v81
  %v89 = vunpack.c.l.b16 %v87
  %v90 = vunpack.c.h.b16 %v87
  %v91 = vpack.c.b16 %v89, %v89
  %v92 = vpack.c.b16 %v90, %v90
  %vm95 = vcmask 584704
  %96 = vst.msk [vmem:[%s3] sm:$0xf] %vm95, %v91
  %97 = vst.msk [vmem:[%s3 + $0x4] sm:$0xf] %vm95, %v92
  // Predicated region
  $region14: #{_lambda_.28} parent=0 // pred_check
    _
  $region15: #{_lambda_.28} parent=0 // pred_check_branch
    %99 = sbr.rel (0) target = $region17
  $region16: #{_lambda_.28} parent=0 // pred_region
    _
  $region17: #{_lambda_.28} parent=0 // pred_fallthru
    _
  // Predicated region
  $region18: #{_lambda_.28} parent=0 // pred_check
    _
  $region19: #{_lambda_.28} parent=0 // pred_check_branch
    %101 = sbr.rel (0) target = $region21
  $region20: #{_lambda_.28} parent=0 // pred_region
    _
  $region21: #{_lambda_.28} parent=0 // pred_fallthru
    _

// kernel: _lambda_.29
$region0: #{_lambda_.29}
  #allocation0 [shape = 'u32[]', space=smem, size = 0x4, offset = 0x4, fixed_abs, tag = 'smem constant byte address 0x4 - core index']
  #allocation1 [shape = 'u32[144,128]{1,0:T(1,128)}', space=vmem, size = 0x12000, scoped, tag = 'internal scratch']
  %s0 = inlined_call_operand.vmem [shape: bf16[16,144], index: 0, kind: input, shape index: {}]
  %s1 = inlined_call_operand.vmem [shape: f32[16,1], index: 1, kind: input, shape index: {}]
  %s2 = inlined_call_operand.vmem [shape: bf16[144,72], index: 2, kind: input, shape index: {}]
  %s3 = inlined_call_operand.vmem [shape: bf16[16,72], index: 3, kind: input, shape index: {}]
  %s4 = inlined_call_operand.vmem [shape: bf16[16,72], index: 4, kind: output, shape index: {}]
  %s5 = sld [smem:[#allocation0]]
  $region26: #{_lambda_.29} parent=0
    _
  %s7 = ssub.s32 1, %s5
  %s8 = scalar_select 0, %s7, %s5
  // Predicated region
  $region2: #{_lambda_.29} parent=0 // pred_check
    _
  $region3: #{_lambda_.29} parent=0 // pred_check_branch
    %10 = sbr.rel (0) target = $region5
  $region4: #{_lambda_.29} parent=0 // pred_region
    _
  $region5: #{_lambda_.29} parent=0 // pred_fallthru
    _
  // Predicated region
  $region6: #{_lambda_.29} parent=0 // pred_check
    _
  $region7: #{_lambda_.29} parent=0 // pred_check_branch
    %12 = sbr.rel (0) target = $region9
  $region8: #{_lambda_.29} parent=0 // pred_region
    _
  $region9: #{_lambda_.29} parent=0 // pred_fallthru
    _
  // Predicated region
  $region10: #{_lambda_.29} parent=0 // pred_check
    _
  $region11: #{_lambda_.29} parent=0 // pred_check_branch
    %14 = sbr.rel (0) target = $region13
  $region12: #{_lambda_.29} parent=0 // pred_region
    _
  $region13: #{_lambda_.29} parent=0 // pred_fallthru
    _
  // Predicated region
  $region14: #{_lambda_.29} parent=0 // pred_check
    _
  $region15: #{_lambda_.29} parent=0 // pred_check_branch
    %16 = sbr.rel (0) target = $region17
  $region16: #{_lambda_.29} parent=0 // pred_region
    _
  $region17: #{_lambda_.29} parent=0 // pred_fallthru
    _
  %v18 = vld [vmem:[%s0] sm:$0xff]
  %v19 = vld [vmem:[%s0 + $0x8] sm:$0xff]
  %v20 = vld [vmem:[%s2] sm:$0xf]
  %v21 = vld [vmem:[%s2 + $0x4] sm:$0xf]
  %v22 = vld [vmem:[%s2 + $0x8] sm:$0xf]
  %v23 = vld [vmem:[%s2 + $0xc] sm:$0xf]
  %v24 = vld [vmem:[%s2 + $0x10] sm:$0xf]
  %v25 = vld [vmem:[%s2 + $0x14] sm:$0xf]
  %v26 = vld [vmem:[%s2 + $0x18] sm:$0xf]
  %v27 = vld [vmem:[%s2 + $0x1c] sm:$0xf]
  %v28 = vld [vmem:[%s2 + $0x20] sm:$0xf]
  %v29 = vld [vmem:[%s2 + $0x24] sm:$0xf]
  %v30 = vld [vmem:[%s2 + $0x28] sm:$0xf]
  %v31 = vld [vmem:[%s2 + $0x2c] sm:$0xf]
  %v32 = vld [vmem:[%s2 + $0x30] sm:$0xf]
  %v33 = vld [vmem:[%s2 + $0x34] sm:$0xf]
  %v34 = vld [vmem:[%s2 + $0x38] sm:$0xf]
  %v35 = vld [vmem:[%s2 + $0x3c] sm:$0xf]
  %v36 = vld [vmem:[%s2 + $0x40] sm:$0xf]
  %v37 = vld [vmem:[%s2 + $0x44] sm:$0xf]
  %v38 = vld [vmem:[%s1] sm:$0xff]
  %v39 = vld [vmem:[%s1 + $0x8] sm:$0xff]
  %41 = vset.pattern.permute.xlu0 0
  %42 = vperm.xlu0 %41, %v38
  %v43 = vpop.permute.xlu0 %42
  %46 = vset.pattern.permute.xlu0 0
  %47 = vperm.xlu0 %46, %v39
  %v48 = vpop.permute.xlu0 %47
  %v52 = vunpack.c.l.b16 %v18
  %v53 = vunpack.c.h.b16 %v18
  %v54 = vunpack.c.l.b16 %v19
  %v55 = vunpack.c.h.b16 %v19
  %v56 = vpack.c.b16 %v54, %v52
  %v57 = vpack.c.b16 %v55, %v53
  %v77 = vunpack.c.l.b16 %v20
  %v78 = vunpack.c.l.b16 %v21
  %v79 = vunpack.c.l.b16 %v22
  %v80 = vunpack.c.l.b16 %v23
  %v81 = vunpack.c.l.b16 %v24
  %v82 = vunpack.c.l.b16 %v25
  %v83 = vunpack.c.l.b16 %v26
  %v84 = vunpack.c.l.b16 %v27
  %v85 = vunpack.c.l.b16 %v28
  %v86 = vunpack.c.l.b16 %v29
  %v87 = vunpack.c.l.b16 %v30
  %v88 = vunpack.c.l.b16 %v31
  %v89 = vunpack.c.l.b16 %v32
  %v90 = vunpack.c.l.b16 %v33
  %v91 = vunpack.c.l.b16 %v34
  %v92 = vunpack.c.l.b16 %v35
  %v93 = vunpack.c.l.b16 %v36
  %v94 = vunpack.c.l.b16 %v37
  %v95 = vpack.c.b16 %v78, %v77
  %v96 = vpack.c.b16 %v80, %v79
  %v97 = vpack.c.b16 %v82, %v81
  %v98 = vpack.c.b16 %v84, %v83
  %v99 = vpack.c.b16 %v86, %v85
  %v100 = vpack.c.b16 %v88, %v87
  %v101 = vpack.c.b16 %v90, %v89
  %v102 = vpack.c.b16 %v92, %v91
  %v103 = vpack.c.b16 %v94, %v93
  %vm113 = vcmask 130048
  %v115 = vsel %vm113, %v57, 0
  %117 = vmatprep.subr.bf16.mxu0 0
  %118 = vmatpush1.bf16.msra.mxu0 %v95
  %119 = vmatprep.subr.bf16.mxu0 0
  %120 = vmatpush1.bf16.msra.mxu0 %v96
  %121 = vmatprep.subr.bf16.mxu0 0
  %122 = vmatpush1.bf16.msra.mxu0 %v97
  %123 = vmatprep.subr.bf16.mxu0 0
  %124 = vmatpush1.bf16.msra.mxu0 %v98
  %125 = vmatprep.subr.bf16.mxu0 0
  %126 = vmatpush1.bf16.msra.mxu0 %v99
  %127 = vmatprep.subr.bf16.mxu0 0
  %128 = vmatpush1.bf16.msra.mxu0 %v100
  %129 = vmatprep.subr.bf16.mxu0 0
  %130 = vmatpush1.bf16.msra.mxu0 %v101
  %131 = vmatprep.subr.bf16.mxu0 0
  %132 = vmatpush1.bf16.msra.mxu0 %v102
  %133 = vmatprep.subr.bf16.mxu0 0
  %134 = vmatpush1.bf16.msra.mxu0 %v103
  %135 = vmatprep.subr.bf16.mxu0 0
  %136 = vmatpush1.bf16.msra.mxu0 0
  %137 = vmatprep.subr.bf16.mxu0 0
  %138 = vmatpush1.bf16.msra.mxu0 0
  %139 = vmatprep.subr.bf16.mxu0 0
  %140 = vmatpush1.bf16.msra.mxu0 0
  %141 = vmatprep.subr.bf16.mxu0 0
  %142 = vmatpush1.bf16.msra.mxu0 0
  %143 = vmatprep.subr.bf16.mxu0 0
  %144 = vmatpush1.bf16.msra.mxu0 0
  %145 = vmatprep.subr.bf16.mxu0 0
  %146 = vmatpush1.bf16.msra.mxu0 0
  %147 = vmatprep.subr.bf16.mxu0 0
  %148 = vmatpush1.bf16.msra.mxu0 0
  %149 = vmatprep.mubr.bf16.mxu0 %v115
  %150 = vmatmul.mubr.bf16.gmra.mrb[0].mxu0 %v56
  %v151 = vpop.f32.mrb[0].mxu0
  %v152 = vadd.f32 %v43, %v151
  %v153 = vpop.f32.mrb[0].mxu0
  %v154 = vpop.f32.mrb[0].mxu0
  %v155 = vadd.f32 %v48, %v154
  %v156 = vpop.f32.mrb[0].mxu0
  %157 = vdwg.mxu0
  %v158 = vld [vmem:[%s3] sm:$0xf]
  %v159 = vld [vmem:[%s3 + $0x4] sm:$0xf]
  %v160 = vunpack.c.l.bf16 %v158
  %v161 = vunpack.c.l.bf16 %v159
  %v162 = vadd.f32 %v152, %v160
  %v163 = vadd.f32 %v155, %v161
  %v164 = vmax.f32 %v162, 0.0
  %v165 = vmax.f32 %v163, 0.0
  %v166 = vpack.c.bf16 %v165, %v164
  %v168 = vunpack.c.l.b16 %v166
  %v169 = vunpack.c.h.b16 %v166
  %v170 = vpack.c.b16 %v168, %v168
  %v171 = vpack.c.b16 %v169, %v169
  %vm174 = vcmask 584704
  %175 = vst.msk [vmem:[%s4] sm:$0xf] %vm174, %v170
  %176 = vst.msk [vmem:[%s4 + $0x4] sm:$0xf] %vm174, %v171
  // Predicated region
  $region18: #{_lambda_.29} parent=0 // pred_check
    _
  $region19: #{_lambda_.29} parent=0 // pred_check_branch
    %178 = sbr.rel (0) target = $region21
  $region20: #{_lambda_.29} parent=0 // pred_region
    _
  $region21: #{_lambda_.29} parent=0 // pred_fallthru
    _
  // Predicated region
  $region22: #{_lambda_.29} parent=0 // pred_check
    _
  $region23: #{_lambda_.29} parent=0 // pred_check_branch
    %180 = sbr.rel (0) target = $region25
  $region24: #{_lambda_.29} parent=0 // pred_region
    _
  $region25: #{_lambda_.29} parent=0 // pred_fallthru
    _

// kernel: _lambda_.30
$region0: #{_lambda_.30}
  #allocation0 [shape = 'u32[]', space=smem, size = 0x4, offset = 0x4, fixed_abs, tag = 'smem constant byte address 0x4 - core index']
  #allocation1 [shape = 'u32[144,128]{1,0:T(1,128)}', space=vmem, size = 0x12000, scoped, tag = 'internal scratch']
  %s0 = inlined_call_operand.vmem [shape: bf16[32,144], index: 0, kind: input, shape index: {}]
  %s1 = inlined_call_operand.vmem [shape: f32[32,1], index: 1, kind: input, shape index: {}]
  %s2 = inlined_call_operand.vmem [shape: bf16[144,18], index: 2, kind: input, shape index: {}]
  %s3 = inlined_call_operand.vmem [shape: bf16[32,18], index: 3, kind: output, shape index: {}]
  %s4 = sld [smem:[#allocation0]]
  $region22: #{_lambda_.30} parent=0
    _
  %s6 = ssub.s32 1, %s4
  %s7 = scalar_select 0, %s6, %s4
  // Predicated region
  $region2: #{_lambda_.30} parent=0 // pred_check
    _
  $region3: #{_lambda_.30} parent=0 // pred_check_branch
    %9 = sbr.rel (0) target = $region5
  $region4: #{_lambda_.30} parent=0 // pred_region
    _
  $region5: #{_lambda_.30} parent=0 // pred_fallthru
    _
  // Predicated region
  $region6: #{_lambda_.30} parent=0 // pred_check
    _
  $region7: #{_lambda_.30} parent=0 // pred_check_branch
    %11 = sbr.rel (0) target = $region9
  $region8: #{_lambda_.30} parent=0 // pred_region
    _
  $region9: #{_lambda_.30} parent=0 // pred_fallthru
    _
  // Predicated region
  $region10: #{_lambda_.30} parent=0 // pred_check
    _
  $region11: #{_lambda_.30} parent=0 // pred_check_branch
    %13 = sbr.rel (0) target = $region13
  $region12: #{_lambda_.30} parent=0 // pred_region
    _
  $region13: #{_lambda_.30} parent=0 // pred_fallthru
    _
  %v15 = vld [vmem:[%s0] sm:$0xff]
  %v16 = vld [vmem:[%s0 + $0x8] sm:$0xff]
  %v17 = vld [vmem:[%s0 + $0x10] sm:$0xff]
  %v18 = vld [vmem:[%s0 + $0x18] sm:$0xff]
  %v19 = vld [vmem:[%s2] sm:$0xf]
  %v20 = vld [vmem:[%s2 + $0x4] sm:$0xf]
  %v21 = vld [vmem:[%s2 + $0x8] sm:$0xf]
  %v22 = vld [vmem:[%s2 + $0xc] sm:$0xf]
  %v23 = vld [vmem:[%s2 + $0x10] sm:$0xf]
  %v24 = vld [vmem:[%s2 + $0x14] sm:$0xf]
  %v25 = vld [vmem:[%s2 + $0x18] sm:$0xf]
  %v26 = vld [vmem:[%s2 + $0x1c] sm:$0xf]
  %v27 = vld [vmem:[%s2 + $0x20] sm:$0xf]
  %v28 = vld [vmem:[%s2 + $0x24] sm:$0xf]
  %v29 = vld [vmem:[%s2 + $0x28] sm:$0xf]
  %v30 = vld [vmem:[%s2 + $0x2c] sm:$0xf]
  %v31 = vld [vmem:[%s2 + $0x30] sm:$0xf]
  %v32 = vld [vmem:[%s2 + $0x34] sm:$0xf]
  %v33 = vld [vmem:[%s2 + $0x38] sm:$0xf]
  %v34 = vld [vmem:[%s2 + $0x3c] sm:$0xf]
  %v35 = vld [vmem:[%s2 + $0x40] sm:$0xf]
  %v36 = vld [vmem:[%s2 + $0x44] sm:$0xf]
  %v37 = vld [vmem:[%s1] sm:$0xff]
  %v38 = vld [vmem:[%s1 + $0x8] sm:$0xff]
  %v39 = vld [vmem:[%s1 + $0x10] sm:$0xff]
  %v40 = vld [vmem:[%s1 + $0x18] sm:$0xff]
  %42 = vset.pattern.permute.xlu0 0
  %43 = vperm.xlu0 %42, %v37
  %v44 = vpop.permute.xlu0 %43
  %47 = vset.pattern.permute.xlu0 0
  %48 = vperm.xlu0 %47, %v38
  %v49 = vpop.permute.xlu0 %48
  %52 = vset.pattern.permute.xlu0 0
  %53 = vperm.xlu0 %52, %v39
  %v54 = vpop.permute.xlu0 %53
  %57 = vset.pattern.permute.xlu0 0
  %58 = vperm.xlu0 %57, %v40
  %v59 = vpop.permute.xlu0 %58
  %v65 = vunpack.c.l.b16 %v15
  %v66 = vunpack.c.h.b16 %v15
  %v67 = vunpack.c.l.b16 %v16
  %v68 = vunpack.c.h.b16 %v16
  %v69 = vunpack.c.l.b16 %v17
  %v70 = vunpack.c.h.b16 %v17
  %v71 = vunpack.c.l.b16 %v18
  %v72 = vunpack.c.h.b16 %v18
  %v73 = vpack.c.b16 %v67, %v65
  %v74 = vpack.c.b16 %v68, %v66
  %v75 = vpack.c.b16 %v71, %v69
  %v76 = vpack.c.b16 %v72, %v70
  %v97 = vunpack.c.l.b16 %v19
  %v98 = vunpack.c.l.b16 %v20
  %v99 = vunpack.c.l.b16 %v21
  %v100 = vunpack.c.l.b16 %v22
  %v101 = vunpack.c.l.b16 %v23
  %v102 = vunpack.c.l.b16 %v24
  %v103 = vunpack.c.l.b16 %v25
  %v104 = vunpack.c.l.b16 %v26
  %v105 = vunpack.c.l.b16 %v27
  %v106 = vunpack.c.l.b16 %v28
  %v107 = vunpack.c.l.b16 %v29
  %v108 = vunpack.c.l.b16 %v30
  %v109 = vunpack.c.l.b16 %v31
  %v110 = vunpack.c.l.b16 %v32
  %v111 = vunpack.c.l.b16 %v33
  %v112 = vunpack.c.l.b16 %v34
  %v113 = vunpack.c.l.b16 %v35
  %v114 = vunpack.c.l.b16 %v36
  %v115 = vpack.c.b16 %v98, %v97
  %v116 = vpack.c.b16 %v100, %v99
  %v117 = vpack.c.b16 %v102, %v101
  %v118 = vpack.c.b16 %v104, %v103
  %v119 = vpack.c.b16 %v106, %v105
  %v120 = vpack.c.b16 %v108, %v107
  %v121 = vpack.c.b16 %v110, %v109
  %v122 = vpack.c.b16 %v112, %v111
  %v123 = vpack.c.b16 %v114, %v113
  %vm133 = vcmask 130048
  %v135 = vsel %vm133, %v74, 0
  %v138 = vsel %vm133, %v76, 0
  %140 = vmatprep.subr.bf16.mxu0 0
  %141 = vmatpush1.bf16.msra.mxu0 %v115
  %142 = vmatprep.subr.bf16.mxu0 0
  %143 = vmatpush1.bf16.msra.mxu0 %v116
  %144 = vmatprep.subr.bf16.mxu0 0
  %145 = vmatpush1.bf16.msra.mxu0 %v117
  %146 = vmatprep.subr.bf16.mxu0 0
  %147 = vmatpush1.bf16.msra.mxu0 %v118
  %148 = vmatprep.subr.bf16.mxu0 0
  %149 = vmatpush1.bf16.msra.mxu0 %v119
  %150 = vmatprep.subr.bf16.mxu0 0
  %151 = vmatpush1.bf16.msra.mxu0 %v120
  %152 = vmatprep.subr.bf16.mxu0 0
  %153 = vmatpush1.bf16.msra.mxu0 %v121
  %154 = vmatprep.subr.bf16.mxu0 0
  %155 = vmatpush1.bf16.msra.mxu0 %v122
  %156 = vmatprep.subr.bf16.mxu0 0
  %157 = vmatpush1.bf16.msra.mxu0 %v123
  %158 = vmatprep.subr.bf16.mxu0 0
  %159 = vmatpush1.bf16.msra.mxu0 0
  %160 = vmatprep.subr.bf16.mxu0 0
  %161 = vmatpush1.bf16.msra.mxu0 0
  %162 = vmatprep.subr.bf16.mxu0 0
  %163 = vmatpush1.bf16.msra.mxu0 0
  %164 = vmatprep.subr.bf16.mxu0 0
  %165 = vmatpush1.bf16.msra.mxu0 0
  %166 = vmatprep.subr.bf16.mxu0 0
  %167 = vmatpush1.bf16.msra.mxu0 0
  %168 = vmatprep.subr.bf16.mxu0 0
  %169 = vmatpush1.bf16.msra.mxu0 0
  %170 = vmatprep.subr.bf16.mxu0 0
  %171 = vmatpush1.bf16.msra.mxu0 0
  %172 = vmatprep.mubr.bf16.mxu0 %v135
  %173 = vmatmul.mubr.bf16.gmra.mrb[0].mxu0 %v73
  %v174 = vpop.f32.mrb[0].mxu0
  %v175 = vadd.f32 %v44, %v174
  %v176 = vpop.f32.mrb[0].mxu0
  %v177 = vpop.f32.mrb[0].mxu0
  %v178 = vadd.f32 %v49, %v177
  %v179 = vpop.f32.mrb[0].mxu0
  %180 = vmatprep.mubr.bf16.mxu0 %v138
  %181 = vmatmul.mubr.bf16.gmra.mrb[0].mxu0 %v75
  %v182 = vpop.f32.mrb[0].mxu0
  %v183 = vadd.f32 %v54, %v182
  %v184 = vpop.f32.mrb[0].mxu0
  %v185 = vpop.f32.mrb[0].mxu0
  %v186 = vadd.f32 %v59, %v185
  %v187 = vpop.f32.mrb[0].mxu0
  %188 = vdwg.mxu0
  %v189 = vmax.f32 %v175, 0.0
  %v190 = vmax.f32 %v178, 0.0
  %v191 = vmax.f32 %v183, 0.0
  %v192 = vmax.f32 %v186, 0.0
  %v193 = vpack.c.bf16 %v190, %v189
  %v194 = vpack.c.bf16 %v192, %v191
  %v197 = vunpack.c.l.b16 %v193
  %v198 = vunpack.c.h.b16 %v193
  %v199 = vunpack.c.l.b16 %v194
  %v200 = vunpack.c.h.b16 %v194
  %v201 = vpack.c.b16 %v197, %v197
  %v202 = vpack.c.b16 %v198, %v198
  %v203 = vpack.c.b16 %v199, %v199
  %v204 = vpack.c.b16 %v200, %v200
  %vm209 = vcmask 142336
  %210 = vst.msk [vmem:[%s3] sm:$0xf] %vm209, %v201
  %211 = vst.msk [vmem:[%s3 + $0x4] sm:$0xf] %vm209, %v202
  %212 = vst.msk [vmem:[%s3 + $0x8] sm:$0xf] %vm209, %v203
  %213 = vst.msk [vmem:[%s3 + $0xc] sm:$0xf] %vm209, %v204
  // Predicated region
  $region14: #{_lambda_.30} parent=0 // pred_check
    _
  $region15: #{_lambda_.30} parent=0 // pred_check_branch
    %215 = sbr.rel (0) target = $region17
  $region16: #{_lambda_.30} parent=0 // pred_region
    _
  $region17: #{_lambda_.30} parent=0 // pred_fallthru
    _
  // Predicated region
  $region18: #{_lambda_.30} parent=0 // pred_check
    _
  $region19: #{_lambda_.30} parent=0 // pred_check_branch
    %217 = sbr.rel (0) target = $region21
  $region20: #{_lambda_.30} parent=0 // pred_region
    _
  $region21: #{_lambda_.30} parent=0 // pred_fallthru
    _

// kernel: _lambda_.31
$region0: #{_lambda_.31}
  #allocation0 [shape = 'u32[]', space=smem, size = 0x4, offset = 0x4, fixed_abs, tag = 'smem constant byte address 0x4 - core index']
  #allocation1 [shape = 'u32[144,128]{1,0:T(1,128)}', space=vmem, size = 0x12000, scoped, tag = 'internal scratch']
  %s0 = inlined_call_operand.vmem [shape: bf16[32,16], index: 0, kind: input, shape index: {}]
  %s1 = inlined_call_operand.vmem [shape: f32[32,1], index: 1, kind: input, shape index: {}]
  %s2 = inlined_call_operand.vmem [shape: bf16[16,18], index: 2, kind: input, shape index: {}]
  %s3 = inlined_call_operand.vmem [shape: bf16[32,18], index: 3, kind: output, shape index: {}]
  %s4 = sld [smem:[#allocation0]]
  $region22: #{_lambda_.31} parent=0
    _
  %s6 = ssub.s32 1, %s4
  %s7 = scalar_select 0, %s6, %s4
  // Predicated region
  $region2: #{_lambda_.31} parent=0 // pred_check
    _
  $region3: #{_lambda_.31} parent=0 // pred_check_branch
    %9 = sbr.rel (0) target = $region5
  $region4: #{_lambda_.31} parent=0 // pred_region
    _
  $region5: #{_lambda_.31} parent=0 // pred_fallthru
    _
  // Predicated region
  $region6: #{_lambda_.31} parent=0 // pred_check
    _
  $region7: #{_lambda_.31} parent=0 // pred_check_branch
    %11 = sbr.rel (0) target = $region9
  $region8: #{_lambda_.31} parent=0 // pred_region
    _
  $region9: #{_lambda_.31} parent=0 // pred_fallthru
    _
  // Predicated region
  $region10: #{_lambda_.31} parent=0 // pred_check
    _
  $region11: #{_lambda_.31} parent=0 // pred_check_branch
    %13 = sbr.rel (0) target = $region13
  $region12: #{_lambda_.31} parent=0 // pred_region
    _
  $region13: #{_lambda_.31} parent=0 // pred_fallthru
    _
  %v15 = vld [vmem:[%s0] sm:$0xf]
  %v16 = vld [vmem:[%s0 + $0x4] sm:$0xf]
  %v17 = vld [vmem:[%s0 + $0x8] sm:$0xf]
  %v18 = vld [vmem:[%s0 + $0xc] sm:$0xf]
  %v19 = vld [vmem:[%s2] sm:$0xf]
  %v20 = vld [vmem:[%s2 + $0x4] sm:$0xf]
  %v21 = vld [vmem:[%s1] sm:$0xff]
  %v22 = vld [vmem:[%s1 + $0x8] sm:$0xff]
  %v23 = vld [vmem:[%s1 + $0x10] sm:$0xff]
  %v24 = vld [vmem:[%s1 + $0x18] sm:$0xff]
  %26 = vset.pattern.permute.xlu0 0
  %27 = vperm.xlu0 %26, %v21
  %v28 = vpop.permute.xlu0 %27
  %31 = vset.pattern.permute.xlu0 0
  %32 = vperm.xlu0 %31, %v22
  %v33 = vpop.permute.xlu0 %32
  %36 = vset.pattern.permute.xlu0 0
  %37 = vperm.xlu0 %36, %v23
  %v38 = vpop.permute.xlu0 %37
  %41 = vset.pattern.permute.xlu0 0
  %42 = vperm.xlu0 %41, %v24
  %v43 = vpop.permute.xlu0 %42
  %v49 = vunpack.c.l.b16 %v15
  %v50 = vunpack.c.l.b16 %v16
  %v51 = vunpack.c.l.b16 %v17
  %v52 = vunpack.c.l.b16 %v18
  %v53 = vpack.c.b16 %v50, %v49
  %v54 = vpack.c.b16 %v52, %v51
  %v57 = vunpack.c.l.b16 %v19
  %v58 = vunpack.c.l.b16 %v20
  %v59 = vpack.c.b16 %v58, %v57
  %vm61 = vcmask 130048
  %v63 = vsel %vm61, %v53, 0
  %v66 = vsel %vm61, %v54, 0
  %68 = vmatprep.subr.bf16.mxu0 0
  %69 = vmatpush1.bf16.msra.mxu0 %v59
  %70 = vmatprep.subr.bf16.mxu0 0
  %71 = vmatpush1.bf16.msra.mxu0 0
  %72 = vmatprep.subr.bf16.mxu0 0
  %73 = vmatpush1.bf16.msra.mxu0 0
  %74 = vmatprep.subr.bf16.mxu0 0
  %75 = vmatpush1.bf16.msra.mxu0 0
  %76 = vmatprep.subr.bf16.mxu0 0
  %77 = vmatpush1.bf16.msra.mxu0 0
  %78 = vmatprep.subr.bf16.mxu0 0
  %79 = vmatpush1.bf16.msra.mxu0 0
  %80 = vmatprep.subr.bf16.mxu0 0
  %81 = vmatpush1.bf16.msra.mxu0 0
  %82 = vmatprep.subr.bf16.mxu0 0
  %83 = vmatpush1.bf16.msra.mxu0 0
  %84 = vmatprep.subr.bf16.mxu0 0
  %85 = vmatpush1.bf16.msra.mxu0 0
  %86 = vmatprep.subr.bf16.mxu0 0
  %87 = vmatpush1.bf16.msra.mxu0 0
  %88 = vmatprep.subr.bf16.mxu0 0
  %89 = vmatpush1.bf16.msra.mxu0 0
  %90 = vmatprep.subr.bf16.mxu0 0
  %91 = vmatpush1.bf16.msra.mxu0 0
  %92 = vmatprep.subr.bf16.mxu0 0
  %93 = vmatpush1.bf16.msra.mxu0 0
  %94 = vmatprep.subr.bf16.mxu0 0
  %95 = vmatpush1.bf16.msra.mxu0 0
  %96 = vmatprep.subr.bf16.mxu0 0
  %97 = vmatpush1.bf16.msra.mxu0 0
  %98 = vmatprep.subr.bf16.mxu0 0
  %99 = vmatpush1.bf16.msra.mxu0 0
  %100 = vmatprep.mubr.bf16.mxu0 0
  %101 = vmatmul.mubr.bf16.gmra.mrb[0].mxu0 %v63
  %v102 = vpop.f32.mrb[0].mxu0
  %v103 = vadd.f32 %v28, %v102
  %v104 = vpop.f32.mrb[0].mxu0
  %v105 = vpop.f32.mrb[0].mxu0
  %v106 = vadd.f32 %v33, %v105
  %v107 = vpop.f32.mrb[0].mxu0
  %108 = vmatprep.mubr.bf16.mxu0 0
  %109 = vmatmul.mubr.bf16.gmra.mrb[0].mxu0 %v66
  %v110 = vpop.f32.mrb[0].mxu0
  %v111 = vadd.f32 %v38, %v110
  %v112 = vpop.f32.mrb[0].mxu0
  %v113 = vpop.f32.mrb[0].mxu0
  %v114 = vadd.f32 %v43, %v113
  %v115 = vpop.f32.mrb[0].mxu0
  %116 = vdwg.mxu0
  %v117 = vpack.c.bf16 %v106, %v103
  %v118 = vpack.c.bf16 %v114, %v111
  %v121 = vunpack.c.l.b16 %v117
  %v122 = vunpack.c.h.b16 %v117
  %v123 = vunpack.c.l.b16 %v118
  %v124 = vunpack.c.h.b16 %v118
  %v125 = vpack.c.b16 %v121, %v121
  %v126 = vpack.c.b16 %v122, %v122
  %v127 = vpack.c.b16 %v123, %v123
  %v128 = vpack.c.b16 %v124, %v124
  %vm133 = vcmask 142336
  %134 = vst.msk [vmem:[%s3] sm:$0xf] %vm133, %v125
  %135 = vst.msk [vmem:[%s3 + $0x4] sm:$0xf] %vm133, %v126
  %136 = vst.msk [vmem:[%s3 + $0x8] sm:$0xf] %vm133, %v127
  %137 = vst.msk [vmem:[%s3 + $0xc] sm:$0xf] %vm133, %v128
  // Predicated region
  $region14: #{_lambda_.31} parent=0 // pred_check
    _
  $region15: #{_lambda_.31} parent=0 // pred_check_branch
    %139 = sbr.rel (0) target = $region17
  $region16: #{_lambda_.31} parent=0 // pred_region
    _
  $region17: #{_lambda_.31} parent=0 // pred_fallthru
    _
  // Predicated region
  $region18: #{_lambda_.31} parent=0 // pred_check
    _
  $region19: #{_lambda_.31} parent=0 // pred_check_branch
    %141 = sbr.rel (0) target = $region21
  $region20: #{_lambda_.31} parent=0 // pred_region
    _
  $region21: #{_lambda_.31} parent=0 // pred_fallthru
    _

// kernel: _lambda_.32
$region0: #{_lambda_.32}
  #allocation0 [shape = 'u32[]', space=smem, size = 0x4, offset = 0x4, fixed_abs, tag = 'smem constant byte address 0x4 - core index']
  #allocation1 [shape = 'u32[144,128]{1,0:T(1,128)}', space=vmem, size = 0x12000, scoped, tag = 'internal scratch']
  %s0 = inlined_call_operand.vmem [shape: bf16[32,288], index: 0, kind: input, shape index: {}]
  %s1 = inlined_call_operand.vmem [shape: f32[32,1], index: 1, kind: input, shape index: {}]
  %s2 = inlined_call_operand.vmem [shape: bf16[288,18], index: 2, kind: input, shape index: {}]
  %s3 = inlined_call_operand.vmem [shape: bf16[32,18], index: 3, kind: input, shape index: {}]
  %s4 = inlined_call_operand.vmem [shape: bf16[32,18], index: 4, kind: output, shape index: {}]
  %s5 = sld [smem:[#allocation0]]
  $region26: #{_lambda_.32} parent=0
    _
  %s7 = ssub.s32 1, %s5
  %s8 = scalar_select 0, %s7, %s5
  // Predicated region
  $region2: #{_lambda_.32} parent=0 // pred_check
    _
  $region3: #{_lambda_.32} parent=0 // pred_check_branch
    %10 = sbr.rel (0) target = $region5
  $region4: #{_lambda_.32} parent=0 // pred_region
    _
  $region5: #{_lambda_.32} parent=0 // pred_fallthru
    _
  // Predicated region
  $region6: #{_lambda_.32} parent=0 // pred_check
    _
  $region7: #{_lambda_.32} parent=0 // pred_check_branch
    %12 = sbr.rel (0) target = $region9
  $region8: #{_lambda_.32} parent=0 // pred_region
    _
  $region9: #{_lambda_.32} parent=0 // pred_fallthru
    _
  // Predicated region
  $region10: #{_lambda_.32} parent=0 // pred_check
    _
  $region11: #{_lambda_.32} parent=0 // pred_check_branch
    %14 = sbr.rel (0) target = $region13
  $region12: #{_lambda_.32} parent=0 // pred_region
    _
  $region13: #{_lambda_.32} parent=0 // pred_fallthru
    _
  // Predicated region
  $region14: #{_lambda_.32} parent=0 // pred_check
    _
  $region15: #{_lambda_.32} parent=0 // pred_check_branch
    %16 = sbr.rel (0) target = $region17
  $region16: #{_lambda_.32} parent=0 // pred_region
    _
  $region17: #{_lambda_.32} parent=0 // pred_fallthru
    _
  %v18 = vld [vmem:[%s0] sm:$0xff]
  %v19 = vld [vmem:[%s0 + $0x8] sm:$0xf]
  %v20 = vld [vmem:[%s0 + $0xc] sm:$0xff]
  %v21 = vld [vmem:[%s0 + $0x14] sm:$0xf]
  %v22 = vld [vmem:[%s0 + $0x18] sm:$0xff]
  %v23 = vld [vmem:[%s0 + $0x20] sm:$0xf]
  %v24 = vld [vmem:[%s0 + $0x24] sm:$0xff]
  %v25 = vld [vmem:[%s0 + $0x2c] sm:$0xf]
  %v26 = vld [vmem:[%s2] sm:$0xf]
  %v27 = vld [vmem:[%s2 + $0x4] sm:$0xf]
  %v28 = vld [vmem:[%s2 + $0x8] sm:$0xf]
  %v29 = vld [vmem:[%s2 + $0xc] sm:$0xf]
  %v30 = vld [vmem:[%s2 + $0x10] sm:$0xf]
  %v31 = vld [vmem:[%s2 + $0x14] sm:$0xf]
  %v32 = vld [vmem:[%s2 + $0x18] sm:$0xf]
  %v33 = vld [vmem:[%s2 + $0x1c] sm:$0xf]
  %v34 = vld [vmem:[%s2 + $0x20] sm:$0xf]
  %v35 = vld [vmem:[%s2 + $0x24] sm:$0xf]
  %v36 = vld [vmem:[%s2 + $0x28] sm:$0xf]
  %v37 = vld [vmem:[%s2 + $0x2c] sm:$0xf]
  %v38 = vld [vmem:[%s2 + $0x30] sm:$0xf]
  %v39 = vld [vmem:[%s2 + $0x34] sm:$0xf]
  %v40 = vld [vmem:[%s2 + $0x38] sm:$0xf]
  %v41 = vld [vmem:[%s2 + $0x3c] sm:$0xf]
  %v42 = vld [vmem:[%s2 + $0x40] sm:$0xf]
  %v43 = vld [vmem:[%s2 + $0x44] sm:$0xf]
  %v44 = vld [vmem:[%s2 + $0x48] sm:$0xf]
  %v45 = vld [vmem:[%s2 + $0x4c] sm:$0xf]
  %v46 = vld [vmem:[%s2 + $0x50] sm:$0xf]
  %v47 = vld [vmem:[%s2 + $0x54] sm:$0xf]
  %v48 = vld [vmem:[%s2 + $0x58] sm:$0xf]
  %v49 = vld [vmem:[%s2 + $0x5c] sm:$0xf]
  %v50 = vld [vmem:[%s2 + $0x60] sm:$0xf]
  %v51 = vld [vmem:[%s2 + $0x64] sm:$0xf]
  %v52 = vld [vmem:[%s2 + $0x68] sm:$0xf]
  %v53 = vld [vmem:[%s2 + $0x6c] sm:$0xf]
  %v54 = vld [vmem:[%s2 + $0x70] sm:$0xf]
  %v55 = vld [vmem:[%s2 + $0x74] sm:$0xf]
  %v56 = vld [vmem:[%s2 + $0x78] sm:$0xf]
  %v57 = vld [vmem:[%s2 + $0x7c] sm:$0xf]
  %v58 = vld [vmem:[%s2 + $0x80] sm:$0xf]
  %v59 = vld [vmem:[%s2 + $0x84] sm:$0xf]
  %v60 = vld [vmem:[%s2 + $0x88] sm:$0xf]
  %v61 = vld [vmem:[%s2 + $0x8c] sm:$0xf]
  %v62 = vld [vmem:[%s1] sm:$0xff]
  %v63 = vld [vmem:[%s1 + $0x8] sm:$0xff]
  %v64 = vld [vmem:[%s1 + $0x10] sm:$0xff]
  %v65 = vld [vmem:[%s1 + $0x18] sm:$0xff]
  %67 = vset.pattern.permute.xlu0 0
  %68 = vperm.xlu0 %67, %v62
  %v69 = vpop.permute.xlu0 %68
  %72 = vset.pattern.permute.xlu0 0
  %73 = vperm.xlu0 %72, %v63
  %v74 = vpop.permute.xlu0 %73
  %77 = vset.pattern.permute.xlu0 0
  %78 = vperm.xlu0 %77, %v64
  %v79 = vpop.permute.xlu0 %78
  %82 = vset.pattern.permute.xlu0 0
  %83 = vperm.xlu0 %82, %v65
  %v84 = vpop.permute.xlu0 %83
  %v94 = vunpack.c.l.b16 %v18
  %v95 = vunpack.c.h.b16 %v18
  %v96 = vunpack.c.l.b16 %v19
  %v97 = vunpack.c.l.b16 %v20
  %v98 = vunpack.c.h.b16 %v20
  %v99 = vunpack.c.l.b16 %v21
  %v100 = vunpack.c.l.b16 %v22
  %v101 = vunpack.c.h.b16 %v22
  %v102 = vunpack.c.l.b16 %v23
  %v103 = vunpack.c.l.b16 %v24
  %v104 = vunpack.c.h.b16 %v24
  %v105 = vunpack.c.l.b16 %v25
  %v106 = vpack.c.b16 %v97, %v94
  %v107 = vpack.c.b16 %v98, %v95
  %v108 = vpack.c.b16 %v99, %v96
  %v109 = vpack.c.b16 %v103, %v100
  %v110 = vpack.c.b16 %v104, %v101
  %v111 = vpack.c.b16 %v105, %v102
  %v152 = vunpack.c.l.b16 %v26
  %v153 = vunpack.c.l.b16 %v27
  %v154 = vunpack.c.l.b16 %v28
  %v155 = vunpack.c.l.b16 %v29
  %v156 = vunpack.c.l.b16 %v30
  %v157 = vunpack.c.l.b16 %v31
  %v158 = vunpack.c.l.b16 %v32
  %v159 = vunpack.c.l.b16 %v33
  %v160 = vunpack.c.l.b16 %v34
  %v161 = vunpack.c.l.b16 %v35
  %v162 = vunpack.c.l.b16 %v36
  %v163 = vunpack.c.l.b16 %v37
  %v164 = vunpack.c.l.b16 %v38
  %v165 = vunpack.c.l.b16 %v39
  %v166 = vunpack.c.l.b16 %v40
  %v167 = vunpack.c.l.b16 %v41
  %v168 = vunpack.c.l.b16 %v42
  %v169 = vunpack.c.l.b16 %v43
  %v170 = vunpack.c.l.b16 %v44
  %v171 = vunpack.c.l.b16 %v45
  %v172 = vunpack.c.l.b16 %v46
  %v173 = vunpack.c.l.b16 %v47
  %v174 = vunpack.c.l.b16 %v48
  %v175 = vunpack.c.l.b16 %v49
  %v176 = vunpack.c.l.b16 %v50
  %v177 = vunpack.c.l.b16 %v51
  %v178 = vunpack.c.l.b16 %v52
  %v179 = vunpack.c.l.b16 %v53
  %v180 = vunpack.c.l.b16 %v54
  %v181 = vunpack.c.l.b16 %v55
  %v182 = vunpack.c.l.b16 %v56
  %v183 = vunpack.c.l.b16 %v57
  %v184 = vunpack.c.l.b16 %v58
  %v185 = vunpack.c.l.b16 %v59
  %v186 = vunpack.c.l.b16 %v60
  %v187 = vunpack.c.l.b16 %v61
  %v188 = vpack.c.b16 %v153, %v152
  %v189 = vpack.c.b16 %v155, %v154
  %v190 = vpack.c.b16 %v157, %v156
  %v191 = vpack.c.b16 %v159, %v158
  %v192 = vpack.c.b16 %v161, %v160
  %v193 = vpack.c.b16 %v163, %v162
  %v194 = vpack.c.b16 %v165, %v164
  %v195 = vpack.c.b16 %v167, %v166
  %v196 = vpack.c.b16 %v169, %v168
  %v197 = vpack.c.b16 %v171, %v170
  %v198 = vpack.c.b16 %v173, %v172
  %v199 = vpack.c.b16 %v175, %v174
  %v200 = vpack.c.b16 %v177, %v176
  %v201 = vpack.c.b16 %v179, %v178
  %v202 = vpack.c.b16 %v181, %v180
  %v203 = vpack.c.b16 %v183, %v182
  %v204 = vpack.c.b16 %v185, %v184
  %v205 = vpack.c.b16 %v187, %v186
  %vm224 = vcmask 261120
  %v226 = vsel %vm224, %v108, 0
  %v229 = vsel %vm224, %v111, 0
  %231 = vmatprep.subr.bf16.mxu0 0
  %232 = vmatpush1.bf16.msra.mxu0 %v188
  %233 = vmatprep.subr.bf16.mxu0 0
  %234 = vmatpush1.bf16.msra.mxu0 %v189
  %235 = vmatprep.subr.bf16.mxu0 0
  %236 = vmatpush1.bf16.msra.mxu0 %v190
  %237 = vmatprep.subr.bf16.mxu0 0
  %238 = vmatpush1.bf16.msra.mxu0 %v191
  %239 = vmatprep.subr.bf16.mxu0 0
  %240 = vmatpush1.bf16.msra.mxu0 %v192
  %241 = vmatprep.subr.bf16.mxu0 0
  %242 = vmatpush1.bf16.msra.mxu0 %v193
  %243 = vmatprep.subr.bf16.mxu0 0
  %244 = vmatpush1.bf16.msra.mxu0 %v194
  %245 = vmatprep.subr.bf16.mxu0 0
  %246 = vmatpush1.bf16.msra.mxu0 %v195
  %247 = vmatprep.subr.bf16.mxu0 0
  %248 = vmatpush1.bf16.msra.mxu0 %v196
  %249 = vmatprep.subr.bf16.mxu0 0
  %250 = vmatpush1.bf16.msra.mxu0 %v197
  %251 = vmatprep.subr.bf16.mxu0 0
  %252 = vmatpush1.bf16.msra.mxu0 %v198
  %253 = vmatprep.subr.bf16.mxu0 0
  %254 = vmatpush1.bf16.msra.mxu0 %v199
  %255 = vmatprep.subr.bf16.mxu0 0
  %256 = vmatpush1.bf16.msra.mxu0 %v200
  %257 = vmatprep.subr.bf16.mxu0 0
  %258 = vmatpush1.bf16.msra.mxu0 %v201
  %259 = vmatprep.subr.bf16.mxu0 0
  %260 = vmatpush1.bf16.msra.mxu0 %v202
  %261 = vmatprep.subr.bf16.mxu0 0
  %262 = vmatpush1.bf16.msra.mxu0 %v203
  %263 = vmatprep.mubr.bf16.mxu0 %v107
  %264 = vmatmul.mubr.bf16.gmra.mrb[0].mxu0 %v106
  %v265 = vpop.f32.mrb[0].mxu0
  %v266 = vadd.f32 %v69, %v265
  %v267 = vpop.f32.mrb[0].mxu0
  %v268 = vpop.f32.mrb[0].mxu0
  %v269 = vadd.f32 %v74, %v268
  %v270 = vpop.f32.mrb[0].mxu0
  %271 = vmatprep.mubr.bf16.mxu0 %v110
  %272 = vmatmul.mubr.bf16.gmra.mrb[0].mxu0 %v109
  %v273 = vpop.f32.mrb[0].mxu0
  %v274 = vadd.f32 %v79, %v273
  %v275 = vpop.f32.mrb[0].mxu0
  %v276 = vpop.f32.mrb[0].mxu0
  %v277 = vadd.f32 %v84, %v276
  %v278 = vpop.f32.mrb[0].mxu0
  %279 = vdwg.mxu0
  %280 = vmatprep.subr.bf16.mxu0 0
  %281 = vmatpush1.bf16.msra.mxu0 %v204
  %282 = vmatprep.subr.bf16.mxu0 0
  %283 = vmatpush1.bf16.msra.mxu0 %v205
  %284 = vmatprep.subr.bf16.mxu0 0
  %285 = vmatpush1.bf16.msra.mxu0 0
  %286 = vmatprep.subr.bf16.mxu0 0
  %287 = vmatpush1.bf16.msra.mxu0 0
  %288 = vmatprep.subr.bf16.mxu0 0
  %289 = vmatpush1.bf16.msra.mxu0 0
  %290 = vmatprep.subr.bf16.mxu0 0
  %291 = vmatpush1.bf16.msra.mxu0 0
  %292 = vmatprep.subr.bf16.mxu0 0
  %293 = vmatpush1.bf16.msra.mxu0 0
  %294 = vmatprep.subr.bf16.mxu0 0
  %295 = vmatpush1.bf16.msra.mxu0 0
  %296 = vmatprep.subr.bf16.mxu0 0
  %297 = vmatpush1.bf16.msra.mxu0 0
  %298 = vmatprep.subr.bf16.mxu0 0
  %299 = vmatpush1.bf16.msra.mxu0 0
  %300 = vmatprep.subr.bf16.mxu0 0
  %301 = vmatpush1.bf16.msra.mxu0 0
  %302 = vmatprep.subr.bf16.mxu0 0
  %303 = vmatpush1.bf16.msra.mxu0 0
  %304 = vmatprep.subr.bf16.mxu0 0
  %305 = vmatpush1.bf16.msra.mxu0 0
  %306 = vmatprep.subr.bf16.mxu0 0
  %307 = vmatpush1.bf16.msra.mxu0 0
  %308 = vmatprep.subr.bf16.mxu0 0
  %309 = vmatpush1.bf16.msra.mxu0 0
  %310 = vmatprep.subr.bf16.mxu0 0
  %311 = vmatpush1.bf16.msra.mxu0 0
  %312 = vmatprep.mubr.bf16.mxu0 0
  %313 = vmatmul.mubr.bf16.gmra.mrb[0].mxu0 %v226
  %v314 = vpop.f32.mrb[0].mxu0
  %v315 = vadd.f32 %v266, %v314
  %v316 = vpop.f32.mrb[0].mxu0
  %v317 = vpop.f32.mrb[0].mxu0
  %v318 = vadd.f32 %v269, %v317
  %v319 = vpop.f32.mrb[0].mxu0
  %320 = vmatprep.mubr.bf16.mxu0 0
  %321 = vmatmul.mubr.bf16.gmra.mrb[0].mxu0 %v229
  %v322 = vpop.f32.mrb[0].mxu0
  %v323 = vadd.f32 %v274, %v322
  %v324 = vpop.f32.mrb[0].mxu0
  %v325 = vpop.f32.mrb[0].mxu0
  %v326 = vadd.f32 %v277, %v325
  %v327 = vpop.f32.mrb[0].mxu0
  %328 = vdwg.mxu0
  %v329 = vld [vmem:[%s3] sm:$0xf]
  %v330 = vld [vmem:[%s3 + $0x4] sm:$0xf]
  %v331 = vld [vmem:[%s3 + $0x8] sm:$0xf]
  %v332 = vld [vmem:[%s3 + $0xc] sm:$0xf]
  %v333 = vunpack.c.l.bf16 %v329
  %v334 = vunpack.c.l.bf16 %v330
  %v335 = vunpack.c.l.bf16 %v331
  %v336 = vunpack.c.l.bf16 %v332
  %v337 = vadd.f32 %v315, %v333
  %v338 = vadd.f32 %v318, %v334
  %v339 = vadd.f32 %v323, %v335
  %v340 = vadd.f32 %v326, %v336
  %v341 = vmax.f32 %v337, 0.0
  %v342 = vmax.f32 %v338, 0.0
  %v343 = vmax.f32 %v339, 0.0
  %v344 = vmax.f32 %v340, 0.0
  %v345 = vpack.c.bf16 %v342, %v341
  %v346 = vpack.c.bf16 %v344, %v343
  %v349 = vunpack.c.l.b16 %v345
  %v350 = vunpack.c.h.b16 %v345
  %v351 = vunpack.c.l.b16 %v346
  %v352 = vunpack.c.h.b16 %v346
  %v353 = vpack.c.b16 %v349, %v349
  %v354 = vpack.c.b16 %v350, %v350
  %v355 = vpack.c.b16 %v351, %v351
  %v356 = vpack.c.b16 %v352, %v352
  %vm361 = vcmask 142336
  %362 = vst.msk [vmem:[%s4] sm:$0xf] %vm361, %v353
  %363 = vst.msk [vmem:[%s4 + $0x4] sm:$0xf] %vm361, %v354
  %364 = vst.msk [vmem:[%s4 + $0x8] sm:$0xf] %vm361, %v355
  %365 = vst.msk [vmem:[%s4 + $0xc] sm:$0xf] %vm361, %v356
  // Predicated region
  $region18: #{_lambda_.32} parent=0 // pred_check
    _
  $region19: #{_lambda_.32} parent=0 // pred_check_branch
    %367 = sbr.rel (0) target = $region21
  $region20: #{_lambda_.32} parent=0 // pred_region
    _
  $region21: #{_lambda_.32} parent=0 // pred_fallthru
    _
  // Predicated region
  $region22: #{_lambda_.32} parent=0 // pred_check
    _
  $region23: #{_lambda_.32} parent=0 // pred_check_branch
    %369 = sbr.rel (0) target = $region25
  $region24: #{_lambda_.32} parent=0 // pred_region
    _
  $region25: #{_lambda_.32} parent=0 // pred_fallthru
    _

// kernel: _lambda_.33
$region0: #{_lambda_.33}
  #allocation0 [shape = 'u32[]', space=smem, size = 0x4, offset = 0x4, fixed_abs, tag = 'smem constant byte address 0x4 - core index']
  #allocation1 [shape = 'u32[144,128]{1,0:T(1,128)}', space=vmem, size = 0x12000, scoped, tag = 'internal scratch']
  %s0 = inlined_call_operand.vmem [shape: f32[288,2], index: 0, kind: input, shape index: {}]
  %s1 = inlined_call_operand.vmem [shape: f32[32,288], index: 1, kind: input, shape index: {}]
  %s2 = inlined_call_operand.vmem [shape: f32[32,1], index: 2, kind: input, shape index: {}]
  %s3 = inlined_call_operand.vmem [shape: f32[16,32], index: 3, kind: input, shape index: {}]
  %s4 = inlined_call_operand.vmem [shape: f32[16,1], index: 4, kind: input, shape index: {}]
  %s5 = inlined_call_operand.vmem [shape: f32[8,16], index: 5, kind: input, shape index: {}]
  %s6 = inlined_call_operand.vmem [shape: f32[8,1], index: 6, kind: input, shape index: {}]
  %s7 = inlined_call_operand.vmem [shape: f32[4,8], index: 7, kind: input, shape index: {}]
  %s8 = inlined_call_operand.vmem [shape: f32[4,1], index: 8, kind: input, shape index: {}]
  %s9 = inlined_call_operand.vmem [shape: f32[3,4], index: 9, kind: input, shape index: {}]
  %s10 = inlined_call_operand.vmem [shape: f32[3,1], index: 10, kind: input, shape index: {}]
  %s11 = inlined_call_operand.vmem [shape: f32[3,2], index: 11, kind: output, shape index: {}]
  %s12 = sld [smem:[#allocation0]]
  $region54: #{_lambda_.33} parent=0
    _
  %s14 = ssub.s32 1, %s12
  %s15 = scalar_select 0, %s14, %s12
  // Predicated region
  $region2: #{_lambda_.33} parent=0 // pred_check
    _
  $region3: #{_lambda_.33} parent=0 // pred_check_branch
    %17 = sbr.rel (0) target = $region5
  $region4: #{_lambda_.33} parent=0 // pred_region
    _
  $region5: #{_lambda_.33} parent=0 // pred_fallthru
    _
  // Predicated region
  $region6: #{_lambda_.33} parent=0 // pred_check
    _
  $region7: #{_lambda_.33} parent=0 // pred_check_branch
    %19 = sbr.rel (0) target = $region9
  $region8: #{_lambda_.33} parent=0 // pred_region
    _
  $region9: #{_lambda_.33} parent=0 // pred_fallthru
    _
  // Predicated region
  $region10: #{_lambda_.33} parent=0 // pred_check
    _
  $region11: #{_lambda_.33} parent=0 // pred_check_branch
    %21 = sbr.rel (0) target = $region13
  $region12: #{_lambda_.33} parent=0 // pred_region
    _
  $region13: #{_lambda_.33} parent=0 // pred_fallthru
    _
  // Predicated region
  $region14: #{_lambda_.33} parent=0 // pred_check
    _
  $region15: #{_lambda_.33} parent=0 // pred_check_branch
    %23 = sbr.rel (0) target = $region17
  $region16: #{_lambda_.33} parent=0 // pred_region
    _
  $region17: #{_lambda_.33} parent=0 // pred_fallthru
    _
  // Predicated region
  $region18: #{_lambda_.33} parent=0 // pred_check
    _
  $region19: #{_lambda_.33} parent=0 // pred_check_branch
    %25 = sbr.rel (0) target = $region21
  $region20: #{_lambda_.33} parent=0 // pred_region
    _
  $region21: #{_lambda_.33} parent=0 // pred_fallthru
    _
  // Predicated region
  $region22: #{_lambda_.33} parent=0 // pred_check
    _
  $region23: #{_lambda_.33} parent=0 // pred_check_branch
    %27 = sbr.rel (0) target = $region25
  $region24: #{_lambda_.33} parent=0 // pred_region
    _
  $region25: #{_lambda_.33} parent=0 // pred_fallthru
    _
  // Predicated region
  $region26: #{_lambda_.33} parent=0 // pred_check
    _
  $region27: #{_lambda_.33} parent=0 // pred_check_branch
    %29 = sbr.rel (0) target = $region29
  $region28: #{_lambda_.33} parent=0 // pred_region
    _
  $region29: #{_lambda_.33} parent=0 // pred_fallthru
    _
  // Predicated region
  $region30: #{_lambda_.33} parent=0 // pred_check
    _
  $region31: #{_lambda_.33} parent=0 // pred_check_branch
    %31 = sbr.rel (0) target = $region33
  $region32: #{_lambda_.33} parent=0 // pred_region
    _
  $region33: #{_lambda_.33} parent=0 // pred_fallthru
    _
  // Predicated region
  $region34: #{_lambda_.33} parent=0 // pred_check
    _
  $region35: #{_lambda_.33} parent=0 // pred_check_branch
    %33 = sbr.rel (0) target = $region37
  $region36: #{_lambda_.33} parent=0 // pred_region
    _
  $region37: #{_lambda_.33} parent=0 // pred_fallthru
    _
  // Predicated region
  $region38: #{_lambda_.33} parent=0 // pred_check
    _
  $region39: #{_lambda_.33} parent=0 // pred_check_branch
    %35 = sbr.rel (0) target = $region41
  $region40: #{_lambda_.33} parent=0 // pred_region
    _
  $region41: #{_lambda_.33} parent=0 // pred_fallthru
    _
  // Predicated region
  $region42: #{_lambda_.33} parent=0 // pred_check
    _
  $region43: #{_lambda_.33} parent=0 // pred_check_branch
    %37 = sbr.rel (0) target = $region45
  $region44: #{_lambda_.33} parent=0 // pred_region
    _
  $region45: #{_lambda_.33} parent=0 // pred_fallthru
    _
  %v38 = vld [vmem:[%s0] sm:$0xff]
  %v39 = vld [vmem:[%s0 + $0x8] sm:$0xff]
  %v40 = vld [vmem:[%s0 + $0x10] sm:$0xff]
  %v41 = vld [vmem:[%s0 + $0x18] sm:$0xff]
  %v42 = vld [vmem:[%s0 + $0x20] sm:$0xff]
  %v43 = vld [vmem:[%s0 + $0x28] sm:$0xff]
  %v44 = vld [vmem:[%s0 + $0x30] sm:$0xff]
  %v45 = vld [vmem:[%s0 + $0x38] sm:$0xff]
  %v46 = vld [vmem:[%s0 + $0x40] sm:$0xff]
  %v47 = vld [vmem:[%s0 + $0x48] sm:$0xff]
  %v48 = vld [vmem:[%s0 + $0x50] sm:$0xff]
  %v49 = vld [vmem:[%s0 + $0x58] sm:$0xff]
  %v50 = vld [vmem:[%s0 + $0x60] sm:$0xff]
  %v51 = vld [vmem:[%s0 + $0x68] sm:$0xff]
  %v52 = vld [vmem:[%s0 + $0x70] sm:$0xff]
  %v53 = vld [vmem:[%s0 + $0x78] sm:$0xff]
  %v54 = vld [vmem:[%s0 + $0x80] sm:$0xff]
  %v55 = vld [vmem:[%s0 + $0x88] sm:$0xff]
  %v56 = vld [vmem:[%s0 + $0x90] sm:$0xff]
  %v57 = vld [vmem:[%s0 + $0x98] sm:$0xff]
  %v58 = vld [vmem:[%s0 + $0xa0] sm:$0xff]
  %v59 = vld [vmem:[%s0 + $0xa8] sm:$0xff]
  %v60 = vld [vmem:[%s0 + $0xb0] sm:$0xff]
  %v61 = vld [vmem:[%s0 + $0xb8] sm:$0xff]
  %v62 = vld [vmem:[%s0 + $0xc0] sm:$0xff]
  %v63 = vld [vmem:[%s0 + $0xc8] sm:$0xff]
  %v64 = vld [vmem:[%s0 + $0xd0] sm:$0xff]
  %v65 = vld [vmem:[%s0 + $0xd8] sm:$0xff]
  %v66 = vld [vmem:[%s0 + $0xe0] sm:$0xff]
  %v67 = vld [vmem:[%s0 + $0xe8] sm:$0xff]
  %v68 = vld [vmem:[%s0 + $0xf0] sm:$0xff]
  %v69 = vld [vmem:[%s0 + $0xf8] sm:$0xff]
  %v70 = vld [vmem:[%s0 + $0x100] sm:$0xff]
  %v71 = vld [vmem:[%s0 + $0x108] sm:$0xff]
  %v72 = vld [vmem:[%s0 + $0x110] sm:$0xff]
  %v73 = vld [vmem:[%s0 + $0x118] sm:$0xff]
  %v74 = vld [vmem:[%s1] sm:$0xff]
  %v75 = vld [vmem:[%s1 + $0x8] sm:$0xff]
  %v76 = vld [vmem:[%s1 + $0x10] sm:$0xff]
  %v77 = vld [vmem:[%s1 + $0x18] sm:$0xff]
  %v78 = vld [vmem:[%s1 + $0x20] sm:$0xff]
  %v79 = vld [vmem:[%s1 + $0x28] sm:$0xff]
  %v80 = vld [vmem:[%s1 + $0x30] sm:$0xff]
  %v81 = vld [vmem:[%s1 + $0x38] sm:$0xff]
  %v82 = vld [vmem:[%s1 + $0x40] sm:$0xff]
  %v83 = vld [vmem:[%s1 + $0x48] sm:$0xff]
  %v84 = vld [vmem:[%s1 + $0x50] sm:$0xff]
  %v85 = vld [vmem:[%s1 + $0x58] sm:$0xff]
  %v86 = vld [vmem:[%s2] sm:$0xff]
  %v87 = vld [vmem:[%s2 + $0x8] sm:$0xff]
  %v88 = vld [vmem:[%s2 + $0x10] sm:$0xff]
  %v89 = vld [vmem:[%s2 + $0x18] sm:$0xff]
  %91 = vset.pattern.permute.xlu0 0
  %92 = vperm.xlu0 %91, %v86
  %v93 = vpop.permute.xlu0 %92
  %96 = vset.pattern.permute.xlu0 0
  %97 = vperm.xlu0 %96, %v87
  %v98 = vpop.permute.xlu0 %97
  %101 = vset.pattern.permute.xlu0 0
  %102 = vperm.xlu0 %101, %v88
  %v103 = vpop.permute.xlu0 %102
  %106 = vset.pattern.permute.xlu0 0
  %107 = vperm.xlu0 %106, %v89
  %v108 = vpop.permute.xlu0 %107
  %vm110 = vcmask 261120
  %v112 = vsel %vm110, %v76, 0
  %v115 = vsel %vm110, %v79, 0
  %v118 = vsel %vm110, %v82, 0
  %v121 = vsel %vm110, %v85, 0
  %123 = vmatprep.subr.mxu0 0.0
  %124 = vmatpush1.msra.mxu0 %v38
  %125 = vmatprep.subr.mxu0 0.0
  %126 = vmatpush1.msra.mxu0 %v39
  %127 = vmatprep.subr.mxu0 0.0
  %128 = vmatpush1.msra.mxu0 %v40
  %129 = vmatprep.subr.mxu0 0.0
  %130 = vmatpush1.msra.mxu0 %v41
  %131 = vmatprep.subr.mxu0 0.0
  %132 = vmatpush1.msra.mxu0 %v42
  %133 = vmatprep.subr.mxu0 0.0
  %134 = vmatpush1.msra.mxu0 %v43
  %135 = vmatprep.subr.mxu0 0.0
  %136 = vmatpush1.msra.mxu0 %v44
  %137 = vmatprep.subr.mxu0 0.0
  %138 = vmatpush1.msra.mxu0 %v45
  %139 = vmatprep.subr.mxu0 0.0
  %140 = vmatpush1.msra.mxu0 %v46
  %141 = vmatprep.subr.mxu0 0.0
  %142 = vmatpush1.msra.mxu0 %v47
  %143 = vmatprep.subr.mxu0 0.0
  %144 = vmatpush1.msra.mxu0 %v48
  %145 = vmatprep.subr.mxu0 0.0
  %146 = vmatpush1.msra.mxu0 %v49
  %147 = vmatprep.subr.mxu0 0.0
  %148 = vmatpush1.msra.mxu0 %v50
  %149 = vmatprep.subr.mxu0 0.0
  %150 = vmatpush1.msra.mxu0 %v51
  %151 = vmatprep.subr.mxu0 0.0
  %152 = vmatpush1.msra.mxu0 %v52
  %153 = vmatprep.subr.mxu0 0.0
  %154 = vmatpush1.msra.mxu0 %v53
  %155 = vmatprep.subr.mxu0 0.0
  %156 = vmatpush1.msra.mxu0 %v54
  %157 = vmatprep.subr.mxu0 0.0
  %158 = vmatpush1.msra.mxu0 %v55
  %159 = vmatprep.subr.mxu0 0.0
  %160 = vmatpush1.msra.mxu0 %v56
  %161 = vmatprep.subr.mxu0 0.0
  %162 = vmatpush1.msra.mxu0 %v57
  %163 = vmatprep.subr.mxu0 0.0
  %164 = vmatpush1.msra.mxu0 %v58
  %165 = vmatprep.subr.mxu0 0.0
  %166 = vmatpush1.msra.mxu0 %v59
  %167 = vmatprep.subr.mxu0 0.0
  %168 = vmatpush1.msra.mxu0 %v60
  %169 = vmatprep.subr.mxu0 0.0
  %170 = vmatpush1.msra.mxu0 %v61
  %171 = vmatprep.subr.mxu0 0.0
  %172 = vmatpush1.msra.mxu0 %v62
  %173 = vmatprep.subr.mxu0 0.0
  %174 = vmatpush1.msra.mxu0 %v63
  %175 = vmatprep.subr.mxu0 0.0
  %176 = vmatpush1.msra.mxu0 %v64
  %177 = vmatprep.subr.mxu0 0.0
  %178 = vmatpush1.msra.mxu0 %v65
  %179 = vmatprep.subr.mxu0 0.0
  %180 = vmatpush1.msra.mxu0 %v66
  %181 = vmatprep.subr.mxu0 0.0
  %182 = vmatpush1.msra.mxu0 %v67
  %183 = vmatprep.subr.mxu0 0.0
  %184 = vmatpush1.msra.mxu0 %v68
  %185 = vmatprep.subr.mxu0 0.0
  %186 = vmatpush1.msra.mxu0 %v69
  %187 = vmatprep.mubr.f32.mxu0 %v75
  %188 = vmatmul.mubr.f32.gmra.mrb[0].mxu0 %v74
  %v189 = vpop.f32.mrb[0].mxu0
  %v190 = vadd.f32 %v93, %v189
  %v191 = vpop.f32.mrb[0].mxu0
  %192 = vmatprep.mubr.f32.mxu0 %v78
  %193 = vmatmul.mubr.f32.gmra.mrb[0].mxu0 %v77
  %v194 = vpop.f32.mrb[0].mxu0
  %v195 = vadd.f32 %v98, %v194
  %v196 = vpop.f32.mrb[0].mxu0
  %197 = vmatprep.mubr.f32.mxu0 %v81
  %198 = vmatmul.mubr.f32.gmra.mrb[0].mxu0 %v80
  %v199 = vpop.f32.mrb[0].mxu0
  %v200 = vadd.f32 %v103, %v199
  %v201 = vpop.f32.mrb[0].mxu0
  %202 = vmatprep.mubr.f32.mxu0 %v84
  %203 = vmatmul.mubr.f32.gmra.mrb[0].mxu0 %v83
  %v204 = vpop.f32.mrb[0].mxu0
  %v205 = vadd.f32 %v108, %v204
  %v206 = vpop.f32.mrb[0].mxu0
  %207 = vdwg.mxu0
  %208 = vmatprep.subr.mxu0 0.0
  %209 = vmatpush1.msra.mxu0 %v70
  %210 = vmatprep.subr.mxu0 0.0
  %211 = vmatpush1.msra.mxu0 %v71
  %212 = vmatprep.subr.mxu0 0.0
  %213 = vmatpush1.msra.mxu0 %v72
  %214 = vmatprep.subr.mxu0 0.0
  %215 = vmatpush1.msra.mxu0 %v73
  %216 = vmatprep.subr.mxu0 0.0
  %217 = vmatpush1.msra.mxu0 0.0
  %218 = vmatprep.subr.mxu0 0.0
  %219 = vmatpush1.msra.mxu0 0.0
  %220 = vmatprep.subr.mxu0 0.0
  %221 = vmatpush1.msra.mxu0 0.0
  %222 = vmatprep.subr.mxu0 0.0
  %223 = vmatpush1.msra.mxu0 0.0
  %224 = vmatprep.subr.mxu0 0.0
  %225 = vmatpush1.msra.mxu0 0.0
  %226 = vmatprep.subr.mxu0 0.0
  %227 = vmatpush1.msra.mxu0 0.0
  %228 = vmatprep.subr.mxu0 0.0
  %229 = vmatpush1.msra.mxu0 0.0
  %230 = vmatprep.subr.mxu0 0.0
  %231 = vmatpush1.msra.mxu0 0.0
  %232 = vmatprep.subr.mxu0 0.0
  %233 = vmatpush1.msra.mxu0 0.0
  %234 = vmatprep.subr.mxu0 0.0
  %235 = vmatpush1.msra.mxu0 0.0
  %236 = vmatprep.subr.mxu0 0.0
  %237 = vmatpush1.msra.mxu0 0.0
  %238 = vmatprep.subr.mxu0 0.0
  %239 = vmatpush1.msra.mxu0 0.0
  %240 = vmatprep.subr.mxu0 0.0
  %241 = vmatpush1.msra.mxu0 0.0
  %242 = vmatprep.subr.mxu0 0.0
  %243 = vmatpush1.msra.mxu0 0.0
  %244 = vmatprep.subr.mxu0 0.0
  %245 = vmatpush1.msra.mxu0 0.0
  %246 = vmatprep.subr.mxu0 0.0
  %247 = vmatpush1.msra.mxu0 0.0
  %248 = vmatprep.subr.mxu0 0.0
  %249 = vmatpush1.msra.mxu0 0.0
  %250 = vmatprep.subr.mxu0 0.0
  %251 = vmatpush1.msra.mxu0 0.0
  %252 = vmatprep.subr.mxu0 0.0
  %253 = vmatpush1.msra.mxu0 0.0
  %254 = vmatprep.subr.mxu0 0.0
  %255 = vmatpush1.msra.mxu0 0.0
  %256 = vmatprep.subr.mxu0 0.0
  %257 = vmatpush1.msra.mxu0 0.0
  %258 = vmatprep.subr.mxu0 0.0
  %259 = vmatpush1.msra.mxu0 0.0
  %260 = vmatprep.subr.mxu0 0.0
  %261 = vmatpush1.msra.mxu0 0.0
  %262 = vmatprep.subr.mxu0 0.0
  %263 = vmatpush1.msra.mxu0 0.0
  %264 = vmatprep.subr.mxu0 0.0
  %265 = vmatpush1.msra.mxu0 0.0
  %266 = vmatprep.subr.mxu0 0.0
  %267 = vmatpush1.msra.mxu0 0.0
  %268 = vmatprep.subr.mxu0 0.0
  %269 = vmatpush1.msra.mxu0 0.0
  %270 = vmatprep.subr.mxu0 0.0
  %271 = vmatpush1.msra.mxu0 0.0
  %272 = vmatprep.mubr.f32.mxu0 0.0
  %273 = vmatmul.mubr.f32.gmra.mrb[0].mxu0 %v112
  %v274 = vpop.f32.mrb[0].mxu0
  %v275 = vadd.f32 %v190, %v274
  %v276 = vpop.f32.mrb[0].mxu0
  %277 = vmatprep.mubr.f32.mxu0 0.0
  %278 = vmatmul.mubr.f32.gmra.mrb[0].mxu0 %v115
  %v279 = vpop.f32.mrb[0].mxu0
  %v280 = vadd.f32 %v195, %v279
  %v281 = vpop.f32.mrb[0].mxu0
  %282 = vmatprep.mubr.f32.mxu0 0.0
  %283 = vmatmul.mubr.f32.gmra.mrb[0].mxu0 %v118
  %v284 = vpop.f32.mrb[0].mxu0
  %v285 = vadd.f32 %v200, %v284
  %v286 = vpop.f32.mrb[0].mxu0
  %287 = vmatprep.mubr.f32.mxu0 0.0
  %288 = vmatmul.mubr.f32.gmra.mrb[0].mxu0 %v121
  %v289 = vpop.f32.mrb[0].mxu0
  %v290 = vadd.f32 %v205, %v289
  %v291 = vpop.f32.mrb[0].mxu0
  %292 = vdwg.mxu0
  %v293 = vmax.f32 %v275, 0.0
  %v294 = vmax.f32 %v280, 0.0
  %v295 = vmax.f32 %v285, 0.0
  %v296 = vmax.f32 %v290, 0.0
  %v297 = vld [vmem:[%s3] sm:$0xff]
  %v298 = vld [vmem:[%s3 + $0x8] sm:$0xff]
  %v299 = vld [vmem:[%s4] sm:$0xff]
  %v300 = vld [vmem:[%s4 + $0x8] sm:$0xff]
  %302 = vset.pattern.permute.xlu0 0
  %303 = vperm.xlu0 %302, %v299
  %v304 = vpop.permute.xlu0 %303
  %307 = vset.pattern.permute.xlu0 0
  %308 = vperm.xlu0 %307, %v300
  %v309 = vpop.permute.xlu0 %308
  %v312 = vsel %vm110, %v297, 0
  %v315 = vsel %vm110, %v298, 0
  %317 = vmatprep.subr.mxu0 0.0
  %318 = vmatpush1.msra.mxu0 %v293
  %319 = vmatprep.subr.mxu0 0.0
  %320 = vmatpush1.msra.mxu0 %v294
  %321 = vmatprep.subr.mxu0 0.0
  %322 = vmatpush1.msra.mxu0 %v295
  %323 = vmatprep.subr.mxu0 0.0
  %324 = vmatpush1.msra.mxu0 %v296
  %325 = vmatprep.subr.mxu0 0.0
  %326 = vmatpush1.msra.mxu0 0.0
  %327 = vmatprep.subr.mxu0 0.0
  %328 = vmatpush1.msra.mxu0 0.0
  %329 = vmatprep.subr.mxu0 0.0
  %330 = vmatpush1.msra.mxu0 0.0
  %331 = vmatprep.subr.mxu0 0.0
  %332 = vmatpush1.msra.mxu0 0.0
  %333 = vmatprep.subr.mxu0 0.0
  %334 = vmatpush1.msra.mxu0 0.0
  %335 = vmatprep.subr.mxu0 0.0
  %336 = vmatpush1.msra.mxu0 0.0
  %337 = vmatprep.subr.mxu0 0.0
  %338 = vmatpush1.msra.mxu0 0.0
  %339 = vmatprep.subr.mxu0 0.0
  %340 = vmatpush1.msra.mxu0 0.0
  %341 = vmatprep.subr.mxu0 0.0
  %342 = vmatpush1.msra.mxu0 0.0
  %343 = vmatprep.subr.mxu0 0.0
  %344 = vmatpush1.msra.mxu0 0.0
  %345 = vmatprep.subr.mxu0 0.0
  %346 = vmatpush1.msra.mxu0 0.0
  %347 = vmatprep.subr.mxu0 0.0
  %348 = vmatpush1.msra.mxu0 0.0
  %349 = vmatprep.subr.mxu0 0.0
  %350 = vmatpush1.msra.mxu0 0.0
  %351 = vmatprep.subr.mxu0 0.0
  %352 = vmatpush1.msra.mxu0 0.0
  %353 = vmatprep.subr.mxu0 0.0
  %354 = vmatpush1.msra.mxu0 0.0
  %355 = vmatprep.subr.mxu0 0.0
  %356 = vmatpush1.msra.mxu0 0.0
  %357 = vmatprep.subr.mxu0 0.0
  %358 = vmatpush1.msra.mxu0 0.0
  %359 = vmatprep.subr.mxu0 0.0
  %360 = vmatpush1.msra.mxu0 0.0
  %361 = vmatprep.subr.mxu0 0.0
  %362 = vmatpush1.msra.mxu0 0.0
  %363 = vmatprep.subr.mxu0 0.0
  %364 = vmatpush1.msra.mxu0 0.0
  %365 = vmatprep.subr.mxu0 0.0
  %366 = vmatpush1.msra.mxu0 0.0
  %367 = vmatprep.subr.mxu0 0.0
  %368 = vmatpush1.msra.mxu0 0.0
  %369 = vmatprep.subr.mxu0 0.0
  %370 = vmatpush1.msra.mxu0 0.0
  %371 = vmatprep.subr.mxu0 0.0
  %372 = vmatpush1.msra.mxu0 0.0
  %373 = vmatprep.subr.mxu0 0.0
  %374 = vmatpush1.msra.mxu0 0.0
  %375 = vmatprep.subr.mxu0 0.0
  %376 = vmatpush1.msra.mxu0 0.0
  %377 = vmatprep.subr.mxu0 0.0
  %378 = vmatpush1.msra.mxu0 0.0
  %379 = vmatprep.subr.mxu0 0.0
  %380 = vmatpush1.msra.mxu0 0.0
  %381 = vmatprep.mubr.f32.mxu0 0.0
  %382 = vmatmul.mubr.f32.gmra.mrb[0].mxu0 %v312
  %v383 = vpop.f32.mrb[0].mxu0
  %v384 = vadd.f32 %v304, %v383
  %v385 = vpop.f32.mrb[0].mxu0
  %386 = vmatprep.mubr.f32.mxu0 0.0
  %387 = vmatmul.mubr.f32.gmra.mrb[0].mxu0 %v315
  %v388 = vpop.f32.mrb[0].mxu0
  %v389 = vadd.f32 %v309, %v388
  %v390 = vpop.f32.mrb[0].mxu0
  %391 = vdwg.mxu0
  %v392 = vmax.f32 %v384, 0.0
  %v393 = vmax.f32 %v389, 0.0
  %v394 = vld [vmem:[%s5] sm:$0xff]
  %v395 = vld [vmem:[%s6] sm:$0xff]
  %397 = vset.pattern.permute.xlu0 0
  %398 = vperm.xlu0 %397, %v395
  %v399 = vpop.permute.xlu0 %398
  %vm401 = vcmask 130048
  %v403 = vsel %vm401, %v394, 0
  %405 = vmatprep.subr.mxu0 0.0
  %406 = vmatpush1.msra.mxu0 %v392
  %407 = vmatprep.subr.mxu0 0.0
  %408 = vmatpush1.msra.mxu0 %v393
  %409 = vmatprep.subr.mxu0 0.0
  %410 = vmatpush1.msra.mxu0 0.0
  %411 = vmatprep.subr.mxu0 0.0
  %412 = vmatpush1.msra.mxu0 0.0
  %413 = vmatprep.subr.mxu0 0.0
  %414 = vmatpush1.msra.mxu0 0.0
  %415 = vmatprep.subr.mxu0 0.0
  %416 = vmatpush1.msra.mxu0 0.0
  %417 = vmatprep.subr.mxu0 0.0
  %418 = vmatpush1.msra.mxu0 0.0
  %419 = vmatprep.subr.mxu0 0.0
  %420 = vmatpush1.msra.mxu0 0.0
  %421 = vmatprep.subr.mxu0 0.0
  %422 = vmatpush1.msra.mxu0 0.0
  %423 = vmatprep.subr.mxu0 0.0
  %424 = vmatpush1.msra.mxu0 0.0
  %425 = vmatprep.subr.mxu0 0.0
  %426 = vmatpush1.msra.mxu0 0.0
  %427 = vmatprep.subr.mxu0 0.0
  %428 = vmatpush1.msra.mxu0 0.0
  %429 = vmatprep.subr.mxu0 0.0
  %430 = vmatpush1.msra.mxu0 0.0
  %431 = vmatprep.subr.mxu0 0.0
  %432 = vmatpush1.msra.mxu0 0.0
  %433 = vmatprep.subr.mxu0 0.0
  %434 = vmatpush1.msra.mxu0 0.0
  %435 = vmatprep.subr.mxu0 0.0
  %436 = vmatpush1.msra.mxu0 0.0
  %437 = vmatprep.subr.mxu0 0.0
  %438 = vmatpush1.msra.mxu0 0.0
  %439 = vmatprep.subr.mxu0 0.0
  %440 = vmatpush1.msra.mxu0 0.0
  %441 = vmatprep.subr.mxu0 0.0
  %442 = vmatpush1.msra.mxu0 0.0
  %443 = vmatprep.subr.mxu0 0.0
  %444 = vmatpush1.msra.mxu0 0.0
  %445 = vmatprep.subr.mxu0 0.0
  %446 = vmatpush1.msra.mxu0 0.0
  %447 = vmatprep.subr.mxu0 0.0
  %448 = vmatpush1.msra.mxu0 0.0
  %449 = vmatprep.subr.mxu0 0.0
  %450 = vmatpush1.msra.mxu0 0.0
  %451 = vmatprep.subr.mxu0 0.0
  %452 = vmatpush1.msra.mxu0 0.0
  %453 = vmatprep.subr.mxu0 0.0
  %454 = vmatpush1.msra.mxu0 0.0
  %455 = vmatprep.subr.mxu0 0.0
  %456 = vmatpush1.msra.mxu0 0.0
  %457 = vmatprep.subr.mxu0 0.0
  %458 = vmatpush1.msra.mxu0 0.0
  %459 = vmatprep.subr.mxu0 0.0
  %460 = vmatpush1.msra.mxu0 0.0
  %461 = vmatprep.subr.mxu0 0.0
  %462 = vmatpush1.msra.mxu0 0.0
  %463 = vmatprep.subr.mxu0 0.0
  %464 = vmatpush1.msra.mxu0 0.0
  %465 = vmatprep.subr.mxu0 0.0
  %466 = vmatpush1.msra.mxu0 0.0
  %467 = vmatprep.subr.mxu0 0.0
  %468 = vmatpush1.msra.mxu0 0.0
  %469 = vmatprep.mubr.f32.mxu0 0.0
  %470 = vmatmul.mubr.f32.gmra.mrb[0].mxu0 %v403
  %v471 = vpop.f32.mrb[0].mxu0
  %v472 = vadd.f32 %v399, %v471
  %v473 = vpop.f32.mrb[0].mxu0
  %474 = vdwg.mxu0
  %v475 = vmax.f32 %v472, 0.0
  %v476 = vld [vmem:[%s7] sm:$0xf]
  %v477 = vld [vmem:[%s8] sm:$0xf]
  %479 = vset.pattern.permute.xlu0 0
  %480 = vperm.xlu0 %479, %v477
  %v481 = vpop.permute.xlu0 %480
  %vm483 = vcmask 64512
  %v485 = vsel %vm483, %v476, 0
  %487 = vmatprep.subr.mxu0 0.0
  %488 = vmatpush1.msra.mxu0 %v475
  %489 = vmatprep.subr.mxu0 0.0
  %490 = vmatpush1.msra.mxu0 0.0
  %491 = vmatprep.subr.mxu0 0.0
  %492 = vmatpush1.msra.mxu0 0.0
  %493 = vmatprep.subr.mxu0 0.0
  %494 = vmatpush1.msra.mxu0 0.0
  %495 = vmatprep.subr.mxu0 0.0
  %496 = vmatpush1.msra.mxu0 0.0
  %497 = vmatprep.subr.mxu0 0.0
  %498 = vmatpush1.msra.mxu0 0.0
  %499 = vmatprep.subr.mxu0 0.0
  %500 = vmatpush1.msra.mxu0 0.0
  %501 = vmatprep.subr.mxu0 0.0
  %502 = vmatpush1.msra.mxu0 0.0
  %503 = vmatprep.subr.mxu0 0.0
  %504 = vmatpush1.msra.mxu0 0.0
  %505 = vmatprep.subr.mxu0 0.0
  %506 = vmatpush1.msra.mxu0 0.0
  %507 = vmatprep.subr.mxu0 0.0
  %508 = vmatpush1.msra.mxu0 0.0
  %509 = vmatprep.subr.mxu0 0.0
  %510 = vmatpush1.msra.mxu0 0.0
  %511 = vmatprep.subr.mxu0 0.0
  %512 = vmatpush1.msra.mxu0 0.0
  %513 = vmatprep.subr.mxu0 0.0
  %514 = vmatpush1.msra.mxu0 0.0
  %515 = vmatprep.subr.mxu0 0.0
  %516 = vmatpush1.msra.mxu0 0.0
  %517 = vmatprep.subr.mxu0 0.0
  %518 = vmatpush1.msra.mxu0 0.0
  %519 = vmatprep.subr.mxu0 0.0
  %520 = vmatpush1.msra.mxu0 0.0
  %521 = vmatprep.subr.mxu0 0.0
  %522 = vmatpush1.msra.mxu0 0.0
  %523 = vmatprep.subr.mxu0 0.0
  %524 = vmatpush1.msra.mxu0 0.0
  %525 = vmatprep.subr.mxu0 0.0
  %526 = vmatpush1.msra.mxu0 0.0
  %527 = vmatprep.subr.mxu0 0.0
  %528 = vmatpush1.msra.mxu0 0.0
  %529 = vmatprep.subr.mxu0 0.0
  %530 = vmatpush1.msra.mxu0 0.0
  %531 = vmatprep.subr.mxu0 0.0
  %532 = vmatpush1.msra.mxu0 0.0
  %533 = vmatprep.subr.mxu0 0.0
  %534 = vmatpush1.msra.mxu0 0.0
  %535 = vmatprep.subr.mxu0 0.0
  %536 = vmatpush1.msra.mxu0 0.0
  %537 = vmatprep.subr.mxu0 0.0
  %538 = vmatpush1.msra.mxu0 0.0
  %539 = vmatprep.subr.mxu0 0.0
  %540 = vmatpush1.msra.mxu0 0.0
  %541 = vmatprep.subr.mxu0 0.0
  %542 = vmatpush1.msra.mxu0 0.0
  %543 = vmatprep.subr.mxu0 0.0
  %544 = vmatpush1.msra.mxu0 0.0
  %545 = vmatprep.subr.mxu0 0.0
  %546 = vmatpush1.msra.mxu0 0.0
  %547 = vmatprep.subr.mxu0 0.0
  %548 = vmatpush1.msra.mxu0 0.0
  %549 = vmatprep.subr.mxu0 0.0
  %550 = vmatpush1.msra.mxu0 0.0
  %551 = vmatprep.mubr.f32.mxu0 0.0
  %552 = vmatmul.mubr.f32.gmra.mrb[0].mxu0 %v485
  %v553 = vpop.f32.mrb[0].mxu0
  %v554 = vadd.f32 %v481, %v553
  %v555 = vpop.f32.mrb[0].mxu0
  %556 = vdwg.mxu0
  %v557 = vmax.f32 %v554, 0.0
  %v558 = vld [vmem:[%s9] sm:$0x7]
  %v559 = vld [vmem:[%s10] sm:$0x7]
  %561 = vset.pattern.permute.xlu0 0
  %562 = vperm.xlu0 %561, %v559
  %v563 = vpop.permute.xlu0 %562
  %vm565 = vcmask 31744
  %v567 = vsel %vm565, %v558, 0
  %vm569 = vcmask 1043456
  %v571 = vsel %vm569, %v557, 0
  %573 = vmatprep.subr.mxu0 0.0
  %574 = vmatpush1.msra.mxu0 %v571
  %575 = vmatprep.subr.mxu0 0.0
  %576 = vmatpush1.msra.mxu0 0.0
  %577 = vmatprep.subr.mxu0 0.0
  %578 = vmatpush1.msra.mxu0 0.0
  %579 = vmatprep.subr.mxu0 0.0
  %580 = vmatpush1.msra.mxu0 0.0
  %581 = vmatprep.subr.mxu0 0.0
  %582 = vmatpush1.msra.mxu0 0.0
  %583 = vmatprep.subr.mxu0 0.0
  %584 = vmatpush1.msra.mxu0 0.0
  %585 = vmatprep.subr.mxu0 0.0
  %586 = vmatpush1.msra.mxu0 0.0
  %587 = vmatprep.subr.mxu0 0.0
  %588 = vmatpush1.msra.mxu0 0.0
  %589 = vmatprep.subr.mxu0 0.0
  %590 = vmatpush1.msra.mxu0 0.0
  %591 = vmatprep.subr.mxu0 0.0
  %592 = vmatpush1.msra.mxu0 0.0
  %593 = vmatprep.subr.mxu0 0.0
  %594 = vmatpush1.msra.mxu0 0.0
  %595 = vmatprep.subr.mxu0 0.0
  %596 = vmatpush1.msra.mxu0 0.0
  %597 = vmatprep.subr.mxu0 0.0
  %598 = vmatpush1.msra.mxu0 0.0
  %599 = vmatprep.subr.mxu0 0.0
  %600 = vmatpush1.msra.mxu0 0.0
  %601 = vmatprep.subr.mxu0 0.0
  %602 = vmatpush1.msra.mxu0 0.0
  %603 = vmatprep.subr.mxu0 0.0
  %604 = vmatpush1.msra.mxu0 0.0
  %605 = vmatprep.subr.mxu0 0.0
  %606 = vmatpush1.msra.mxu0 0.0
  %607 = vmatprep.subr.mxu0 0.0
  %608 = vmatpush1.msra.mxu0 0.0
  %609 = vmatprep.subr.mxu0 0.0
  %610 = vmatpush1.msra.mxu0 0.0
  %611 = vmatprep.subr.mxu0 0.0
  %612 = vmatpush1.msra.mxu0 0.0
  %613 = vmatprep.subr.mxu0 0.0
  %614 = vmatpush1.msra.mxu0 0.0
  %615 = vmatprep.subr.mxu0 0.0
  %616 = vmatpush1.msra.mxu0 0.0
  %617 = vmatprep.subr.mxu0 0.0
  %618 = vmatpush1.msra.mxu0 0.0
  %619 = vmatprep.subr.mxu0 0.0
  %620 = vmatpush1.msra.mxu0 0.0
  %621 = vmatprep.subr.mxu0 0.0
  %622 = vmatpush1.msra.mxu0 0.0
  %623 = vmatprep.subr.mxu0 0.0
  %624 = vmatpush1.msra.mxu0 0.0
  %625 = vmatprep.subr.mxu0 0.0
  %626 = vmatpush1.msra.mxu0 0.0
  %627 = vmatprep.subr.mxu0 0.0
  %628 = vmatpush1.msra.mxu0 0.0
  %629 = vmatprep.subr.mxu0 0.0
  %630 = vmatpush1.msra.mxu0 0.0
  %631 = vmatprep.subr.mxu0 0.0
  %632 = vmatpush1.msra.mxu0 0.0
  %633 = vmatprep.subr.mxu0 0.0
  %634 = vmatpush1.msra.mxu0 0.0
  %635 = vmatprep.subr.mxu0 0.0
  %636 = vmatpush1.msra.mxu0 0.0
  %637 = vmatprep.mubr.f32.mxu0 0.0
  %638 = vmatmul.mubr.f32.gmra.mrb[0].mxu0 %v567
  %v639 = vpop.f32.mrb[0].mxu0
  %v640 = vadd.f32 %v563, %v639
  %v641 = vpop.f32.mrb[0].mxu0
  %642 = vdwg.mxu0
  %vm643 = vcmask 10240
  %644 = vst.msk [vmem:[%s11] sm:$0x7] %vm643, %v640
  // Predicated region
  $region46: #{_lambda_.33} parent=0 // pred_check
    _
  $region47: #{_lambda_.33} parent=0 // pred_check_branch
    %646 = sbr.rel (0) target = $region49
  $region48: #{_lambda_.33} parent=0 // pred_region
    _
  $region49: #{_lambda_.33} parent=0 // pred_fallthru
    _
  // Predicated region
  $region50: #{_lambda_.33} parent=0 // pred_check
    _
  $region51: #{_lambda_.33} parent=0 // pred_check_branch
    %648 = sbr.rel (0) target = $region53
  $region52: #{_lambda_.33} parent=0 // pred_region
    _
  $region53: #{_lambda_.33} parent=0 // pred_fallthru
    _

</llo_original>
